<compile_context>
chip_gen: v7x
topology: tpu7x:2x2x1
jax: 0.10.0
libtpu: 0.0.40
codegen_flags: <defaults>
</compile_context>

<pallas_src>
import functools

import numpy as np
import jax
import jax.numpy as jnp
from jax.experimental import pallas as pl
from jax.experimental.pallas import tpu as pltpu


# ----------------------------- helpers (usable inside kernels) -----------------------------

def _layernorm(x, gamma, beta, eps=1e-5):
    mu = jnp.mean(x, axis=-1, keepdims=True)
    var = jnp.mean((x - mu) ** 2, axis=-1, keepdims=True)
    return (x - mu) * jax.lax.rsqrt(var + eps) * gamma + beta


# ----------------------------------------- Pallas kernels ----------------------------------

def window_attention_kernel(num_heads, head_dim, compute_dtype,
                            x_ref, g1_ref, b1_ref,
                            wqkv_ref, bqkv_ref, wp_ref, bp_ref,
                            bm_ref, o_ref):
    # x_ref: (Wb, L, C) -- all windows of one image per grid step (Wb*L rows for the MXU).
    Wb, L, C = x_ref.shape

    # fused norm1 (commutes with the roll / window-partition done in the wrapper), f32
    xn = _layernorm(x_ref[...], g1_ref[...], b1_ref[...])
    x2 = xn.reshape(Wb * L, C).astype(compute_dtype)

    # fused QKV projection: one (Wb*L, C) x (C, 3C) matmul; scale folded into q weight/bias.
    qkv = jnp.dot(x2, wqkv_ref[...], preferred_element_type=jnp.float32) + bqkv_ref[...]

    wp = wp_ref[...]                       # (C, C), compute_dtype
    bm = bm_ref[...]                       # (nH, Wb, L, L), f32 (rel-pos bias + shift mask)
    acc = jnp.zeros((Wb * L, C), jnp.float32)

    for h in range(num_heads):             # static loop over heads
        qh = qkv[:, h * head_dim:(h + 1) * head_dim]
        kh = qkv[:, C + h * head_dim:C + (h + 1) * head_dim]
        vh = qkv[:, 2 * C + h * head_dim:2 * C + (h + 1) * head_dim]
        qh = qh.reshape(Wb, L, head_dim).astype(compute_dtype)
        kh = kh.reshape(Wb, L, head_dim).astype(compute_dtype)
        vh = vh.reshape(Wb, L, head_dim).astype(compute_dtype)

        s = jnp.einsum('bld,bmd->blm', qh, kh,
                       preferred_element_type=jnp.float32)           # (Wb, L, L)
        s = s + bm[h]
        s = s - jnp.max(s, axis=-1, keepdims=True)
        p = jnp.exp(s)
        p = p * pl.reciprocal(jnp.sum(p, axis=-1, keepdims=True), approx=True)

        oh = jnp.einsum('blm,bmd->bld', p.astype(compute_dtype), vh,
                        preferred_element_type=jnp.float32)          # (Wb, L, Dh)
        # accumulate through the matching slice of the output projection (no concat)
        acc = acc + jnp.dot(oh.reshape(Wb * L, head_dim).astype(compute_dtype),
                            wp[h * head_dim:(h + 1) * head_dim, :],
                            preferred_element_type=jnp.float32)

    y = acc + bp_ref[...]
    o_ref[...] = y.reshape(Wb, L, C).astype(o_ref.dtype)


def ln_mlp_residual_kernel(compute_dtype,
                           x_ref, attn_ref, g1_ref, b1_ref, g2_ref, b2_ref,
                           w1_ref, bb1_ref, w2_ref, bb2_ref, o_ref):
    # y = norm1(x) + attn ; out = y + MLP(norm2(y))
    # norm1 is recomputed here (cheap) instead of round-tripping the normalized tensor via HBM.
    xn = _layernorm(x_ref[...], g1_ref[...], b1_ref[...])
    y = xn + attn_ref[...]
    yn = _layernorm(y, g2_ref[...], b2_ref[...])
    h = jnp.dot(yn.astype(compute_dtype), w1_ref[...],
                preferred_element_type=jnp.float32) + bb1_ref[...]
    h = jax.nn.gelu(h, approximate=False)                            # f32 element-wise
    m = jnp.dot(h.astype(compute_dtype), w2_ref[...],
                preferred_element_type=jnp.float32) + bb2_ref[...]
    o_ref[...] = (y + m).astype(o_ref.dtype)


# --------------------------------------------- wrappers -------------------------------------

def window_attention_pallas(xw, params, bias_mask, num_heads, compute_dtype):
    NWB, L, C = xw.shape                       # NWB = B * nW
    nH, nW = bias_mask.shape[0], bias_mask.shape[1]
    assert NWB % nW == 0
    B = NWB // nW
    head_dim = C // num_heads
    kernel = functools.partial(window_attention_kernel, num_heads, head_dim, compute_dtype)
    return pl.pallas_call(
        kernel,
        out_shape=jax.ShapeDtypeStruct((NWB, L, C), xw.dtype),
        grid=(B,),
        in_specs=[
            pl.BlockSpec((nW, L, C), lambda b: (b, 0, 0)),            # all windows of image b
            pl.BlockSpec((1, C), lambda b: (0, 0)),                   # gamma1
            pl.BlockSpec((1, C), lambda b: (0, 0)),                   # beta1
            pl.BlockSpec((C, 3 * C), lambda b: (0, 0)),               # fused wqkv (bf16, scaled)
            pl.BlockSpec((1, 3 * C), lambda b: (0, 0)),               # fused bqkv (f32, scaled)
            pl.BlockSpec((C, C), lambda b: (0, 0)),                   # wp (bf16)
            pl.BlockSpec((1, C), lambda b: (0, 0)),                   # bp
            pl.BlockSpec((nH, nW, L, L), lambda b: (0, 0, 0, 0)),     # rel-pos bias + shift mask
        ],
        out_specs=pl.BlockSpec((nW, L, C), lambda b: (b, 0, 0)),
        compiler_params=pltpu.CompilerParams(dimension_semantics=("parallel",)),
    )(xw,
      params['g1'].reshape(1, C), params['b1'].reshape(1, C),
      params['wqkv'], params['bqkv'].reshape(1, 3 * C),
      params['wp'], params['bp'].reshape(1, C),
      bias_mask)


def ln_mlp_residual_pallas(x2d, attn2d, params, compute_dtype, tm=256):
    N, C = x2d.shape
    Hd = params['w1'].shape[1]
    tm = min(tm, N)
    assert N % tm == 0
    kernel = functools.partial(ln_mlp_residual_kernel, compute_dtype)
    return pl.pallas_call(
        kernel,
        out_shape=jax.ShapeDtypeStruct((N, C), x2d.dtype),
        grid=(N // tm,),
        in_specs=[
            pl.BlockSpec((tm, C), lambda i: (i, 0)),          # raw x rows
            pl.BlockSpec((tm, C), lambda i: (i, 0)),          # attention branch rows
            pl.BlockSpec((1, C), lambda i: (0, 0)),           # gamma1
            pl.BlockSpec((1, C), lambda i: (0, 0)),           # beta1
            pl.BlockSpec((1, C), lambda i: (0, 0)),           # gamma2
            pl.BlockSpec((1, C), lambda i: (0, 0)),           # beta2
            pl.BlockSpec((C, Hd), lambda i: (0, 0)),          # w1 (bf16)
            pl.BlockSpec((1, Hd), lambda i: (0, 0)),          # b1
            pl.BlockSpec((Hd, C), lambda i: (0, 0)),          # w2 (bf16)
            pl.BlockSpec((1, C), lambda i: (0, 0)),           # b2
        ],
        out_specs=pl.BlockSpec((tm, C), lambda i: (i, 0)),
        compiler_params=pltpu.CompilerParams(dimension_semantics=("parallel",)),
    )(x2d, attn2d,
      params['g1'].reshape(1, C), params['b1'].reshape(1, C),
      params['g2'].reshape(1, C), params['b2'].reshape(1, C),
      params['w1'], params['bb1'].reshape(1, Hd),
      params['w2'], params['bb2'].reshape(1, C))


# ---------------------------------- windowing glue (pure reshapes) --------------------------

def window_partition(x, ws0, ws1):
    B, H, W, C = x.shape
    x = x.reshape(B, H // ws0, ws0, W // ws1, ws1, C)
    x = jnp.transpose(x, (0, 1, 3, 2, 4, 5))
    return x.reshape(-1, ws0 * ws1, C)


def window_reverse(win, B, H, W, ws0, ws1):
    C = win.shape[-1]
    x = win.reshape(B, H // ws0, W // ws1, ws0, ws1, C)
    x = jnp.transpose(x, (0, 1, 3, 2, 4, 5))
    return x.reshape(B, H, W, C)


def build_attn_mask(H, W, window_size, shift_size):
    ws0, ws1 = window_size
    s0, s1 = shift_size
    img = np.zeros((1, H, W, 1), np.float32)
    h_slices = (slice(0, -ws0), slice(-ws0, -s0), slice(-s0, None))
    w_slices = (slice(0, -ws1), slice(-ws1, -s1), slice(-s1, None))
    cnt = 0
    for hs in wsl_list(h_slices):
        for wsl in wsl_list(w_slices):
            img[:, hs, wsl, :] = cnt
            cnt += 1
    mw = img.reshape(1, H // ws0, ws0, W // ws1, ws1, 1)
    mw = mw.transpose(0, 1, 3, 2, 4, 5).reshape(-1, ws0 * ws1)
    am = mw[:, None, :] - mw[:, :, None]
    am = np.where(am != 0, -100.0, 0.0).astype(np.float32)
    return jnp.asarray(am)                                            # (nW, L, L)


def wsl_list(slices):
    return list(slices)


def build_rel_pos_bias(table, window_size, num_heads):
    Wh, Ww = window_size
    coords = np.stack(np.meshgrid(np.arange(Wh), np.arange(Ww), indexing='ij'))
    cf = coords.reshape(2, -1)
    rel = cf[:, :, None] - cf[:, None, :]
    rel = rel.transpose(1, 2, 0).copy()
    rel[:, :, 0] += Wh - 1
    rel[:, :, 1] += Ww - 1
    rel[:, :, 0] *= 2 * Ww - 1
    idx = rel.sum(-1).reshape(-1)                                     # (L*L,)
    bias = jnp.take(table, jnp.asarray(idx), axis=0)                  # (L*L, nH)
    L = Wh * Ww
    return jnp.transpose(bias.reshape(L, L, num_heads), (2, 0, 1))    # (nH, L, L)


def build_bias_mask(rel_table, window_size, shift_size, H, W, num_heads):
    ws0, ws1 = window_size
    L = ws0 * ws1
    nW = (H // ws0) * (W // ws1)
    bias = build_rel_pos_bias(rel_table, window_size, num_heads)      # (nH, L, L)
    if shift_size is not None:
        mask = build_attn_mask(H, W, window_size, shift_size)         # (nW, L, L)
    else:
        mask = jnp.zeros((nW, L, L), jnp.float32)
    return (bias[:, None, :, :] + mask[None, :, :, :]).astype(jnp.float32)   # (nH, nW, L, L)


# ------------------------------------------ parameter prep ----------------------------------

def prepare_kernel_params(raw, num_heads, compute_dtype=jnp.bfloat16):
    """Fold the attention scale into the q-slice of the fused qkv weight/bias (once), and
    cast matmul weights to the MXU compute dtype.  Biases / LN params stay f32."""
    C = raw['wqkv'].shape[0]
    Dh = C // num_heads
    scale = Dh ** (-0.5)
    col_scale = jnp.concatenate([jnp.full((C,), scale, jnp.float32),
                                 jnp.ones((2 * C,), jnp.float32)])
    wqkv = raw['wqkv'].astype(jnp.float32) * col_scale[None, :]
    bqkv = raw['bqkv'].astype(jnp.float32) * col_scale
    return dict(
        g1=raw['g1'], b1=raw['b1'], g2=raw['g2'], b2=raw['b2'],
        wqkv=wqkv.astype(compute_dtype), bqkv=bqkv,
        wp=raw['wp'].astype(compute_dtype), bp=raw['bp'].astype(jnp.float32),
        w1=raw['w1'].astype(compute_dtype), bb1=raw['bb1'].astype(jnp.float32),
        w2=raw['w2'].astype(compute_dtype), bb2=raw['bb2'].astype(jnp.float32),
    )


# ----------------------------------------- SwinBlock ---------------------------------------

def swin_block_forward(x, kparams, cfg):
    B, H, W, C = x.shape
    ws0, ws1 = cfg['window_size']
    shift = cfg['shift_size']

    # cyclic shift + window partition on the RAW input (norm1 is fused into the kernels and
    # commutes with these pure token permutations).
    if shift is not None:
        sx = jnp.roll(x, shift=(-shift[0], -shift[1]), axis=(1, 2))
    else:
        sx = x
    xw = window_partition(sx, ws0, ws1)                               # (B*nW, L, C)

    # fused norm1 + window attention (Pallas), all windows of one image per grid step
    attn_w = window_attention_pallas(xw, kparams, cfg['bias_mask'],
                                     cfg['num_heads'], cfg['compute_dtype'])

    # window reverse + shift back (glue)
    attn = window_reverse(attn_w, B, H, W, ws0, ws1)
    if shift is not None:
        attn = jnp.roll(attn, shift=(shift[0], shift[1]), axis=(1, 2))

    # fused norm1 + residual + norm2 + MLP + residual (Pallas)
    out = ln_mlp_residual_pallas(x.reshape(-1, C), attn.reshape(-1, C), kparams,
                                 cfg['compute_dtype'], tm=cfg.get('tm', 256))
    return out.reshape(B, H, W, C)


# ------------------------------------- pure-JAX reference ----------------------------------

def reference_forward(x, raw, cfg):
    B, H, W, C = x.shape
    ws0, ws1 = cfg['window_size']
    shift = cfg['shift_size']
    nH = cfg['num_heads']
    Dh = C // nH
    scale = Dh ** (-0.5)
    L = ws0 * ws1

    xn = _layernorm(x, raw['g1'], raw['b1'])                          # x := norm1(x), as in spec
    sx = jnp.roll(xn, shift=(-shift[0], -shift[1]), axis=(1, 2)) if shift is not None else xn
    xw = window_partition(sx, ws0, ws1)
    NW = xw.shape[0]

    qkv = xw @ raw['wqkv'] + raw['bqkv']
    q, k, v = qkv[..., :C], qkv[..., C:2 * C], qkv[..., 2 * C:]
    qh = jnp.transpose(q.reshape(NW, L, nH, Dh), (0, 2, 1, 3)) * scale
    kh = jnp.transpose(k.reshape(NW, L, nH, Dh), (0, 2, 1, 3))
    vh = jnp.transpose(v.reshape(NW, L, nH, Dh), (0, 2, 1, 3))
    s = jnp.einsum('nhld,nhmd->nhlm', qh, kh)                         # (NW, nH, L, L)
    bm = jnp.transpose(cfg['bias_mask'], (1, 0, 2, 3))                # (nW, nH, L, L)
    nW = bm.shape[0]
    s = s + jnp.tile(bm, (NW // nW, 1, 1, 1))
    p = jax.nn.softmax(s, axis=-1)
    o = jnp.einsum('nhlm,nhmd->nhld', p, vh)
    o = jnp.transpose(o, (0, 2, 1, 3)).reshape(NW, L, C)
    o = o @ raw['wp'] + raw['bp']

    attn = window_reverse(o, B, H, W, ws0, ws1)
    if shift is not None:
        attn = jnp.roll(attn, shift=(shift[0], shift[1]), axis=(1, 2))

    y = xn + attn
    yn = _layernorm(y, raw['g2'], raw['b2'])
    h = jax.nn.gelu(yn @ raw['w1'] + raw['bb1'], approximate=False)
    return y + h @ raw['w2'] + raw['bb2']


# --------------------------------------------- main ----------------------------------------

if __name__ == "__main__":
    B, H, W, C = 2, 16, 16, 32
    num_heads = 4
    window_size = (4, 4)
    shift_size = (2, 2)
    hidden = 4 * C

    key = jax.random.PRNGKey(0)
    ks = jax.random.split(key, 12)

    def rnd(k, shape, std=0.02):
        return (std * jax.random.normal(k, shape)).astype(jnp.float32)

    raw_params = dict(
        g1=jnp.ones((C,), jnp.float32), b1=jnp.zeros((C,), jnp.float32),
        g2=jnp.ones((C,), jnp.float32), b2=jnp.zeros((C,), jnp.float32),
        wqkv=rnd(ks[0], (C, 3 * C)), bqkv=rnd(ks[1], (3 * C,)),
        wp=rnd(ks[2], (C, C)), bp=rnd(ks[3], (C,)),
        w1=rnd(ks[4], (C, hidden)), bb1=rnd(ks[5], (hidden,)),
        w2=rnd(ks[6], (hidden, C)), bb2=rnd(ks[7], (C,)),
    )
    rel_table = rnd(ks[8], ((2 * window_size[0] - 1) * (2 * window_size[1] - 1), num_heads))

    cfg = dict(
        window_size=window_size,
        shift_size=shift_size,
        num_heads=num_heads,
        bias_mask=build_bias_mask(rel_table, window_size, shift_size, H, W, num_heads),
        compute_dtype=jnp.bfloat16,     # MXU operands; f32 accumulation + f32 LN/softmax/GELU
        tm=256,
    )

    kparams = prepare_kernel_params(raw_params, num_heads, compute_dtype=cfg['compute_dtype'])

    x = jax.random.normal(ks[9], (B, H, W, C), jnp.float32)

    y = swin_block_forward(x, kparams, cfg)
    y = jax.block_until_ready(y)

    y_ref = reference_forward(x, raw_params, cfg)
    np.testing.assert_allclose(np.asarray(y), np.asarray(y_ref), rtol=2e-2, atol=2e-2)

    print("KERNEL_OK")
</pallas_src>

<mosaic_0001>
module attributes {stable_mosaic.version = 11 : i64} {
  func.func @window_attention_kernel(%arg0: i32, %arg1: memref<16x16x32xf32, #tpu.memory_space<vmem>>, %arg2: memref<1x32xf32, #tpu.memory_space<vmem>>, %arg3: memref<1x32xf32, #tpu.memory_space<vmem>>, %arg4: memref<32x96xbf16, #tpu.memory_space<vmem>>, %arg5: memref<1x96xf32, #tpu.memory_space<vmem>>, %arg6: memref<32x32xbf16, #tpu.memory_space<vmem>>, %arg7: memref<1x32xf32, #tpu.memory_space<vmem>>, %arg8: memref<4x16x16x16xf32, #tpu.memory_space<vmem>>, %arg9: memref<16x16x32xf32, #tpu.memory_space<vmem>>) attributes {dimension_semantics = [#tpu.dimension_semantics<parallel>], iteration_bounds = array<i64: 2>, scalar_prefetch = 0 : i64, scratch_operands = 0 : i64, tpu.core_type = #tpu.core_type<tc>, window_params = [{transform_indices = @transform_0, window_bounds = array<i64: 16, 16, 32>}, {pipeline_mode = #tpu.pipeline_mode<synchronous>, transform_indices = @transform_1, window_bounds = array<i64: 1, 32>}, {pipeline_mode = #tpu.pipeline_mode<synchronous>, transform_indices = @transform_2, window_bounds = array<i64: 1, 32>}, {pipeline_mode = #tpu.pipeline_mode<synchronous>, transform_indices = @transform_3, window_bounds = array<i64: 32, 96>}, {pipeline_mode = #tpu.pipeline_mode<synchronous>, transform_indices = @transform_4, window_bounds = array<i64: 1, 96>}, {pipeline_mode = #tpu.pipeline_mode<synchronous>, transform_indices = @transform_5, window_bounds = array<i64: 32, 32>}, {pipeline_mode = #tpu.pipeline_mode<synchronous>, transform_indices = @transform_6, window_bounds = array<i64: 1, 32>}, {pipeline_mode = #tpu.pipeline_mode<synchronous>, transform_indices = @transform_7, window_bounds = array<i64: 4, 16, 16, 16>}, {transform_indices = @transform_8, window_bounds = array<i64: 16, 16, 32>}]} {
    %c0 = arith.constant 0 : index
    %c0_0 = arith.constant 0 : index
    %c0_1 = arith.constant 0 : index
    %0 = vector.load %arg1[%c0, %c0_0, %c0_1] : memref<16x16x32xf32, #tpu.memory_space<vmem>>, vector<16x16x32xf32>
    %c0_2 = arith.constant 0 : index
    %c0_3 = arith.constant 0 : index
    %1 = vector.load %arg2[%c0_2, %c0_3] : memref<1x32xf32, #tpu.memory_space<vmem>>, vector<1x32xf32>
    %c0_4 = arith.constant 0 : index
    %c0_5 = arith.constant 0 : index
    %2 = vector.load %arg3[%c0_4, %c0_5] : memref<1x32xf32, #tpu.memory_space<vmem>>, vector<1x32xf32>
    %cst = arith.constant dense<0.000000e+00> : vector<16x16xf32>
    %3 = vector.multi_reduction <add>, %0, %cst [2] : vector<16x16x32xf32> to vector<16x16xf32>
    %4 = vector.shape_cast %3 : vector<16x16xf32> to vector<16x16x1xf32>
    %cst_6 = arith.constant 3.200000e+01 : f32
    %5 = vector.broadcast %cst_6 : f32 to vector<16x16x1xf32>
    %6 = arith.divf %4, %5 : vector<16x16x1xf32>
    %7 = vector.broadcast %6 : vector<16x16x1xf32> to vector<16x16x32xf32>
    %8 = arith.subf %0, %7 : vector<16x16x32xf32>
    %9 = arith.mulf %8, %8 : vector<16x16x32xf32>
    %cst_7 = arith.constant dense<0.000000e+00> : vector<16x16xf32>
    %10 = vector.multi_reduction <add>, %9, %cst_7 [2] : vector<16x16x32xf32> to vector<16x16xf32>
    %11 = vector.shape_cast %10 : vector<16x16xf32> to vector<16x16x1xf32>
    %cst_8 = arith.constant 3.200000e+01 : f32
    %12 = vector.broadcast %cst_8 : f32 to vector<16x16x1xf32>
    %13 = arith.divf %11, %12 : vector<16x16x1xf32>
    %14 = vector.broadcast %6 : vector<16x16x1xf32> to vector<16x16x32xf32>
    %15 = arith.subf %0, %14 : vector<16x16x32xf32>
    %cst_9 = arith.constant 9.99999974E-6 : f32
    %16 = vector.broadcast %cst_9 : f32 to vector<16x16x1xf32>
    %17 = arith.addf %13, %16 : vector<16x16x1xf32>
    %18 = math.rsqrt %17 : vector<16x16x1xf32>
    %19 = vector.broadcast %18 : vector<16x16x1xf32> to vector<16x16x32xf32>
    %20 = arith.mulf %15, %19 : vector<16x16x32xf32>
    %21 = vector.shape_cast %1 : vector<1x32xf32> to vector<1x1x32xf32>
    %22 = vector.broadcast %21 : vector<1x1x32xf32> to vector<16x16x32xf32>
    %23 = arith.mulf %20, %22 : vector<16x16x32xf32>
    %24 = vector.shape_cast %2 : vector<1x32xf32> to vector<1x1x32xf32>
    %25 = vector.broadcast %24 : vector<1x1x32xf32> to vector<16x16x32xf32>
    %26 = arith.addf %23, %25 : vector<16x16x32xf32>
    %27 = vector.shape_cast %26 : vector<16x16x32xf32> to vector<256x32xf32>
    %28 = arith.truncf %27 : vector<256x32xf32> to vector<256x32xbf16>
    %c0_10 = arith.constant 0 : index
    %c0_11 = arith.constant 0 : index
    %29 = vector.load %arg4[%c0_10, %c0_11] : memref<32x96xbf16, #tpu.memory_space<vmem>>, vector<32x96xbf16>
    %cst_12 = arith.constant dense<0.000000e+00> : vector<256x96xf32>
    %30 = tpu.matmul %28, %29, %cst_12 {dimension_numbers = #tpu.dot_dimension_numbers<[1], [0], [0], [1], [0, 0, 1, 1], [], []>} : vector<256x32xbf16>, vector<32x96xbf16>, vector<256x96xf32> -> vector<256x96xf32>
    %c0_13 = arith.constant 0 : index
    %c0_14 = arith.constant 0 : index
    %31 = vector.load %arg5[%c0_13, %c0_14] : memref<1x96xf32, #tpu.memory_space<vmem>>, vector<1x96xf32>
    %32 = vector.broadcast %31 : vector<1x96xf32> to vector<256x96xf32>
    %33 = arith.addf %30, %32 : vector<256x96xf32>
    %c0_15 = arith.constant 0 : index
    %c0_16 = arith.constant 0 : index
    %34 = vector.load %arg6[%c0_15, %c0_16] : memref<32x32xbf16, #tpu.memory_space<vmem>>, vector<32x32xbf16>
    %c0_17 = arith.constant 0 : index
    %c0_18 = arith.constant 0 : index
    %c0_19 = arith.constant 0 : index
    %c0_20 = arith.constant 0 : index
    %35 = vector.load %arg8[%c0_17, %c0_18, %c0_19, %c0_20] : memref<4x16x16x16xf32, #tpu.memory_space<vmem>>, vector<4x16x16x16xf32>
    %cst_21 = arith.constant 0.000000e+00 : f32
    %36 = vector.broadcast %cst_21 : f32 to vector<256x32xf32>
    %37 = vector.extract_strided_slice %33 {offsets = [0, 0], sizes = [256, 8], strides = [1, 1]} : vector<256x96xf32> to vector<256x8xf32>
    %38 = vector.extract_strided_slice %33 {offsets = [0, 32], sizes = [256, 8], strides = [1, 1]} : vector<256x96xf32> to vector<256x8xf32>
    %39 = vector.extract_strided_slice %33 {offsets = [0, 64], sizes = [256, 8], strides = [1, 1]} : vector<256x96xf32> to vector<256x8xf32>
    %40 = vector.shape_cast %37 : vector<256x8xf32> to vector<16x16x8xf32>
    %41 = arith.truncf %40 : vector<16x16x8xf32> to vector<16x16x8xbf16>
    %42 = vector.shape_cast %38 : vector<256x8xf32> to vector<16x16x8xf32>
    %43 = arith.truncf %42 : vector<16x16x8xf32> to vector<16x16x8xbf16>
    %44 = vector.shape_cast %39 : vector<256x8xf32> to vector<16x16x8xf32>
    %45 = arith.truncf %44 : vector<16x16x8xf32> to vector<16x16x8xbf16>
    "tpu.trace_start"() <{level = 10 : i32, message = "bld,bmd->blm"}> : () -> ()
    %cst_22 = arith.constant dense<0.000000e+00> : vector<16x16x16xf32>
    %46 = tpu.matmul %41, %43, %cst_22 {dimension_numbers = #tpu.dot_dimension_numbers<[2], [2], [1], [1], [0, 0, 0, 1, 1, 1], [0], [0]>} : vector<16x16x8xbf16>, vector<16x16x8xbf16>, vector<16x16x16xf32> -> vector<16x16x16xf32>
    "tpu.trace_stop"() : () -> ()
    %47 = vector.extract_strided_slice %35 {offsets = [0, 0, 0, 0], sizes = [1, 16, 16, 16], strides = [1, 1, 1, 1]} : vector<4x16x16x16xf32> to vector<1x16x16x16xf32>
    %48 = vector.shape_cast %47 : vector<1x16x16x16xf32> to vector<16x16x16xf32>
    %49 = arith.addf %46, %48 : vector<16x16x16xf32>
    %cst_23 = arith.constant dense<0xFF800000> : vector<16x16xf32>
    %50 = vector.multi_reduction <maximumf>, %49, %cst_23 [2] : vector<16x16x16xf32> to vector<16x16xf32>
    %51 = vector.shape_cast %50 : vector<16x16xf32> to vector<16x16x1xf32>
    %52 = vector.broadcast %51 : vector<16x16x1xf32> to vector<16x16x16xf32>
    %53 = arith.subf %49, %52 : vector<16x16x16xf32>
    %54 = math.exp %53 : vector<16x16x16xf32>
    %cst_24 = arith.constant dense<0.000000e+00> : vector<16x16xf32>
    %55 = vector.multi_reduction <add>, %54, %cst_24 [2] : vector<16x16x16xf32> to vector<16x16xf32>
    %56 = vector.shape_cast %55 : vector<16x16xf32> to vector<16x16x1xf32>
    %57 = tpu.reciprocal %56 {approx = true} : vector<16x16x1xf32> -> vector<16x16x1xf32>
    %58 = vector.broadcast %57 : vector<16x16x1xf32> to vector<16x16x16xf32>
    %59 = arith.mulf %54, %58 : vector<16x16x16xf32>
    %60 = arith.truncf %59 : vector<16x16x16xf32> to vector<16x16x16xbf16>
    "tpu.trace_start"() <{level = 10 : i32, message = "blm,bmd->bld"}> : () -> ()
    %cst_25 = arith.constant dense<0.000000e+00> : vector<16x16x8xf32>
    %61 = tpu.matmul %60, %45, %cst_25 {dimension_numbers = #tpu.dot_dimension_numbers<[2], [1], [1], [2], [0, 0, 0, 1, 1, 2], [0], [0]>} : vector<16x16x16xbf16>, vector<16x16x8xbf16>, vector<16x16x8xf32> -> vector<16x16x8xf32>
    "tpu.trace_stop"() : () -> ()
    %62 = vector.shape_cast %61 : vector<16x16x8xf32> to vector<256x8xf32>
    %63 = arith.truncf %62 : vector<256x8xf32> to vector<256x8xbf16>
    %64 = vector.extract_strided_slice %34 {offsets = [0, 0], sizes = [8, 32], strides = [1, 1]} : vector<32x32xbf16> to vector<8x32xbf16>
    %cst_26 = arith.constant dense<0.000000e+00> : vector<256x32xf32>
    %65 = tpu.matmul %63, %64, %cst_26 {dimension_numbers = #tpu.dot_dimension_numbers<[1], [0], [0], [1], [0, 0, 1, 1], [], []>} : vector<256x8xbf16>, vector<8x32xbf16>, vector<256x32xf32> -> vector<256x32xf32>
    %66 = arith.addf %36, %65 : vector<256x32xf32>
    %67 = vector.extract_strided_slice %33 {offsets = [0, 8], sizes = [256, 8], strides = [1, 1]} : vector<256x96xf32> to vector<256x8xf32>
    %68 = vector.extract_strided_slice %33 {offsets = [0, 40], sizes = [256, 8], strides = [1, 1]} : vector<256x96xf32> to vector<256x8xf32>
    %69 = vector.extract_strided_slice %33 {offsets = [0, 72], sizes = [256, 8], strides = [1, 1]} : vector<256x96xf32> to vector<256x8xf32>
    %70 = vector.shape_cast %67 : vector<256x8xf32> to vector<16x16x8xf32>
    %71 = arith.truncf %70 : vector<16x16x8xf32> to vector<16x16x8xbf16>
    %72 = vector.shape_cast %68 : vector<256x8xf32> to vector<16x16x8xf32>
    %73 = arith.truncf %72 : vector<16x16x8xf32> to vector<16x16x8xbf16>
    %74 = vector.shape_cast %69 : vector<256x8xf32> to vector<16x16x8xf32>
    %75 = arith.truncf %74 : vector<16x16x8xf32> to vector<16x16x8xbf16>
    "tpu.trace_start"() <{level = 10 : i32, message = "bld,bmd->blm"}> : () -> ()
    %cst_27 = arith.constant dense<0.000000e+00> : vector<16x16x16xf32>
    %76 = tpu.matmul %71, %73, %cst_27 {dimension_numbers = #tpu.dot_dimension_numbers<[2], [2], [1], [1], [0, 0, 0, 1, 1, 1], [0], [0]>} : vector<16x16x8xbf16>, vector<16x16x8xbf16>, vector<16x16x16xf32> -> vector<16x16x16xf32>
    "tpu.trace_stop"() : () -> ()
    %77 = vector.extract_strided_slice %35 {offsets = [1, 0, 0, 0], sizes = [1, 16, 16, 16], strides = [1, 1, 1, 1]} : vector<4x16x16x16xf32> to vector<1x16x16x16xf32>
    %78 = vector.shape_cast %77 : vector<1x16x16x16xf32> to vector<16x16x16xf32>
    %79 = arith.addf %76, %78 : vector<16x16x16xf32>
    %cst_28 = arith.constant dense<0xFF800000> : vector<16x16xf32>
    %80 = vector.multi_reduction <maximumf>, %79, %cst_28 [2] : vector<16x16x16xf32> to vector<16x16xf32>
    %81 = vector.shape_cast %80 : vector<16x16xf32> to vector<16x16x1xf32>
    %82 = vector.broadcast %81 : vector<16x16x1xf32> to vector<16x16x16xf32>
    %83 = arith.subf %79, %82 : vector<16x16x16xf32>
    %84 = math.exp %83 : vector<16x16x16xf32>
    %cst_29 = arith.constant dense<0.000000e+00> : vector<16x16xf32>
    %85 = vector.multi_reduction <add>, %84, %cst_29 [2] : vector<16x16x16xf32> to vector<16x16xf32>
    %86 = vector.shape_cast %85 : vector<16x16xf32> to vector<16x16x1xf32>
    %87 = tpu.reciprocal %86 {approx = true} : vector<16x16x1xf32> -> vector<16x16x1xf32>
    %88 = vector.broadcast %87 : vector<16x16x1xf32> to vector<16x16x16xf32>
    %89 = arith.mulf %84, %88 : vector<16x16x16xf32>
    %90 = arith.truncf %89 : vector<16x16x16xf32> to vector<16x16x16xbf16>
    "tpu.trace_start"() <{level = 10 : i32, message = "blm,bmd->bld"}> : () -> ()
    %cst_30 = arith.constant dense<0.000000e+00> : vector<16x16x8xf32>
    %91 = tpu.matmul %90, %75, %cst_30 {dimension_numbers = #tpu.dot_dimension_numbers<[2], [1], [1], [2], [0, 0, 0, 1, 1, 2], [0], [0]>} : vector<16x16x16xbf16>, vector<16x16x8xbf16>, vector<16x16x8xf32> -> vector<16x16x8xf32>
    "tpu.trace_stop"() : () -> ()
    %92 = vector.shape_cast %91 : vector<16x16x8xf32> to vector<256x8xf32>
    %93 = arith.truncf %92 : vector<256x8xf32> to vector<256x8xbf16>
    %94 = vector.extract_strided_slice %34 {offsets = [8, 0], sizes = [8, 32], strides = [1, 1]} : vector<32x32xbf16> to vector<8x32xbf16>
    %cst_31 = arith.constant dense<0.000000e+00> : vector<256x32xf32>
    %95 = tpu.matmul %93, %94, %cst_31 {dimension_numbers = #tpu.dot_dimension_numbers<[1], [0], [0], [1], [0, 0, 1, 1], [], []>} : vector<256x8xbf16>, vector<8x32xbf16>, vector<256x32xf32> -> vector<256x32xf32>
    %96 = arith.addf %66, %95 : vector<256x32xf32>
    %97 = vector.extract_strided_slice %33 {offsets = [0, 16], sizes = [256, 8], strides = [1, 1]} : vector<256x96xf32> to vector<256x8xf32>
    %98 = vector.extract_strided_slice %33 {offsets = [0, 48], sizes = [256, 8], strides = [1, 1]} : vector<256x96xf32> to vector<256x8xf32>
    %99 = vector.extract_strided_slice %33 {offsets = [0, 80], sizes = [256, 8], strides = [1, 1]} : vector<256x96xf32> to vector<256x8xf32>
    %100 = vector.shape_cast %97 : vector<256x8xf32> to vector<16x16x8xf32>
    %101 = arith.truncf %100 : vector<16x16x8xf32> to vector<16x16x8xbf16>
    %102 = vector.shape_cast %98 : vector<256x8xf32> to vector<16x16x8xf32>
    %103 = arith.truncf %102 : vector<16x16x8xf32> to vector<16x16x8xbf16>
    %104 = vector.shape_cast %99 : vector<256x8xf32> to vector<16x16x8xf32>
    %105 = arith.truncf %104 : vector<16x16x8xf32> to vector<16x16x8xbf16>
    "tpu.trace_start"() <{level = 10 : i32, message = "bld,bmd->blm"}> : () -> ()
    %cst_32 = arith.constant dense<0.000000e+00> : vector<16x16x16xf32>
    %106 = tpu.matmul %101, %103, %cst_32 {dimension_numbers = #tpu.dot_dimension_numbers<[2], [2], [1], [1], [0, 0, 0, 1, 1, 1], [0], [0]>} : vector<16x16x8xbf16>, vector<16x16x8xbf16>, vector<16x16x16xf32> -> vector<16x16x16xf32>
    "tpu.trace_stop"() : () -> ()
    %107 = vector.extract_strided_slice %35 {offsets = [2, 0, 0, 0], sizes = [1, 16, 16, 16], strides = [1, 1, 1, 1]} : vector<4x16x16x16xf32> to vector<1x16x16x16xf32>
    %108 = vector.shape_cast %107 : vector<1x16x16x16xf32> to vector<16x16x16xf32>
    %109 = arith.addf %106, %108 : vector<16x16x16xf32>
    %cst_33 = arith.constant dense<0xFF800000> : vector<16x16xf32>
    %110 = vector.multi_reduction <maximumf>, %109, %cst_33 [2] : vector<16x16x16xf32> to vector<16x16xf32>
    %111 = vector.shape_cast %110 : vector<16x16xf32> to vector<16x16x1xf32>
    %112 = vector.broadcast %111 : vector<16x16x1xf32> to vector<16x16x16xf32>
    %113 = arith.subf %109, %112 : vector<16x16x16xf32>
    %114 = math.exp %113 : vector<16x16x16xf32>
    %cst_34 = arith.constant dense<0.000000e+00> : vector<16x16xf32>
    %115 = vector.multi_reduction <add>, %114, %cst_34 [2] : vector<16x16x16xf32> to vector<16x16xf32>
    %116 = vector.shape_cast %115 : vector<16x16xf32> to vector<16x16x1xf32>
    %117 = tpu.reciprocal %116 {approx = true} : vector<16x16x1xf32> -> vector<16x16x1xf32>
    %118 = vector.broadcast %117 : vector<16x16x1xf32> to vector<16x16x16xf32>
    %119 = arith.mulf %114, %118 : vector<16x16x16xf32>
    %120 = arith.truncf %119 : vector<16x16x16xf32> to vector<16x16x16xbf16>
    "tpu.trace_start"() <{level = 10 : i32, message = "blm,bmd->bld"}> : () -> ()
    %cst_35 = arith.constant dense<0.000000e+00> : vector<16x16x8xf32>
    %121 = tpu.matmul %120, %105, %cst_35 {dimension_numbers = #tpu.dot_dimension_numbers<[2], [1], [1], [2], [0, 0, 0, 1, 1, 2], [0], [0]>} : vector<16x16x16xbf16>, vector<16x16x8xbf16>, vector<16x16x8xf32> -> vector<16x16x8xf32>
    "tpu.trace_stop"() : () -> ()
    %122 = vector.shape_cast %121 : vector<16x16x8xf32> to vector<256x8xf32>
    %123 = arith.truncf %122 : vector<256x8xf32> to vector<256x8xbf16>
    %124 = vector.extract_strided_slice %34 {offsets = [16, 0], sizes = [8, 32], strides = [1, 1]} : vector<32x32xbf16> to vector<8x32xbf16>
    %cst_36 = arith.constant dense<0.000000e+00> : vector<256x32xf32>
    %125 = tpu.matmul %123, %124, %cst_36 {dimension_numbers = #tpu.dot_dimension_numbers<[1], [0], [0], [1], [0, 0, 1, 1], [], []>} : vector<256x8xbf16>, vector<8x32xbf16>, vector<256x32xf32> -> vector<256x32xf32>
    %126 = arith.addf %96, %125 : vector<256x32xf32>
    %127 = vector.extract_strided_slice %33 {offsets = [0, 24], sizes = [256, 8], strides = [1, 1]} : vector<256x96xf32> to vector<256x8xf32>
    %128 = vector.extract_strided_slice %33 {offsets = [0, 56], sizes = [256, 8], strides = [1, 1]} : vector<256x96xf32> to vector<256x8xf32>
    %129 = vector.extract_strided_slice %33 {offsets = [0, 88], sizes = [256, 8], strides = [1, 1]} : vector<256x96xf32> to vector<256x8xf32>
    %130 = vector.shape_cast %127 : vector<256x8xf32> to vector<16x16x8xf32>
    %131 = arith.truncf %130 : vector<16x16x8xf32> to vector<16x16x8xbf16>
    %132 = vector.shape_cast %128 : vector<256x8xf32> to vector<16x16x8xf32>
    %133 = arith.truncf %132 : vector<16x16x8xf32> to vector<16x16x8xbf16>
    %134 = vector.shape_cast %129 : vector<256x8xf32> to vector<16x16x8xf32>
    %135 = arith.truncf %134 : vector<16x16x8xf32> to vector<16x16x8xbf16>
    "tpu.trace_start"() <{level = 10 : i32, message = "bld,bmd->blm"}> : () -> ()
    %cst_37 = arith.constant dense<0.000000e+00> : vector<16x16x16xf32>
    %136 = tpu.matmul %131, %133, %cst_37 {dimension_numbers = #tpu.dot_dimension_numbers<[2], [2], [1], [1], [0, 0, 0, 1, 1, 1], [0], [0]>} : vector<16x16x8xbf16>, vector<16x16x8xbf16>, vector<16x16x16xf32> -> vector<16x16x16xf32>
    "tpu.trace_stop"() : () -> ()
    %137 = vector.extract_strided_slice %35 {offsets = [3, 0, 0, 0], sizes = [1, 16, 16, 16], strides = [1, 1, 1, 1]} : vector<4x16x16x16xf32> to vector<1x16x16x16xf32>
    %138 = vector.shape_cast %137 : vector<1x16x16x16xf32> to vector<16x16x16xf32>
    %139 = arith.addf %136, %138 : vector<16x16x16xf32>
    %cst_38 = arith.constant dense<0xFF800000> : vector<16x16xf32>
    %140 = vector.multi_reduction <maximumf>, %139, %cst_38 [2] : vector<16x16x16xf32> to vector<16x16xf32>
    %141 = vector.shape_cast %140 : vector<16x16xf32> to vector<16x16x1xf32>
    %142 = vector.broadcast %141 : vector<16x16x1xf32> to vector<16x16x16xf32>
    %143 = arith.subf %139, %142 : vector<16x16x16xf32>
    %144 = math.exp %143 : vector<16x16x16xf32>
    %cst_39 = arith.constant dense<0.000000e+00> : vector<16x16xf32>
    %145 = vector.multi_reduction <add>, %144, %cst_39 [2] : vector<16x16x16xf32> to vector<16x16xf32>
    %146 = vector.shape_cast %145 : vector<16x16xf32> to vector<16x16x1xf32>
    %147 = tpu.reciprocal %146 {approx = true} : vector<16x16x1xf32> -> vector<16x16x1xf32>
    %148 = vector.broadcast %147 : vector<16x16x1xf32> to vector<16x16x16xf32>
    %149 = arith.mulf %144, %148 : vector<16x16x16xf32>
    %150 = arith.truncf %149 : vector<16x16x16xf32> to vector<16x16x16xbf16>
    "tpu.trace_start"() <{level = 10 : i32, message = "blm,bmd->bld"}> : () -> ()
    %cst_40 = arith.constant dense<0.000000e+00> : vector<16x16x8xf32>
    %151 = tpu.matmul %150, %135, %cst_40 {dimension_numbers = #tpu.dot_dimension_numbers<[2], [1], [1], [2], [0, 0, 0, 1, 1, 2], [0], [0]>} : vector<16x16x16xbf16>, vector<16x16x8xbf16>, vector<16x16x8xf32> -> vector<16x16x8xf32>
    "tpu.trace_stop"() : () -> ()
    %152 = vector.shape_cast %151 : vector<16x16x8xf32> to vector<256x8xf32>
    %153 = arith.truncf %152 : vector<256x8xf32> to vector<256x8xbf16>
    %154 = vector.extract_strided_slice %34 {offsets = [24, 0], sizes = [8, 32], strides = [1, 1]} : vector<32x32xbf16> to vector<8x32xbf16>
    %cst_41 = arith.constant dense<0.000000e+00> : vector<256x32xf32>
    %155 = tpu.matmul %153, %154, %cst_41 {dimension_numbers = #tpu.dot_dimension_numbers<[1], [0], [0], [1], [0, 0, 1, 1], [], []>} : vector<256x8xbf16>, vector<8x32xbf16>, vector<256x32xf32> -> vector<256x32xf32>
    %156 = arith.addf %126, %155 : vector<256x32xf32>
    %c0_42 = arith.constant 0 : index
    %c0_43 = arith.constant 0 : index
    %157 = vector.load %arg7[%c0_42, %c0_43] : memref<1x32xf32, #tpu.memory_space<vmem>>, vector<1x32xf32>
    %158 = vector.broadcast %157 : vector<1x32xf32> to vector<256x32xf32>
    %159 = arith.addf %156, %158 : vector<256x32xf32>
    %160 = vector.shape_cast %159 : vector<256x32xf32> to vector<16x16x32xf32>
    %c0_44 = arith.constant 0 : index
    %c0_45 = arith.constant 0 : index
    %c0_46 = arith.constant 0 : index
    %161 = vector.load %arg9[%c0_44, %c0_45, %c0_46] : memref<16x16x32xf32, #tpu.memory_space<vmem>>, vector<16x16x32xf32>
    tpu.vector_store %arg9[%c0_44, %c0_45, %c0_46], %160 {strides = array<i32>} : memref<16x16x32xf32, #tpu.memory_space<vmem>>, vector<16x16x32xf32>,
    return
  }
  func.func @transform_0(%arg0: i32) -> (i32, i32, i32) {
    %c0_i32 = arith.constant 0 : i32
    %c0_i32_0 = arith.constant 0 : i32
    %c0_i32_1 = arith.constant 0 : i32
    return %arg0, %c0_i32, %c0_i32_0 : i32, i32, i32
  }
  func.func @transform_1(%arg0: i32) -> (i32, i32) {
    %c0_i32 = arith.constant 0 : i32
    %c0_i32_0 = arith.constant 0 : i32
    %c0_i32_1 = arith.constant 0 : i32
    return %c0_i32, %c0_i32_0 : i32, i32
  }
  func.func @transform_2(%arg0: i32) -> (i32, i32) {
    %c0_i32 = arith.constant 0 : i32
    %c0_i32_0 = arith.constant 0 : i32
    %c0_i32_1 = arith.constant 0 : i32
    return %c0_i32, %c0_i32_0 : i32, i32
  }
  func.func @transform_3(%arg0: i32) -> (i32, i32) {
    %c0_i32 = arith.constant 0 : i32
    %c0_i32_0 = arith.constant 0 : i32
    %c0_i32_1 = arith.constant 0 : i32
    return %c0_i32, %c0_i32_0 : i32, i32
  }
  func.func @transform_4(%arg0: i32) -> (i32, i32) {
    %c0_i32 = arith.constant 0 : i32
    %c0_i32_0 = arith.constant 0 : i32
    %c0_i32_1 = arith.constant 0 : i32
    return %c0_i32, %c0_i32_0 : i32, i32
  }
  func.func @transform_5(%arg0: i32) -> (i32, i32) {
    %c0_i32 = arith.constant 0 : i32
    %c0_i32_0 = arith.constant 0 : i32
    %c0_i32_1 = arith.constant 0 : i32
    return %c0_i32, %c0_i32_0 : i32, i32
  }
  func.func @transform_6(%arg0: i32) -> (i32, i32) {
    %c0_i32 = arith.constant 0 : i32
    %c0_i32_0 = arith.constant 0 : i32
    %c0_i32_1 = arith.constant 0 : i32
    return %c0_i32, %c0_i32_0 : i32, i32
  }
  func.func @transform_7(%arg0: i32) -> (i32, i32, i32, i32) {
    %c0_i32 = arith.constant 0 : i32
    %c0_i32_0 = arith.constant 0 : i32
    %c0_i32_1 = arith.constant 0 : i32
    %c0_i32_2 = arith.constant 0 : i32
    %c0_i32_3 = arith.constant 0 : i32
    return %c0_i32, %c0_i32_0, %c0_i32_1, %c0_i32_2 : i32, i32, i32, i32
  }
  func.func @transform_8(%arg0: i32) -> (i32, i32, i32) {
    %c0_i32 = arith.constant 0 : i32
    %c0_i32_0 = arith.constant 0 : i32
    %c0_i32_1 = arith.constant 0 : i32
    return %arg0, %c0_i32, %c0_i32_0 : i32, i32, i32
  }
}

</mosaic_0001>

<llo_original>
// kernel: tpu_custom_call.1
$region0: #{tpu_custom_call.1}
  #allocation0 [shape = 'u32[]', space=smem, size = 0x4, offset = 0x4, fixed_abs, tag = 'smem constant byte address 0x4 - core index']
  #allocation1 [shape = 'u32[144,128]{1,0:T(1,128)}', space=vmem, size = 0x12000, scoped, tag = 'internal scratch']
  %s0 = inlined_call_operand.hbm [shape: f32[32,16,32], index: 0, kind: input, shape index: {}]
  %s1 = inlined_call_operand.vmem [shape: f32[1,32], index: 1, kind: input, shape index: {}]
  %s2 = inlined_call_operand.vmem [shape: f32[1,32], index: 2, kind: input, shape index: {}]
  %s3 = inlined_call_operand.hbm [shape: bf16[32,96], index: 3, kind: input, shape index: {}]
  %s4 = inlined_call_operand.hbm [shape: f32[1,96], index: 4, kind: input, shape index: {}]
  %s5 = inlined_call_operand.vmem [shape: bf16[32,32], index: 5, kind: input, shape index: {}]
  %s6 = inlined_call_operand.vmem [shape: f32[1,32], index: 6, kind: input, shape index: {}]
  %s7 = inlined_call_operand.hbm [shape: f32[4,16,16,16], index: 7, kind: input, shape index: {}]
  %s8 = inlined_call_operand.hbm [shape: f32[32,16,32], index: 8, kind: output, shape index: {}]
  %s9 = sld [smem:[#allocation0]]
  $region81: #{tpu_custom_call.1} parent=0
    _
  %s11 = ssub.s32 1, %s9
  %s12 = scalar_select 0, %s11, %s9
  $region1: #{tpu_custom_call.1} parent=0
    #allocation2 [shape = 'u8[262144]{0}', space=vmem, size = 0x40000, scoped, tag = 'input window, operand 0']
    #allocation3 [shape = 's32[2]{0}', space=sflag, size = 0x8, scoped, tag = 'scoped memory for tpu_custom_call.1']
    #allocation4 [shape = 's32[2]{0}', space=sflag, size = 0x8, scoped, tag = 'scoped memory for tpu_custom_call.1']
    #allocation5 [shape = 'u8[8192]{0}', space=vmem, size = 0x2000, scoped, tag = 'input window, operand 3, single buffered']
    #allocation6 [shape = 's32[1]{0}', space=sflag, size = 0x4, scoped, tag = 'scoped memory for tpu_custom_call.1']
    #allocation7 [shape = 'u8[512]{0}', space=vmem, size = 0x400, scoped, tag = 'input window, operand 4, single buffered']
    #allocation8 [shape = 'u8[524288]{0}', space=vmem, size = 0x80000, scoped, tag = 'input window, operand 7, single buffered']
    #allocation9 [shape = 's32[1]{0}', space=sflag, size = 0x4, scoped, tag = 'scoped memory for tpu_custom_call.1']
    #allocation10 [shape = 'u8[262144]{0}', space=vmem, size = 0x40000, scoped, tag = 'output window, operand 0']
    %13 = vsyncpa [#allocation3], 0
    %s14 = scalar_lea.sflag [#allocation3], 1
    %15 = vsyncpa %s14, 0
    %16 = vsyncpa [#allocation6], 0
    %17 = vsyncpa [#allocation9], 0
    %18 = vsyncpa [#allocation4], 0
    %s19 = scalar_lea.sflag [#allocation4], 1
    %20 = vsyncpa %s19, 0
    loop: start=0, step=1, limit=4
    $region2: #{tpu_custom_call.1} parent=1 // loop_pre_header
      _
    $region3: #{tpu_custom_call.1} parent=1 // loop_header
      %s22 = sphi 0, %s26
      %p23 = scmp.ge.s32.totalorder %s22, 4
      %s32 = sphi 0, %s34
      %s35 = sphi 0, %s32
      %s36 = sphi 0, %s35
      %s52 = sphi 0, %s36
      %s56 = sphi 0, %s56
      %s58 = sphi 0, %s56
      %s59 = sphi 0, %s58
      %s73 = sphi 0, %s59
      %s77 = sphi 0, %s77
      %s79 = sphi 0, %s77
      %s80 = sphi 0, %s79
      %s94 = sphi 0, %s80
      %s98 = sphi 0, %s98
      %s100 = sphi 0, %s98
      %s101 = sphi 0, %s100
      %s115 = sphi 0, %s101
      %s119 = sphi 0, %s119
      %s121 = sphi 0, %s119
      %s122 = sphi 0, %s121
      %s136 = sphi 0, %s122
      %s140 = sphi 0, %s140
      %s142 = sphi 0, %s140
      %s143 = sphi 0, %s142
      %s157 = sphi 0, %s143
      %s161 = sphi 0, %s161
      %s163 = sphi 0, %s161
      %s164 = sphi 0, %s163
      %s178 = sphi 0, %s164
      %s182 = sphi 0, %s182
      %s184 = sphi 0, %s182
      %s185 = sphi 0, %s184
      %s199 = sphi 0, %s185
      %s205 = sphi 0, %s207
      %s208 = sphi 0, %s205
      %s209 = sphi 0, %s208
      %s225 = sphi 0, %s209
    $region4: #{tpu_custom_call.1} parent=1 // loop_header_branch
      %25 = sbr.rel (%p23) target = $region8
    $region5: #{tpu_custom_call.1} parent=1 // loop_body
      %s27 = ssub.s32 %s22, 1
      %s28 = ssub.s32 %s22, 2
      %s29 = sadd.s32 %s22, 1
      %s30 = ssub.s32 %s22, %s29
      %p31 = scmp.eq.s32.totalorder %s30, 0
      %s33 = sadd.s32 %s32, 1
      %s34 = scalar_select %p31, %s32, %s33
      %p37 = pneg %p31
      %p38 = scmp.eq.s32.totalorder %s22, 1
      %p39 = por %p37, %p38
      %p40 = scmp.ne.s32.totalorder %s32, %s35
      %p41 = scmp.eq.s32.totalorder %s22, 0
      %p42 = por %p40, %p41
      %p43 = scmp.ne.s32.totalorder %s32, %s35
      %p44 = scmp.eq.s32.totalorder %s27, 1
      %p45 = por %p43, %p44
      %p46 = scmp.ne.s32.totalorder %s35, %s36
      %p47 = scmp.eq.s32.totalorder %s27, 0
      %p48 = por %p46, %p47
      %p49 = scmp.ne.s32.totalorder %s35, %s36
      %p50 = scmp.eq.s32.totalorder %s28, 1
      %p51 = por %p49, %p50
      %p53 = scmp.ne.s32.totalorder %s36, %s52
      %p54 = scmp.eq.s32.totalorder %s28, 0
      %p55 = por %p53, %p54
      %s57 = sadd.s32 %s56, 1
      %p60 = scmp.eq.s32.totalorder %s22, 1
      %p61 = scmp.ne.s32.totalorder %s56, %s58
      %p62 = scmp.eq.s32.totalorder %s22, 0
      %p63 = por %p61, %p62
      %p64 = scmp.ne.s32.totalorder %s56, %s58
      %p65 = scmp.eq.s32.totalorder %s27, 1
      %p66 = por %p64, %p65
      %p67 = scmp.ne.s32.totalorder %s58, %s59
      %p68 = scmp.eq.s32.totalorder %s27, 0
      %p69 = por %p67, %p68
      %p70 = scmp.ne.s32.totalorder %s58, %s59
      %p71 = scmp.eq.s32.totalorder %s28, 1
      %p72 = por %p70, %p71
      %p74 = scmp.ne.s32.totalorder %s59, %s73
      %p75 = scmp.eq.s32.totalorder %s28, 0
      %p76 = por %p74, %p75
      %s78 = sadd.s32 %s77, 1
      %p81 = scmp.eq.s32.totalorder %s22, 1
      %p82 = scmp.ne.s32.totalorder %s77, %s79
      %p83 = scmp.eq.s32.totalorder %s22, 0
      %p84 = por %p82, %p83
      %p85 = scmp.ne.s32.totalorder %s77, %s79
      %p86 = scmp.eq.s32.totalorder %s27, 1
      %p87 = por %p85, %p86
      %p88 = scmp.ne.s32.totalorder %s79, %s80
      %p89 = scmp.eq.s32.totalorder %s27, 0
      %p90 = por %p88, %p89
      %p91 = scmp.ne.s32.totalorder %s79, %s80
      %p92 = scmp.eq.s32.totalorder %s28, 1
      %p93 = por %p91, %p92
      %p95 = scmp.ne.s32.totalorder %s80, %s94
      %p96 = scmp.eq.s32.totalorder %s28, 0
      %p97 = por %p95, %p96
      %s99 = sadd.s32 %s98, 1
      %p102 = scmp.eq.s32.totalorder %s22, 1
      %p103 = scmp.ne.s32.totalorder %s98, %s100
      %p104 = scmp.eq.s32.totalorder %s22, 0
      %p105 = por %p103, %p104
      %p106 = scmp.ne.s32.totalorder %s98, %s100
      %p107 = scmp.eq.s32.totalorder %s27, 1
      %p108 = por %p106, %p107
      %p109 = scmp.ne.s32.totalorder %s100, %s101
      %p110 = scmp.eq.s32.totalorder %s27, 0
      %p111 = por %p109, %p110
      %p112 = scmp.ne.s32.totalorder %s100, %s101
      %p113 = scmp.eq.s32.totalorder %s28, 1
      %p114 = por %p112, %p113
      %p116 = scmp.ne.s32.totalorder %s101, %s115
      %p117 = scmp.eq.s32.totalorder %s28, 0
      %p118 = por %p116, %p117
      %s120 = sadd.s32 %s119, 1
      %p123 = scmp.eq.s32.totalorder %s22, 1
      %p124 = scmp.ne.s32.totalorder %s119, %s121
      %p125 = scmp.eq.s32.totalorder %s22, 0
      %p126 = por %p124, %p125
      %p127 = scmp.ne.s32.totalorder %s119, %s121
      %p128 = scmp.eq.s32.totalorder %s27, 1
      %p129 = por %p127, %p128
      %p130 = scmp.ne.s32.totalorder %s121, %s122
      %p131 = scmp.eq.s32.totalorder %s27, 0
      %p132 = por %p130, %p131
      %p133 = scmp.ne.s32.totalorder %s121, %s122
      %p134 = scmp.eq.s32.totalorder %s28, 1
      %p135 = por %p133, %p134
      %p137 = scmp.ne.s32.totalorder %s122, %s136
      %p138 = scmp.eq.s32.totalorder %s28, 0
      %p139 = por %p137, %p138
      %s141 = sadd.s32 %s140, 1
      %p144 = scmp.eq.s32.totalorder %s22, 1
      %p145 = scmp.ne.s32.totalorder %s140, %s142
      %p146 = scmp.eq.s32.totalorder %s22, 0
      %p147 = por %p145, %p146
      %p148 = scmp.ne.s32.totalorder %s140, %s142
      %p149 = scmp.eq.s32.totalorder %s27, 1
      %p150 = por %p148, %p149
      %p151 = scmp.ne.s32.totalorder %s142, %s143
      %p152 = scmp.eq.s32.totalorder %s27, 0
      %p153 = por %p151, %p152
      %p154 = scmp.ne.s32.totalorder %s142, %s143
      %p155 = scmp.eq.s32.totalorder %s28, 1
      %p156 = por %p154, %p155
      %p158 = scmp.ne.s32.totalorder %s143, %s157
      %p159 = scmp.eq.s32.totalorder %s28, 0
      %p160 = por %p158, %p159
      %s162 = sadd.s32 %s161, 1
      %p165 = scmp.eq.s32.totalorder %s22, 1
      %p166 = scmp.ne.s32.totalorder %s161, %s163
      %p167 = scmp.eq.s32.totalorder %s22, 0
      %p168 = por %p166, %p167
      %p169 = scmp.ne.s32.totalorder %s161, %s163
      %p170 = scmp.eq.s32.totalorder %s27, 1
      %p171 = por %p169, %p170
      %p172 = scmp.ne.s32.totalorder %s163, %s164
      %p173 = scmp.eq.s32.totalorder %s27, 0
      %p174 = por %p172, %p173
      %p175 = scmp.ne.s32.totalorder %s163, %s164
      %p176 = scmp.eq.s32.totalorder %s28, 1
      %p177 = por %p175, %p176
      %p179 = scmp.ne.s32.totalorder %s164, %s178
      %p180 = scmp.eq.s32.totalorder %s28, 0
      %p181 = por %p179, %p180
      %s183 = sadd.s32 %s182, 1
      %p186 = scmp.eq.s32.totalorder %s22, 1
      %p187 = scmp.ne.s32.totalorder %s182, %s184
      %p188 = scmp.eq.s32.totalorder %s22, 0
      %p189 = por %p187, %p188
      %p190 = scmp.ne.s32.totalorder %s182, %s184
      %p191 = scmp.eq.s32.totalorder %s27, 1
      %p192 = por %p190, %p191
      %p193 = scmp.ne.s32.totalorder %s184, %s185
      %p194 = scmp.eq.s32.totalorder %s27, 0
      %p195 = por %p193, %p194
      %p196 = scmp.ne.s32.totalorder %s184, %s185
      %p197 = scmp.eq.s32.totalorder %s28, 1
      %p198 = por %p196, %p197
      %p200 = scmp.ne.s32.totalorder %s185, %s199
      %p201 = scmp.eq.s32.totalorder %s28, 0
      %p202 = por %p200, %p201
      %s203 = ssub.s32 %s22, %s29
      %p204 = scmp.eq.s32.totalorder %s203, 0
      %s206 = sadd.s32 %s205, 1
      %s207 = scalar_select %p204, %s205, %s206
      %p210 = pneg %p204
      %p211 = scmp.eq.s32.totalorder %s22, 1
      %p212 = por %p210, %p211
      %p213 = scmp.ne.s32.totalorder %s205, %s208
      %p214 = scmp.eq.s32.totalorder %s22, 0
      %p215 = por %p213, %p214
      %p216 = scmp.ne.s32.totalorder %s205, %s208
      %p217 = scmp.eq.s32.totalorder %s27, 1
      %p218 = por %p216, %p217
      %p219 = scmp.ne.s32.totalorder %s208, %s209
      %p220 = scmp.eq.s32.totalorder %s27, 0
      %p221 = por %p219, %p220
      %p222 = scmp.ne.s32.totalorder %s208, %s209
      %p223 = scmp.eq.s32.totalorder %s28, 1
      %p224 = por %p222, %p223
      %p226 = scmp.ne.s32.totalorder %s209, %s225
      %p227 = scmp.eq.s32.totalorder %s28, 0
      %p228 = por %p226, %p227
      %p229 = scmp.le.s32.totalorder 1, %s22
      %p230 = scmp.lt.s32.totalorder %s22, 3
      %p231 = pnand %p229, %p230
      %p232 = pneg %p231
      // Predicated region
      $region9: #{tpu_custom_call.1} parent=5 // pred_check
        _
      $region10: #{tpu_custom_call.1} parent=5 // pred_check_branch
        %234 = sbr.rel (%p231) target = $region12
      $region11: #{tpu_custom_call.1} parent=5 // pred_region
        %s235 = ssub.s32 %s22, 1
        // Predicated region
        $region13: #{tpu_custom_call.1} parent=11 // pred_check
          %p236 = pneg %p69
        $region14: #{tpu_custom_call.1} parent=11 // pred_check_branch
          %238 = sbr.rel (%p236) target = $region16
        $region15: #{tpu_custom_call.1} parent=11 // pred_region
          _
        $region16: #{tpu_custom_call.1} parent=11 // pred_fallthru
          _
        // Predicated region
        $region17: #{tpu_custom_call.1} parent=11 // pred_check
          %p239 = pneg %p90
        $region18: #{tpu_custom_call.1} parent=11 // pred_check_branch
          %241 = sbr.rel (%p239) target = $region20
        $region19: #{tpu_custom_call.1} parent=11 // pred_region
          _
        $region20: #{tpu_custom_call.1} parent=11 // pred_fallthru
          _
        // Predicated region
        $region21: #{tpu_custom_call.1} parent=11 // pred_check
          %p242 = pneg %p111
        $region22: #{tpu_custom_call.1} parent=11 // pred_check_branch
          %244 = sbr.rel (%p242) target = $region24
        $region23: #{tpu_custom_call.1} parent=11 // pred_region
          %s246 = ssub.s32 256, 256
          %247 = vsyncadd [#allocation6], %s246
          %s248 = sshll.u32 [#allocation5], 4
          %s249 = int_to_ptr.vmem [resolvable:$true] %s248
          %254 = dma.hbm_to_vmem [thread:$0]  %s3, 256, %s249, [#allocation6], 64, 64, 4
        $region24: #{tpu_custom_call.1} parent=11 // pred_fallthru
          _
        // Predicated region
        $region25: #{tpu_custom_call.1} parent=11 // pred_check
          %p255 = pneg %p132
        $region26: #{tpu_custom_call.1} parent=11 // pred_check_branch
          %257 = sbr.rel (%p255) target = $region28
        $region27: #{tpu_custom_call.1} parent=11 // pred_region
          %s259 = ssub.s32 16, 16
          %260 = vsyncadd [#allocation6], %s259
          %s262 = sshll.u32 [#allocation7], 4
          %s263 = int_to_ptr.vmem [resolvable:$true] %s262
          %265 = dma.hbm_to_vmem [thread:$0]  %s4, 16, %s263, [#allocation6]
        $region28: #{tpu_custom_call.1} parent=11 // pred_fallthru
          _
        // Predicated region
        $region29: #{tpu_custom_call.1} parent=11 // pred_check
          %p266 = pneg %p153
        $region30: #{tpu_custom_call.1} parent=11 // pred_check_branch
          %268 = sbr.rel (%p266) target = $region32
        $region31: #{tpu_custom_call.1} parent=11 // pred_region
          _
        $region32: #{tpu_custom_call.1} parent=11 // pred_fallthru
          _
        // Predicated region
        $region33: #{tpu_custom_call.1} parent=11 // pred_check
          %p269 = pneg %p174
        $region34: #{tpu_custom_call.1} parent=11 // pred_check_branch
          %271 = sbr.rel (%p269) target = $region36
        $region35: #{tpu_custom_call.1} parent=11 // pred_region
          _
        $region36: #{tpu_custom_call.1} parent=11 // pred_fallthru
          _
        // Predicated region
        $region37: #{tpu_custom_call.1} parent=11 // pred_check
          %p272 = pneg %p195
        $region38: #{tpu_custom_call.1} parent=11 // pred_check_branch
          %274 = sbr.rel (%p272) target = $region40
        $region39: #{tpu_custom_call.1} parent=11 // pred_region
          %s276 = ssub.s32 16384, 16384
          %277 = vsyncadd [#allocation9], %s276
          %s278 = sshll.u32 [#allocation8], 4
          %s279 = int_to_ptr.vmem [resolvable:$true] %s278
          %284 = dma.hbm_to_vmem [thread:$0]  %s7, 16384, %s279, [#allocation9], 128, 128, 8
        $region40: #{tpu_custom_call.1} parent=11 // pred_fallthru
          _
      $region12: #{tpu_custom_call.1} parent=5 // pred_fallthru
        _
      %p285 = scmp.lt.s32.totalorder %s22, 2
      // Predicated region
      $region41: #{tpu_custom_call.1} parent=5 // pred_check
        %p286 = pneg %p285
      $region42: #{tpu_custom_call.1} parent=5 // pred_check_branch
        %288 = sbr.rel (%p286) target = $region44
      $region43: #{tpu_custom_call.1} parent=5 // pred_region
        // Predicated region
        $region45: #{tpu_custom_call.1} parent=43 // pred_check
          %p289 = pneg %p42
        $region46: #{tpu_custom_call.1} parent=43 // pred_check_branch
          %291 = sbr.rel (%p289) target = $region48
        $region47: #{tpu_custom_call.1} parent=43 // pred_region
          %s292 = sand.u32 %s32, 1
          %s293 = scalar_lea.sflag [#allocation3], %s292
          %s294 = sand.u32 %s32, 1
          %s295 = smul.addr %s294, 256
          %s296 = scalar_lea.vmem [#allocation2], %s295
          %s297 = smul.u32 16, %s22
          %s299 = ssub.s32 4096, 4096
          %300 = vsyncadd %s293, %s299
          %s301 = smul.addr %s297, 2
          %s302 = smul.addr %s301, 128
          %s303 = scalar_lea.hbm %s0, %s302
          %s304 = sshll.u32 %s296, 4
          %s305 = int_to_ptr.vmem [resolvable:$true] %s304
          %310 = dma.hbm_to_vmem [thread:$0]  %s303, 4096, %s305, %s293, 128, 128, 8
        $region48: #{tpu_custom_call.1} parent=43 // pred_fallthru
          _
      $region44: #{tpu_custom_call.1} parent=5 // pred_fallthru
        _
      %p311 = scmp.le.s32.totalorder 1, %s22
      %p312 = scmp.lt.s32.totalorder %s22, 3
      %p313 = pnand %p311, %p312
      %p314 = pneg %p313
      // Predicated region
      $region49: #{tpu_custom_call.1} parent=5 // pred_check
        _
      $region50: #{tpu_custom_call.1} parent=5 // pred_check_branch
        %316 = sbr.rel (%p313) target = $region52
      $region51: #{tpu_custom_call.1} parent=5 // pred_region
        %s317 = ssub.s32 %s22, 1
        %s318 = sand.u32 %s35, 1
        %s319 = scalar_lea.sflag [#allocation3], %s318
        %s320 = sand.u32 %s35, 1
        %s321 = smul.addr %s320, 256
        %s322 = scalar_lea.vmem [#allocation2], %s321
        // Predicated region
        $region53: #{tpu_custom_call.1} parent=51 // pred_check
          %p323 = pneg %p48
        $region54: #{tpu_custom_call.1} parent=51 // pred_check_branch
          %325 = sbr.rel (%p323) target = $region56
        $region55: #{tpu_custom_call.1} parent=51 // pred_region
          %326 = dma.done %s319, 4096
        $region56: #{tpu_custom_call.1} parent=51 // pred_fallthru
          _
        // Predicated region
        $region57: #{tpu_custom_call.1} parent=51 // pred_check
          %p327 = pneg %p111
        $region58: #{tpu_custom_call.1} parent=51 // pred_check_branch
          %329 = sbr.rel (%p327) target = $region60
        $region59: #{tpu_custom_call.1} parent=51 // pred_region
          %330 = dma.done [#allocation6], 256
        $region60: #{tpu_custom_call.1} parent=51 // pred_fallthru
          _
        // Predicated region
        $region61: #{tpu_custom_call.1} parent=51 // pred_check
          %p331 = pneg %p132
        $region62: #{tpu_custom_call.1} parent=51 // pred_check_branch
          %333 = sbr.rel (%p331) target = $region64
        $region63: #{tpu_custom_call.1} parent=51 // pred_region
          %334 = dma.done [#allocation6], 16
        $region64: #{tpu_custom_call.1} parent=51 // pred_fallthru
          _
        // Predicated region
        $region65: #{tpu_custom_call.1} parent=51 // pred_check
          %p335 = pneg %p195
        $region66: #{tpu_custom_call.1} parent=51 // pred_check_branch
          %337 = sbr.rel (%p335) target = $region68
        $region67: #{tpu_custom_call.1} parent=51 // pred_region
          %338 = dma.done [#allocation9], 16384
        $region68: #{tpu_custom_call.1} parent=51 // pred_fallthru
          _
        %s339 = sand.u32 %s35, 1
        %s340 = scalar_lea.sflag [#allocation3], %s339
        %s341 = sand.u32 %s35, 1
        %s342 = smul.addr %s341, 256
        %s343 = scalar_lea.vmem [#allocation2], %s342
        %p344 = pneg %p48
        %p345 = pneg %p45
        %p346 = pneg %p69
        %p347 = pneg %p66
        %p348 = pneg %p90
        %p349 = pneg %p87
        %p350 = pneg %p111
        %p351 = pneg %p108
        %p352 = pneg %p132
        %p353 = pneg %p129
        %p354 = pneg %p153
        %p355 = pneg %p150
        %p356 = pneg %p174
        %p357 = pneg %p171
        %p358 = pneg %p195
        %p359 = pneg %p192
        %p360 = pneg %p221
        %p361 = pneg %p218
        %s362 = sand.u32 %s208, 1
        %s363 = scalar_lea.sflag [#allocation4], %s362
        %s364 = sand.u32 %s208, 1
        %s365 = smul.addr %s364, 256
        %s366 = scalar_lea.vmem [#allocation10], %s365
        %s367 = smul.u32 16, %s27
        %s368 = smul.u32 16, %s27
        %v370 = vld [vmem:[%s322] sm:$0xff]
        %v371 = vld [vmem:[%s322 + $0x8] sm:$0xff]
        %v372 = vld [vmem:[%s322 + $0x10] sm:$0xff]
        %v373 = vld [vmem:[%s322 + $0x18] sm:$0xff]
        %v374 = vld [vmem:[%s322 + $0x20] sm:$0xff]
        %v375 = vld [vmem:[%s322 + $0x28] sm:$0xff]
        %v376 = vld [vmem:[%s322 + $0x30] sm:$0xff]
        %v377 = vld [vmem:[%s322 + $0x38] sm:$0xff]
        %v378 = vld [vmem:[%s322 + $0x40] sm:$0xff]
        %v379 = vld [vmem:[%s322 + $0x48] sm:$0xff]
        %v380 = vld [vmem:[%s322 + $0x50] sm:$0xff]
        %v381 = vld [vmem:[%s322 + $0x58] sm:$0xff]
        %v382 = vld [vmem:[%s322 + $0x60] sm:$0xff]
        %v383 = vld [vmem:[%s322 + $0x68] sm:$0xff]
        %v384 = vld [vmem:[%s322 + $0x70] sm:$0xff]
        %v385 = vld [vmem:[%s322 + $0x78] sm:$0xff]
        %v386 = vld [vmem:[%s322 + $0x80] sm:$0xff]
        %v387 = vld [vmem:[%s322 + $0x88] sm:$0xff]
        %v388 = vld [vmem:[%s322 + $0x90] sm:$0xff]
        %v389 = vld [vmem:[%s322 + $0x98] sm:$0xff]
        %v390 = vld [vmem:[%s322 + $0xa0] sm:$0xff]
        %v391 = vld [vmem:[%s322 + $0xa8] sm:$0xff]
        %v392 = vld [vmem:[%s322 + $0xb0] sm:$0xff]
        %v393 = vld [vmem:[%s322 + $0xb8] sm:$0xff]
        %v394 = vld [vmem:[%s322 + $0xc0] sm:$0xff]
        %v395 = vld [vmem:[%s322 + $0xc8] sm:$0xff]
        %v396 = vld [vmem:[%s322 + $0xd0] sm:$0xff]
        %v397 = vld [vmem:[%s322 + $0xd8] sm:$0xff]
        %v398 = vld [vmem:[%s322 + $0xe0] sm:$0xff]
        %v399 = vld [vmem:[%s322 + $0xe8] sm:$0xff]
        %v400 = vld [vmem:[%s322 + $0xf0] sm:$0xff]
        %v401 = vld [vmem:[%s322 + $0xf8] sm:$0xff]
        %v402 = vld [vmem:[%s1] sm:$0x1]
        %v403 = vld [vmem:[%s2] sm:$0x1]
        %vm404 = vcmask 261120
        %v405 = vsel %vm404, %v370, 0.0
        %406 = vadd.xlane.f32.xlu0 %v405
        %v407 = vpop.xlane.xlu0 %406
        %v408 = vsel %vm404, %v371, 0.0
        %409 = vadd.xlane.f32.xlu0 %v408
        %v410 = vpop.xlane.xlu0 %409
        %v411 = vsel %vm404, %v372, 0.0
        %412 = vadd.xlane.f32.xlu0 %v411
        %v413 = vpop.xlane.xlu0 %412
        %v414 = vsel %vm404, %v373, 0.0
        %415 = vadd.xlane.f32.xlu0 %v414
        %v416 = vpop.xlane.xlu0 %415
        %v417 = vsel %vm404, %v374, 0.0
        %418 = vadd.xlane.f32.xlu0 %v417
        %v419 = vpop.xlane.xlu0 %418
        %v420 = vsel %vm404, %v375, 0.0
        %421 = vadd.xlane.f32.xlu0 %v420
        %v422 = vpop.xlane.xlu0 %421
        %v423 = vsel %vm404, %v376, 0.0
        %424 = vadd.xlane.f32.xlu0 %v423
        %v425 = vpop.xlane.xlu0 %424
        %v426 = vsel %vm404, %v377, 0.0
        %427 = vadd.xlane.f32.xlu0 %v426
        %v428 = vpop.xlane.xlu0 %427
        %v429 = vsel %vm404, %v378, 0.0
        %430 = vadd.xlane.f32.xlu0 %v429
        %v431 = vpop.xlane.xlu0 %430
        %v432 = vsel %vm404, %v379, 0.0
        %433 = vadd.xlane.f32.xlu0 %v432
        %v434 = vpop.xlane.xlu0 %433
        %v435 = vsel %vm404, %v380, 0.0
        %436 = vadd.xlane.f32.xlu0 %v435
        %v437 = vpop.xlane.xlu0 %436
        %v438 = vsel %vm404, %v381, 0.0
        %439 = vadd.xlane.f32.xlu0 %v438
        %v440 = vpop.xlane.xlu0 %439
        %v441 = vsel %vm404, %v382, 0.0
        %442 = vadd.xlane.f32.xlu0 %v441
        %v443 = vpop.xlane.xlu0 %442
        %v444 = vsel %vm404, %v383, 0.0
        %445 = vadd.xlane.f32.xlu0 %v444
        %v446 = vpop.xlane.xlu0 %445
        %v447 = vsel %vm404, %v384, 0.0
        %448 = vadd.xlane.f32.xlu0 %v447
        %v449 = vpop.xlane.xlu0 %448
        %v450 = vsel %vm404, %v385, 0.0
        %451 = vadd.xlane.f32.xlu0 %v450
        %v452 = vpop.xlane.xlu0 %451
        %v453 = vsel %vm404, %v386, 0.0
        %454 = vadd.xlane.f32.xlu0 %v453
        %v455 = vpop.xlane.xlu0 %454
        %v456 = vsel %vm404, %v387, 0.0
        %457 = vadd.xlane.f32.xlu0 %v456
        %v458 = vpop.xlane.xlu0 %457
        %v459 = vsel %vm404, %v388, 0.0
        %460 = vadd.xlane.f32.xlu0 %v459
        %v461 = vpop.xlane.xlu0 %460
        %v462 = vsel %vm404, %v389, 0.0
        %463 = vadd.xlane.f32.xlu0 %v462
        %v464 = vpop.xlane.xlu0 %463
        %v465 = vsel %vm404, %v390, 0.0
        %466 = vadd.xlane.f32.xlu0 %v465
        %v467 = vpop.xlane.xlu0 %466
        %v468 = vsel %vm404, %v391, 0.0
        %469 = vadd.xlane.f32.xlu0 %v468
        %v470 = vpop.xlane.xlu0 %469
        %v471 = vsel %vm404, %v392, 0.0
        %472 = vadd.xlane.f32.xlu0 %v471
        %v473 = vpop.xlane.xlu0 %472
        %v474 = vsel %vm404, %v393, 0.0
        %475 = vadd.xlane.f32.xlu0 %v474
        %v476 = vpop.xlane.xlu0 %475
        %v477 = vsel %vm404, %v394, 0.0
        %478 = vadd.xlane.f32.xlu0 %v477
        %v479 = vpop.xlane.xlu0 %478
        %v480 = vsel %vm404, %v395, 0.0
        %481 = vadd.xlane.f32.xlu0 %v480
        %v482 = vpop.xlane.xlu0 %481
        %v483 = vsel %vm404, %v396, 0.0
        %484 = vadd.xlane.f32.xlu0 %v483
        %v485 = vpop.xlane.xlu0 %484
        %v486 = vsel %vm404, %v397, 0.0
        %487 = vadd.xlane.f32.xlu0 %v486
        %v488 = vpop.xlane.xlu0 %487
        %v489 = vsel %vm404, %v398, 0.0
        %490 = vadd.xlane.f32.xlu0 %v489
        %v491 = vpop.xlane.xlu0 %490
        %v492 = vsel %vm404, %v399, 0.0
        %493 = vadd.xlane.f32.xlu0 %v492
        %v494 = vpop.xlane.xlu0 %493
        %v495 = vsel %vm404, %v400, 0.0
        %496 = vadd.xlane.f32.xlu0 %v495
        %v497 = vpop.xlane.xlu0 %496
        %v498 = vsel %vm404, %v401, 0.0
        %499 = vadd.xlane.f32.xlu0 %v498
        %v500 = vpop.xlane.xlu0 %499
        %v501 = vrcp.pop 32.0
        %v502 = vmul.f32 %v407, %v501
        %v503 = vmul.f32 %v410, %v501
        %v504 = vmul.f32 %v413, %v501
        %v505 = vmul.f32 %v416, %v501
        %v506 = vmul.f32 %v419, %v501
        %v507 = vmul.f32 %v422, %v501
        %v508 = vmul.f32 %v425, %v501
        %v509 = vmul.f32 %v428, %v501
        %v510 = vmul.f32 %v431, %v501
        %v511 = vmul.f32 %v434, %v501
        %v512 = vmul.f32 %v437, %v501
        %v513 = vmul.f32 %v440, %v501
        %v514 = vmul.f32 %v443, %v501
        %v515 = vmul.f32 %v446, %v501
        %v516 = vmul.f32 %v449, %v501
        %v517 = vmul.f32 %v452, %v501
        %v518 = vmul.f32 %v455, %v501
        %v519 = vmul.f32 %v458, %v501
        %v520 = vmul.f32 %v461, %v501
        %v521 = vmul.f32 %v464, %v501
        %v522 = vmul.f32 %v467, %v501
        %v523 = vmul.f32 %v470, %v501
        %v524 = vmul.f32 %v473, %v501
        %v525 = vmul.f32 %v476, %v501
        %v526 = vmul.f32 %v479, %v501
        %v527 = vmul.f32 %v482, %v501
        %v528 = vmul.f32 %v485, %v501
        %v529 = vmul.f32 %v488, %v501
        %v530 = vmul.f32 %v491, %v501
        %v531 = vmul.f32 %v494, %v501
        %v532 = vmul.f32 %v497, %v501
        %v533 = vmul.f32 %v500, %v501
        %v534 = vsub.f32 %v370, %v502
        %v535 = vsub.f32 %v371, %v503
        %v536 = vsub.f32 %v372, %v504
        %v537 = vsub.f32 %v373, %v505
        %v538 = vsub.f32 %v374, %v506
        %v539 = vsub.f32 %v375, %v507
        %v540 = vsub.f32 %v376, %v508
        %v541 = vsub.f32 %v377, %v509
        %v542 = vsub.f32 %v378, %v510
        %v543 = vsub.f32 %v379, %v511
        %v544 = vsub.f32 %v380, %v512
        %v545 = vsub.f32 %v381, %v513
        %v546 = vsub.f32 %v382, %v514
        %v547 = vsub.f32 %v383, %v515
        %v548 = vsub.f32 %v384, %v516
        %v549 = vsub.f32 %v385, %v517
        %v550 = vsub.f32 %v386, %v518
        %v551 = vsub.f32 %v387, %v519
        %v552 = vsub.f32 %v388, %v520
        %v553 = vsub.f32 %v389, %v521
        %v554 = vsub.f32 %v390, %v522
        %v555 = vsub.f32 %v391, %v523
        %v556 = vsub.f32 %v392, %v524
        %v557 = vsub.f32 %v393, %v525
        %v558 = vsub.f32 %v394, %v526
        %v559 = vsub.f32 %v395, %v527
        %v560 = vsub.f32 %v396, %v528
        %v561 = vsub.f32 %v397, %v529
        %v562 = vsub.f32 %v398, %v530
        %v563 = vsub.f32 %v399, %v531
        %v564 = vsub.f32 %v400, %v532
        %v565 = vsub.f32 %v401, %v533
        %v566 = vmul.f32 %v534, %v534
        %v567 = vmul.f32 %v535, %v535
        %v568 = vmul.f32 %v536, %v536
        %v569 = vmul.f32 %v537, %v537
        %v570 = vmul.f32 %v538, %v538
        %v571 = vmul.f32 %v539, %v539
        %v572 = vmul.f32 %v540, %v540
        %v573 = vmul.f32 %v541, %v541
        %v574 = vmul.f32 %v542, %v542
        %v575 = vmul.f32 %v543, %v543
        %v576 = vmul.f32 %v544, %v544
        %v577 = vmul.f32 %v545, %v545
        %v578 = vmul.f32 %v546, %v546
        %v579 = vmul.f32 %v547, %v547
        %v580 = vmul.f32 %v548, %v548
        %v581 = vmul.f32 %v549, %v549
        %v582 = vmul.f32 %v550, %v550
        %v583 = vmul.f32 %v551, %v551
        %v584 = vmul.f32 %v552, %v552
        %v585 = vmul.f32 %v553, %v553
        %v586 = vmul.f32 %v554, %v554
        %v587 = vmul.f32 %v555, %v555
        %v588 = vmul.f32 %v556, %v556
        %v589 = vmul.f32 %v557, %v557
        %v590 = vmul.f32 %v558, %v558
        %v591 = vmul.f32 %v559, %v559
        %v592 = vmul.f32 %v560, %v560
        %v593 = vmul.f32 %v561, %v561
        %v594 = vmul.f32 %v562, %v562
        %v595 = vmul.f32 %v563, %v563
        %v596 = vmul.f32 %v564, %v564
        %v597 = vmul.f32 %v565, %v565
        %v598 = vsel %vm404, %v566, 0.0
        %599 = vadd.xlane.f32.xlu0 %v598
        %v600 = vpop.xlane.xlu0 %599
        %v601 = vsel %vm404, %v567, 0.0
        %602 = vadd.xlane.f32.xlu0 %v601
        %v603 = vpop.xlane.xlu0 %602
        %v604 = vsel %vm404, %v568, 0.0
        %605 = vadd.xlane.f32.xlu0 %v604
        %v606 = vpop.xlane.xlu0 %605
        %v607 = vsel %vm404, %v569, 0.0
        %608 = vadd.xlane.f32.xlu0 %v607
        %v609 = vpop.xlane.xlu0 %608
        %v610 = vsel %vm404, %v570, 0.0
        %611 = vadd.xlane.f32.xlu0 %v610
        %v612 = vpop.xlane.xlu0 %611
        %v613 = vsel %vm404, %v571, 0.0
        %614 = vadd.xlane.f32.xlu0 %v613
        %v615 = vpop.xlane.xlu0 %614
        %v616 = vsel %vm404, %v572, 0.0
        %617 = vadd.xlane.f32.xlu0 %v616
        %v618 = vpop.xlane.xlu0 %617
        %v619 = vsel %vm404, %v573, 0.0
        %620 = vadd.xlane.f32.xlu0 %v619
        %v621 = vpop.xlane.xlu0 %620
        %v622 = vsel %vm404, %v574, 0.0
        %623 = vadd.xlane.f32.xlu0 %v622
        %v624 = vpop.xlane.xlu0 %623
        %v625 = vsel %vm404, %v575, 0.0
        %626 = vadd.xlane.f32.xlu0 %v625
        %v627 = vpop.xlane.xlu0 %626
        %v628 = vsel %vm404, %v576, 0.0
        %629 = vadd.xlane.f32.xlu0 %v628
        %v630 = vpop.xlane.xlu0 %629
        %v631 = vsel %vm404, %v577, 0.0
        %632 = vadd.xlane.f32.xlu0 %v631
        %v633 = vpop.xlane.xlu0 %632
        %v634 = vsel %vm404, %v578, 0.0
        %635 = vadd.xlane.f32.xlu0 %v634
        %v636 = vpop.xlane.xlu0 %635
        %v637 = vsel %vm404, %v579, 0.0
        %638 = vadd.xlane.f32.xlu0 %v637
        %v639 = vpop.xlane.xlu0 %638
        %v640 = vsel %vm404, %v580, 0.0
        %641 = vadd.xlane.f32.xlu0 %v640
        %v642 = vpop.xlane.xlu0 %641
        %v643 = vsel %vm404, %v581, 0.0
        %644 = vadd.xlane.f32.xlu0 %v643
        %v645 = vpop.xlane.xlu0 %644
        %v646 = vsel %vm404, %v582, 0.0
        %647 = vadd.xlane.f32.xlu0 %v646
        %v648 = vpop.xlane.xlu0 %647
        %v649 = vsel %vm404, %v583, 0.0
        %650 = vadd.xlane.f32.xlu0 %v649
        %v651 = vpop.xlane.xlu0 %650
        %v652 = vsel %vm404, %v584, 0.0
        %653 = vadd.xlane.f32.xlu0 %v652
        %v654 = vpop.xlane.xlu0 %653
        %v655 = vsel %vm404, %v585, 0.0
        %656 = vadd.xlane.f32.xlu0 %v655
        %v657 = vpop.xlane.xlu0 %656
        %v658 = vsel %vm404, %v586, 0.0
        %659 = vadd.xlane.f32.xlu0 %v658
        %v660 = vpop.xlane.xlu0 %659
        %v661 = vsel %vm404, %v587, 0.0
        %662 = vadd.xlane.f32.xlu0 %v661
        %v663 = vpop.xlane.xlu0 %662
        %v664 = vsel %vm404, %v588, 0.0
        %665 = vadd.xlane.f32.xlu0 %v664
        %v666 = vpop.xlane.xlu0 %665
        %v667 = vsel %vm404, %v589, 0.0
        %668 = vadd.xlane.f32.xlu0 %v667
        %v669 = vpop.xlane.xlu0 %668
        %v670 = vsel %vm404, %v590, 0.0
        %671 = vadd.xlane.f32.xlu0 %v670
        %v672 = vpop.xlane.xlu0 %671
        %v673 = vsel %vm404, %v591, 0.0
        %674 = vadd.xlane.f32.xlu0 %v673
        %v675 = vpop.xlane.xlu0 %674
        %v676 = vsel %vm404, %v592, 0.0
        %677 = vadd.xlane.f32.xlu0 %v676
        %v678 = vpop.xlane.xlu0 %677
        %v679 = vsel %vm404, %v593, 0.0
        %680 = vadd.xlane.f32.xlu0 %v679
        %v681 = vpop.xlane.xlu0 %680
        %v682 = vsel %vm404, %v594, 0.0
        %683 = vadd.xlane.f32.xlu0 %v682
        %v684 = vpop.xlane.xlu0 %683
        %v685 = vsel %vm404, %v595, 0.0
        %686 = vadd.xlane.f32.xlu0 %v685
        %v687 = vpop.xlane.xlu0 %686
        %v688 = vsel %vm404, %v596, 0.0
        %689 = vadd.xlane.f32.xlu0 %v688
        %v690 = vpop.xlane.xlu0 %689
        %v691 = vsel %vm404, %v597, 0.0
        %692 = vadd.xlane.f32.xlu0 %v691
        %v693 = vpop.xlane.xlu0 %692
        %v694 = vmul.f32 %v600, %v501
        %v695 = vmul.f32 %v603, %v501
        %v696 = vmul.f32 %v606, %v501
        %v697 = vmul.f32 %v609, %v501
        %v698 = vmul.f32 %v612, %v501
        %v699 = vmul.f32 %v615, %v501
        %v700 = vmul.f32 %v618, %v501
        %v701 = vmul.f32 %v621, %v501
        %v702 = vmul.f32 %v624, %v501
        %v703 = vmul.f32 %v627, %v501
        %v704 = vmul.f32 %v630, %v501
        %v705 = vmul.f32 %v633, %v501
        %v706 = vmul.f32 %v636, %v501
        %v707 = vmul.f32 %v639, %v501
        %v708 = vmul.f32 %v642, %v501
        %v709 = vmul.f32 %v645, %v501
        %v710 = vmul.f32 %v648, %v501
        %v711 = vmul.f32 %v651, %v501
        %v712 = vmul.f32 %v654, %v501
        %v713 = vmul.f32 %v657, %v501
        %v714 = vmul.f32 %v660, %v501
        %v715 = vmul.f32 %v663, %v501
        %v716 = vmul.f32 %v666, %v501
        %v717 = vmul.f32 %v669, %v501
        %v718 = vmul.f32 %v672, %v501
        %v719 = vmul.f32 %v675, %v501
        %v720 = vmul.f32 %v678, %v501
        %v721 = vmul.f32 %v681, %v501
        %v722 = vmul.f32 %v684, %v501
        %v723 = vmul.f32 %v687, %v501
        %v724 = vmul.f32 %v690, %v501
        %v725 = vmul.f32 %v693, %v501
        %v726 = vadd.f32 %v694, 1e-05
        %v727 = vadd.f32 %v695, 1e-05
        %v728 = vadd.f32 %v696, 1e-05
        %v729 = vadd.f32 %v697, 1e-05
        %v730 = vadd.f32 %v698, 1e-05
        %v731 = vadd.f32 %v699, 1e-05
        %v732 = vadd.f32 %v700, 1e-05
        %v733 = vadd.f32 %v701, 1e-05
        %v734 = vadd.f32 %v702, 1e-05
        %v735 = vadd.f32 %v703, 1e-05
        %v736 = vadd.f32 %v704, 1e-05
        %v737 = vadd.f32 %v705, 1e-05
        %v738 = vadd.f32 %v706, 1e-05
        %v739 = vadd.f32 %v707, 1e-05
        %v740 = vadd.f32 %v708, 1e-05
        %v741 = vadd.f32 %v709, 1e-05
        %v742 = vadd.f32 %v710, 1e-05
        %v743 = vadd.f32 %v711, 1e-05
        %v744 = vadd.f32 %v712, 1e-05
        %v745 = vadd.f32 %v713, 1e-05
        %v746 = vadd.f32 %v714, 1e-05
        %v747 = vadd.f32 %v715, 1e-05
        %v748 = vadd.f32 %v716, 1e-05
        %v749 = vadd.f32 %v717, 1e-05
        %v750 = vadd.f32 %v718, 1e-05
        %v751 = vadd.f32 %v719, 1e-05
        %v752 = vadd.f32 %v720, 1e-05
        %v753 = vadd.f32 %v721, 1e-05
        %v754 = vadd.f32 %v722, 1e-05
        %v755 = vadd.f32 %v723, 1e-05
        %v756 = vadd.f32 %v724, 1e-05
        %v757 = vadd.f32 %v725, 1e-05
        %v758 = vrsqrt.pop %v726
        %v759 = vrsqrt.pop %v727
        %v760 = vrsqrt.pop %v728
        %v761 = vrsqrt.pop %v729
        %v762 = vrsqrt.pop %v730
        %v763 = vrsqrt.pop %v731
        %v764 = vrsqrt.pop %v732
        %v765 = vrsqrt.pop %v733
        %v766 = vrsqrt.pop %v734
        %v767 = vrsqrt.pop %v735
        %v768 = vrsqrt.pop %v736
        %v769 = vrsqrt.pop %v737
        %v770 = vrsqrt.pop %v738
        %v771 = vrsqrt.pop %v739
        %v772 = vrsqrt.pop %v740
        %v773 = vrsqrt.pop %v741
        %v774 = vrsqrt.pop %v742
        %v775 = vrsqrt.pop %v743
        %v776 = vrsqrt.pop %v744
        %v777 = vrsqrt.pop %v745
        %v778 = vrsqrt.pop %v746
        %v779 = vrsqrt.pop %v747
        %v780 = vrsqrt.pop %v748
        %v781 = vrsqrt.pop %v749
        %v782 = vrsqrt.pop %v750
        %v783 = vrsqrt.pop %v751
        %v784 = vrsqrt.pop %v752
        %v785 = vrsqrt.pop %v753
        %v786 = vrsqrt.pop %v754
        %v787 = vrsqrt.pop %v755
        %v788 = vrsqrt.pop %v756
        %v789 = vrsqrt.pop %v757
        %v790 = vmul.f32 %v534, %v758
        %v791 = vmul.f32 %v535, %v759
        %v792 = vmul.f32 %v536, %v760
        %v793 = vmul.f32 %v537, %v761
        %v794 = vmul.f32 %v538, %v762
        %v795 = vmul.f32 %v539, %v763
        %v796 = vmul.f32 %v540, %v764
        %v797 = vmul.f32 %v541, %v765
        %v798 = vmul.f32 %v542, %v766
        %v799 = vmul.f32 %v543, %v767
        %v800 = vmul.f32 %v544, %v768
        %v801 = vmul.f32 %v545, %v769
        %v802 = vmul.f32 %v546, %v770
        %v803 = vmul.f32 %v547, %v771
        %v804 = vmul.f32 %v548, %v772
        %v805 = vmul.f32 %v549, %v773
        %v806 = vmul.f32 %v550, %v774
        %v807 = vmul.f32 %v551, %v775
        %v808 = vmul.f32 %v552, %v776
        %v809 = vmul.f32 %v553, %v777
        %v810 = vmul.f32 %v554, %v778
        %v811 = vmul.f32 %v555, %v779
        %v812 = vmul.f32 %v556, %v780
        %v813 = vmul.f32 %v557, %v781
        %v814 = vmul.f32 %v558, %v782
        %v815 = vmul.f32 %v559, %v783
        %v816 = vmul.f32 %v560, %v784
        %v817 = vmul.f32 %v561, %v785
        %v818 = vmul.f32 %v562, %v786
        %v819 = vmul.f32 %v563, %v787
        %v820 = vmul.f32 %v564, %v788
        %v821 = vmul.f32 %v565, %v789
        %v823 = vlaneseq
        %v824 = vshrl.u32 %v823, 7
        %v825 = vsub.s32 0, %v824
        %v826 = vrot.slane %v402, %v825
        %v828 = vmul.f32 %v790, %v826
        %v829 = vmul.f32 %v791, %v826
        %v830 = vmul.f32 %v792, %v826
        %v831 = vmul.f32 %v793, %v826
        %v832 = vmul.f32 %v794, %v826
        %v833 = vmul.f32 %v795, %v826
        %v834 = vmul.f32 %v796, %v826
        %v835 = vmul.f32 %v797, %v826
        %v836 = vmul.f32 %v798, %v826
        %v837 = vmul.f32 %v799, %v826
        %v838 = vmul.f32 %v800, %v826
        %v839 = vmul.f32 %v801, %v826
        %v840 = vmul.f32 %v802, %v826
        %v841 = vmul.f32 %v803, %v826
        %v842 = vmul.f32 %v804, %v826
        %v843 = vmul.f32 %v805, %v826
        %v844 = vmul.f32 %v806, %v826
        %v845 = vmul.f32 %v807, %v826
        %v846 = vmul.f32 %v808, %v826
        %v847 = vmul.f32 %v809, %v826
        %v848 = vmul.f32 %v810, %v826
        %v849 = vmul.f32 %v811, %v826
        %v850 = vmul.f32 %v812, %v826
        %v851 = vmul.f32 %v813, %v826
        %v852 = vmul.f32 %v814, %v826
        %v853 = vmul.f32 %v815, %v826
        %v854 = vmul.f32 %v816, %v826
        %v855 = vmul.f32 %v817, %v826
        %v856 = vmul.f32 %v818, %v826
        %v857 = vmul.f32 %v819, %v826
        %v858 = vmul.f32 %v820, %v826
        %v859 = vmul.f32 %v821, %v826
        %v861 = vlaneseq
        %v862 = vshrl.u32 %v861, 7
        %v863 = vsub.s32 0, %v862
        %v864 = vrot.slane %v403, %v863
        %v866 = vadd.f32 %v828, %v864
        %v867 = vadd.f32 %v829, %v864
        %v868 = vadd.f32 %v830, %v864
        %v869 = vadd.f32 %v831, %v864
        %v870 = vadd.f32 %v832, %v864
        %v871 = vadd.f32 %v833, %v864
        %v872 = vadd.f32 %v834, %v864
        %v873 = vadd.f32 %v835, %v864
        %v874 = vadd.f32 %v836, %v864
        %v875 = vadd.f32 %v837, %v864
        %v876 = vadd.f32 %v838, %v864
        %v877 = vadd.f32 %v839, %v864
        %v878 = vadd.f32 %v840, %v864
        %v879 = vadd.f32 %v841, %v864
        %v880 = vadd.f32 %v842, %v864
        %v881 = vadd.f32 %v843, %v864
        %v882 = vadd.f32 %v844, %v864
        %v883 = vadd.f32 %v845, %v864
        %v884 = vadd.f32 %v846, %v864
        %v885 = vadd.f32 %v847, %v864
        %v886 = vadd.f32 %v848, %v864
        %v887 = vadd.f32 %v849, %v864
        %v888 = vadd.f32 %v850, %v864
        %v889 = vadd.f32 %v851, %v864
        %v890 = vadd.f32 %v852, %v864
        %v891 = vadd.f32 %v853, %v864
        %v892 = vadd.f32 %v854, %v864
        %v893 = vadd.f32 %v855, %v864
        %v894 = vadd.f32 %v856, %v864
        %v895 = vadd.f32 %v857, %v864
        %v896 = vadd.f32 %v858, %v864
        %v897 = vadd.f32 %v859, %v864
        %v898 = vpack.c.bf16 %v867, %v866
        %v899 = vpack.c.bf16 %v869, %v868
        %v900 = vpack.c.bf16 %v871, %v870
        %v901 = vpack.c.bf16 %v873, %v872
        %v902 = vpack.c.bf16 %v875, %v874
        %v903 = vpack.c.bf16 %v877, %v876
        %v904 = vpack.c.bf16 %v879, %v878
        %v905 = vpack.c.bf16 %v881, %v880
        %v906 = vpack.c.bf16 %v883, %v882
        %v907 = vpack.c.bf16 %v885, %v884
        %v908 = vpack.c.bf16 %v887, %v886
        %v909 = vpack.c.bf16 %v889, %v888
        %v910 = vpack.c.bf16 %v891, %v890
        %v911 = vpack.c.bf16 %v893, %v892
        %v912 = vpack.c.bf16 %v895, %v894
        %v913 = vpack.c.bf16 %v897, %v896
        %v914 = vld [vmem:[#allocation5] sm:$0xf]
        %v915 = vld [vmem:[#allocation5 + $0x4] sm:$0xf]
        %v916 = vld [vmem:[#allocation5 + $0x8] sm:$0xf]
        %v917 = vld [vmem:[#allocation5 + $0xc] sm:$0xf]
        %v918 = vld [vmem:[#allocation7] sm:$0x1]
        %v920 = vlaneseq
        %v921 = vshrl.u32 %v920, 7
        %v922 = vsub.s32 0, %v921
        %v923 = vrot.slane %v918, %v922
        %v929 = vunpack.c.l.b16 %v914
        %v930 = vunpack.c.l.b16 %v915
        %v931 = vunpack.c.l.b16 %v916
        %v932 = vunpack.c.l.b16 %v917
        %v933 = vpack.c.b16 %v930, %v929
        %v934 = vpack.c.b16 %v932, %v931
        %v938 = vsel %vm404, %v898, 0
        %v941 = vsel %vm404, %v899, 0
        %v944 = vsel %vm404, %v900, 0
        %v947 = vsel %vm404, %v901, 0
        %v950 = vsel %vm404, %v902, 0
        %v953 = vsel %vm404, %v903, 0
        %v956 = vsel %vm404, %v904, 0
        %v959 = vsel %vm404, %v905, 0
        %v962 = vsel %vm404, %v906, 0
        %v965 = vsel %vm404, %v907, 0
        %v968 = vsel %vm404, %v908, 0
        %v971 = vsel %vm404, %v909, 0
        %v974 = vsel %vm404, %v910, 0
        %v977 = vsel %vm404, %v911, 0
        %v980 = vsel %vm404, %v912, 0
        %v983 = vsel %vm404, %v913, 0
        %985 = vmatprep.subr.bf16.mxu0 0
        %986 = vmatpush1.bf16.msra.mxu0 %v933
        %987 = vmatprep.subr.bf16.mxu0 0
        %988 = vmatpush1.bf16.msra.mxu0 %v934
        %989 = vmatprep.subr.bf16.mxu0 0
        %990 = vmatpush1.bf16.msra.mxu0 0
        %991 = vmatprep.subr.bf16.mxu0 0
        %992 = vmatpush1.bf16.msra.mxu0 0
        %993 = vmatprep.subr.bf16.mxu0 0
        %994 = vmatpush1.bf16.msra.mxu0 0
        %995 = vmatprep.subr.bf16.mxu0 0
        %996 = vmatpush1.bf16.msra.mxu0 0
        %997 = vmatprep.subr.bf16.mxu0 0
        %998 = vmatpush1.bf16.msra.mxu0 0
        %999 = vmatprep.subr.bf16.mxu0 0
        %1000 = vmatpush1.bf16.msra.mxu0 0
        %1001 = vmatprep.subr.bf16.mxu0 0
        %1002 = vmatpush1.bf16.msra.mxu0 0
        %1003 = vmatprep.subr.bf16.mxu0 0
        %1004 = vmatpush1.bf16.msra.mxu0 0
        %1005 = vmatprep.subr.bf16.mxu0 0
        %1006 = vmatpush1.bf16.msra.mxu0 0
        %1007 = vmatprep.subr.bf16.mxu0 0
        %1008 = vmatpush1.bf16.msra.mxu0 0
        %1009 = vmatprep.subr.bf16.mxu0 0
        %1010 = vmatpush1.bf16.msra.mxu0 0
        %1011 = vmatprep.subr.bf16.mxu0 0
        %1012 = vmatpush1.bf16.msra.mxu0 0
        %1013 = vmatprep.subr.bf16.mxu0 0
        %1014 = vmatpush1.bf16.msra.mxu0 0
        %1015 = vmatprep.subr.bf16.mxu0 0
        %1016 = vmatpush1.bf16.msra.mxu0 0
        %1017 = vmatprep.mubr.bf16.mxu0 0
        %1018 = vmatmul.mubr.bf16.gmra.mrb[0].mxu0 %v938
        %v1019 = vpop.f32.mrb[0].mxu0
        %v1020 = vadd.f32 %v923, %v1019
        %v1021 = vpop.f32.mrb[0].mxu0
        %v1022 = vpop.f32.mrb[0].mxu0
        %v1023 = vadd.f32 %v923, %v1022
        %v1024 = vpop.f32.mrb[0].mxu0
        %1025 = vmatprep.mubr.bf16.mxu0 0
        %1026 = vmatmul.mubr.bf16.gmra.mrb[0].mxu0 %v941
        %v1027 = vpop.f32.mrb[0].mxu0
        %v1028 = vadd.f32 %v923, %v1027
        %v1029 = vpop.f32.mrb[0].mxu0
        %v1030 = vpop.f32.mrb[0].mxu0
        %v1031 = vadd.f32 %v923, %v1030
        %v1032 = vpop.f32.mrb[0].mxu0
        %1033 = vmatprep.mubr.bf16.mxu0 0
        %1034 = vmatmul.mubr.bf16.gmra.mrb[0].mxu0 %v944
        %v1035 = vpop.f32.mrb[0].mxu0
        %v1036 = vadd.f32 %v923, %v1035
        %v1037 = vpop.f32.mrb[0].mxu0
        %v1038 = vpop.f32.mrb[0].mxu0
        %v1039 = vadd.f32 %v923, %v1038
        %v1040 = vpop.f32.mrb[0].mxu0
        %1041 = vmatprep.mubr.bf16.mxu0 0
        %1042 = vmatmul.mubr.bf16.gmra.mrb[0].mxu0 %v947
        %v1043 = vpop.f32.mrb[0].mxu0
        %v1044 = vadd.f32 %v923, %v1043
        %v1045 = vpop.f32.mrb[0].mxu0
        %v1046 = vpop.f32.mrb[0].mxu0
        %v1047 = vadd.f32 %v923, %v1046
        %v1048 = vpop.f32.mrb[0].mxu0
        %1049 = vmatprep.mubr.bf16.mxu0 0
        %1050 = vmatmul.mubr.bf16.gmra.mrb[0].mxu0 %v950
        %v1051 = vpop.f32.mrb[0].mxu0
        %v1052 = vadd.f32 %v923, %v1051
        %v1053 = vpop.f32.mrb[0].mxu0
        %v1054 = vpop.f32.mrb[0].mxu0
        %v1055 = vadd.f32 %v923, %v1054
        %v1056 = vpop.f32.mrb[0].mxu0
        %1057 = vmatprep.mubr.bf16.mxu0 0
        %1058 = vmatmul.mubr.bf16.gmra.mrb[0].mxu0 %v953
        %v1059 = vpop.f32.mrb[0].mxu0
        %v1060 = vadd.f32 %v923, %v1059
        %v1061 = vpop.f32.mrb[0].mxu0
        %v1062 = vpop.f32.mrb[0].mxu0
        %v1063 = vadd.f32 %v923, %v1062
        %v1064 = vpop.f32.mrb[0].mxu0
        %1065 = vmatprep.mubr.bf16.mxu0 0
        %1066 = vmatmul.mubr.bf16.gmra.mrb[0].mxu0 %v956
        %v1067 = vpop.f32.mrb[0].mxu0
        %v1068 = vadd.f32 %v923, %v1067
        %v1069 = vpop.f32.mrb[0].mxu0
        %v1070 = vpop.f32.mrb[0].mxu0
        %v1071 = vadd.f32 %v923, %v1070
        %v1072 = vpop.f32.mrb[0].mxu0
        %1073 = vmatprep.mubr.bf16.mxu0 0
        %1074 = vmatmul.mubr.bf16.gmra.mrb[0].mxu0 %v959
        %v1075 = vpop.f32.mrb[0].mxu0
        %v1076 = vadd.f32 %v923, %v1075
        %v1077 = vpop.f32.mrb[0].mxu0
        %v1078 = vpop.f32.mrb[0].mxu0
        %v1079 = vadd.f32 %v923, %v1078
        %v1080 = vpop.f32.mrb[0].mxu0
        %1081 = vmatprep.mubr.bf16.mxu0 0
        %1082 = vmatmul.mubr.bf16.gmra.mrb[0].mxu0 %v962
        %v1083 = vpop.f32.mrb[0].mxu0
        %v1084 = vadd.f32 %v923, %v1083
        %v1085 = vpop.f32.mrb[0].mxu0
        %v1086 = vpop.f32.mrb[0].mxu0
        %v1087 = vadd.f32 %v923, %v1086
        %v1088 = vpop.f32.mrb[0].mxu0
        %1089 = vmatprep.mubr.bf16.mxu0 0
        %1090 = vmatmul.mubr.bf16.gmra.mrb[0].mxu0 %v965
        %v1091 = vpop.f32.mrb[0].mxu0
        %v1092 = vadd.f32 %v923, %v1091
        %v1093 = vpop.f32.mrb[0].mxu0
        %v1094 = vpop.f32.mrb[0].mxu0
        %v1095 = vadd.f32 %v923, %v1094
        %v1096 = vpop.f32.mrb[0].mxu0
        %1097 = vmatprep.mubr.bf16.mxu0 0
        %1098 = vmatmul.mubr.bf16.gmra.mrb[0].mxu0 %v968
        %v1099 = vpop.f32.mrb[0].mxu0
        %v1100 = vadd.f32 %v923, %v1099
        %v1101 = vpop.f32.mrb[0].mxu0
        %v1102 = vpop.f32.mrb[0].mxu0
        %v1103 = vadd.f32 %v923, %v1102
        %v1104 = vpop.f32.mrb[0].mxu0
        %1105 = vmatprep.mubr.bf16.mxu0 0
        %1106 = vmatmul.mubr.bf16.gmra.mrb[0].mxu0 %v971
        %v1107 = vpop.f32.mrb[0].mxu0
        %v1108 = vadd.f32 %v923, %v1107
        %v1109 = vpop.f32.mrb[0].mxu0
        %v1110 = vpop.f32.mrb[0].mxu0
        %v1111 = vadd.f32 %v923, %v1110
        %v1112 = vpop.f32.mrb[0].mxu0
        %1113 = vmatprep.mubr.bf16.mxu0 0
        %1114 = vmatmul.mubr.bf16.gmra.mrb[0].mxu0 %v974
        %v1115 = vpop.f32.mrb[0].mxu0
        %v1116 = vadd.f32 %v923, %v1115
        %v1117 = vpop.f32.mrb[0].mxu0
        %v1118 = vpop.f32.mrb[0].mxu0
        %v1119 = vadd.f32 %v923, %v1118
        %v1120 = vpop.f32.mrb[0].mxu0
        %1121 = vmatprep.mubr.bf16.mxu0 0
        %1122 = vmatmul.mubr.bf16.gmra.mrb[0].mxu0 %v977
        %v1123 = vpop.f32.mrb[0].mxu0
        %v1124 = vadd.f32 %v923, %v1123
        %v1125 = vpop.f32.mrb[0].mxu0
        %v1126 = vpop.f32.mrb[0].mxu0
        %v1127 = vadd.f32 %v923, %v1126
        %v1128 = vpop.f32.mrb[0].mxu0
        %1129 = vmatprep.mubr.bf16.mxu0 0
        %1130 = vmatmul.mubr.bf16.gmra.mrb[0].mxu0 %v980
        %v1131 = vpop.f32.mrb[0].mxu0
        %v1132 = vadd.f32 %v923, %v1131
        %v1133 = vpop.f32.mrb[0].mxu0
        %v1134 = vpop.f32.mrb[0].mxu0
        %v1135 = vadd.f32 %v923, %v1134
        %v1136 = vpop.f32.mrb[0].mxu0
        %1137 = vmatprep.mubr.bf16.mxu0 0
        %1138 = vmatmul.mubr.bf16.gmra.mrb[0].mxu0 %v983
        %v1139 = vpop.f32.mrb[0].mxu0
        %v1140 = vadd.f32 %v923, %v1139
        %v1141 = vpop.f32.mrb[0].mxu0
        %v1142 = vpop.f32.mrb[0].mxu0
        %v1143 = vadd.f32 %v923, %v1142
        %v1144 = vpop.f32.mrb[0].mxu0
        %1145 = vdwg.mxu0
        %v1146 = vld [vmem:[%s5] sm:$0xf]
        %v1147 = vld [vmem:[%s5 + $0x4] sm:$0xf]
        %v1148 = vld [vmem:[%s5 + $0x8] sm:$0xf]
        %v1149 = vld [vmem:[%s5 + $0xc] sm:$0xf]
        %v1150 = vld [vmem:[#allocation8] sm:$0xff]
        %v1151 = vld [vmem:[#allocation8 + $0x8] sm:$0xff]
        %v1152 = vld [vmem:[#allocation8 + $0x10] sm:$0xff]
        %v1153 = vld [vmem:[#allocation8 + $0x18] sm:$0xff]
        %v1154 = vld [vmem:[#allocation8 + $0x20] sm:$0xff]
        %v1155 = vld [vmem:[#allocation8 + $0x28] sm:$0xff]
        %v1156 = vld [vmem:[#allocation8 + $0x30] sm:$0xff]
        %v1157 = vld [vmem:[#allocation8 + $0x38] sm:$0xff]
        %v1158 = vld [vmem:[#allocation8 + $0x40] sm:$0xff]
        %v1159 = vld [vmem:[#allocation8 + $0x48] sm:$0xff]
        %v1160 = vld [vmem:[#allocation8 + $0x50] sm:$0xff]
        %v1161 = vld [vmem:[#allocation8 + $0x58] sm:$0xff]
        %v1162 = vld [vmem:[#allocation8 + $0x60] sm:$0xff]
        %v1163 = vld [vmem:[#allocation8 + $0x68] sm:$0xff]
        %v1164 = vld [vmem:[#allocation8 + $0x70] sm:$0xff]
        %v1165 = vld [vmem:[#allocation8 + $0x78] sm:$0xff]
        %v1166 = vld [vmem:[#allocation8 + $0x80] sm:$0xff]
        %v1167 = vld [vmem:[#allocation8 + $0x88] sm:$0xff]
        %v1168 = vld [vmem:[#allocation8 + $0x90] sm:$0xff]
        %v1169 = vld [vmem:[#allocation8 + $0x98] sm:$0xff]
        %v1170 = vld [vmem:[#allocation8 + $0xa0] sm:$0xff]
        %v1171 = vld [vmem:[#allocation8 + $0xa8] sm:$0xff]
        %v1172 = vld [vmem:[#allocation8 + $0xb0] sm:$0xff]
        %v1173 = vld [vmem:[#allocation8 + $0xb8] sm:$0xff]
        %v1174 = vld [vmem:[#allocation8 + $0xc0] sm:$0xff]
        %v1175 = vld [vmem:[#allocation8 + $0xc8] sm:$0xff]
        %v1176 = vld [vmem:[#allocation8 + $0xd0] sm:$0xff]
        %v1177 = vld [vmem:[#allocation8 + $0xd8] sm:$0xff]
        %v1178 = vld [vmem:[#allocation8 + $0xe0] sm:$0xff]
        %v1179 = vld [vmem:[#allocation8 + $0xe8] sm:$0xff]
        %v1180 = vld [vmem:[#allocation8 + $0xf0] sm:$0xff]
        %v1181 = vld [vmem:[#allocation8 + $0xf8] sm:$0xff]
        %v1182 = vld [vmem:[#allocation8 + $0x100] sm:$0xff]
        %v1183 = vld [vmem:[#allocation8 + $0x108] sm:$0xff]
        %v1184 = vld [vmem:[#allocation8 + $0x110] sm:$0xff]
        %v1185 = vld [vmem:[#allocation8 + $0x118] sm:$0xff]
        %v1186 = vld [vmem:[#allocation8 + $0x120] sm:$0xff]
        %v1187 = vld [vmem:[#allocation8 + $0x128] sm:$0xff]
        %v1188 = vld [vmem:[#allocation8 + $0x130] sm:$0xff]
        %v1189 = vld [vmem:[#allocation8 + $0x138] sm:$0xff]
        %v1190 = vld [vmem:[#allocation8 + $0x140] sm:$0xff]
        %v1191 = vld [vmem:[#allocation8 + $0x148] sm:$0xff]
        %v1192 = vld [vmem:[#allocation8 + $0x150] sm:$0xff]
        %v1193 = vld [vmem:[#allocation8 + $0x158] sm:$0xff]
        %v1194 = vld [vmem:[#allocation8 + $0x160] sm:$0xff]
        %v1195 = vld [vmem:[#allocation8 + $0x168] sm:$0xff]
        %v1196 = vld [vmem:[#allocation8 + $0x170] sm:$0xff]
        %v1197 = vld [vmem:[#allocation8 + $0x178] sm:$0xff]
        %v1198 = vld [vmem:[#allocation8 + $0x180] sm:$0xff]
        %v1199 = vld [vmem:[#allocation8 + $0x188] sm:$0xff]
        %v1200 = vld [vmem:[#allocation8 + $0x190] sm:$0xff]
        %v1201 = vld [vmem:[#allocation8 + $0x198] sm:$0xff]
        %v1202 = vld [vmem:[#allocation8 + $0x1a0] sm:$0xff]
        %v1203 = vld [vmem:[#allocation8 + $0x1a8] sm:$0xff]
        %v1204 = vld [vmem:[#allocation8 + $0x1b0] sm:$0xff]
        %v1205 = vld [vmem:[#allocation8 + $0x1b8] sm:$0xff]
        %v1206 = vld [vmem:[#allocation8 + $0x1c0] sm:$0xff]
        %v1207 = vld [vmem:[#allocation8 + $0x1c8] sm:$0xff]
        %v1208 = vld [vmem:[#allocation8 + $0x1d0] sm:$0xff]
        %v1209 = vld [vmem:[#allocation8 + $0x1d8] sm:$0xff]
        %v1210 = vld [vmem:[#allocation8 + $0x1e0] sm:$0xff]
        %v1211 = vld [vmem:[#allocation8 + $0x1e8] sm:$0xff]
        %v1212 = vld [vmem:[#allocation8 + $0x1f0] sm:$0xff]
        %v1213 = vld [vmem:[#allocation8 + $0x1f8] sm:$0xff]
        %v1214 = vld [vmem:[#allocation8 + $0x200] sm:$0xff]
        %v1215 = vld [vmem:[#allocation8 + $0x208] sm:$0xff]
        %v1216 = vld [vmem:[#allocation8 + $0x210] sm:$0xff]
        %v1217 = vld [vmem:[#allocation8 + $0x218] sm:$0xff]
        %v1218 = vld [vmem:[#allocation8 + $0x220] sm:$0xff]
        %v1219 = vld [vmem:[#allocation8 + $0x228] sm:$0xff]
        %v1220 = vld [vmem:[#allocation8 + $0x230] sm:$0xff]
        %v1221 = vld [vmem:[#allocation8 + $0x238] sm:$0xff]
        %v1222 = vld [vmem:[#allocation8 + $0x240] sm:$0xff]
        %v1223 = vld [vmem:[#allocation8 + $0x248] sm:$0xff]
        %v1224 = vld [vmem:[#allocation8 + $0x250] sm:$0xff]
        %v1225 = vld [vmem:[#allocation8 + $0x258] sm:$0xff]
        %v1226 = vld [vmem:[#allocation8 + $0x260] sm:$0xff]
        %v1227 = vld [vmem:[#allocation8 + $0x268] sm:$0xff]
        %v1228 = vld [vmem:[#allocation8 + $0x270] sm:$0xff]
        %v1229 = vld [vmem:[#allocation8 + $0x278] sm:$0xff]
        %v1230 = vld [vmem:[#allocation8 + $0x280] sm:$0xff]
        %v1231 = vld [vmem:[#allocation8 + $0x288] sm:$0xff]
        %v1232 = vld [vmem:[#allocation8 + $0x290] sm:$0xff]
        %v1233 = vld [vmem:[#allocation8 + $0x298] sm:$0xff]
        %v1234 = vld [vmem:[#allocation8 + $0x2a0] sm:$0xff]
        %v1235 = vld [vmem:[#allocation8 + $0x2a8] sm:$0xff]
        %v1236 = vld [vmem:[#allocation8 + $0x2b0] sm:$0xff]
        %v1237 = vld [vmem:[#allocation8 + $0x2b8] sm:$0xff]
        %v1238 = vld [vmem:[#allocation8 + $0x2c0] sm:$0xff]
        %v1239 = vld [vmem:[#allocation8 + $0x2c8] sm:$0xff]
        %v1240 = vld [vmem:[#allocation8 + $0x2d0] sm:$0xff]
        %v1241 = vld [vmem:[#allocation8 + $0x2d8] sm:$0xff]
        %v1242 = vld [vmem:[#allocation8 + $0x2e0] sm:$0xff]
        %v1243 = vld [vmem:[#allocation8 + $0x2e8] sm:$0xff]
        %v1244 = vld [vmem:[#allocation8 + $0x2f0] sm:$0xff]
        %v1245 = vld [vmem:[#allocation8 + $0x2f8] sm:$0xff]
        %v1246 = vld [vmem:[#allocation8 + $0x300] sm:$0xff]
        %v1247 = vld [vmem:[#allocation8 + $0x308] sm:$0xff]
        %v1248 = vld [vmem:[#allocation8 + $0x310] sm:$0xff]
        %v1249 = vld [vmem:[#allocation8 + $0x318] sm:$0xff]
        %v1250 = vld [vmem:[#allocation8 + $0x320] sm:$0xff]
        %v1251 = vld [vmem:[#allocation8 + $0x328] sm:$0xff]
        %v1252 = vld [vmem:[#allocation8 + $0x330] sm:$0xff]
        %v1253 = vld [vmem:[#allocation8 + $0x338] sm:$0xff]
        %v1254 = vld [vmem:[#allocation8 + $0x340] sm:$0xff]
        %v1255 = vld [vmem:[#allocation8 + $0x348] sm:$0xff]
        %v1256 = vld [vmem:[#allocation8 + $0x350] sm:$0xff]
        %v1257 = vld [vmem:[#allocation8 + $0x358] sm:$0xff]
        %v1258 = vld [vmem:[#allocation8 + $0x360] sm:$0xff]
        %v1259 = vld [vmem:[#allocation8 + $0x368] sm:$0xff]
        %v1260 = vld [vmem:[#allocation8 + $0x370] sm:$0xff]
        %v1261 = vld [vmem:[#allocation8 + $0x378] sm:$0xff]
        %v1262 = vld [vmem:[#allocation8 + $0x380] sm:$0xff]
        %v1263 = vld [vmem:[#allocation8 + $0x388] sm:$0xff]
        %v1264 = vld [vmem:[#allocation8 + $0x390] sm:$0xff]
        %v1265 = vld [vmem:[#allocation8 + $0x398] sm:$0xff]
        %v1266 = vld [vmem:[#allocation8 + $0x3a0] sm:$0xff]
        %v1267 = vld [vmem:[#allocation8 + $0x3a8] sm:$0xff]
        %v1268 = vld [vmem:[#allocation8 + $0x3b0] sm:$0xff]
        %v1269 = vld [vmem:[#allocation8 + $0x3b8] sm:$0xff]
        %v1270 = vld [vmem:[#allocation8 + $0x3c0] sm:$0xff]
        %v1271 = vld [vmem:[#allocation8 + $0x3c8] sm:$0xff]
        %v1272 = vld [vmem:[#allocation8 + $0x3d0] sm:$0xff]
        %v1273 = vld [vmem:[#allocation8 + $0x3d8] sm:$0xff]
        %v1274 = vld [vmem:[#allocation8 + $0x3e0] sm:$0xff]
        %v1275 = vld [vmem:[#allocation8 + $0x3e8] sm:$0xff]
        %v1276 = vld [vmem:[#allocation8 + $0x3f0] sm:$0xff]
        %v1277 = vld [vmem:[#allocation8 + $0x3f8] sm:$0xff]
        %v1278 = vpack.c.bf16 %v1023, %v1020
        %v1279 = vpack.c.bf16 %v1031, %v1028
        %v1280 = vpack.c.bf16 %v1039, %v1036
        %v1281 = vpack.c.bf16 %v1047, %v1044
        %v1282 = vpack.c.bf16 %v1055, %v1052
        %v1283 = vpack.c.bf16 %v1063, %v1060
        %v1284 = vpack.c.bf16 %v1071, %v1068
        %v1285 = vpack.c.bf16 %v1079, %v1076
        %v1286 = vpack.c.bf16 %v1087, %v1084
        %v1287 = vpack.c.bf16 %v1095, %v1092
        %v1288 = vpack.c.bf16 %v1103, %v1100
        %v1289 = vpack.c.bf16 %v1111, %v1108
        %v1290 = vpack.c.bf16 %v1119, %v1116
        %v1291 = vpack.c.bf16 %v1127, %v1124
        %v1292 = vpack.c.bf16 %v1135, %v1132
        %v1293 = vpack.c.bf16 %v1143, %v1140
        %1295 = vrot.lane.b32.xlu0 %v1278, 96
        %v1296 = vpop.permute.xlu0 %1295
        %vm1297 = vcmask 64512
        %v1299 = vsel %vm1297, %v1278, 0
        %v1302 = vsel %vm1297, %v1296, 0
        %1304 = vmatprep.subr.bf16.mxu0 0
        %1305 = vmatpush1.bf16.xpose.msra.mxu0 %v1302
        %1306 = vmatprep.subr.bf16.mxu0 0
        %1307 = vmatpush1.bf16.xpose.msra.mxu0 0
        %1308 = vmatprep.subr.bf16.mxu0 0
        %1309 = vmatpush1.bf16.xpose.msra.mxu0 0
        %1310 = vmatprep.subr.bf16.mxu0 0
        %1311 = vmatpush1.bf16.xpose.msra.mxu0 0
        %1312 = vmatprep.subr.bf16.mxu0 0
        %1313 = vmatpush1.bf16.xpose.msra.mxu0 0
        %1314 = vmatprep.subr.bf16.mxu0 0
        %1315 = vmatpush1.bf16.xpose.msra.mxu0 0
        %1316 = vmatprep.subr.bf16.mxu0 0
        %1317 = vmatpush1.bf16.xpose.msra.mxu0 0
        %1318 = vmatprep.subr.bf16.mxu0 0
        %1319 = vmatpush1.bf16.xpose.msra.mxu0 0
        %1320 = vmatprep.subr.bf16.mxu0 0
        %1321 = vmatpush1.bf16.xpose.msra.mxu0 0
        %1322 = vmatprep.subr.bf16.mxu0 0
        %1323 = vmatpush1.bf16.xpose.msra.mxu0 0
        %1324 = vmatprep.subr.bf16.mxu0 0
        %1325 = vmatpush1.bf16.xpose.msra.mxu0 0
        %1326 = vmatprep.subr.bf16.mxu0 0
        %1327 = vmatpush1.bf16.xpose.msra.mxu0 0
        %1328 = vmatprep.subr.bf16.mxu0 0
        %1329 = vmatpush1.bf16.xpose.msra.mxu0 0
        %1330 = vmatprep.subr.bf16.mxu0 0
        %1331 = vmatpush1.bf16.xpose.msra.mxu0 0
        %1332 = vmatprep.subr.bf16.mxu0 0
        %1333 = vmatpush1.bf16.xpose.msra.mxu0 0
        %1334 = vmatprep.subr.bf16.mxu0 0
        %1335 = vmatpush1.bf16.xpose.msra.mxu0 0
        %1336 = vmatprep.mubr.bf16.mxu0 0
        %1337 = vmatmul.mubr.bf16.gmra.mrb[0].mxu0 %v1299
        %v1338 = vpop.f32.mrb[0].mxu0
        %v1339 = vadd.f32 %v1150, %v1338
        %v1340 = vpop.f32.mrb[0].mxu0
        %v1341 = vpop.f32.mrb[0].mxu0
        %v1342 = vadd.f32 %v1151, %v1341
        %v1343 = vpop.f32.mrb[0].mxu0
        %1344 = vdwg.mxu0
        %1346 = vrot.lane.b32.xlu0 %v1279, 96
        %v1347 = vpop.permute.xlu0 %1346
        %v1349 = vsel %vm1297, %v1279, 0
        %v1352 = vsel %vm1297, %v1347, 0
        %1354 = vmatprep.subr.bf16.mxu0 0
        %1355 = vmatpush1.bf16.xpose.msra.mxu0 %v1352
        %1356 = vmatprep.subr.bf16.mxu0 0
        %1357 = vmatpush1.bf16.xpose.msra.mxu0 0
        %1358 = vmatprep.subr.bf16.mxu0 0
        %1359 = vmatpush1.bf16.xpose.msra.mxu0 0
        %1360 = vmatprep.subr.bf16.mxu0 0
        %1361 = vmatpush1.bf16.xpose.msra.mxu0 0
        %1362 = vmatprep.subr.bf16.mxu0 0
        %1363 = vmatpush1.bf16.xpose.msra.mxu0 0
        %1364 = vmatprep.subr.bf16.mxu0 0
        %1365 = vmatpush1.bf16.xpose.msra.mxu0 0
        %1366 = vmatprep.subr.bf16.mxu0 0
        %1367 = vmatpush1.bf16.xpose.msra.mxu0 0
        %1368 = vmatprep.subr.bf16.mxu0 0
        %1369 = vmatpush1.bf16.xpose.msra.mxu0 0
        %1370 = vmatprep.subr.bf16.mxu0 0
        %1371 = vmatpush1.bf16.xpose.msra.mxu0 0
        %1372 = vmatprep.subr.bf16.mxu0 0
        %1373 = vmatpush1.bf16.xpose.msra.mxu0 0
        %1374 = vmatprep.subr.bf16.mxu0 0
        %1375 = vmatpush1.bf16.xpose.msra.mxu0 0
        %1376 = vmatprep.subr.bf16.mxu0 0
        %1377 = vmatpush1.bf16.xpose.msra.mxu0 0
        %1378 = vmatprep.subr.bf16.mxu0 0
        %1379 = vmatpush1.bf16.xpose.msra.mxu0 0
        %1380 = vmatprep.subr.bf16.mxu0 0
        %1381 = vmatpush1.bf16.xpose.msra.mxu0 0
        %1382 = vmatprep.subr.bf16.mxu0 0
        %1383 = vmatpush1.bf16.xpose.msra.mxu0 0
        %1384 = vmatprep.subr.bf16.mxu0 0
        %1385 = vmatpush1.bf16.xpose.msra.mxu0 0
        %1386 = vmatprep.mubr.bf16.mxu0 0
        %1387 = vmatmul.mubr.bf16.gmra.mrb[0].mxu0 %v1349
        %v1388 = vpop.f32.mrb[0].mxu0
        %v1389 = vadd.f32 %v1152, %v1388
        %v1390 = vpop.f32.mrb[0].mxu0
        %v1391 = vpop.f32.mrb[0].mxu0
        %v1392 = vadd.f32 %v1153, %v1391
        %v1393 = vpop.f32.mrb[0].mxu0
        %1394 = vdwg.mxu0
        %1396 = vrot.lane.b32.xlu0 %v1280, 96
        %v1397 = vpop.permute.xlu0 %1396
        %v1399 = vsel %vm1297, %v1280, 0
        %v1402 = vsel %vm1297, %v1397, 0
        %1404 = vmatprep.subr.bf16.mxu0 0
        %1405 = vmatpush1.bf16.xpose.msra.mxu0 %v1402
        %1406 = vmatprep.subr.bf16.mxu0 0
        %1407 = vmatpush1.bf16.xpose.msra.mxu0 0
        %1408 = vmatprep.subr.bf16.mxu0 0
        %1409 = vmatpush1.bf16.xpose.msra.mxu0 0
        %1410 = vmatprep.subr.bf16.mxu0 0
        %1411 = vmatpush1.bf16.xpose.msra.mxu0 0
        %1412 = vmatprep.subr.bf16.mxu0 0
        %1413 = vmatpush1.bf16.xpose.msra.mxu0 0
        %1414 = vmatprep.subr.bf16.mxu0 0
        %1415 = vmatpush1.bf16.xpose.msra.mxu0 0
        %1416 = vmatprep.subr.bf16.mxu0 0
        %1417 = vmatpush1.bf16.xpose.msra.mxu0 0
        %1418 = vmatprep.subr.bf16.mxu0 0
        %1419 = vmatpush1.bf16.xpose.msra.mxu0 0
        %1420 = vmatprep.subr.bf16.mxu0 0
        %1421 = vmatpush1.bf16.xpose.msra.mxu0 0
        %1422 = vmatprep.subr.bf16.mxu0 0
        %1423 = vmatpush1.bf16.xpose.msra.mxu0 0
        %1424 = vmatprep.subr.bf16.mxu0 0
        %1425 = vmatpush1.bf16.xpose.msra.mxu0 0
        %1426 = vmatprep.subr.bf16.mxu0 0
        %1427 = vmatpush1.bf16.xpose.msra.mxu0 0
        %1428 = vmatprep.subr.bf16.mxu0 0
        %1429 = vmatpush1.bf16.xpose.msra.mxu0 0
        %1430 = vmatprep.subr.bf16.mxu0 0
        %1431 = vmatpush1.bf16.xpose.msra.mxu0 0
        %1432 = vmatprep.subr.bf16.mxu0 0
        %1433 = vmatpush1.bf16.xpose.msra.mxu0 0
        %1434 = vmatprep.subr.bf16.mxu0 0
        %1435 = vmatpush1.bf16.xpose.msra.mxu0 0
        %1436 = vmatprep.mubr.bf16.mxu0 0
        %1437 = vmatmul.mubr.bf16.gmra.mrb[0].mxu0 %v1399
        %v1438 = vpop.f32.mrb[0].mxu0
        %v1439 = vadd.f32 %v1154, %v1438
        %v1440 = vpop.f32.mrb[0].mxu0
        %v1441 = vpop.f32.mrb[0].mxu0
        %v1442 = vadd.f32 %v1155, %v1441
        %v1443 = vpop.f32.mrb[0].mxu0
        %1444 = vdwg.mxu0
        %1446 = vrot.lane.b32.xlu0 %v1281, 96
        %v1447 = vpop.permute.xlu0 %1446
        %v1449 = vsel %vm1297, %v1281, 0
        %v1452 = vsel %vm1297, %v1447, 0
        %1454 = vmatprep.subr.bf16.mxu0 0
        %1455 = vmatpush1.bf16.xpose.msra.mxu0 %v1452
        %1456 = vmatprep.subr.bf16.mxu0 0
        %1457 = vmatpush1.bf16.xpose.msra.mxu0 0
        %1458 = vmatprep.subr.bf16.mxu0 0
        %1459 = vmatpush1.bf16.xpose.msra.mxu0 0
        %1460 = vmatprep.subr.bf16.mxu0 0
        %1461 = vmatpush1.bf16.xpose.msra.mxu0 0
        %1462 = vmatprep.subr.bf16.mxu0 0
        %1463 = vmatpush1.bf16.xpose.msra.mxu0 0
        %1464 = vmatprep.subr.bf16.mxu0 0
        %1465 = vmatpush1.bf16.xpose.msra.mxu0 0
        %1466 = vmatprep.subr.bf16.mxu0 0
        %1467 = vmatpush1.bf16.xpose.msra.mxu0 0
        %1468 = vmatprep.subr.bf16.mxu0 0
        %1469 = vmatpush1.bf16.xpose.msra.mxu0 0
        %1470 = vmatprep.subr.bf16.mxu0 0
        %1471 = vmatpush1.bf16.xpose.msra.mxu0 0
        %1472 = vmatprep.subr.bf16.mxu0 0
        %1473 = vmatpush1.bf16.xpose.msra.mxu0 0
        %1474 = vmatprep.subr.bf16.mxu0 0
        %1475 = vmatpush1.bf16.xpose.msra.mxu0 0
        %1476 = vmatprep.subr.bf16.mxu0 0
        %1477 = vmatpush1.bf16.xpose.msra.mxu0 0
        %1478 = vmatprep.subr.bf16.mxu0 0
        %1479 = vmatpush1.bf16.xpose.msra.mxu0 0
        %1480 = vmatprep.subr.bf16.mxu0 0
        %1481 = vmatpush1.bf16.xpose.msra.mxu0 0
        %1482 = vmatprep.subr.bf16.mxu0 0
        %1483 = vmatpush1.bf16.xpose.msra.mxu0 0
        %1484 = vmatprep.subr.bf16.mxu0 0
        %1485 = vmatpush1.bf16.xpose.msra.mxu0 0
        %1486 = vmatprep.mubr.bf16.mxu0 0
        %1487 = vmatmul.mubr.bf16.gmra.mrb[0].mxu0 %v1449
        %v1488 = vpop.f32.mrb[0].mxu0
        %v1489 = vadd.f32 %v1156, %v1488
        %v1490 = vpop.f32.mrb[0].mxu0
        %v1491 = vpop.f32.mrb[0].mxu0
        %v1492 = vadd.f32 %v1157, %v1491
        %v1493 = vpop.f32.mrb[0].mxu0
        %1494 = vdwg.mxu0
        %1496 = vrot.lane.b32.xlu0 %v1282, 96
        %v1497 = vpop.permute.xlu0 %1496
        %v1499 = vsel %vm1297, %v1282, 0
        %v1502 = vsel %vm1297, %v1497, 0
        %1504 = vmatprep.subr.bf16.mxu0 0
        %1505 = vmatpush1.bf16.xpose.msra.mxu0 %v1502
        %1506 = vmatprep.subr.bf16.mxu0 0
        %1507 = vmatpush1.bf16.xpose.msra.mxu0 0
        %1508 = vmatprep.subr.bf16.mxu0 0
        %1509 = vmatpush1.bf16.xpose.msra.mxu0 0
        %1510 = vmatprep.subr.bf16.mxu0 0
        %1511 = vmatpush1.bf16.xpose.msra.mxu0 0
        %1512 = vmatprep.subr.bf16.mxu0 0
        %1513 = vmatpush1.bf16.xpose.msra.mxu0 0
        %1514 = vmatprep.subr.bf16.mxu0 0
        %1515 = vmatpush1.bf16.xpose.msra.mxu0 0
        %1516 = vmatprep.subr.bf16.mxu0 0
        %1517 = vmatpush1.bf16.xpose.msra.mxu0 0
        %1518 = vmatprep.subr.bf16.mxu0 0
        %1519 = vmatpush1.bf16.xpose.msra.mxu0 0
        %1520 = vmatprep.subr.bf16.mxu0 0
        %1521 = vmatpush1.bf16.xpose.msra.mxu0 0
        %1522 = vmatprep.subr.bf16.mxu0 0
        %1523 = vmatpush1.bf16.xpose.msra.mxu0 0
        %1524 = vmatprep.subr.bf16.mxu0 0
        %1525 = vmatpush1.bf16.xpose.msra.mxu0 0
        %1526 = vmatprep.subr.bf16.mxu0 0
        %1527 = vmatpush1.bf16.xpose.msra.mxu0 0
        %1528 = vmatprep.subr.bf16.mxu0 0
        %1529 = vmatpush1.bf16.xpose.msra.mxu0 0
        %1530 = vmatprep.subr.bf16.mxu0 0
        %1531 = vmatpush1.bf16.xpose.msra.mxu0 0
        %1532 = vmatprep.subr.bf16.mxu0 0
        %1533 = vmatpush1.bf16.xpose.msra.mxu0 0
        %1534 = vmatprep.subr.bf16.mxu0 0
        %1535 = vmatpush1.bf16.xpose.msra.mxu0 0
        %1536 = vmatprep.mubr.bf16.mxu0 0
        %1537 = vmatmul.mubr.bf16.gmra.mrb[0].mxu0 %v1499
        %v1538 = vpop.f32.mrb[0].mxu0
        %v1539 = vadd.f32 %v1158, %v1538
        %v1540 = vpop.f32.mrb[0].mxu0
        %v1541 = vpop.f32.mrb[0].mxu0
        %v1542 = vadd.f32 %v1159, %v1541
        %v1543 = vpop.f32.mrb[0].mxu0
        %1544 = vdwg.mxu0
        %1546 = vrot.lane.b32.xlu0 %v1283, 96
        %v1547 = vpop.permute.xlu0 %1546
        %v1549 = vsel %vm1297, %v1283, 0
        %v1552 = vsel %vm1297, %v1547, 0
        %1554 = vmatprep.subr.bf16.mxu0 0
        %1555 = vmatpush1.bf16.xpose.msra.mxu0 %v1552
        %1556 = vmatprep.subr.bf16.mxu0 0
        %1557 = vmatpush1.bf16.xpose.msra.mxu0 0
        %1558 = vmatprep.subr.bf16.mxu0 0
        %1559 = vmatpush1.bf16.xpose.msra.mxu0 0
        %1560 = vmatprep.subr.bf16.mxu0 0
        %1561 = vmatpush1.bf16.xpose.msra.mxu0 0
        %1562 = vmatprep.subr.bf16.mxu0 0
        %1563 = vmatpush1.bf16.xpose.msra.mxu0 0
        %1564 = vmatprep.subr.bf16.mxu0 0
        %1565 = vmatpush1.bf16.xpose.msra.mxu0 0
        %1566 = vmatprep.subr.bf16.mxu0 0
        %1567 = vmatpush1.bf16.xpose.msra.mxu0 0
        %1568 = vmatprep.subr.bf16.mxu0 0
        %1569 = vmatpush1.bf16.xpose.msra.mxu0 0
        %1570 = vmatprep.subr.bf16.mxu0 0
        %1571 = vmatpush1.bf16.xpose.msra.mxu0 0
        %1572 = vmatprep.subr.bf16.mxu0 0
        %1573 = vmatpush1.bf16.xpose.msra.mxu0 0
        %1574 = vmatprep.subr.bf16.mxu0 0
        %1575 = vmatpush1.bf16.xpose.msra.mxu0 0
        %1576 = vmatprep.subr.bf16.mxu0 0
        %1577 = vmatpush1.bf16.xpose.msra.mxu0 0
        %1578 = vmatprep.subr.bf16.mxu0 0
        %1579 = vmatpush1.bf16.xpose.msra.mxu0 0
        %1580 = vmatprep.subr.bf16.mxu0 0
        %1581 = vmatpush1.bf16.xpose.msra.mxu0 0
        %1582 = vmatprep.subr.bf16.mxu0 0
        %1583 = vmatpush1.bf16.xpose.msra.mxu0 0
        %1584 = vmatprep.subr.bf16.mxu0 0
        %1585 = vmatpush1.bf16.xpose.msra.mxu0 0
        %1586 = vmatprep.mubr.bf16.mxu0 0
        %1587 = vmatmul.mubr.bf16.gmra.mrb[0].mxu0 %v1549
        %v1588 = vpop.f32.mrb[0].mxu0
        %v1589 = vadd.f32 %v1160, %v1588
        %v1590 = vpop.f32.mrb[0].mxu0
        %v1591 = vpop.f32.mrb[0].mxu0
        %v1592 = vadd.f32 %v1161, %v1591
        %v1593 = vpop.f32.mrb[0].mxu0
        %1594 = vdwg.mxu0
        %1596 = vrot.lane.b32.xlu0 %v1284, 96
        %v1597 = vpop.permute.xlu0 %1596
        %v1599 = vsel %vm1297, %v1284, 0
        %v1602 = vsel %vm1297, %v1597, 0
        %1604 = vmatprep.subr.bf16.mxu0 0
        %1605 = vmatpush1.bf16.xpose.msra.mxu0 %v1602
        %1606 = vmatprep.subr.bf16.mxu0 0
        %1607 = vmatpush1.bf16.xpose.msra.mxu0 0
        %1608 = vmatprep.subr.bf16.mxu0 0
        %1609 = vmatpush1.bf16.xpose.msra.mxu0 0
        %1610 = vmatprep.subr.bf16.mxu0 0
        %1611 = vmatpush1.bf16.xpose.msra.mxu0 0
        %1612 = vmatprep.subr.bf16.mxu0 0
        %1613 = vmatpush1.bf16.xpose.msra.mxu0 0
        %1614 = vmatprep.subr.bf16.mxu0 0
        %1615 = vmatpush1.bf16.xpose.msra.mxu0 0
        %1616 = vmatprep.subr.bf16.mxu0 0
        %1617 = vmatpush1.bf16.xpose.msra.mxu0 0
        %1618 = vmatprep.subr.bf16.mxu0 0
        %1619 = vmatpush1.bf16.xpose.msra.mxu0 0
        %1620 = vmatprep.subr.bf16.mxu0 0
        %1621 = vmatpush1.bf16.xpose.msra.mxu0 0
        %1622 = vmatprep.subr.bf16.mxu0 0
        %1623 = vmatpush1.bf16.xpose.msra.mxu0 0
        %1624 = vmatprep.subr.bf16.mxu0 0
        %1625 = vmatpush1.bf16.xpose.msra.mxu0 0
        %1626 = vmatprep.subr.bf16.mxu0 0
        %1627 = vmatpush1.bf16.xpose.msra.mxu0 0
        %1628 = vmatprep.subr.bf16.mxu0 0
        %1629 = vmatpush1.bf16.xpose.msra.mxu0 0
        %1630 = vmatprep.subr.bf16.mxu0 0
        %1631 = vmatpush1.bf16.xpose.msra.mxu0 0
        %1632 = vmatprep.subr.bf16.mxu0 0
        %1633 = vmatpush1.bf16.xpose.msra.mxu0 0
        %1634 = vmatprep.subr.bf16.mxu0 0
        %1635 = vmatpush1.bf16.xpose.msra.mxu0 0
        %1636 = vmatprep.mubr.bf16.mxu0 0
        %1637 = vmatmul.mubr.bf16.gmra.mrb[0].mxu0 %v1599
        %v1638 = vpop.f32.mrb[0].mxu0
        %v1639 = vadd.f32 %v1162, %v1638
        %v1640 = vpop.f32.mrb[0].mxu0
        %v1641 = vpop.f32.mrb[0].mxu0
        %v1642 = vadd.f32 %v1163, %v1641
        %v1643 = vpop.f32.mrb[0].mxu0
        %1644 = vdwg.mxu0
        %1646 = vrot.lane.b32.xlu0 %v1285, 96
        %v1647 = vpop.permute.xlu0 %1646
        %v1649 = vsel %vm1297, %v1285, 0
        %v1652 = vsel %vm1297, %v1647, 0
        %1654 = vmatprep.subr.bf16.mxu0 0
        %1655 = vmatpush1.bf16.xpose.msra.mxu0 %v1652
        %1656 = vmatprep.subr.bf16.mxu0 0
        %1657 = vmatpush1.bf16.xpose.msra.mxu0 0
        %1658 = vmatprep.subr.bf16.mxu0 0
        %1659 = vmatpush1.bf16.xpose.msra.mxu0 0
        %1660 = vmatprep.subr.bf16.mxu0 0
        %1661 = vmatpush1.bf16.xpose.msra.mxu0 0
        %1662 = vmatprep.subr.bf16.mxu0 0
        %1663 = vmatpush1.bf16.xpose.msra.mxu0 0
        %1664 = vmatprep.subr.bf16.mxu0 0
        %1665 = vmatpush1.bf16.xpose.msra.mxu0 0
        %1666 = vmatprep.subr.bf16.mxu0 0
        %1667 = vmatpush1.bf16.xpose.msra.mxu0 0
        %1668 = vmatprep.subr.bf16.mxu0 0
        %1669 = vmatpush1.bf16.xpose.msra.mxu0 0
        %1670 = vmatprep.subr.bf16.mxu0 0
        %1671 = vmatpush1.bf16.xpose.msra.mxu0 0
        %1672 = vmatprep.subr.bf16.mxu0 0
        %1673 = vmatpush1.bf16.xpose.msra.mxu0 0
        %1674 = vmatprep.subr.bf16.mxu0 0
        %1675 = vmatpush1.bf16.xpose.msra.mxu0 0
        %1676 = vmatprep.subr.bf16.mxu0 0
        %1677 = vmatpush1.bf16.xpose.msra.mxu0 0
        %1678 = vmatprep.subr.bf16.mxu0 0
        %1679 = vmatpush1.bf16.xpose.msra.mxu0 0
        %1680 = vmatprep.subr.bf16.mxu0 0
        %1681 = vmatpush1.bf16.xpose.msra.mxu0 0
        %1682 = vmatprep.subr.bf16.mxu0 0
        %1683 = vmatpush1.bf16.xpose.msra.mxu0 0
        %1684 = vmatprep.subr.bf16.mxu0 0
        %1685 = vmatpush1.bf16.xpose.msra.mxu0 0
        %1686 = vmatprep.mubr.bf16.mxu0 0
        %1687 = vmatmul.mubr.bf16.gmra.mrb[0].mxu0 %v1649
        %v1688 = vpop.f32.mrb[0].mxu0
        %v1689 = vadd.f32 %v1164, %v1688
        %v1690 = vpop.f32.mrb[0].mxu0
        %v1691 = vpop.f32.mrb[0].mxu0
        %v1692 = vadd.f32 %v1165, %v1691
        %v1693 = vpop.f32.mrb[0].mxu0
        %1694 = vdwg.mxu0
        %1696 = vrot.lane.b32.xlu0 %v1286, 96
        %v1697 = vpop.permute.xlu0 %1696
        %v1699 = vsel %vm1297, %v1286, 0
        %v1702 = vsel %vm1297, %v1697, 0
        %1704 = vmatprep.subr.bf16.mxu0 0
        %1705 = vmatpush1.bf16.xpose.msra.mxu0 %v1702
        %1706 = vmatprep.subr.bf16.mxu0 0
        %1707 = vmatpush1.bf16.xpose.msra.mxu0 0
        %1708 = vmatprep.subr.bf16.mxu0 0
        %1709 = vmatpush1.bf16.xpose.msra.mxu0 0
        %1710 = vmatprep.subr.bf16.mxu0 0
        %1711 = vmatpush1.bf16.xpose.msra.mxu0 0
        %1712 = vmatprep.subr.bf16.mxu0 0
        %1713 = vmatpush1.bf16.xpose.msra.mxu0 0
        %1714 = vmatprep.subr.bf16.mxu0 0
        %1715 = vmatpush1.bf16.xpose.msra.mxu0 0
        %1716 = vmatprep.subr.bf16.mxu0 0
        %1717 = vmatpush1.bf16.xpose.msra.mxu0 0
        %1718 = vmatprep.subr.bf16.mxu0 0
        %1719 = vmatpush1.bf16.xpose.msra.mxu0 0
        %1720 = vmatprep.subr.bf16.mxu0 0
        %1721 = vmatpush1.bf16.xpose.msra.mxu0 0
        %1722 = vmatprep.subr.bf16.mxu0 0
        %1723 = vmatpush1.bf16.xpose.msra.mxu0 0
        %1724 = vmatprep.subr.bf16.mxu0 0
        %1725 = vmatpush1.bf16.xpose.msra.mxu0 0
        %1726 = vmatprep.subr.bf16.mxu0 0
        %1727 = vmatpush1.bf16.xpose.msra.mxu0 0
        %1728 = vmatprep.subr.bf16.mxu0 0
        %1729 = vmatpush1.bf16.xpose.msra.mxu0 0
        %1730 = vmatprep.subr.bf16.mxu0 0
        %1731 = vmatpush1.bf16.xpose.msra.mxu0 0
        %1732 = vmatprep.subr.bf16.mxu0 0
        %1733 = vmatpush1.bf16.xpose.msra.mxu0 0
        %1734 = vmatprep.subr.bf16.mxu0 0
        %1735 = vmatpush1.bf16.xpose.msra.mxu0 0
        %1736 = vmatprep.mubr.bf16.mxu0 0
        %1737 = vmatmul.mubr.bf16.gmra.mrb[0].mxu0 %v1699
        %v1738 = vpop.f32.mrb[0].mxu0
        %v1739 = vadd.f32 %v1166, %v1738
        %v1740 = vpop.f32.mrb[0].mxu0
        %v1741 = vpop.f32.mrb[0].mxu0
        %v1742 = vadd.f32 %v1167, %v1741
        %v1743 = vpop.f32.mrb[0].mxu0
        %1744 = vdwg.mxu0
        %1746 = vrot.lane.b32.xlu0 %v1287, 96
        %v1747 = vpop.permute.xlu0 %1746
        %v1749 = vsel %vm1297, %v1287, 0
        %v1752 = vsel %vm1297, %v1747, 0
        %1754 = vmatprep.subr.bf16.mxu0 0
        %1755 = vmatpush1.bf16.xpose.msra.mxu0 %v1752
        %1756 = vmatprep.subr.bf16.mxu0 0
        %1757 = vmatpush1.bf16.xpose.msra.mxu0 0
        %1758 = vmatprep.subr.bf16.mxu0 0
        %1759 = vmatpush1.bf16.xpose.msra.mxu0 0
        %1760 = vmatprep.subr.bf16.mxu0 0
        %1761 = vmatpush1.bf16.xpose.msra.mxu0 0
        %1762 = vmatprep.subr.bf16.mxu0 0
        %1763 = vmatpush1.bf16.xpose.msra.mxu0 0
        %1764 = vmatprep.subr.bf16.mxu0 0
        %1765 = vmatpush1.bf16.xpose.msra.mxu0 0
        %1766 = vmatprep.subr.bf16.mxu0 0
        %1767 = vmatpush1.bf16.xpose.msra.mxu0 0
        %1768 = vmatprep.subr.bf16.mxu0 0
        %1769 = vmatpush1.bf16.xpose.msra.mxu0 0
        %1770 = vmatprep.subr.bf16.mxu0 0
        %1771 = vmatpush1.bf16.xpose.msra.mxu0 0
        %1772 = vmatprep.subr.bf16.mxu0 0
        %1773 = vmatpush1.bf16.xpose.msra.mxu0 0
        %1774 = vmatprep.subr.bf16.mxu0 0
        %1775 = vmatpush1.bf16.xpose.msra.mxu0 0
        %1776 = vmatprep.subr.bf16.mxu0 0
        %1777 = vmatpush1.bf16.xpose.msra.mxu0 0
        %1778 = vmatprep.subr.bf16.mxu0 0
        %1779 = vmatpush1.bf16.xpose.msra.mxu0 0
        %1780 = vmatprep.subr.bf16.mxu0 0
        %1781 = vmatpush1.bf16.xpose.msra.mxu0 0
        %1782 = vmatprep.subr.bf16.mxu0 0
        %1783 = vmatpush1.bf16.xpose.msra.mxu0 0
        %1784 = vmatprep.subr.bf16.mxu0 0
        %1785 = vmatpush1.bf16.xpose.msra.mxu0 0
        %1786 = vmatprep.mubr.bf16.mxu0 0
        %1787 = vmatmul.mubr.bf16.gmra.mrb[0].mxu0 %v1749
        %v1788 = vpop.f32.mrb[0].mxu0
        %v1789 = vadd.f32 %v1168, %v1788
        %v1790 = vpop.f32.mrb[0].mxu0
        %v1791 = vpop.f32.mrb[0].mxu0
        %v1792 = vadd.f32 %v1169, %v1791
        %v1793 = vpop.f32.mrb[0].mxu0
        %1794 = vdwg.mxu0
        %1796 = vrot.lane.b32.xlu0 %v1288, 96
        %v1797 = vpop.permute.xlu0 %1796
        %v1799 = vsel %vm1297, %v1288, 0
        %v1802 = vsel %vm1297, %v1797, 0
        %1804 = vmatprep.subr.bf16.mxu0 0
        %1805 = vmatpush1.bf16.xpose.msra.mxu0 %v1802
        %1806 = vmatprep.subr.bf16.mxu0 0
        %1807 = vmatpush1.bf16.xpose.msra.mxu0 0
        %1808 = vmatprep.subr.bf16.mxu0 0
        %1809 = vmatpush1.bf16.xpose.msra.mxu0 0
        %1810 = vmatprep.subr.bf16.mxu0 0
        %1811 = vmatpush1.bf16.xpose.msra.mxu0 0
        %1812 = vmatprep.subr.bf16.mxu0 0
        %1813 = vmatpush1.bf16.xpose.msra.mxu0 0
        %1814 = vmatprep.subr.bf16.mxu0 0
        %1815 = vmatpush1.bf16.xpose.msra.mxu0 0
        %1816 = vmatprep.subr.bf16.mxu0 0
        %1817 = vmatpush1.bf16.xpose.msra.mxu0 0
        %1818 = vmatprep.subr.bf16.mxu0 0
        %1819 = vmatpush1.bf16.xpose.msra.mxu0 0
        %1820 = vmatprep.subr.bf16.mxu0 0
        %1821 = vmatpush1.bf16.xpose.msra.mxu0 0
        %1822 = vmatprep.subr.bf16.mxu0 0
        %1823 = vmatpush1.bf16.xpose.msra.mxu0 0
        %1824 = vmatprep.subr.bf16.mxu0 0
        %1825 = vmatpush1.bf16.xpose.msra.mxu0 0
        %1826 = vmatprep.subr.bf16.mxu0 0
        %1827 = vmatpush1.bf16.xpose.msra.mxu0 0
        %1828 = vmatprep.subr.bf16.mxu0 0
        %1829 = vmatpush1.bf16.xpose.msra.mxu0 0
        %1830 = vmatprep.subr.bf16.mxu0 0
        %1831 = vmatpush1.bf16.xpose.msra.mxu0 0
        %1832 = vmatprep.subr.bf16.mxu0 0
        %1833 = vmatpush1.bf16.xpose.msra.mxu0 0
        %1834 = vmatprep.subr.bf16.mxu0 0
        %1835 = vmatpush1.bf16.xpose.msra.mxu0 0
        %1836 = vmatprep.mubr.bf16.mxu0 0
        %1837 = vmatmul.mubr.bf16.gmra.mrb[0].mxu0 %v1799
        %v1838 = vpop.f32.mrb[0].mxu0
        %v1839 = vadd.f32 %v1170, %v1838
        %v1840 = vpop.f32.mrb[0].mxu0
        %v1841 = vpop.f32.mrb[0].mxu0
        %v1842 = vadd.f32 %v1171, %v1841
        %v1843 = vpop.f32.mrb[0].mxu0
        %1844 = vdwg.mxu0
        %1846 = vrot.lane.b32.xlu0 %v1289, 96
        %v1847 = vpop.permute.xlu0 %1846
        %v1849 = vsel %vm1297, %v1289, 0
        %v1852 = vsel %vm1297, %v1847, 0
        %1854 = vmatprep.subr.bf16.mxu0 0
        %1855 = vmatpush1.bf16.xpose.msra.mxu0 %v1852
        %1856 = vmatprep.subr.bf16.mxu0 0
        %1857 = vmatpush1.bf16.xpose.msra.mxu0 0
        %1858 = vmatprep.subr.bf16.mxu0 0
        %1859 = vmatpush1.bf16.xpose.msra.mxu0 0
        %1860 = vmatprep.subr.bf16.mxu0 0
        %1861 = vmatpush1.bf16.xpose.msra.mxu0 0
        %1862 = vmatprep.subr.bf16.mxu0 0
        %1863 = vmatpush1.bf16.xpose.msra.mxu0 0
        %1864 = vmatprep.subr.bf16.mxu0 0
        %1865 = vmatpush1.bf16.xpose.msra.mxu0 0
        %1866 = vmatprep.subr.bf16.mxu0 0
        %1867 = vmatpush1.bf16.xpose.msra.mxu0 0
        %1868 = vmatprep.subr.bf16.mxu0 0
        %1869 = vmatpush1.bf16.xpose.msra.mxu0 0
        %1870 = vmatprep.subr.bf16.mxu0 0
        %1871 = vmatpush1.bf16.xpose.msra.mxu0 0
        %1872 = vmatprep.subr.bf16.mxu0 0
        %1873 = vmatpush1.bf16.xpose.msra.mxu0 0
        %1874 = vmatprep.subr.bf16.mxu0 0
        %1875 = vmatpush1.bf16.xpose.msra.mxu0 0
        %1876 = vmatprep.subr.bf16.mxu0 0
        %1877 = vmatpush1.bf16.xpose.msra.mxu0 0
        %1878 = vmatprep.subr.bf16.mxu0 0
        %1879 = vmatpush1.bf16.xpose.msra.mxu0 0
        %1880 = vmatprep.subr.bf16.mxu0 0
        %1881 = vmatpush1.bf16.xpose.msra.mxu0 0
        %1882 = vmatprep.subr.bf16.mxu0 0
        %1883 = vmatpush1.bf16.xpose.msra.mxu0 0
        %1884 = vmatprep.subr.bf16.mxu0 0
        %1885 = vmatpush1.bf16.xpose.msra.mxu0 0
        %1886 = vmatprep.mubr.bf16.mxu0 0
        %1887 = vmatmul.mubr.bf16.gmra.mrb[0].mxu0 %v1849
        %v1888 = vpop.f32.mrb[0].mxu0
        %v1889 = vadd.f32 %v1172, %v1888
        %v1890 = vpop.f32.mrb[0].mxu0
        %v1891 = vpop.f32.mrb[0].mxu0
        %v1892 = vadd.f32 %v1173, %v1891
        %v1893 = vpop.f32.mrb[0].mxu0
        %1894 = vdwg.mxu0
        %1896 = vrot.lane.b32.xlu0 %v1290, 96
        %v1897 = vpop.permute.xlu0 %1896
        %v1899 = vsel %vm1297, %v1290, 0
        %v1902 = vsel %vm1297, %v1897, 0
        %1904 = vmatprep.subr.bf16.mxu0 0
        %1905 = vmatpush1.bf16.xpose.msra.mxu0 %v1902
        %1906 = vmatprep.subr.bf16.mxu0 0
        %1907 = vmatpush1.bf16.xpose.msra.mxu0 0
        %1908 = vmatprep.subr.bf16.mxu0 0
        %1909 = vmatpush1.bf16.xpose.msra.mxu0 0
        %1910 = vmatprep.subr.bf16.mxu0 0
        %1911 = vmatpush1.bf16.xpose.msra.mxu0 0
        %1912 = vmatprep.subr.bf16.mxu0 0
        %1913 = vmatpush1.bf16.xpose.msra.mxu0 0
        %1914 = vmatprep.subr.bf16.mxu0 0
        %1915 = vmatpush1.bf16.xpose.msra.mxu0 0
        %1916 = vmatprep.subr.bf16.mxu0 0
        %1917 = vmatpush1.bf16.xpose.msra.mxu0 0
        %1918 = vmatprep.subr.bf16.mxu0 0
        %1919 = vmatpush1.bf16.xpose.msra.mxu0 0
        %1920 = vmatprep.subr.bf16.mxu0 0
        %1921 = vmatpush1.bf16.xpose.msra.mxu0 0
        %1922 = vmatprep.subr.bf16.mxu0 0
        %1923 = vmatpush1.bf16.xpose.msra.mxu0 0
        %1924 = vmatprep.subr.bf16.mxu0 0
        %1925 = vmatpush1.bf16.xpose.msra.mxu0 0
        %1926 = vmatprep.subr.bf16.mxu0 0
        %1927 = vmatpush1.bf16.xpose.msra.mxu0 0
        %1928 = vmatprep.subr.bf16.mxu0 0
        %1929 = vmatpush1.bf16.xpose.msra.mxu0 0
        %1930 = vmatprep.subr.bf16.mxu0 0
        %1931 = vmatpush1.bf16.xpose.msra.mxu0 0
        %1932 = vmatprep.subr.bf16.mxu0 0
        %1933 = vmatpush1.bf16.xpose.msra.mxu0 0
        %1934 = vmatprep.subr.bf16.mxu0 0
        %1935 = vmatpush1.bf16.xpose.msra.mxu0 0
        %1936 = vmatprep.mubr.bf16.mxu0 0
        %1937 = vmatmul.mubr.bf16.gmra.mrb[0].mxu0 %v1899
        %v1938 = vpop.f32.mrb[0].mxu0
        %v1939 = vadd.f32 %v1174, %v1938
        %v1940 = vpop.f32.mrb[0].mxu0
        %v1941 = vpop.f32.mrb[0].mxu0
        %v1942 = vadd.f32 %v1175, %v1941
        %v1943 = vpop.f32.mrb[0].mxu0
        %1944 = vdwg.mxu0
        %1946 = vrot.lane.b32.xlu0 %v1291, 96
        %v1947 = vpop.permute.xlu0 %1946
        %v1949 = vsel %vm1297, %v1291, 0
        %v1952 = vsel %vm1297, %v1947, 0
        %1954 = vmatprep.subr.bf16.mxu0 0
        %1955 = vmatpush1.bf16.xpose.msra.mxu0 %v1952
        %1956 = vmatprep.subr.bf16.mxu0 0
        %1957 = vmatpush1.bf16.xpose.msra.mxu0 0
        %1958 = vmatprep.subr.bf16.mxu0 0
        %1959 = vmatpush1.bf16.xpose.msra.mxu0 0
        %1960 = vmatprep.subr.bf16.mxu0 0
        %1961 = vmatpush1.bf16.xpose.msra.mxu0 0
        %1962 = vmatprep.subr.bf16.mxu0 0
        %1963 = vmatpush1.bf16.xpose.msra.mxu0 0
        %1964 = vmatprep.subr.bf16.mxu0 0
        %1965 = vmatpush1.bf16.xpose.msra.mxu0 0
        %1966 = vmatprep.subr.bf16.mxu0 0
        %1967 = vmatpush1.bf16.xpose.msra.mxu0 0
        %1968 = vmatprep.subr.bf16.mxu0 0
        %1969 = vmatpush1.bf16.xpose.msra.mxu0 0
        %1970 = vmatprep.subr.bf16.mxu0 0
        %1971 = vmatpush1.bf16.xpose.msra.mxu0 0
        %1972 = vmatprep.subr.bf16.mxu0 0
        %1973 = vmatpush1.bf16.xpose.msra.mxu0 0
        %1974 = vmatprep.subr.bf16.mxu0 0
        %1975 = vmatpush1.bf16.xpose.msra.mxu0 0
        %1976 = vmatprep.subr.bf16.mxu0 0
        %1977 = vmatpush1.bf16.xpose.msra.mxu0 0
        %1978 = vmatprep.subr.bf16.mxu0 0
        %1979 = vmatpush1.bf16.xpose.msra.mxu0 0
        %1980 = vmatprep.subr.bf16.mxu0 0
        %1981 = vmatpush1.bf16.xpose.msra.mxu0 0
        %1982 = vmatprep.subr.bf16.mxu0 0
        %1983 = vmatpush1.bf16.xpose.msra.mxu0 0
        %1984 = vmatprep.subr.bf16.mxu0 0
        %1985 = vmatpush1.bf16.xpose.msra.mxu0 0
        %1986 = vmatprep.mubr.bf16.mxu0 0
        %1987 = vmatmul.mubr.bf16.gmra.mrb[0].mxu0 %v1949
        %v1988 = vpop.f32.mrb[0].mxu0
        %v1989 = vadd.f32 %v1176, %v1988
        %v1990 = vpop.f32.mrb[0].mxu0
        %v1991 = vpop.f32.mrb[0].mxu0
        %v1992 = vadd.f32 %v1177, %v1991
        %v1993 = vpop.f32.mrb[0].mxu0
        %1994 = vdwg.mxu0
        %1996 = vrot.lane.b32.xlu0 %v1292, 96
        %v1997 = vpop.permute.xlu0 %1996
        %v1999 = vsel %vm1297, %v1292, 0
        %v2002 = vsel %vm1297, %v1997, 0
        %2004 = vmatprep.subr.bf16.mxu0 0
        %2005 = vmatpush1.bf16.xpose.msra.mxu0 %v2002
        %2006 = vmatprep.subr.bf16.mxu0 0
        %2007 = vmatpush1.bf16.xpose.msra.mxu0 0
        %2008 = vmatprep.subr.bf16.mxu0 0
        %2009 = vmatpush1.bf16.xpose.msra.mxu0 0
        %2010 = vmatprep.subr.bf16.mxu0 0
        %2011 = vmatpush1.bf16.xpose.msra.mxu0 0
        %2012 = vmatprep.subr.bf16.mxu0 0
        %2013 = vmatpush1.bf16.xpose.msra.mxu0 0
        %2014 = vmatprep.subr.bf16.mxu0 0
        %2015 = vmatpush1.bf16.xpose.msra.mxu0 0
        %2016 = vmatprep.subr.bf16.mxu0 0
        %2017 = vmatpush1.bf16.xpose.msra.mxu0 0
        %2018 = vmatprep.subr.bf16.mxu0 0
        %2019 = vmatpush1.bf16.xpose.msra.mxu0 0
        %2020 = vmatprep.subr.bf16.mxu0 0
        %2021 = vmatpush1.bf16.xpose.msra.mxu0 0
        %2022 = vmatprep.subr.bf16.mxu0 0
        %2023 = vmatpush1.bf16.xpose.msra.mxu0 0
        %2024 = vmatprep.subr.bf16.mxu0 0
        %2025 = vmatpush1.bf16.xpose.msra.mxu0 0
        %2026 = vmatprep.subr.bf16.mxu0 0
        %2027 = vmatpush1.bf16.xpose.msra.mxu0 0
        %2028 = vmatprep.subr.bf16.mxu0 0
        %2029 = vmatpush1.bf16.xpose.msra.mxu0 0
        %2030 = vmatprep.subr.bf16.mxu0 0
        %2031 = vmatpush1.bf16.xpose.msra.mxu0 0
        %2032 = vmatprep.subr.bf16.mxu0 0
        %2033 = vmatpush1.bf16.xpose.msra.mxu0 0
        %2034 = vmatprep.subr.bf16.mxu0 0
        %2035 = vmatpush1.bf16.xpose.msra.mxu0 0
        %2036 = vmatprep.mubr.bf16.mxu0 0
        %2037 = vmatmul.mubr.bf16.gmra.mrb[0].mxu0 %v1999
        %v2038 = vpop.f32.mrb[0].mxu0
        %v2039 = vadd.f32 %v1178, %v2038
        %v2040 = vpop.f32.mrb[0].mxu0
        %v2041 = vpop.f32.mrb[0].mxu0
        %v2042 = vadd.f32 %v1179, %v2041
        %v2043 = vpop.f32.mrb[0].mxu0
        %2044 = vdwg.mxu0
        %2046 = vrot.lane.b32.xlu0 %v1293, 96
        %v2047 = vpop.permute.xlu0 %2046
        %v2049 = vsel %vm1297, %v1293, 0
        %v2052 = vsel %vm1297, %v2047, 0
        %2054 = vmatprep.subr.bf16.mxu0 0
        %2055 = vmatpush1.bf16.xpose.msra.mxu0 %v2052
        %2056 = vmatprep.subr.bf16.mxu0 0
        %2057 = vmatpush1.bf16.xpose.msra.mxu0 0
        %2058 = vmatprep.subr.bf16.mxu0 0
        %2059 = vmatpush1.bf16.xpose.msra.mxu0 0
        %2060 = vmatprep.subr.bf16.mxu0 0
        %2061 = vmatpush1.bf16.xpose.msra.mxu0 0
        %2062 = vmatprep.subr.bf16.mxu0 0
        %2063 = vmatpush1.bf16.xpose.msra.mxu0 0
        %2064 = vmatprep.subr.bf16.mxu0 0
        %2065 = vmatpush1.bf16.xpose.msra.mxu0 0
        %2066 = vmatprep.subr.bf16.mxu0 0
        %2067 = vmatpush1.bf16.xpose.msra.mxu0 0
        %2068 = vmatprep.subr.bf16.mxu0 0
        %2069 = vmatpush1.bf16.xpose.msra.mxu0 0
        %2070 = vmatprep.subr.bf16.mxu0 0
        %2071 = vmatpush1.bf16.xpose.msra.mxu0 0
        %2072 = vmatprep.subr.bf16.mxu0 0
        %2073 = vmatpush1.bf16.xpose.msra.mxu0 0
        %2074 = vmatprep.subr.bf16.mxu0 0
        %2075 = vmatpush1.bf16.xpose.msra.mxu0 0
        %2076 = vmatprep.subr.bf16.mxu0 0
        %2077 = vmatpush1.bf16.xpose.msra.mxu0 0
        %2078 = vmatprep.subr.bf16.mxu0 0
        %2079 = vmatpush1.bf16.xpose.msra.mxu0 0
        %2080 = vmatprep.subr.bf16.mxu0 0
        %2081 = vmatpush1.bf16.xpose.msra.mxu0 0
        %2082 = vmatprep.subr.bf16.mxu0 0
        %2083 = vmatpush1.bf16.xpose.msra.mxu0 0
        %2084 = vmatprep.subr.bf16.mxu0 0
        %2085 = vmatpush1.bf16.xpose.msra.mxu0 0
        %2086 = vmatprep.mubr.bf16.mxu0 0
        %2087 = vmatmul.mubr.bf16.gmra.mrb[0].mxu0 %v2049
        %v2088 = vpop.f32.mrb[0].mxu0
        %v2089 = vadd.f32 %v1180, %v2088
        %v2090 = vpop.f32.mrb[0].mxu0
        %v2091 = vpop.f32.mrb[0].mxu0
        %v2092 = vadd.f32 %v1181, %v2091
        %v2093 = vpop.f32.mrb[0].mxu0
        %2094 = vdwg.mxu0
        %vm2095 = vcmask 130048
        %v2096 = vsel %vm2095, %v1339, -inf
        %2097 = vmax.xlane.f32.xlu0 %v2096
        %v2098 = vpop.xlane.xlu0 %2097
        %v2099 = vsel %vm2095, %v1342, -inf
        %2100 = vmax.xlane.f32.xlu0 %v2099
        %v2101 = vpop.xlane.xlu0 %2100
        %v2102 = vsel %vm2095, %v1389, -inf
        %2103 = vmax.xlane.f32.xlu0 %v2102
        %v2104 = vpop.xlane.xlu0 %2103
        %v2105 = vsel %vm2095, %v1392, -inf
        %2106 = vmax.xlane.f32.xlu0 %v2105
        %v2107 = vpop.xlane.xlu0 %2106
        %v2108 = vsel %vm2095, %v1439, -inf
        %2109 = vmax.xlane.f32.xlu0 %v2108
        %v2110 = vpop.xlane.xlu0 %2109
        %v2111 = vsel %vm2095, %v1442, -inf
        %2112 = vmax.xlane.f32.xlu0 %v2111
        %v2113 = vpop.xlane.xlu0 %2112
        %v2114 = vsel %vm2095, %v1489, -inf
        %2115 = vmax.xlane.f32.xlu0 %v2114
        %v2116 = vpop.xlane.xlu0 %2115
        %v2117 = vsel %vm2095, %v1492, -inf
        %2118 = vmax.xlane.f32.xlu0 %v2117
        %v2119 = vpop.xlane.xlu0 %2118
        %v2120 = vsel %vm2095, %v1539, -inf
        %2121 = vmax.xlane.f32.xlu0 %v2120
        %v2122 = vpop.xlane.xlu0 %2121
        %v2123 = vsel %vm2095, %v1542, -inf
        %2124 = vmax.xlane.f32.xlu0 %v2123
        %v2125 = vpop.xlane.xlu0 %2124
        %v2126 = vsel %vm2095, %v1589, -inf
        %2127 = vmax.xlane.f32.xlu0 %v2126
        %v2128 = vpop.xlane.xlu0 %2127
        %v2129 = vsel %vm2095, %v1592, -inf
        %2130 = vmax.xlane.f32.xlu0 %v2129
        %v2131 = vpop.xlane.xlu0 %2130
        %v2132 = vsel %vm2095, %v1639, -inf
        %2133 = vmax.xlane.f32.xlu0 %v2132
        %v2134 = vpop.xlane.xlu0 %2133
        %v2135 = vsel %vm2095, %v1642, -inf
        %2136 = vmax.xlane.f32.xlu0 %v2135
        %v2137 = vpop.xlane.xlu0 %2136
        %v2138 = vsel %vm2095, %v1689, -inf
        %2139 = vmax.xlane.f32.xlu0 %v2138
        %v2140 = vpop.xlane.xlu0 %2139
        %v2141 = vsel %vm2095, %v1692, -inf
        %2142 = vmax.xlane.f32.xlu0 %v2141
        %v2143 = vpop.xlane.xlu0 %2142
        %v2144 = vsel %vm2095, %v1739, -inf
        %2145 = vmax.xlane.f32.xlu0 %v2144
        %v2146 = vpop.xlane.xlu0 %2145
        %v2147 = vsel %vm2095, %v1742, -inf
        %2148 = vmax.xlane.f32.xlu0 %v2147
        %v2149 = vpop.xlane.xlu0 %2148
        %v2150 = vsel %vm2095, %v1789, -inf
        %2151 = vmax.xlane.f32.xlu0 %v2150
        %v2152 = vpop.xlane.xlu0 %2151
        %v2153 = vsel %vm2095, %v1792, -inf
        %2154 = vmax.xlane.f32.xlu0 %v2153
        %v2155 = vpop.xlane.xlu0 %2154
        %v2156 = vsel %vm2095, %v1839, -inf
        %2157 = vmax.xlane.f32.xlu0 %v2156
        %v2158 = vpop.xlane.xlu0 %2157
        %v2159 = vsel %vm2095, %v1842, -inf
        %2160 = vmax.xlane.f32.xlu0 %v2159
        %v2161 = vpop.xlane.xlu0 %2160
        %v2162 = vsel %vm2095, %v1889, -inf
        %2163 = vmax.xlane.f32.xlu0 %v2162
        %v2164 = vpop.xlane.xlu0 %2163
        %v2165 = vsel %vm2095, %v1892, -inf
        %2166 = vmax.xlane.f32.xlu0 %v2165
        %v2167 = vpop.xlane.xlu0 %2166
        %v2168 = vsel %vm2095, %v1939, -inf
        %2169 = vmax.xlane.f32.xlu0 %v2168
        %v2170 = vpop.xlane.xlu0 %2169
        %v2171 = vsel %vm2095, %v1942, -inf
        %2172 = vmax.xlane.f32.xlu0 %v2171
        %v2173 = vpop.xlane.xlu0 %2172
        %v2174 = vsel %vm2095, %v1989, -inf
        %2175 = vmax.xlane.f32.xlu0 %v2174
        %v2176 = vpop.xlane.xlu0 %2175
        %v2177 = vsel %vm2095, %v1992, -inf
        %2178 = vmax.xlane.f32.xlu0 %v2177
        %v2179 = vpop.xlane.xlu0 %2178
        %v2180 = vsel %vm2095, %v2039, -inf
        %2181 = vmax.xlane.f32.xlu0 %v2180
        %v2182 = vpop.xlane.xlu0 %2181
        %v2183 = vsel %vm2095, %v2042, -inf
        %2184 = vmax.xlane.f32.xlu0 %v2183
        %v2185 = vpop.xlane.xlu0 %2184
        %v2186 = vsel %vm2095, %v2089, -inf
        %2187 = vmax.xlane.f32.xlu0 %v2186
        %v2188 = vpop.xlane.xlu0 %2187
        %v2189 = vsel %vm2095, %v2092, -inf
        %2190 = vmax.xlane.f32.xlu0 %v2189
        %v2191 = vpop.xlane.xlu0 %2190
        %v2192 = vsub.f32 %v1339, %v2098
        %v2193 = vsub.f32 %v1342, %v2101
        %v2194 = vsub.f32 %v1389, %v2104
        %v2195 = vsub.f32 %v1392, %v2107
        %v2196 = vsub.f32 %v1439, %v2110
        %v2197 = vsub.f32 %v1442, %v2113
        %v2198 = vsub.f32 %v1489, %v2116
        %v2199 = vsub.f32 %v1492, %v2119
        %v2200 = vsub.f32 %v1539, %v2122
        %v2201 = vsub.f32 %v1542, %v2125
        %v2202 = vsub.f32 %v1589, %v2128
        %v2203 = vsub.f32 %v1592, %v2131
        %v2204 = vsub.f32 %v1639, %v2134
        %v2205 = vsub.f32 %v1642, %v2137
        %v2206 = vsub.f32 %v1689, %v2140
        %v2207 = vsub.f32 %v1692, %v2143
        %v2208 = vsub.f32 %v1739, %v2146
        %v2209 = vsub.f32 %v1742, %v2149
        %v2210 = vsub.f32 %v1789, %v2152
        %v2211 = vsub.f32 %v1792, %v2155
        %v2212 = vsub.f32 %v1839, %v2158
        %v2213 = vsub.f32 %v1842, %v2161
        %v2214 = vsub.f32 %v1889, %v2164
        %v2215 = vsub.f32 %v1892, %v2167
        %v2216 = vsub.f32 %v1939, %v2170
        %v2217 = vsub.f32 %v1942, %v2173
        %v2218 = vsub.f32 %v1989, %v2176
        %v2219 = vsub.f32 %v1992, %v2179
        %v2220 = vsub.f32 %v2039, %v2182
        %v2221 = vsub.f32 %v2042, %v2185
        %v2222 = vsub.f32 %v2089, %v2188
        %v2223 = vsub.f32 %v2092, %v2191
        %v2224 = vmul.f32 %v2192, 1.442695
        %v2225 = vpow.pop %v2224
        %v2226 = vmul.f32 %v2193, 1.442695
        %v2227 = vpow.pop %v2226
        %v2228 = vmul.f32 %v2194, 1.442695
        %v2229 = vpow.pop %v2228
        %v2230 = vmul.f32 %v2195, 1.442695
        %v2231 = vpow.pop %v2230
        %v2232 = vmul.f32 %v2196, 1.442695
        %v2233 = vpow.pop %v2232
        %v2234 = vmul.f32 %v2197, 1.442695
        %v2235 = vpow.pop %v2234
        %v2236 = vmul.f32 %v2198, 1.442695
        %v2237 = vpow.pop %v2236
        %v2238 = vmul.f32 %v2199, 1.442695
        %v2239 = vpow.pop %v2238
        %v2240 = vmul.f32 %v2200, 1.442695
        %v2241 = vpow.pop %v2240
        %v2242 = vmul.f32 %v2201, 1.442695
        %v2243 = vpow.pop %v2242
        %v2244 = vmul.f32 %v2202, 1.442695
        %v2245 = vpow.pop %v2244
        %v2246 = vmul.f32 %v2203, 1.442695
        %v2247 = vpow.pop %v2246
        %v2248 = vmul.f32 %v2204, 1.442695
        %v2249 = vpow.pop %v2248
        %v2250 = vmul.f32 %v2205, 1.442695
        %v2251 = vpow.pop %v2250
        %v2252 = vmul.f32 %v2206, 1.442695
        %v2253 = vpow.pop %v2252
        %v2254 = vmul.f32 %v2207, 1.442695
        %v2255 = vpow.pop %v2254
        %v2256 = vmul.f32 %v2208, 1.442695
        %v2257 = vpow.pop %v2256
        %v2258 = vmul.f32 %v2209, 1.442695
        %v2259 = vpow.pop %v2258
        %v2260 = vmul.f32 %v2210, 1.442695
        %v2261 = vpow.pop %v2260
        %v2262 = vmul.f32 %v2211, 1.442695
        %v2263 = vpow.pop %v2262
        %v2264 = vmul.f32 %v2212, 1.442695
        %v2265 = vpow.pop %v2264
        %v2266 = vmul.f32 %v2213, 1.442695
        %v2267 = vpow.pop %v2266
        %v2268 = vmul.f32 %v2214, 1.442695
        %v2269 = vpow.pop %v2268
        %v2270 = vmul.f32 %v2215, 1.442695
        %v2271 = vpow.pop %v2270
        %v2272 = vmul.f32 %v2216, 1.442695
        %v2273 = vpow.pop %v2272
        %v2274 = vmul.f32 %v2217, 1.442695
        %v2275 = vpow.pop %v2274
        %v2276 = vmul.f32 %v2218, 1.442695
        %v2277 = vpow.pop %v2276
        %v2278 = vmul.f32 %v2219, 1.442695
        %v2279 = vpow.pop %v2278
        %v2280 = vmul.f32 %v2220, 1.442695
        %v2281 = vpow.pop %v2280
        %v2282 = vmul.f32 %v2221, 1.442695
        %v2283 = vpow.pop %v2282
        %v2284 = vmul.f32 %v2222, 1.442695
        %v2285 = vpow.pop %v2284
        %v2286 = vmul.f32 %v2223, 1.442695
        %v2287 = vpow.pop %v2286
        %v2288 = vsel %vm2095, %v2225, 0.0
        %2289 = vadd.xlane.f32.xlu0 %v2288
        %v2290 = vpop.xlane.xlu0 %2289
        %v2291 = vsel %vm2095, %v2227, 0.0
        %2292 = vadd.xlane.f32.xlu0 %v2291
        %v2293 = vpop.xlane.xlu0 %2292
        %v2294 = vsel %vm2095, %v2229, 0.0
        %2295 = vadd.xlane.f32.xlu0 %v2294
        %v2296 = vpop.xlane.xlu0 %2295
        %v2297 = vsel %vm2095, %v2231, 0.0
        %2298 = vadd.xlane.f32.xlu0 %v2297
        %v2299 = vpop.xlane.xlu0 %2298
        %v2300 = vsel %vm2095, %v2233, 0.0
        %2301 = vadd.xlane.f32.xlu0 %v2300
        %v2302 = vpop.xlane.xlu0 %2301
        %v2303 = vsel %vm2095, %v2235, 0.0
        %2304 = vadd.xlane.f32.xlu0 %v2303
        %v2305 = vpop.xlane.xlu0 %2304
        %v2306 = vsel %vm2095, %v2237, 0.0
        %2307 = vadd.xlane.f32.xlu0 %v2306
        %v2308 = vpop.xlane.xlu0 %2307
        %v2309 = vsel %vm2095, %v2239, 0.0
        %2310 = vadd.xlane.f32.xlu0 %v2309
        %v2311 = vpop.xlane.xlu0 %2310
        %v2312 = vsel %vm2095, %v2241, 0.0
        %2313 = vadd.xlane.f32.xlu0 %v2312
        %v2314 = vpop.xlane.xlu0 %2313
        %v2315 = vsel %vm2095, %v2243, 0.0
        %2316 = vadd.xlane.f32.xlu0 %v2315
        %v2317 = vpop.xlane.xlu0 %2316
        %v2318 = vsel %vm2095, %v2245, 0.0
        %2319 = vadd.xlane.f32.xlu0 %v2318
        %v2320 = vpop.xlane.xlu0 %2319
        %v2321 = vsel %vm2095, %v2247, 0.0
        %2322 = vadd.xlane.f32.xlu0 %v2321
        %v2323 = vpop.xlane.xlu0 %2322
        %v2324 = vsel %vm2095, %v2249, 0.0
        %2325 = vadd.xlane.f32.xlu0 %v2324
        %v2326 = vpop.xlane.xlu0 %2325
        %v2327 = vsel %vm2095, %v2251, 0.0
        %2328 = vadd.xlane.f32.xlu0 %v2327
        %v2329 = vpop.xlane.xlu0 %2328
        %v2330 = vsel %vm2095, %v2253, 0.0
        %2331 = vadd.xlane.f32.xlu0 %v2330
        %v2332 = vpop.xlane.xlu0 %2331
        %v2333 = vsel %vm2095, %v2255, 0.0
        %2334 = vadd.xlane.f32.xlu0 %v2333
        %v2335 = vpop.xlane.xlu0 %2334
        %v2336 = vsel %vm2095, %v2257, 0.0
        %2337 = vadd.xlane.f32.xlu0 %v2336
        %v2338 = vpop.xlane.xlu0 %2337
        %v2339 = vsel %vm2095, %v2259, 0.0
        %2340 = vadd.xlane.f32.xlu0 %v2339
        %v2341 = vpop.xlane.xlu0 %2340
        %v2342 = vsel %vm2095, %v2261, 0.0
        %2343 = vadd.xlane.f32.xlu0 %v2342
        %v2344 = vpop.xlane.xlu0 %2343
        %v2345 = vsel %vm2095, %v2263, 0.0
        %2346 = vadd.xlane.f32.xlu0 %v2345
        %v2347 = vpop.xlane.xlu0 %2346
        %v2348 = vsel %vm2095, %v2265, 0.0
        %2349 = vadd.xlane.f32.xlu0 %v2348
        %v2350 = vpop.xlane.xlu0 %2349
        %v2351 = vsel %vm2095, %v2267, 0.0
        %2352 = vadd.xlane.f32.xlu0 %v2351
        %v2353 = vpop.xlane.xlu0 %2352
        %v2354 = vsel %vm2095, %v2269, 0.0
        %2355 = vadd.xlane.f32.xlu0 %v2354
        %v2356 = vpop.xlane.xlu0 %2355
        %v2357 = vsel %vm2095, %v2271, 0.0
        %2358 = vadd.xlane.f32.xlu0 %v2357
        %v2359 = vpop.xlane.xlu0 %2358
        %v2360 = vsel %vm2095, %v2273, 0.0
        %2361 = vadd.xlane.f32.xlu0 %v2360
        %v2362 = vpop.xlane.xlu0 %2361
        %v2363 = vsel %vm2095, %v2275, 0.0
        %2364 = vadd.xlane.f32.xlu0 %v2363
        %v2365 = vpop.xlane.xlu0 %2364
        %v2366 = vsel %vm2095, %v2277, 0.0
        %2367 = vadd.xlane.f32.xlu0 %v2366
        %v2368 = vpop.xlane.xlu0 %2367
        %v2369 = vsel %vm2095, %v2279, 0.0
        %2370 = vadd.xlane.f32.xlu0 %v2369
        %v2371 = vpop.xlane.xlu0 %2370
        %v2372 = vsel %vm2095, %v2281, 0.0
        %2373 = vadd.xlane.f32.xlu0 %v2372
        %v2374 = vpop.xlane.xlu0 %2373
        %v2375 = vsel %vm2095, %v2283, 0.0
        %2376 = vadd.xlane.f32.xlu0 %v2375
        %v2377 = vpop.xlane.xlu0 %2376
        %v2378 = vsel %vm2095, %v2285, 0.0
        %2379 = vadd.xlane.f32.xlu0 %v2378
        %v2380 = vpop.xlane.xlu0 %2379
        %v2381 = vsel %vm2095, %v2287, 0.0
        %2382 = vadd.xlane.f32.xlu0 %v2381
        %v2383 = vpop.xlane.xlu0 %2382
        %v2384 = vrcp.pop %v2290
        %v2385 = vrcp.pop %v2293
        %v2386 = vrcp.pop %v2296
        %v2387 = vrcp.pop %v2299
        %v2388 = vrcp.pop %v2302
        %v2389 = vrcp.pop %v2305
        %v2390 = vrcp.pop %v2308
        %v2391 = vrcp.pop %v2311
        %v2392 = vrcp.pop %v2314
        %v2393 = vrcp.pop %v2317
        %v2394 = vrcp.pop %v2320
        %v2395 = vrcp.pop %v2323
        %v2396 = vrcp.pop %v2326
        %v2397 = vrcp.pop %v2329
        %v2398 = vrcp.pop %v2332
        %v2399 = vrcp.pop %v2335
        %v2400 = vrcp.pop %v2338
        %v2401 = vrcp.pop %v2341
        %v2402 = vrcp.pop %v2344
        %v2403 = vrcp.pop %v2347
        %v2404 = vrcp.pop %v2350
        %v2405 = vrcp.pop %v2353
        %v2406 = vrcp.pop %v2356
        %v2407 = vrcp.pop %v2359
        %v2408 = vrcp.pop %v2362
        %v2409 = vrcp.pop %v2365
        %v2410 = vrcp.pop %v2368
        %v2411 = vrcp.pop %v2371
        %v2412 = vrcp.pop %v2374
        %v2413 = vrcp.pop %v2377
        %v2414 = vrcp.pop %v2380
        %v2415 = vrcp.pop %v2383
        %v2416 = vmul.f32 %v2225, %v2384
        %v2417 = vmul.f32 %v2227, %v2385
        %v2418 = vmul.f32 %v2229, %v2386
        %v2419 = vmul.f32 %v2231, %v2387
        %v2420 = vmul.f32 %v2233, %v2388
        %v2421 = vmul.f32 %v2235, %v2389
        %v2422 = vmul.f32 %v2237, %v2390
        %v2423 = vmul.f32 %v2239, %v2391
        %v2424 = vmul.f32 %v2241, %v2392
        %v2425 = vmul.f32 %v2243, %v2393
        %v2426 = vmul.f32 %v2245, %v2394
        %v2427 = vmul.f32 %v2247, %v2395
        %v2428 = vmul.f32 %v2249, %v2396
        %v2429 = vmul.f32 %v2251, %v2397
        %v2430 = vmul.f32 %v2253, %v2398
        %v2431 = vmul.f32 %v2255, %v2399
        %v2432 = vmul.f32 %v2257, %v2400
        %v2433 = vmul.f32 %v2259, %v2401
        %v2434 = vmul.f32 %v2261, %v2402
        %v2435 = vmul.f32 %v2263, %v2403
        %v2436 = vmul.f32 %v2265, %v2404
        %v2437 = vmul.f32 %v2267, %v2405
        %v2438 = vmul.f32 %v2269, %v2406
        %v2439 = vmul.f32 %v2271, %v2407
        %v2440 = vmul.f32 %v2273, %v2408
        %v2441 = vmul.f32 %v2275, %v2409
        %v2442 = vmul.f32 %v2277, %v2410
        %v2443 = vmul.f32 %v2279, %v2411
        %v2444 = vmul.f32 %v2281, %v2412
        %v2445 = vmul.f32 %v2283, %v2413
        %v2446 = vmul.f32 %v2285, %v2414
        %v2447 = vmul.f32 %v2287, %v2415
        %v2448 = vpack.c.bf16 %v2417, %v2416
        %v2449 = vpack.c.bf16 %v2419, %v2418
        %v2450 = vpack.c.bf16 %v2421, %v2420
        %v2451 = vpack.c.bf16 %v2423, %v2422
        %v2452 = vpack.c.bf16 %v2425, %v2424
        %v2453 = vpack.c.bf16 %v2427, %v2426
        %v2454 = vpack.c.bf16 %v2429, %v2428
        %v2455 = vpack.c.bf16 %v2431, %v2430
        %v2456 = vpack.c.bf16 %v2433, %v2432
        %v2457 = vpack.c.bf16 %v2435, %v2434
        %v2458 = vpack.c.bf16 %v2437, %v2436
        %v2459 = vpack.c.bf16 %v2439, %v2438
        %v2460 = vpack.c.bf16 %v2441, %v2440
        %v2461 = vpack.c.bf16 %v2443, %v2442
        %v2462 = vpack.c.bf16 %v2445, %v2444
        %v2463 = vpack.c.bf16 %v2447, %v2446
        %2464 = vrot.lane.b32.xlu0 %v1278, 64
        %v2465 = vpop.permute.xlu0 %2464
        %v2468 = vsel %vm2095, %v2448, 0
        %2470 = vmatprep.subr.bf16.mxu0 0
        %2471 = vmatpush1.bf16.msra.mxu0 %v2465
        %2472 = vmatprep.subr.bf16.mxu0 0
        %2473 = vmatpush1.bf16.msra.mxu0 0
        %2474 = vmatprep.subr.bf16.mxu0 0
        %2475 = vmatpush1.bf16.msra.mxu0 0
        %2476 = vmatprep.subr.bf16.mxu0 0
        %2477 = vmatpush1.bf16.msra.mxu0 0
        %2478 = vmatprep.subr.bf16.mxu0 0
        %2479 = vmatpush1.bf16.msra.mxu0 0
        %2480 = vmatprep.subr.bf16.mxu0 0
        %2481 = vmatpush1.bf16.msra.mxu0 0
        %2482 = vmatprep.subr.bf16.mxu0 0
        %2483 = vmatpush1.bf16.msra.mxu0 0
        %2484 = vmatprep.subr.bf16.mxu0 0
        %2485 = vmatpush1.bf16.msra.mxu0 0
        %2486 = vmatprep.subr.bf16.mxu0 0
        %2487 = vmatpush1.bf16.msra.mxu0 0
        %2488 = vmatprep.subr.bf16.mxu0 0
        %2489 = vmatpush1.bf16.msra.mxu0 0
        %2490 = vmatprep.subr.bf16.mxu0 0
        %2491 = vmatpush1.bf16.msra.mxu0 0
        %2492 = vmatprep.subr.bf16.mxu0 0
        %2493 = vmatpush1.bf16.msra.mxu0 0
        %2494 = vmatprep.subr.bf16.mxu0 0
        %2495 = vmatpush1.bf16.msra.mxu0 0
        %2496 = vmatprep.subr.bf16.mxu0 0
        %2497 = vmatpush1.bf16.msra.mxu0 0
        %2498 = vmatprep.subr.bf16.mxu0 0
        %2499 = vmatpush1.bf16.msra.mxu0 0
        %2500 = vmatprep.subr.bf16.mxu0 0
        %2501 = vmatpush1.bf16.msra.mxu0 0
        %2502 = vmatprep.mubr.bf16.mxu0 0
        %2503 = vmatmul.mubr.bf16.gmra.mrb[0].mxu0 %v2468
        %v2504 = vpop.f32.mrb[0].mxu0
        %v2505 = vadd.f32 0.0, %v2504
        %v2506 = vpop.f32.mrb[0].mxu0
        %v2507 = vpop.f32.mrb[0].mxu0
        %v2508 = vadd.f32 0.0, %v2507
        %v2509 = vpop.f32.mrb[0].mxu0
        %2510 = vdwg.mxu0
        %2511 = vrot.lane.b32.xlu0 %v1279, 64
        %v2512 = vpop.permute.xlu0 %2511
        %v2515 = vsel %vm2095, %v2449, 0
        %2517 = vmatprep.subr.bf16.mxu0 0
        %2518 = vmatpush1.bf16.msra.mxu0 %v2512
        %2519 = vmatprep.subr.bf16.mxu0 0
        %2520 = vmatpush1.bf16.msra.mxu0 0
        %2521 = vmatprep.subr.bf16.mxu0 0
        %2522 = vmatpush1.bf16.msra.mxu0 0
        %2523 = vmatprep.subr.bf16.mxu0 0
        %2524 = vmatpush1.bf16.msra.mxu0 0
        %2525 = vmatprep.subr.bf16.mxu0 0
        %2526 = vmatpush1.bf16.msra.mxu0 0
        %2527 = vmatprep.subr.bf16.mxu0 0
        %2528 = vmatpush1.bf16.msra.mxu0 0
        %2529 = vmatprep.subr.bf16.mxu0 0
        %2530 = vmatpush1.bf16.msra.mxu0 0
        %2531 = vmatprep.subr.bf16.mxu0 0
        %2532 = vmatpush1.bf16.msra.mxu0 0
        %2533 = vmatprep.subr.bf16.mxu0 0
        %2534 = vmatpush1.bf16.msra.mxu0 0
        %2535 = vmatprep.subr.bf16.mxu0 0
        %2536 = vmatpush1.bf16.msra.mxu0 0
        %2537 = vmatprep.subr.bf16.mxu0 0
        %2538 = vmatpush1.bf16.msra.mxu0 0
        %2539 = vmatprep.subr.bf16.mxu0 0
        %2540 = vmatpush1.bf16.msra.mxu0 0
        %2541 = vmatprep.subr.bf16.mxu0 0
        %2542 = vmatpush1.bf16.msra.mxu0 0
        %2543 = vmatprep.subr.bf16.mxu0 0
        %2544 = vmatpush1.bf16.msra.mxu0 0
        %2545 = vmatprep.subr.bf16.mxu0 0
        %2546 = vmatpush1.bf16.msra.mxu0 0
        %2547 = vmatprep.subr.bf16.mxu0 0
        %2548 = vmatpush1.bf16.msra.mxu0 0
        %2549 = vmatprep.mubr.bf16.mxu0 0
        %2550 = vmatmul.mubr.bf16.gmra.mrb[0].mxu0 %v2515
        %v2551 = vpop.f32.mrb[0].mxu0
        %v2552 = vadd.f32 0.0, %v2551
        %v2553 = vpop.f32.mrb[0].mxu0
        %v2554 = vpop.f32.mrb[0].mxu0
        %v2555 = vadd.f32 0.0, %v2554
        %v2556 = vpop.f32.mrb[0].mxu0
        %2557 = vdwg.mxu0
        %2558 = vrot.lane.b32.xlu0 %v1280, 64
        %v2559 = vpop.permute.xlu0 %2558
        %v2562 = vsel %vm2095, %v2450, 0
        %2564 = vmatprep.subr.bf16.mxu0 0
        %2565 = vmatpush1.bf16.msra.mxu0 %v2559
        %2566 = vmatprep.subr.bf16.mxu0 0
        %2567 = vmatpush1.bf16.msra.mxu0 0
        %2568 = vmatprep.subr.bf16.mxu0 0
        %2569 = vmatpush1.bf16.msra.mxu0 0
        %2570 = vmatprep.subr.bf16.mxu0 0
        %2571 = vmatpush1.bf16.msra.mxu0 0
        %2572 = vmatprep.subr.bf16.mxu0 0
        %2573 = vmatpush1.bf16.msra.mxu0 0
        %2574 = vmatprep.subr.bf16.mxu0 0
        %2575 = vmatpush1.bf16.msra.mxu0 0
        %2576 = vmatprep.subr.bf16.mxu0 0
        %2577 = vmatpush1.bf16.msra.mxu0 0
        %2578 = vmatprep.subr.bf16.mxu0 0
        %2579 = vmatpush1.bf16.msra.mxu0 0
        %2580 = vmatprep.subr.bf16.mxu0 0
        %2581 = vmatpush1.bf16.msra.mxu0 0
        %2582 = vmatprep.subr.bf16.mxu0 0
        %2583 = vmatpush1.bf16.msra.mxu0 0
        %2584 = vmatprep.subr.bf16.mxu0 0
        %2585 = vmatpush1.bf16.msra.mxu0 0
        %2586 = vmatprep.subr.bf16.mxu0 0
        %2587 = vmatpush1.bf16.msra.mxu0 0
        %2588 = vmatprep.subr.bf16.mxu0 0
        %2589 = vmatpush1.bf16.msra.mxu0 0
        %2590 = vmatprep.subr.bf16.mxu0 0
        %2591 = vmatpush1.bf16.msra.mxu0 0
        %2592 = vmatprep.subr.bf16.mxu0 0
        %2593 = vmatpush1.bf16.msra.mxu0 0
        %2594 = vmatprep.subr.bf16.mxu0 0
        %2595 = vmatpush1.bf16.msra.mxu0 0
        %2596 = vmatprep.mubr.bf16.mxu0 0
        %2597 = vmatmul.mubr.bf16.gmra.mrb[0].mxu0 %v2562
        %v2598 = vpop.f32.mrb[0].mxu0
        %v2599 = vadd.f32 0.0, %v2598
        %v2600 = vpop.f32.mrb[0].mxu0
        %v2601 = vpop.f32.mrb[0].mxu0
        %v2602 = vadd.f32 0.0, %v2601
        %v2603 = vpop.f32.mrb[0].mxu0
        %2604 = vdwg.mxu0
        %2605 = vrot.lane.b32.xlu0 %v1281, 64
        %v2606 = vpop.permute.xlu0 %2605
        %v2609 = vsel %vm2095, %v2451, 0
        %2611 = vmatprep.subr.bf16.mxu0 0
        %2612 = vmatpush1.bf16.msra.mxu0 %v2606
        %2613 = vmatprep.subr.bf16.mxu0 0
        %2614 = vmatpush1.bf16.msra.mxu0 0
        %2615 = vmatprep.subr.bf16.mxu0 0
        %2616 = vmatpush1.bf16.msra.mxu0 0
        %2617 = vmatprep.subr.bf16.mxu0 0
        %2618 = vmatpush1.bf16.msra.mxu0 0
        %2619 = vmatprep.subr.bf16.mxu0 0
        %2620 = vmatpush1.bf16.msra.mxu0 0
        %2621 = vmatprep.subr.bf16.mxu0 0
        %2622 = vmatpush1.bf16.msra.mxu0 0
        %2623 = vmatprep.subr.bf16.mxu0 0
        %2624 = vmatpush1.bf16.msra.mxu0 0
        %2625 = vmatprep.subr.bf16.mxu0 0
        %2626 = vmatpush1.bf16.msra.mxu0 0
        %2627 = vmatprep.subr.bf16.mxu0 0
        %2628 = vmatpush1.bf16.msra.mxu0 0
        %2629 = vmatprep.subr.bf16.mxu0 0
        %2630 = vmatpush1.bf16.msra.mxu0 0
        %2631 = vmatprep.subr.bf16.mxu0 0
        %2632 = vmatpush1.bf16.msra.mxu0 0
        %2633 = vmatprep.subr.bf16.mxu0 0
        %2634 = vmatpush1.bf16.msra.mxu0 0
        %2635 = vmatprep.subr.bf16.mxu0 0
        %2636 = vmatpush1.bf16.msra.mxu0 0
        %2637 = vmatprep.subr.bf16.mxu0 0
        %2638 = vmatpush1.bf16.msra.mxu0 0
        %2639 = vmatprep.subr.bf16.mxu0 0
        %2640 = vmatpush1.bf16.msra.mxu0 0
        %2641 = vmatprep.subr.bf16.mxu0 0
        %2642 = vmatpush1.bf16.msra.mxu0 0
        %2643 = vmatprep.mubr.bf16.mxu0 0
        %2644 = vmatmul.mubr.bf16.gmra.mrb[0].mxu0 %v2609
        %v2645 = vpop.f32.mrb[0].mxu0
        %v2646 = vadd.f32 0.0, %v2645
        %v2647 = vpop.f32.mrb[0].mxu0
        %v2648 = vpop.f32.mrb[0].mxu0
        %v2649 = vadd.f32 0.0, %v2648
        %v2650 = vpop.f32.mrb[0].mxu0
        %2651 = vdwg.mxu0
        %2652 = vrot.lane.b32.xlu0 %v1282, 64
        %v2653 = vpop.permute.xlu0 %2652
        %v2656 = vsel %vm2095, %v2452, 0
        %2658 = vmatprep.subr.bf16.mxu0 0
        %2659 = vmatpush1.bf16.msra.mxu0 %v2653
        %2660 = vmatprep.subr.bf16.mxu0 0
        %2661 = vmatpush1.bf16.msra.mxu0 0
        %2662 = vmatprep.subr.bf16.mxu0 0
        %2663 = vmatpush1.bf16.msra.mxu0 0
        %2664 = vmatprep.subr.bf16.mxu0 0
        %2665 = vmatpush1.bf16.msra.mxu0 0
        %2666 = vmatprep.subr.bf16.mxu0 0
        %2667 = vmatpush1.bf16.msra.mxu0 0
        %2668 = vmatprep.subr.bf16.mxu0 0
        %2669 = vmatpush1.bf16.msra.mxu0 0
        %2670 = vmatprep.subr.bf16.mxu0 0
        %2671 = vmatpush1.bf16.msra.mxu0 0
        %2672 = vmatprep.subr.bf16.mxu0 0
        %2673 = vmatpush1.bf16.msra.mxu0 0
        %2674 = vmatprep.subr.bf16.mxu0 0
        %2675 = vmatpush1.bf16.msra.mxu0 0
        %2676 = vmatprep.subr.bf16.mxu0 0
        %2677 = vmatpush1.bf16.msra.mxu0 0
        %2678 = vmatprep.subr.bf16.mxu0 0
        %2679 = vmatpush1.bf16.msra.mxu0 0
        %2680 = vmatprep.subr.bf16.mxu0 0
        %2681 = vmatpush1.bf16.msra.mxu0 0
        %2682 = vmatprep.subr.bf16.mxu0 0
        %2683 = vmatpush1.bf16.msra.mxu0 0
        %2684 = vmatprep.subr.bf16.mxu0 0
        %2685 = vmatpush1.bf16.msra.mxu0 0
        %2686 = vmatprep.subr.bf16.mxu0 0
        %2687 = vmatpush1.bf16.msra.mxu0 0
        %2688 = vmatprep.subr.bf16.mxu0 0
        %2689 = vmatpush1.bf16.msra.mxu0 0
        %2690 = vmatprep.mubr.bf16.mxu0 0
        %2691 = vmatmul.mubr.bf16.gmra.mrb[0].mxu0 %v2656
        %v2692 = vpop.f32.mrb[0].mxu0
        %v2693 = vadd.f32 0.0, %v2692
        %v2694 = vpop.f32.mrb[0].mxu0
        %v2695 = vpop.f32.mrb[0].mxu0
        %v2696 = vadd.f32 0.0, %v2695
        %v2697 = vpop.f32.mrb[0].mxu0
        %2698 = vdwg.mxu0
        %2699 = vrot.lane.b32.xlu0 %v1283, 64
        %v2700 = vpop.permute.xlu0 %2699
        %v2703 = vsel %vm2095, %v2453, 0
        %2705 = vmatprep.subr.bf16.mxu0 0
        %2706 = vmatpush1.bf16.msra.mxu0 %v2700
        %2707 = vmatprep.subr.bf16.mxu0 0
        %2708 = vmatpush1.bf16.msra.mxu0 0
        %2709 = vmatprep.subr.bf16.mxu0 0
        %2710 = vmatpush1.bf16.msra.mxu0 0
        %2711 = vmatprep.subr.bf16.mxu0 0
        %2712 = vmatpush1.bf16.msra.mxu0 0
        %2713 = vmatprep.subr.bf16.mxu0 0
        %2714 = vmatpush1.bf16.msra.mxu0 0
        %2715 = vmatprep.subr.bf16.mxu0 0
        %2716 = vmatpush1.bf16.msra.mxu0 0
        %2717 = vmatprep.subr.bf16.mxu0 0
        %2718 = vmatpush1.bf16.msra.mxu0 0
        %2719 = vmatprep.subr.bf16.mxu0 0
        %2720 = vmatpush1.bf16.msra.mxu0 0
        %2721 = vmatprep.subr.bf16.mxu0 0
        %2722 = vmatpush1.bf16.msra.mxu0 0
        %2723 = vmatprep.subr.bf16.mxu0 0
        %2724 = vmatpush1.bf16.msra.mxu0 0
        %2725 = vmatprep.subr.bf16.mxu0 0
        %2726 = vmatpush1.bf16.msra.mxu0 0
        %2727 = vmatprep.subr.bf16.mxu0 0
        %2728 = vmatpush1.bf16.msra.mxu0 0
        %2729 = vmatprep.subr.bf16.mxu0 0
        %2730 = vmatpush1.bf16.msra.mxu0 0
        %2731 = vmatprep.subr.bf16.mxu0 0
        %2732 = vmatpush1.bf16.msra.mxu0 0
        %2733 = vmatprep.subr.bf16.mxu0 0
        %2734 = vmatpush1.bf16.msra.mxu0 0
        %2735 = vmatprep.subr.bf16.mxu0 0
        %2736 = vmatpush1.bf16.msra.mxu0 0
        %2737 = vmatprep.mubr.bf16.mxu0 0
        %2738 = vmatmul.mubr.bf16.gmra.mrb[0].mxu0 %v2703
        %v2739 = vpop.f32.mrb[0].mxu0
        %v2740 = vadd.f32 0.0, %v2739
        %v2741 = vpop.f32.mrb[0].mxu0
        %v2742 = vpop.f32.mrb[0].mxu0
        %v2743 = vadd.f32 0.0, %v2742
        %v2744 = vpop.f32.mrb[0].mxu0
        %2745 = vdwg.mxu0
        %2746 = vrot.lane.b32.xlu0 %v1284, 64
        %v2747 = vpop.permute.xlu0 %2746
        %v2750 = vsel %vm2095, %v2454, 0
        %2752 = vmatprep.subr.bf16.mxu0 0
        %2753 = vmatpush1.bf16.msra.mxu0 %v2747
        %2754 = vmatprep.subr.bf16.mxu0 0
        %2755 = vmatpush1.bf16.msra.mxu0 0
        %2756 = vmatprep.subr.bf16.mxu0 0
        %2757 = vmatpush1.bf16.msra.mxu0 0
        %2758 = vmatprep.subr.bf16.mxu0 0
        %2759 = vmatpush1.bf16.msra.mxu0 0
        %2760 = vmatprep.subr.bf16.mxu0 0
        %2761 = vmatpush1.bf16.msra.mxu0 0
        %2762 = vmatprep.subr.bf16.mxu0 0
        %2763 = vmatpush1.bf16.msra.mxu0 0
        %2764 = vmatprep.subr.bf16.mxu0 0
        %2765 = vmatpush1.bf16.msra.mxu0 0
        %2766 = vmatprep.subr.bf16.mxu0 0
        %2767 = vmatpush1.bf16.msra.mxu0 0
        %2768 = vmatprep.subr.bf16.mxu0 0
        %2769 = vmatpush1.bf16.msra.mxu0 0
        %2770 = vmatprep.subr.bf16.mxu0 0
        %2771 = vmatpush1.bf16.msra.mxu0 0
        %2772 = vmatprep.subr.bf16.mxu0 0
        %2773 = vmatpush1.bf16.msra.mxu0 0
        %2774 = vmatprep.subr.bf16.mxu0 0
        %2775 = vmatpush1.bf16.msra.mxu0 0
        %2776 = vmatprep.subr.bf16.mxu0 0
        %2777 = vmatpush1.bf16.msra.mxu0 0
        %2778 = vmatprep.subr.bf16.mxu0 0
        %2779 = vmatpush1.bf16.msra.mxu0 0
        %2780 = vmatprep.subr.bf16.mxu0 0
        %2781 = vmatpush1.bf16.msra.mxu0 0
        %2782 = vmatprep.subr.bf16.mxu0 0
        %2783 = vmatpush1.bf16.msra.mxu0 0
        %2784 = vmatprep.mubr.bf16.mxu0 0
        %2785 = vmatmul.mubr.bf16.gmra.mrb[0].mxu0 %v2750
        %v2786 = vpop.f32.mrb[0].mxu0
        %v2787 = vadd.f32 0.0, %v2786
        %v2788 = vpop.f32.mrb[0].mxu0
        %v2789 = vpop.f32.mrb[0].mxu0
        %v2790 = vadd.f32 0.0, %v2789
        %v2791 = vpop.f32.mrb[0].mxu0
        %2792 = vdwg.mxu0
        %2793 = vrot.lane.b32.xlu0 %v1285, 64
        %v2794 = vpop.permute.xlu0 %2793
        %v2797 = vsel %vm2095, %v2455, 0
        %2799 = vmatprep.subr.bf16.mxu0 0
        %2800 = vmatpush1.bf16.msra.mxu0 %v2794
        %2801 = vmatprep.subr.bf16.mxu0 0
        %2802 = vmatpush1.bf16.msra.mxu0 0
        %2803 = vmatprep.subr.bf16.mxu0 0
        %2804 = vmatpush1.bf16.msra.mxu0 0
        %2805 = vmatprep.subr.bf16.mxu0 0
        %2806 = vmatpush1.bf16.msra.mxu0 0
        %2807 = vmatprep.subr.bf16.mxu0 0
        %2808 = vmatpush1.bf16.msra.mxu0 0
        %2809 = vmatprep.subr.bf16.mxu0 0
        %2810 = vmatpush1.bf16.msra.mxu0 0
        %2811 = vmatprep.subr.bf16.mxu0 0
        %2812 = vmatpush1.bf16.msra.mxu0 0
        %2813 = vmatprep.subr.bf16.mxu0 0
        %2814 = vmatpush1.bf16.msra.mxu0 0
        %2815 = vmatprep.subr.bf16.mxu0 0
        %2816 = vmatpush1.bf16.msra.mxu0 0
        %2817 = vmatprep.subr.bf16.mxu0 0
        %2818 = vmatpush1.bf16.msra.mxu0 0
        %2819 = vmatprep.subr.bf16.mxu0 0
        %2820 = vmatpush1.bf16.msra.mxu0 0
        %2821 = vmatprep.subr.bf16.mxu0 0
        %2822 = vmatpush1.bf16.msra.mxu0 0
        %2823 = vmatprep.subr.bf16.mxu0 0
        %2824 = vmatpush1.bf16.msra.mxu0 0
        %2825 = vmatprep.subr.bf16.mxu0 0
        %2826 = vmatpush1.bf16.msra.mxu0 0
        %2827 = vmatprep.subr.bf16.mxu0 0
        %2828 = vmatpush1.bf16.msra.mxu0 0
        %2829 = vmatprep.subr.bf16.mxu0 0
        %2830 = vmatpush1.bf16.msra.mxu0 0
        %2831 = vmatprep.mubr.bf16.mxu0 0
        %2832 = vmatmul.mubr.bf16.gmra.mrb[0].mxu0 %v2797
        %v2833 = vpop.f32.mrb[0].mxu0
        %v2834 = vadd.f32 0.0, %v2833
        %v2835 = vpop.f32.mrb[0].mxu0
        %v2836 = vpop.f32.mrb[0].mxu0
        %v2837 = vadd.f32 0.0, %v2836
        %v2838 = vpop.f32.mrb[0].mxu0
        %2839 = vdwg.mxu0
        %2840 = vrot.lane.b32.xlu0 %v1286, 64
        %v2841 = vpop.permute.xlu0 %2840
        %v2844 = vsel %vm2095, %v2456, 0
        %2846 = vmatprep.subr.bf16.mxu0 0
        %2847 = vmatpush1.bf16.msra.mxu0 %v2841
        %2848 = vmatprep.subr.bf16.mxu0 0
        %2849 = vmatpush1.bf16.msra.mxu0 0
        %2850 = vmatprep.subr.bf16.mxu0 0
        %2851 = vmatpush1.bf16.msra.mxu0 0
        %2852 = vmatprep.subr.bf16.mxu0 0
        %2853 = vmatpush1.bf16.msra.mxu0 0
        %2854 = vmatprep.subr.bf16.mxu0 0
        %2855 = vmatpush1.bf16.msra.mxu0 0
        %2856 = vmatprep.subr.bf16.mxu0 0
        %2857 = vmatpush1.bf16.msra.mxu0 0
        %2858 = vmatprep.subr.bf16.mxu0 0
        %2859 = vmatpush1.bf16.msra.mxu0 0
        %2860 = vmatprep.subr.bf16.mxu0 0
        %2861 = vmatpush1.bf16.msra.mxu0 0
        %2862 = vmatprep.subr.bf16.mxu0 0
        %2863 = vmatpush1.bf16.msra.mxu0 0
        %2864 = vmatprep.subr.bf16.mxu0 0
        %2865 = vmatpush1.bf16.msra.mxu0 0
        %2866 = vmatprep.subr.bf16.mxu0 0
        %2867 = vmatpush1.bf16.msra.mxu0 0
        %2868 = vmatprep.subr.bf16.mxu0 0
        %2869 = vmatpush1.bf16.msra.mxu0 0
        %2870 = vmatprep.subr.bf16.mxu0 0
        %2871 = vmatpush1.bf16.msra.mxu0 0
        %2872 = vmatprep.subr.bf16.mxu0 0
        %2873 = vmatpush1.bf16.msra.mxu0 0
        %2874 = vmatprep.subr.bf16.mxu0 0
        %2875 = vmatpush1.bf16.msra.mxu0 0
        %2876 = vmatprep.subr.bf16.mxu0 0
        %2877 = vmatpush1.bf16.msra.mxu0 0
        %2878 = vmatprep.mubr.bf16.mxu0 0
        %2879 = vmatmul.mubr.bf16.gmra.mrb[0].mxu0 %v2844
        %v2880 = vpop.f32.mrb[0].mxu0
        %v2881 = vadd.f32 0.0, %v2880
        %v2882 = vpop.f32.mrb[0].mxu0
        %v2883 = vpop.f32.mrb[0].mxu0
        %v2884 = vadd.f32 0.0, %v2883
        %v2885 = vpop.f32.mrb[0].mxu0
        %2886 = vdwg.mxu0
        %2887 = vrot.lane.b32.xlu0 %v1287, 64
        %v2888 = vpop.permute.xlu0 %2887
        %v2891 = vsel %vm2095, %v2457, 0
        %2893 = vmatprep.subr.bf16.mxu0 0
        %2894 = vmatpush1.bf16.msra.mxu0 %v2888
        %2895 = vmatprep.subr.bf16.mxu0 0
        %2896 = vmatpush1.bf16.msra.mxu0 0
        %2897 = vmatprep.subr.bf16.mxu0 0
        %2898 = vmatpush1.bf16.msra.mxu0 0
        %2899 = vmatprep.subr.bf16.mxu0 0
        %2900 = vmatpush1.bf16.msra.mxu0 0
        %2901 = vmatprep.subr.bf16.mxu0 0
        %2902 = vmatpush1.bf16.msra.mxu0 0
        %2903 = vmatprep.subr.bf16.mxu0 0
        %2904 = vmatpush1.bf16.msra.mxu0 0
        %2905 = vmatprep.subr.bf16.mxu0 0
        %2906 = vmatpush1.bf16.msra.mxu0 0
        %2907 = vmatprep.subr.bf16.mxu0 0
        %2908 = vmatpush1.bf16.msra.mxu0 0
        %2909 = vmatprep.subr.bf16.mxu0 0
        %2910 = vmatpush1.bf16.msra.mxu0 0
        %2911 = vmatprep.subr.bf16.mxu0 0
        %2912 = vmatpush1.bf16.msra.mxu0 0
        %2913 = vmatprep.subr.bf16.mxu0 0
        %2914 = vmatpush1.bf16.msra.mxu0 0
        %2915 = vmatprep.subr.bf16.mxu0 0
        %2916 = vmatpush1.bf16.msra.mxu0 0
        %2917 = vmatprep.subr.bf16.mxu0 0
        %2918 = vmatpush1.bf16.msra.mxu0 0
        %2919 = vmatprep.subr.bf16.mxu0 0
        %2920 = vmatpush1.bf16.msra.mxu0 0
        %2921 = vmatprep.subr.bf16.mxu0 0
        %2922 = vmatpush1.bf16.msra.mxu0 0
        %2923 = vmatprep.subr.bf16.mxu0 0
        %2924 = vmatpush1.bf16.msra.mxu0 0
        %2925 = vmatprep.mubr.bf16.mxu0 0
        %2926 = vmatmul.mubr.bf16.gmra.mrb[0].mxu0 %v2891
        %v2927 = vpop.f32.mrb[0].mxu0
        %v2928 = vadd.f32 0.0, %v2927
        %v2929 = vpop.f32.mrb[0].mxu0
        %v2930 = vpop.f32.mrb[0].mxu0
        %v2931 = vadd.f32 0.0, %v2930
        %v2932 = vpop.f32.mrb[0].mxu0
        %2933 = vdwg.mxu0
        %2934 = vrot.lane.b32.xlu0 %v1288, 64
        %v2935 = vpop.permute.xlu0 %2934
        %v2938 = vsel %vm2095, %v2458, 0
        %2940 = vmatprep.subr.bf16.mxu0 0
        %2941 = vmatpush1.bf16.msra.mxu0 %v2935
        %2942 = vmatprep.subr.bf16.mxu0 0
        %2943 = vmatpush1.bf16.msra.mxu0 0
        %2944 = vmatprep.subr.bf16.mxu0 0
        %2945 = vmatpush1.bf16.msra.mxu0 0
        %2946 = vmatprep.subr.bf16.mxu0 0
        %2947 = vmatpush1.bf16.msra.mxu0 0
        %2948 = vmatprep.subr.bf16.mxu0 0
        %2949 = vmatpush1.bf16.msra.mxu0 0
        %2950 = vmatprep.subr.bf16.mxu0 0
        %2951 = vmatpush1.bf16.msra.mxu0 0
        %2952 = vmatprep.subr.bf16.mxu0 0
        %2953 = vmatpush1.bf16.msra.mxu0 0
        %2954 = vmatprep.subr.bf16.mxu0 0
        %2955 = vmatpush1.bf16.msra.mxu0 0
        %2956 = vmatprep.subr.bf16.mxu0 0
        %2957 = vmatpush1.bf16.msra.mxu0 0
        %2958 = vmatprep.subr.bf16.mxu0 0
        %2959 = vmatpush1.bf16.msra.mxu0 0
        %2960 = vmatprep.subr.bf16.mxu0 0
        %2961 = vmatpush1.bf16.msra.mxu0 0
        %2962 = vmatprep.subr.bf16.mxu0 0
        %2963 = vmatpush1.bf16.msra.mxu0 0
        %2964 = vmatprep.subr.bf16.mxu0 0
        %2965 = vmatpush1.bf16.msra.mxu0 0
        %2966 = vmatprep.subr.bf16.mxu0 0
        %2967 = vmatpush1.bf16.msra.mxu0 0
        %2968 = vmatprep.subr.bf16.mxu0 0
        %2969 = vmatpush1.bf16.msra.mxu0 0
        %2970 = vmatprep.subr.bf16.mxu0 0
        %2971 = vmatpush1.bf16.msra.mxu0 0
        %2972 = vmatprep.mubr.bf16.mxu0 0
        %2973 = vmatmul.mubr.bf16.gmra.mrb[0].mxu0 %v2938
        %v2974 = vpop.f32.mrb[0].mxu0
        %v2975 = vadd.f32 0.0, %v2974
        %v2976 = vpop.f32.mrb[0].mxu0
        %v2977 = vpop.f32.mrb[0].mxu0
        %v2978 = vadd.f32 0.0, %v2977
        %v2979 = vpop.f32.mrb[0].mxu0
        %2980 = vdwg.mxu0
        %2981 = vrot.lane.b32.xlu0 %v1289, 64
        %v2982 = vpop.permute.xlu0 %2981
        %v2985 = vsel %vm2095, %v2459, 0
        %2987 = vmatprep.subr.bf16.mxu0 0
        %2988 = vmatpush1.bf16.msra.mxu0 %v2982
        %2989 = vmatprep.subr.bf16.mxu0 0
        %2990 = vmatpush1.bf16.msra.mxu0 0
        %2991 = vmatprep.subr.bf16.mxu0 0
        %2992 = vmatpush1.bf16.msra.mxu0 0
        %2993 = vmatprep.subr.bf16.mxu0 0
        %2994 = vmatpush1.bf16.msra.mxu0 0
        %2995 = vmatprep.subr.bf16.mxu0 0
        %2996 = vmatpush1.bf16.msra.mxu0 0
        %2997 = vmatprep.subr.bf16.mxu0 0
        %2998 = vmatpush1.bf16.msra.mxu0 0
        %2999 = vmatprep.subr.bf16.mxu0 0
        %3000 = vmatpush1.bf16.msra.mxu0 0
        %3001 = vmatprep.subr.bf16.mxu0 0
        %3002 = vmatpush1.bf16.msra.mxu0 0
        %3003 = vmatprep.subr.bf16.mxu0 0
        %3004 = vmatpush1.bf16.msra.mxu0 0
        %3005 = vmatprep.subr.bf16.mxu0 0
        %3006 = vmatpush1.bf16.msra.mxu0 0
        %3007 = vmatprep.subr.bf16.mxu0 0
        %3008 = vmatpush1.bf16.msra.mxu0 0
        %3009 = vmatprep.subr.bf16.mxu0 0
        %3010 = vmatpush1.bf16.msra.mxu0 0
        %3011 = vmatprep.subr.bf16.mxu0 0
        %3012 = vmatpush1.bf16.msra.mxu0 0
        %3013 = vmatprep.subr.bf16.mxu0 0
        %3014 = vmatpush1.bf16.msra.mxu0 0
        %3015 = vmatprep.subr.bf16.mxu0 0
        %3016 = vmatpush1.bf16.msra.mxu0 0
        %3017 = vmatprep.subr.bf16.mxu0 0
        %3018 = vmatpush1.bf16.msra.mxu0 0
        %3019 = vmatprep.mubr.bf16.mxu0 0
        %3020 = vmatmul.mubr.bf16.gmra.mrb[0].mxu0 %v2985
        %v3021 = vpop.f32.mrb[0].mxu0
        %v3022 = vadd.f32 0.0, %v3021
        %v3023 = vpop.f32.mrb[0].mxu0
        %v3024 = vpop.f32.mrb[0].mxu0
        %v3025 = vadd.f32 0.0, %v3024
        %v3026 = vpop.f32.mrb[0].mxu0
        %3027 = vdwg.mxu0
        %3028 = vrot.lane.b32.xlu0 %v1290, 64
        %v3029 = vpop.permute.xlu0 %3028
        %v3032 = vsel %vm2095, %v2460, 0
        %3034 = vmatprep.subr.bf16.mxu0 0
        %3035 = vmatpush1.bf16.msra.mxu0 %v3029
        %3036 = vmatprep.subr.bf16.mxu0 0
        %3037 = vmatpush1.bf16.msra.mxu0 0
        %3038 = vmatprep.subr.bf16.mxu0 0
        %3039 = vmatpush1.bf16.msra.mxu0 0
        %3040 = vmatprep.subr.bf16.mxu0 0
        %3041 = vmatpush1.bf16.msra.mxu0 0
        %3042 = vmatprep.subr.bf16.mxu0 0
        %3043 = vmatpush1.bf16.msra.mxu0 0
        %3044 = vmatprep.subr.bf16.mxu0 0
        %3045 = vmatpush1.bf16.msra.mxu0 0
        %3046 = vmatprep.subr.bf16.mxu0 0
        %3047 = vmatpush1.bf16.msra.mxu0 0
        %3048 = vmatprep.subr.bf16.mxu0 0
        %3049 = vmatpush1.bf16.msra.mxu0 0
        %3050 = vmatprep.subr.bf16.mxu0 0
        %3051 = vmatpush1.bf16.msra.mxu0 0
        %3052 = vmatprep.subr.bf16.mxu0 0
        %3053 = vmatpush1.bf16.msra.mxu0 0
        %3054 = vmatprep.subr.bf16.mxu0 0
        %3055 = vmatpush1.bf16.msra.mxu0 0
        %3056 = vmatprep.subr.bf16.mxu0 0
        %3057 = vmatpush1.bf16.msra.mxu0 0
        %3058 = vmatprep.subr.bf16.mxu0 0
        %3059 = vmatpush1.bf16.msra.mxu0 0
        %3060 = vmatprep.subr.bf16.mxu0 0
        %3061 = vmatpush1.bf16.msra.mxu0 0
        %3062 = vmatprep.subr.bf16.mxu0 0
        %3063 = vmatpush1.bf16.msra.mxu0 0
        %3064 = vmatprep.subr.bf16.mxu0 0
        %3065 = vmatpush1.bf16.msra.mxu0 0
        %3066 = vmatprep.mubr.bf16.mxu0 0
        %3067 = vmatmul.mubr.bf16.gmra.mrb[0].mxu0 %v3032
        %v3068 = vpop.f32.mrb[0].mxu0
        %v3069 = vadd.f32 0.0, %v3068
        %v3070 = vpop.f32.mrb[0].mxu0
        %v3071 = vpop.f32.mrb[0].mxu0
        %v3072 = vadd.f32 0.0, %v3071
        %v3073 = vpop.f32.mrb[0].mxu0
        %3074 = vdwg.mxu0
        %3075 = vrot.lane.b32.xlu0 %v1291, 64
        %v3076 = vpop.permute.xlu0 %3075
        %v3079 = vsel %vm2095, %v2461, 0
        %3081 = vmatprep.subr.bf16.mxu0 0
        %3082 = vmatpush1.bf16.msra.mxu0 %v3076
        %3083 = vmatprep.subr.bf16.mxu0 0
        %3084 = vmatpush1.bf16.msra.mxu0 0
        %3085 = vmatprep.subr.bf16.mxu0 0
        %3086 = vmatpush1.bf16.msra.mxu0 0
        %3087 = vmatprep.subr.bf16.mxu0 0
        %3088 = vmatpush1.bf16.msra.mxu0 0
        %3089 = vmatprep.subr.bf16.mxu0 0
        %3090 = vmatpush1.bf16.msra.mxu0 0
        %3091 = vmatprep.subr.bf16.mxu0 0
        %3092 = vmatpush1.bf16.msra.mxu0 0
        %3093 = vmatprep.subr.bf16.mxu0 0
        %3094 = vmatpush1.bf16.msra.mxu0 0
        %3095 = vmatprep.subr.bf16.mxu0 0
        %3096 = vmatpush1.bf16.msra.mxu0 0
        %3097 = vmatprep.subr.bf16.mxu0 0
        %3098 = vmatpush1.bf16.msra.mxu0 0
        %3099 = vmatprep.subr.bf16.mxu0 0
        %3100 = vmatpush1.bf16.msra.mxu0 0
        %3101 = vmatprep.subr.bf16.mxu0 0
        %3102 = vmatpush1.bf16.msra.mxu0 0
        %3103 = vmatprep.subr.bf16.mxu0 0
        %3104 = vmatpush1.bf16.msra.mxu0 0
        %3105 = vmatprep.subr.bf16.mxu0 0
        %3106 = vmatpush1.bf16.msra.mxu0 0
        %3107 = vmatprep.subr.bf16.mxu0 0
        %3108 = vmatpush1.bf16.msra.mxu0 0
        %3109 = vmatprep.subr.bf16.mxu0 0
        %3110 = vmatpush1.bf16.msra.mxu0 0
        %3111 = vmatprep.subr.bf16.mxu0 0
        %3112 = vmatpush1.bf16.msra.mxu0 0
        %3113 = vmatprep.mubr.bf16.mxu0 0
        %3114 = vmatmul.mubr.bf16.gmra.mrb[0].mxu0 %v3079
        %v3115 = vpop.f32.mrb[0].mxu0
        %v3116 = vadd.f32 0.0, %v3115
        %v3117 = vpop.f32.mrb[0].mxu0
        %v3118 = vpop.f32.mrb[0].mxu0
        %v3119 = vadd.f32 0.0, %v3118
        %v3120 = vpop.f32.mrb[0].mxu0
        %3121 = vdwg.mxu0
        %3122 = vrot.lane.b32.xlu0 %v1292, 64
        %v3123 = vpop.permute.xlu0 %3122
        %v3126 = vsel %vm2095, %v2462, 0
        %3128 = vmatprep.subr.bf16.mxu0 0
        %3129 = vmatpush1.bf16.msra.mxu0 %v3123
        %3130 = vmatprep.subr.bf16.mxu0 0
        %3131 = vmatpush1.bf16.msra.mxu0 0
        %3132 = vmatprep.subr.bf16.mxu0 0
        %3133 = vmatpush1.bf16.msra.mxu0 0
        %3134 = vmatprep.subr.bf16.mxu0 0
        %3135 = vmatpush1.bf16.msra.mxu0 0
        %3136 = vmatprep.subr.bf16.mxu0 0
        %3137 = vmatpush1.bf16.msra.mxu0 0
        %3138 = vmatprep.subr.bf16.mxu0 0
        %3139 = vmatpush1.bf16.msra.mxu0 0
        %3140 = vmatprep.subr.bf16.mxu0 0
        %3141 = vmatpush1.bf16.msra.mxu0 0
        %3142 = vmatprep.subr.bf16.mxu0 0
        %3143 = vmatpush1.bf16.msra.mxu0 0
        %3144 = vmatprep.subr.bf16.mxu0 0
        %3145 = vmatpush1.bf16.msra.mxu0 0
        %3146 = vmatprep.subr.bf16.mxu0 0
        %3147 = vmatpush1.bf16.msra.mxu0 0
        %3148 = vmatprep.subr.bf16.mxu0 0
        %3149 = vmatpush1.bf16.msra.mxu0 0
        %3150 = vmatprep.subr.bf16.mxu0 0
        %3151 = vmatpush1.bf16.msra.mxu0 0
        %3152 = vmatprep.subr.bf16.mxu0 0
        %3153 = vmatpush1.bf16.msra.mxu0 0
        %3154 = vmatprep.subr.bf16.mxu0 0
        %3155 = vmatpush1.bf16.msra.mxu0 0
        %3156 = vmatprep.subr.bf16.mxu0 0
        %3157 = vmatpush1.bf16.msra.mxu0 0
        %3158 = vmatprep.subr.bf16.mxu0 0
        %3159 = vmatpush1.bf16.msra.mxu0 0
        %3160 = vmatprep.mubr.bf16.mxu0 0
        %3161 = vmatmul.mubr.bf16.gmra.mrb[0].mxu0 %v3126
        %v3162 = vpop.f32.mrb[0].mxu0
        %v3163 = vadd.f32 0.0, %v3162
        %v3164 = vpop.f32.mrb[0].mxu0
        %v3165 = vpop.f32.mrb[0].mxu0
        %v3166 = vadd.f32 0.0, %v3165
        %v3167 = vpop.f32.mrb[0].mxu0
        %3168 = vdwg.mxu0
        %3169 = vrot.lane.b32.xlu0 %v1293, 64
        %v3170 = vpop.permute.xlu0 %3169
        %v3173 = vsel %vm2095, %v2463, 0
        %3175 = vmatprep.subr.bf16.mxu0 0
        %3176 = vmatpush1.bf16.msra.mxu0 %v3170
        %3177 = vmatprep.subr.bf16.mxu0 0
        %3178 = vmatpush1.bf16.msra.mxu0 0
        %3179 = vmatprep.subr.bf16.mxu0 0
        %3180 = vmatpush1.bf16.msra.mxu0 0
        %3181 = vmatprep.subr.bf16.mxu0 0
        %3182 = vmatpush1.bf16.msra.mxu0 0
        %3183 = vmatprep.subr.bf16.mxu0 0
        %3184 = vmatpush1.bf16.msra.mxu0 0
        %3185 = vmatprep.subr.bf16.mxu0 0
        %3186 = vmatpush1.bf16.msra.mxu0 0
        %3187 = vmatprep.subr.bf16.mxu0 0
        %3188 = vmatpush1.bf16.msra.mxu0 0
        %3189 = vmatprep.subr.bf16.mxu0 0
        %3190 = vmatpush1.bf16.msra.mxu0 0
        %3191 = vmatprep.subr.bf16.mxu0 0
        %3192 = vmatpush1.bf16.msra.mxu0 0
        %3193 = vmatprep.subr.bf16.mxu0 0
        %3194 = vmatpush1.bf16.msra.mxu0 0
        %3195 = vmatprep.subr.bf16.mxu0 0
        %3196 = vmatpush1.bf16.msra.mxu0 0
        %3197 = vmatprep.subr.bf16.mxu0 0
        %3198 = vmatpush1.bf16.msra.mxu0 0
        %3199 = vmatprep.subr.bf16.mxu0 0
        %3200 = vmatpush1.bf16.msra.mxu0 0
        %3201 = vmatprep.subr.bf16.mxu0 0
        %3202 = vmatpush1.bf16.msra.mxu0 0
        %3203 = vmatprep.subr.bf16.mxu0 0
        %3204 = vmatpush1.bf16.msra.mxu0 0
        %3205 = vmatprep.subr.bf16.mxu0 0
        %3206 = vmatpush1.bf16.msra.mxu0 0
        %3207 = vmatprep.mubr.bf16.mxu0 0
        %3208 = vmatmul.mubr.bf16.gmra.mrb[0].mxu0 %v3173
        %v3209 = vpop.f32.mrb[0].mxu0
        %v3210 = vadd.f32 0.0, %v3209
        %v3211 = vpop.f32.mrb[0].mxu0
        %v3212 = vpop.f32.mrb[0].mxu0
        %v3213 = vadd.f32 0.0, %v3212
        %v3214 = vpop.f32.mrb[0].mxu0
        %3215 = vdwg.mxu0
        %v3216 = vpack.c.bf16 %v2508, %v2505
        %v3217 = vpack.c.bf16 %v2555, %v2552
        %v3218 = vpack.c.bf16 %v2602, %v2599
        %v3219 = vpack.c.bf16 %v2649, %v2646
        %v3220 = vpack.c.bf16 %v2696, %v2693
        %v3221 = vpack.c.bf16 %v2743, %v2740
        %v3222 = vpack.c.bf16 %v2790, %v2787
        %v3223 = vpack.c.bf16 %v2837, %v2834
        %v3224 = vpack.c.bf16 %v2884, %v2881
        %v3225 = vpack.c.bf16 %v2931, %v2928
        %v3226 = vpack.c.bf16 %v2978, %v2975
        %v3227 = vpack.c.bf16 %v3025, %v3022
        %v3228 = vpack.c.bf16 %v3072, %v3069
        %v3229 = vpack.c.bf16 %v3119, %v3116
        %v3230 = vpack.c.bf16 %v3166, %v3163
        %v3231 = vpack.c.bf16 %v3213, %v3210
        %3232 = vrot.lane.b32.xlu0 %v1278, 120
        %v3233 = vpop.permute.xlu0 %3232
        %3234 = vrot.lane.b32.xlu0 %v1278, 88
        %v3235 = vpop.permute.xlu0 %3234
        %v3237 = vsel %vm1297, %v3233, 0
        %v3240 = vsel %vm1297, %v3235, 0
        %3242 = vmatprep.subr.bf16.mxu0 0
        %3243 = vmatpush1.bf16.xpose.msra.mxu0 %v3240
        %3244 = vmatprep.subr.bf16.mxu0 0
        %3245 = vmatpush1.bf16.xpose.msra.mxu0 0
        %3246 = vmatprep.subr.bf16.mxu0 0
        %3247 = vmatpush1.bf16.xpose.msra.mxu0 0
        %3248 = vmatprep.subr.bf16.mxu0 0
        %3249 = vmatpush1.bf16.xpose.msra.mxu0 0
        %3250 = vmatprep.subr.bf16.mxu0 0
        %3251 = vmatpush1.bf16.xpose.msra.mxu0 0
        %3252 = vmatprep.subr.bf16.mxu0 0
        %3253 = vmatpush1.bf16.xpose.msra.mxu0 0
        %3254 = vmatprep.subr.bf16.mxu0 0
        %3255 = vmatpush1.bf16.xpose.msra.mxu0 0
        %3256 = vmatprep.subr.bf16.mxu0 0
        %3257 = vmatpush1.bf16.xpose.msra.mxu0 0
        %3258 = vmatprep.subr.bf16.mxu0 0
        %3259 = vmatpush1.bf16.xpose.msra.mxu0 0
        %3260 = vmatprep.subr.bf16.mxu0 0
        %3261 = vmatpush1.bf16.xpose.msra.mxu0 0
        %3262 = vmatprep.subr.bf16.mxu0 0
        %3263 = vmatpush1.bf16.xpose.msra.mxu0 0
        %3264 = vmatprep.subr.bf16.mxu0 0
        %3265 = vmatpush1.bf16.xpose.msra.mxu0 0
        %3266 = vmatprep.subr.bf16.mxu0 0
        %3267 = vmatpush1.bf16.xpose.msra.mxu0 0
        %3268 = vmatprep.subr.bf16.mxu0 0
        %3269 = vmatpush1.bf16.xpose.msra.mxu0 0
        %3270 = vmatprep.subr.bf16.mxu0 0
        %3271 = vmatpush1.bf16.xpose.msra.mxu0 0
        %3272 = vmatprep.subr.bf16.mxu0 0
        %3273 = vmatpush1.bf16.xpose.msra.mxu0 0
        %3274 = vmatprep.mubr.bf16.mxu0 0
        %3275 = vmatmul.mubr.bf16.gmra.mrb[0].mxu0 %v3237
        %v3276 = vpop.f32.mrb[0].mxu0
        %v3277 = vadd.f32 %v1182, %v3276
        %v3278 = vpop.f32.mrb[0].mxu0
        %v3279 = vpop.f32.mrb[0].mxu0
        %v3280 = vadd.f32 %v1183, %v3279
        %v3281 = vpop.f32.mrb[0].mxu0
        %3282 = vdwg.mxu0
        %3283 = vrot.lane.b32.xlu0 %v1279, 120
        %v3284 = vpop.permute.xlu0 %3283
        %3285 = vrot.lane.b32.xlu0 %v1279, 88
        %v3286 = vpop.permute.xlu0 %3285
        %v3288 = vsel %vm1297, %v3284, 0
        %v3291 = vsel %vm1297, %v3286, 0
        %3293 = vmatprep.subr.bf16.mxu0 0
        %3294 = vmatpush1.bf16.xpose.msra.mxu0 %v3291
        %3295 = vmatprep.subr.bf16.mxu0 0
        %3296 = vmatpush1.bf16.xpose.msra.mxu0 0
        %3297 = vmatprep.subr.bf16.mxu0 0
        %3298 = vmatpush1.bf16.xpose.msra.mxu0 0
        %3299 = vmatprep.subr.bf16.mxu0 0
        %3300 = vmatpush1.bf16.xpose.msra.mxu0 0
        %3301 = vmatprep.subr.bf16.mxu0 0
        %3302 = vmatpush1.bf16.xpose.msra.mxu0 0
        %3303 = vmatprep.subr.bf16.mxu0 0
        %3304 = vmatpush1.bf16.xpose.msra.mxu0 0
        %3305 = vmatprep.subr.bf16.mxu0 0
        %3306 = vmatpush1.bf16.xpose.msra.mxu0 0
        %3307 = vmatprep.subr.bf16.mxu0 0
        %3308 = vmatpush1.bf16.xpose.msra.mxu0 0
        %3309 = vmatprep.subr.bf16.mxu0 0
        %3310 = vmatpush1.bf16.xpose.msra.mxu0 0
        %3311 = vmatprep.subr.bf16.mxu0 0
        %3312 = vmatpush1.bf16.xpose.msra.mxu0 0
        %3313 = vmatprep.subr.bf16.mxu0 0
        %3314 = vmatpush1.bf16.xpose.msra.mxu0 0
        %3315 = vmatprep.subr.bf16.mxu0 0
        %3316 = vmatpush1.bf16.xpose.msra.mxu0 0
        %3317 = vmatprep.subr.bf16.mxu0 0
        %3318 = vmatpush1.bf16.xpose.msra.mxu0 0
        %3319 = vmatprep.subr.bf16.mxu0 0
        %3320 = vmatpush1.bf16.xpose.msra.mxu0 0
        %3321 = vmatprep.subr.bf16.mxu0 0
        %3322 = vmatpush1.bf16.xpose.msra.mxu0 0
        %3323 = vmatprep.subr.bf16.mxu0 0
        %3324 = vmatpush1.bf16.xpose.msra.mxu0 0
        %3325 = vmatprep.mubr.bf16.mxu0 0
        %3326 = vmatmul.mubr.bf16.gmra.mrb[0].mxu0 %v3288
        %v3327 = vpop.f32.mrb[0].mxu0
        %v3328 = vadd.f32 %v1184, %v3327
        %v3329 = vpop.f32.mrb[0].mxu0
        %v3330 = vpop.f32.mrb[0].mxu0
        %v3331 = vadd.f32 %v1185, %v3330
        %v3332 = vpop.f32.mrb[0].mxu0
        %3333 = vdwg.mxu0
        %3334 = vrot.lane.b32.xlu0 %v1280, 120
        %v3335 = vpop.permute.xlu0 %3334
        %3336 = vrot.lane.b32.xlu0 %v1280, 88
        %v3337 = vpop.permute.xlu0 %3336
        %v3339 = vsel %vm1297, %v3335, 0
        %v3342 = vsel %vm1297, %v3337, 0
        %3344 = vmatprep.subr.bf16.mxu0 0
        %3345 = vmatpush1.bf16.xpose.msra.mxu0 %v3342
        %3346 = vmatprep.subr.bf16.mxu0 0
        %3347 = vmatpush1.bf16.xpose.msra.mxu0 0
        %3348 = vmatprep.subr.bf16.mxu0 0
        %3349 = vmatpush1.bf16.xpose.msra.mxu0 0
        %3350 = vmatprep.subr.bf16.mxu0 0
        %3351 = vmatpush1.bf16.xpose.msra.mxu0 0
        %3352 = vmatprep.subr.bf16.mxu0 0
        %3353 = vmatpush1.bf16.xpose.msra.mxu0 0
        %3354 = vmatprep.subr.bf16.mxu0 0
        %3355 = vmatpush1.bf16.xpose.msra.mxu0 0
        %3356 = vmatprep.subr.bf16.mxu0 0
        %3357 = vmatpush1.bf16.xpose.msra.mxu0 0
        %3358 = vmatprep.subr.bf16.mxu0 0
        %3359 = vmatpush1.bf16.xpose.msra.mxu0 0
        %3360 = vmatprep.subr.bf16.mxu0 0
        %3361 = vmatpush1.bf16.xpose.msra.mxu0 0
        %3362 = vmatprep.subr.bf16.mxu0 0
        %3363 = vmatpush1.bf16.xpose.msra.mxu0 0
        %3364 = vmatprep.subr.bf16.mxu0 0
        %3365 = vmatpush1.bf16.xpose.msra.mxu0 0
        %3366 = vmatprep.subr.bf16.mxu0 0
        %3367 = vmatpush1.bf16.xpose.msra.mxu0 0
        %3368 = vmatprep.subr.bf16.mxu0 0
        %3369 = vmatpush1.bf16.xpose.msra.mxu0 0
        %3370 = vmatprep.subr.bf16.mxu0 0
        %3371 = vmatpush1.bf16.xpose.msra.mxu0 0
        %3372 = vmatprep.subr.bf16.mxu0 0
        %3373 = vmatpush1.bf16.xpose.msra.mxu0 0
        %3374 = vmatprep.subr.bf16.mxu0 0
        %3375 = vmatpush1.bf16.xpose.msra.mxu0 0
        %3376 = vmatprep.mubr.bf16.mxu0 0
        %3377 = vmatmul.mubr.bf16.gmra.mrb[0].mxu0 %v3339
        %v3378 = vpop.f32.mrb[0].mxu0
        %v3379 = vadd.f32 %v1186, %v3378
        %v3380 = vpop.f32.mrb[0].mxu0
        %v3381 = vpop.f32.mrb[0].mxu0
        %v3382 = vadd.f32 %v1187, %v3381
        %v3383 = vpop.f32.mrb[0].mxu0
        %3384 = vdwg.mxu0
        %3385 = vrot.lane.b32.xlu0 %v1281, 120
        %v3386 = vpop.permute.xlu0 %3385
        %3387 = vrot.lane.b32.xlu0 %v1281, 88
        %v3388 = vpop.permute.xlu0 %3387
        %v3390 = vsel %vm1297, %v3386, 0
        %v3393 = vsel %vm1297, %v3388, 0
        %3395 = vmatprep.subr.bf16.mxu0 0
        %3396 = vmatpush1.bf16.xpose.msra.mxu0 %v3393
        %3397 = vmatprep.subr.bf16.mxu0 0
        %3398 = vmatpush1.bf16.xpose.msra.mxu0 0
        %3399 = vmatprep.subr.bf16.mxu0 0
        %3400 = vmatpush1.bf16.xpose.msra.mxu0 0
        %3401 = vmatprep.subr.bf16.mxu0 0
        %3402 = vmatpush1.bf16.xpose.msra.mxu0 0
        %3403 = vmatprep.subr.bf16.mxu0 0
        %3404 = vmatpush1.bf16.xpose.msra.mxu0 0
        %3405 = vmatprep.subr.bf16.mxu0 0
        %3406 = vmatpush1.bf16.xpose.msra.mxu0 0
        %3407 = vmatprep.subr.bf16.mxu0 0
        %3408 = vmatpush1.bf16.xpose.msra.mxu0 0
        %3409 = vmatprep.subr.bf16.mxu0 0
        %3410 = vmatpush1.bf16.xpose.msra.mxu0 0
        %3411 = vmatprep.subr.bf16.mxu0 0
        %3412 = vmatpush1.bf16.xpose.msra.mxu0 0
        %3413 = vmatprep.subr.bf16.mxu0 0
        %3414 = vmatpush1.bf16.xpose.msra.mxu0 0
        %3415 = vmatprep.subr.bf16.mxu0 0
        %3416 = vmatpush1.bf16.xpose.msra.mxu0 0
        %3417 = vmatprep.subr.bf16.mxu0 0
        %3418 = vmatpush1.bf16.xpose.msra.mxu0 0
        %3419 = vmatprep.subr.bf16.mxu0 0
        %3420 = vmatpush1.bf16.xpose.msra.mxu0 0
        %3421 = vmatprep.subr.bf16.mxu0 0
        %3422 = vmatpush1.bf16.xpose.msra.mxu0 0
        %3423 = vmatprep.subr.bf16.mxu0 0
        %3424 = vmatpush1.bf16.xpose.msra.mxu0 0
        %3425 = vmatprep.subr.bf16.mxu0 0
        %3426 = vmatpush1.bf16.xpose.msra.mxu0 0
        %3427 = vmatprep.mubr.bf16.mxu0 0
        %3428 = vmatmul.mubr.bf16.gmra.mrb[0].mxu0 %v3390
        %v3429 = vpop.f32.mrb[0].mxu0
        %v3430 = vadd.f32 %v1188, %v3429
        %v3431 = vpop.f32.mrb[0].mxu0
        %v3432 = vpop.f32.mrb[0].mxu0
        %v3433 = vadd.f32 %v1189, %v3432
        %v3434 = vpop.f32.mrb[0].mxu0
        %3435 = vdwg.mxu0
        %3436 = vrot.lane.b32.xlu0 %v1282, 120
        %v3437 = vpop.permute.xlu0 %3436
        %3438 = vrot.lane.b32.xlu0 %v1282, 88
        %v3439 = vpop.permute.xlu0 %3438
        %v3441 = vsel %vm1297, %v3437, 0
        %v3444 = vsel %vm1297, %v3439, 0
        %3446 = vmatprep.subr.bf16.mxu0 0
        %3447 = vmatpush1.bf16.xpose.msra.mxu0 %v3444
        %3448 = vmatprep.subr.bf16.mxu0 0
        %3449 = vmatpush1.bf16.xpose.msra.mxu0 0
        %3450 = vmatprep.subr.bf16.mxu0 0
        %3451 = vmatpush1.bf16.xpose.msra.mxu0 0
        %3452 = vmatprep.subr.bf16.mxu0 0
        %3453 = vmatpush1.bf16.xpose.msra.mxu0 0
        %3454 = vmatprep.subr.bf16.mxu0 0
        %3455 = vmatpush1.bf16.xpose.msra.mxu0 0
        %3456 = vmatprep.subr.bf16.mxu0 0
        %3457 = vmatpush1.bf16.xpose.msra.mxu0 0
        %3458 = vmatprep.subr.bf16.mxu0 0
        %3459 = vmatpush1.bf16.xpose.msra.mxu0 0
        %3460 = vmatprep.subr.bf16.mxu0 0
        %3461 = vmatpush1.bf16.xpose.msra.mxu0 0
        %3462 = vmatprep.subr.bf16.mxu0 0
        %3463 = vmatpush1.bf16.xpose.msra.mxu0 0
        %3464 = vmatprep.subr.bf16.mxu0 0
        %3465 = vmatpush1.bf16.xpose.msra.mxu0 0
        %3466 = vmatprep.subr.bf16.mxu0 0
        %3467 = vmatpush1.bf16.xpose.msra.mxu0 0
        %3468 = vmatprep.subr.bf16.mxu0 0
        %3469 = vmatpush1.bf16.xpose.msra.mxu0 0
        %3470 = vmatprep.subr.bf16.mxu0 0
        %3471 = vmatpush1.bf16.xpose.msra.mxu0 0
        %3472 = vmatprep.subr.bf16.mxu0 0
        %3473 = vmatpush1.bf16.xpose.msra.mxu0 0
        %3474 = vmatprep.subr.bf16.mxu0 0
        %3475 = vmatpush1.bf16.xpose.msra.mxu0 0
        %3476 = vmatprep.subr.bf16.mxu0 0
        %3477 = vmatpush1.bf16.xpose.msra.mxu0 0
        %3478 = vmatprep.mubr.bf16.mxu0 0
        %3479 = vmatmul.mubr.bf16.gmra.mrb[0].mxu0 %v3441
        %v3480 = vpop.f32.mrb[0].mxu0
        %v3481 = vadd.f32 %v1190, %v3480
        %v3482 = vpop.f32.mrb[0].mxu0
        %v3483 = vpop.f32.mrb[0].mxu0
        %v3484 = vadd.f32 %v1191, %v3483
        %v3485 = vpop.f32.mrb[0].mxu0
        %3486 = vdwg.mxu0
        %3487 = vrot.lane.b32.xlu0 %v1283, 120
        %v3488 = vpop.permute.xlu0 %3487
        %3489 = vrot.lane.b32.xlu0 %v1283, 88
        %v3490 = vpop.permute.xlu0 %3489
        %v3492 = vsel %vm1297, %v3488, 0
        %v3495 = vsel %vm1297, %v3490, 0
        %3497 = vmatprep.subr.bf16.mxu0 0
        %3498 = vmatpush1.bf16.xpose.msra.mxu0 %v3495
        %3499 = vmatprep.subr.bf16.mxu0 0
        %3500 = vmatpush1.bf16.xpose.msra.mxu0 0
        %3501 = vmatprep.subr.bf16.mxu0 0
        %3502 = vmatpush1.bf16.xpose.msra.mxu0 0
        %3503 = vmatprep.subr.bf16.mxu0 0
        %3504 = vmatpush1.bf16.xpose.msra.mxu0 0
        %3505 = vmatprep.subr.bf16.mxu0 0
        %3506 = vmatpush1.bf16.xpose.msra.mxu0 0
        %3507 = vmatprep.subr.bf16.mxu0 0
        %3508 = vmatpush1.bf16.xpose.msra.mxu0 0
        %3509 = vmatprep.subr.bf16.mxu0 0
        %3510 = vmatpush1.bf16.xpose.msra.mxu0 0
        %3511 = vmatprep.subr.bf16.mxu0 0
        %3512 = vmatpush1.bf16.xpose.msra.mxu0 0
        %3513 = vmatprep.subr.bf16.mxu0 0
        %3514 = vmatpush1.bf16.xpose.msra.mxu0 0
        %3515 = vmatprep.subr.bf16.mxu0 0
        %3516 = vmatpush1.bf16.xpose.msra.mxu0 0
        %3517 = vmatprep.subr.bf16.mxu0 0
        %3518 = vmatpush1.bf16.xpose.msra.mxu0 0
        %3519 = vmatprep.subr.bf16.mxu0 0
        %3520 = vmatpush1.bf16.xpose.msra.mxu0 0
        %3521 = vmatprep.subr.bf16.mxu0 0
        %3522 = vmatpush1.bf16.xpose.msra.mxu0 0
        %3523 = vmatprep.subr.bf16.mxu0 0
        %3524 = vmatpush1.bf16.xpose.msra.mxu0 0
        %3525 = vmatprep.subr.bf16.mxu0 0
        %3526 = vmatpush1.bf16.xpose.msra.mxu0 0
        %3527 = vmatprep.subr.bf16.mxu0 0
        %3528 = vmatpush1.bf16.xpose.msra.mxu0 0
        %3529 = vmatprep.mubr.bf16.mxu0 0
        %3530 = vmatmul.mubr.bf16.gmra.mrb[0].mxu0 %v3492
        %v3531 = vpop.f32.mrb[0].mxu0
        %v3532 = vadd.f32 %v1192, %v3531
        %v3533 = vpop.f32.mrb[0].mxu0
        %v3534 = vpop.f32.mrb[0].mxu0
        %v3535 = vadd.f32 %v1193, %v3534
        %v3536 = vpop.f32.mrb[0].mxu0
        %3537 = vdwg.mxu0
        %3538 = vrot.lane.b32.xlu0 %v1284, 120
        %v3539 = vpop.permute.xlu0 %3538
        %3540 = vrot.lane.b32.xlu0 %v1284, 88
        %v3541 = vpop.permute.xlu0 %3540
        %v3543 = vsel %vm1297, %v3539, 0
        %v3546 = vsel %vm1297, %v3541, 0
        %3548 = vmatprep.subr.bf16.mxu0 0
        %3549 = vmatpush1.bf16.xpose.msra.mxu0 %v3546
        %3550 = vmatprep.subr.bf16.mxu0 0
        %3551 = vmatpush1.bf16.xpose.msra.mxu0 0
        %3552 = vmatprep.subr.bf16.mxu0 0
        %3553 = vmatpush1.bf16.xpose.msra.mxu0 0
        %3554 = vmatprep.subr.bf16.mxu0 0
        %3555 = vmatpush1.bf16.xpose.msra.mxu0 0
        %3556 = vmatprep.subr.bf16.mxu0 0
        %3557 = vmatpush1.bf16.xpose.msra.mxu0 0
        %3558 = vmatprep.subr.bf16.mxu0 0
        %3559 = vmatpush1.bf16.xpose.msra.mxu0 0
        %3560 = vmatprep.subr.bf16.mxu0 0
        %3561 = vmatpush1.bf16.xpose.msra.mxu0 0
        %3562 = vmatprep.subr.bf16.mxu0 0
        %3563 = vmatpush1.bf16.xpose.msra.mxu0 0
        %3564 = vmatprep.subr.bf16.mxu0 0
        %3565 = vmatpush1.bf16.xpose.msra.mxu0 0
        %3566 = vmatprep.subr.bf16.mxu0 0
        %3567 = vmatpush1.bf16.xpose.msra.mxu0 0
        %3568 = vmatprep.subr.bf16.mxu0 0
        %3569 = vmatpush1.bf16.xpose.msra.mxu0 0
        %3570 = vmatprep.subr.bf16.mxu0 0
        %3571 = vmatpush1.bf16.xpose.msra.mxu0 0
        %3572 = vmatprep.subr.bf16.mxu0 0
        %3573 = vmatpush1.bf16.xpose.msra.mxu0 0
        %3574 = vmatprep.subr.bf16.mxu0 0
        %3575 = vmatpush1.bf16.xpose.msra.mxu0 0
        %3576 = vmatprep.subr.bf16.mxu0 0
        %3577 = vmatpush1.bf16.xpose.msra.mxu0 0
        %3578 = vmatprep.subr.bf16.mxu0 0
        %3579 = vmatpush1.bf16.xpose.msra.mxu0 0
        %3580 = vmatprep.mubr.bf16.mxu0 0
        %3581 = vmatmul.mubr.bf16.gmra.mrb[0].mxu0 %v3543
        %v3582 = vpop.f32.mrb[0].mxu0
        %v3583 = vadd.f32 %v1194, %v3582
        %v3584 = vpop.f32.mrb[0].mxu0
        %v3585 = vpop.f32.mrb[0].mxu0
        %v3586 = vadd.f32 %v1195, %v3585
        %v3587 = vpop.f32.mrb[0].mxu0
        %3588 = vdwg.mxu0
        %3589 = vrot.lane.b32.xlu0 %v1285, 120
        %v3590 = vpop.permute.xlu0 %3589
        %3591 = vrot.lane.b32.xlu0 %v1285, 88
        %v3592 = vpop.permute.xlu0 %3591
        %v3594 = vsel %vm1297, %v3590, 0
        %v3597 = vsel %vm1297, %v3592, 0
        %3599 = vmatprep.subr.bf16.mxu0 0
        %3600 = vmatpush1.bf16.xpose.msra.mxu0 %v3597
        %3601 = vmatprep.subr.bf16.mxu0 0
        %3602 = vmatpush1.bf16.xpose.msra.mxu0 0
        %3603 = vmatprep.subr.bf16.mxu0 0
        %3604 = vmatpush1.bf16.xpose.msra.mxu0 0
        %3605 = vmatprep.subr.bf16.mxu0 0
        %3606 = vmatpush1.bf16.xpose.msra.mxu0 0
        %3607 = vmatprep.subr.bf16.mxu0 0
        %3608 = vmatpush1.bf16.xpose.msra.mxu0 0
        %3609 = vmatprep.subr.bf16.mxu0 0
        %3610 = vmatpush1.bf16.xpose.msra.mxu0 0
        %3611 = vmatprep.subr.bf16.mxu0 0
        %3612 = vmatpush1.bf16.xpose.msra.mxu0 0
        %3613 = vmatprep.subr.bf16.mxu0 0
        %3614 = vmatpush1.bf16.xpose.msra.mxu0 0
        %3615 = vmatprep.subr.bf16.mxu0 0
        %3616 = vmatpush1.bf16.xpose.msra.mxu0 0
        %3617 = vmatprep.subr.bf16.mxu0 0
        %3618 = vmatpush1.bf16.xpose.msra.mxu0 0
        %3619 = vmatprep.subr.bf16.mxu0 0
        %3620 = vmatpush1.bf16.xpose.msra.mxu0 0
        %3621 = vmatprep.subr.bf16.mxu0 0
        %3622 = vmatpush1.bf16.xpose.msra.mxu0 0
        %3623 = vmatprep.subr.bf16.mxu0 0
        %3624 = vmatpush1.bf16.xpose.msra.mxu0 0
        %3625 = vmatprep.subr.bf16.mxu0 0
        %3626 = vmatpush1.bf16.xpose.msra.mxu0 0
        %3627 = vmatprep.subr.bf16.mxu0 0
        %3628 = vmatpush1.bf16.xpose.msra.mxu0 0
        %3629 = vmatprep.subr.bf16.mxu0 0
        %3630 = vmatpush1.bf16.xpose.msra.mxu0 0
        %3631 = vmatprep.mubr.bf16.mxu0 0
        %3632 = vmatmul.mubr.bf16.gmra.mrb[0].mxu0 %v3594
        %v3633 = vpop.f32.mrb[0].mxu0
        %v3634 = vadd.f32 %v1196, %v3633
        %v3635 = vpop.f32.mrb[0].mxu0
        %v3636 = vpop.f32.mrb[0].mxu0
        %v3637 = vadd.f32 %v1197, %v3636
        %v3638 = vpop.f32.mrb[0].mxu0
        %3639 = vdwg.mxu0
        %3640 = vrot.lane.b32.xlu0 %v1286, 120
        %v3641 = vpop.permute.xlu0 %3640
        %3642 = vrot.lane.b32.xlu0 %v1286, 88
        %v3643 = vpop.permute.xlu0 %3642
        %v3645 = vsel %vm1297, %v3641, 0
        %v3648 = vsel %vm1297, %v3643, 0
        %3650 = vmatprep.subr.bf16.mxu0 0
        %3651 = vmatpush1.bf16.xpose.msra.mxu0 %v3648
        %3652 = vmatprep.subr.bf16.mxu0 0
        %3653 = vmatpush1.bf16.xpose.msra.mxu0 0
        %3654 = vmatprep.subr.bf16.mxu0 0
        %3655 = vmatpush1.bf16.xpose.msra.mxu0 0
        %3656 = vmatprep.subr.bf16.mxu0 0
        %3657 = vmatpush1.bf16.xpose.msra.mxu0 0
        %3658 = vmatprep.subr.bf16.mxu0 0
        %3659 = vmatpush1.bf16.xpose.msra.mxu0 0
        %3660 = vmatprep.subr.bf16.mxu0 0
        %3661 = vmatpush1.bf16.xpose.msra.mxu0 0
        %3662 = vmatprep.subr.bf16.mxu0 0
        %3663 = vmatpush1.bf16.xpose.msra.mxu0 0
        %3664 = vmatprep.subr.bf16.mxu0 0
        %3665 = vmatpush1.bf16.xpose.msra.mxu0 0
        %3666 = vmatprep.subr.bf16.mxu0 0
        %3667 = vmatpush1.bf16.xpose.msra.mxu0 0
        %3668 = vmatprep.subr.bf16.mxu0 0
        %3669 = vmatpush1.bf16.xpose.msra.mxu0 0
        %3670 = vmatprep.subr.bf16.mxu0 0
        %3671 = vmatpush1.bf16.xpose.msra.mxu0 0
        %3672 = vmatprep.subr.bf16.mxu0 0
        %3673 = vmatpush1.bf16.xpose.msra.mxu0 0
        %3674 = vmatprep.subr.bf16.mxu0 0
        %3675 = vmatpush1.bf16.xpose.msra.mxu0 0
        %3676 = vmatprep.subr.bf16.mxu0 0
        %3677 = vmatpush1.bf16.xpose.msra.mxu0 0
        %3678 = vmatprep.subr.bf16.mxu0 0
        %3679 = vmatpush1.bf16.xpose.msra.mxu0 0
        %3680 = vmatprep.subr.bf16.mxu0 0
        %3681 = vmatpush1.bf16.xpose.msra.mxu0 0
        %3682 = vmatprep.mubr.bf16.mxu0 0
        %3683 = vmatmul.mubr.bf16.gmra.mrb[0].mxu0 %v3645
        %v3684 = vpop.f32.mrb[0].mxu0
        %v3685 = vadd.f32 %v1198, %v3684
        %v3686 = vpop.f32.mrb[0].mxu0
        %v3687 = vpop.f32.mrb[0].mxu0
        %v3688 = vadd.f32 %v1199, %v3687
        %v3689 = vpop.f32.mrb[0].mxu0
        %3690 = vdwg.mxu0
        %3691 = vrot.lane.b32.xlu0 %v1287, 120
        %v3692 = vpop.permute.xlu0 %3691
        %3693 = vrot.lane.b32.xlu0 %v1287, 88
        %v3694 = vpop.permute.xlu0 %3693
        %v3696 = vsel %vm1297, %v3692, 0
        %v3699 = vsel %vm1297, %v3694, 0
        %3701 = vmatprep.subr.bf16.mxu0 0
        %3702 = vmatpush1.bf16.xpose.msra.mxu0 %v3699
        %3703 = vmatprep.subr.bf16.mxu0 0
        %3704 = vmatpush1.bf16.xpose.msra.mxu0 0
        %3705 = vmatprep.subr.bf16.mxu0 0
        %3706 = vmatpush1.bf16.xpose.msra.mxu0 0
        %3707 = vmatprep.subr.bf16.mxu0 0
        %3708 = vmatpush1.bf16.xpose.msra.mxu0 0
        %3709 = vmatprep.subr.bf16.mxu0 0
        %3710 = vmatpush1.bf16.xpose.msra.mxu0 0
        %3711 = vmatprep.subr.bf16.mxu0 0
        %3712 = vmatpush1.bf16.xpose.msra.mxu0 0
        %3713 = vmatprep.subr.bf16.mxu0 0
        %3714 = vmatpush1.bf16.xpose.msra.mxu0 0
        %3715 = vmatprep.subr.bf16.mxu0 0
        %3716 = vmatpush1.bf16.xpose.msra.mxu0 0
        %3717 = vmatprep.subr.bf16.mxu0 0
        %3718 = vmatpush1.bf16.xpose.msra.mxu0 0
        %3719 = vmatprep.subr.bf16.mxu0 0
        %3720 = vmatpush1.bf16.xpose.msra.mxu0 0
        %3721 = vmatprep.subr.bf16.mxu0 0
        %3722 = vmatpush1.bf16.xpose.msra.mxu0 0
        %3723 = vmatprep.subr.bf16.mxu0 0
        %3724 = vmatpush1.bf16.xpose.msra.mxu0 0
        %3725 = vmatprep.subr.bf16.mxu0 0
        %3726 = vmatpush1.bf16.xpose.msra.mxu0 0
        %3727 = vmatprep.subr.bf16.mxu0 0
        %3728 = vmatpush1.bf16.xpose.msra.mxu0 0
        %3729 = vmatprep.subr.bf16.mxu0 0
        %3730 = vmatpush1.bf16.xpose.msra.mxu0 0
        %3731 = vmatprep.subr.bf16.mxu0 0
        %3732 = vmatpush1.bf16.xpose.msra.mxu0 0
        %3733 = vmatprep.mubr.bf16.mxu0 0
        %3734 = vmatmul.mubr.bf16.gmra.mrb[0].mxu0 %v3696
        %v3735 = vpop.f32.mrb[0].mxu0
        %v3736 = vadd.f32 %v1200, %v3735
        %v3737 = vpop.f32.mrb[0].mxu0
        %v3738 = vpop.f32.mrb[0].mxu0
        %v3739 = vadd.f32 %v1201, %v3738
        %v3740 = vpop.f32.mrb[0].mxu0
        %3741 = vdwg.mxu0
        %3742 = vrot.lane.b32.xlu0 %v1288, 120
        %v3743 = vpop.permute.xlu0 %3742
        %3744 = vrot.lane.b32.xlu0 %v1288, 88
        %v3745 = vpop.permute.xlu0 %3744
        %v3747 = vsel %vm1297, %v3743, 0
        %v3750 = vsel %vm1297, %v3745, 0
        %3752 = vmatprep.subr.bf16.mxu0 0
        %3753 = vmatpush1.bf16.xpose.msra.mxu0 %v3750
        %3754 = vmatprep.subr.bf16.mxu0 0
        %3755 = vmatpush1.bf16.xpose.msra.mxu0 0
        %3756 = vmatprep.subr.bf16.mxu0 0
        %3757 = vmatpush1.bf16.xpose.msra.mxu0 0
        %3758 = vmatprep.subr.bf16.mxu0 0
        %3759 = vmatpush1.bf16.xpose.msra.mxu0 0
        %3760 = vmatprep.subr.bf16.mxu0 0
        %3761 = vmatpush1.bf16.xpose.msra.mxu0 0
        %3762 = vmatprep.subr.bf16.mxu0 0
        %3763 = vmatpush1.bf16.xpose.msra.mxu0 0
        %3764 = vmatprep.subr.bf16.mxu0 0
        %3765 = vmatpush1.bf16.xpose.msra.mxu0 0
        %3766 = vmatprep.subr.bf16.mxu0 0
        %3767 = vmatpush1.bf16.xpose.msra.mxu0 0
        %3768 = vmatprep.subr.bf16.mxu0 0
        %3769 = vmatpush1.bf16.xpose.msra.mxu0 0
        %3770 = vmatprep.subr.bf16.mxu0 0
        %3771 = vmatpush1.bf16.xpose.msra.mxu0 0
        %3772 = vmatprep.subr.bf16.mxu0 0
        %3773 = vmatpush1.bf16.xpose.msra.mxu0 0
        %3774 = vmatprep.subr.bf16.mxu0 0
        %3775 = vmatpush1.bf16.xpose.msra.mxu0 0
        %3776 = vmatprep.subr.bf16.mxu0 0
        %3777 = vmatpush1.bf16.xpose.msra.mxu0 0
        %3778 = vmatprep.subr.bf16.mxu0 0
        %3779 = vmatpush1.bf16.xpose.msra.mxu0 0
        %3780 = vmatprep.subr.bf16.mxu0 0
        %3781 = vmatpush1.bf16.xpose.msra.mxu0 0
        %3782 = vmatprep.subr.bf16.mxu0 0
        %3783 = vmatpush1.bf16.xpose.msra.mxu0 0
        %3784 = vmatprep.mubr.bf16.mxu0 0
        %3785 = vmatmul.mubr.bf16.gmra.mrb[0].mxu0 %v3747
        %v3786 = vpop.f32.mrb[0].mxu0
        %v3787 = vadd.f32 %v1202, %v3786
        %v3788 = vpop.f32.mrb[0].mxu0
        %v3789 = vpop.f32.mrb[0].mxu0
        %v3790 = vadd.f32 %v1203, %v3789
        %v3791 = vpop.f32.mrb[0].mxu0
        %3792 = vdwg.mxu0
        %3793 = vrot.lane.b32.xlu0 %v1289, 120
        %v3794 = vpop.permute.xlu0 %3793
        %3795 = vrot.lane.b32.xlu0 %v1289, 88
        %v3796 = vpop.permute.xlu0 %3795
        %v3798 = vsel %vm1297, %v3794, 0
        %v3801 = vsel %vm1297, %v3796, 0
        %3803 = vmatprep.subr.bf16.mxu0 0
        %3804 = vmatpush1.bf16.xpose.msra.mxu0 %v3801
        %3805 = vmatprep.subr.bf16.mxu0 0
        %3806 = vmatpush1.bf16.xpose.msra.mxu0 0
        %3807 = vmatprep.subr.bf16.mxu0 0
        %3808 = vmatpush1.bf16.xpose.msra.mxu0 0
        %3809 = vmatprep.subr.bf16.mxu0 0
        %3810 = vmatpush1.bf16.xpose.msra.mxu0 0
        %3811 = vmatprep.subr.bf16.mxu0 0
        %3812 = vmatpush1.bf16.xpose.msra.mxu0 0
        %3813 = vmatprep.subr.bf16.mxu0 0
        %3814 = vmatpush1.bf16.xpose.msra.mxu0 0
        %3815 = vmatprep.subr.bf16.mxu0 0
        %3816 = vmatpush1.bf16.xpose.msra.mxu0 0
        %3817 = vmatprep.subr.bf16.mxu0 0
        %3818 = vmatpush1.bf16.xpose.msra.mxu0 0
        %3819 = vmatprep.subr.bf16.mxu0 0
        %3820 = vmatpush1.bf16.xpose.msra.mxu0 0
        %3821 = vmatprep.subr.bf16.mxu0 0
        %3822 = vmatpush1.bf16.xpose.msra.mxu0 0
        %3823 = vmatprep.subr.bf16.mxu0 0
        %3824 = vmatpush1.bf16.xpose.msra.mxu0 0
        %3825 = vmatprep.subr.bf16.mxu0 0
        %3826 = vmatpush1.bf16.xpose.msra.mxu0 0
        %3827 = vmatprep.subr.bf16.mxu0 0
        %3828 = vmatpush1.bf16.xpose.msra.mxu0 0
        %3829 = vmatprep.subr.bf16.mxu0 0
        %3830 = vmatpush1.bf16.xpose.msra.mxu0 0
        %3831 = vmatprep.subr.bf16.mxu0 0
        %3832 = vmatpush1.bf16.xpose.msra.mxu0 0
        %3833 = vmatprep.subr.bf16.mxu0 0
        %3834 = vmatpush1.bf16.xpose.msra.mxu0 0
        %3835 = vmatprep.mubr.bf16.mxu0 0
        %3836 = vmatmul.mubr.bf16.gmra.mrb[0].mxu0 %v3798
        %v3837 = vpop.f32.mrb[0].mxu0
        %v3838 = vadd.f32 %v1204, %v3837
        %v3839 = vpop.f32.mrb[0].mxu0
        %v3840 = vpop.f32.mrb[0].mxu0
        %v3841 = vadd.f32 %v1205, %v3840
        %v3842 = vpop.f32.mrb[0].mxu0
        %3843 = vdwg.mxu0
        %3844 = vrot.lane.b32.xlu0 %v1290, 120
        %v3845 = vpop.permute.xlu0 %3844
        %3846 = vrot.lane.b32.xlu0 %v1290, 88
        %v3847 = vpop.permute.xlu0 %3846
        %v3849 = vsel %vm1297, %v3845, 0
        %v3852 = vsel %vm1297, %v3847, 0
        %3854 = vmatprep.subr.bf16.mxu0 0
        %3855 = vmatpush1.bf16.xpose.msra.mxu0 %v3852
        %3856 = vmatprep.subr.bf16.mxu0 0
        %3857 = vmatpush1.bf16.xpose.msra.mxu0 0
        %3858 = vmatprep.subr.bf16.mxu0 0
        %3859 = vmatpush1.bf16.xpose.msra.mxu0 0
        %3860 = vmatprep.subr.bf16.mxu0 0
        %3861 = vmatpush1.bf16.xpose.msra.mxu0 0
        %3862 = vmatprep.subr.bf16.mxu0 0
        %3863 = vmatpush1.bf16.xpose.msra.mxu0 0
        %3864 = vmatprep.subr.bf16.mxu0 0
        %3865 = vmatpush1.bf16.xpose.msra.mxu0 0
        %3866 = vmatprep.subr.bf16.mxu0 0
        %3867 = vmatpush1.bf16.xpose.msra.mxu0 0
        %3868 = vmatprep.subr.bf16.mxu0 0
        %3869 = vmatpush1.bf16.xpose.msra.mxu0 0
        %3870 = vmatprep.subr.bf16.mxu0 0
        %3871 = vmatpush1.bf16.xpose.msra.mxu0 0
        %3872 = vmatprep.subr.bf16.mxu0 0
        %3873 = vmatpush1.bf16.xpose.msra.mxu0 0
        %3874 = vmatprep.subr.bf16.mxu0 0
        %3875 = vmatpush1.bf16.xpose.msra.mxu0 0
        %3876 = vmatprep.subr.bf16.mxu0 0
        %3877 = vmatpush1.bf16.xpose.msra.mxu0 0
        %3878 = vmatprep.subr.bf16.mxu0 0
        %3879 = vmatpush1.bf16.xpose.msra.mxu0 0
        %3880 = vmatprep.subr.bf16.mxu0 0
        %3881 = vmatpush1.bf16.xpose.msra.mxu0 0
        %3882 = vmatprep.subr.bf16.mxu0 0
        %3883 = vmatpush1.bf16.xpose.msra.mxu0 0
        %3884 = vmatprep.subr.bf16.mxu0 0
        %3885 = vmatpush1.bf16.xpose.msra.mxu0 0
        %3886 = vmatprep.mubr.bf16.mxu0 0
        %3887 = vmatmul.mubr.bf16.gmra.mrb[0].mxu0 %v3849
        %v3888 = vpop.f32.mrb[0].mxu0
        %v3889 = vadd.f32 %v1206, %v3888
        %v3890 = vpop.f32.mrb[0].mxu0
        %v3891 = vpop.f32.mrb[0].mxu0
        %v3892 = vadd.f32 %v1207, %v3891
        %v3893 = vpop.f32.mrb[0].mxu0
        %3894 = vdwg.mxu0
        %3895 = vrot.lane.b32.xlu0 %v1291, 120
        %v3896 = vpop.permute.xlu0 %3895
        %3897 = vrot.lane.b32.xlu0 %v1291, 88
        %v3898 = vpop.permute.xlu0 %3897
        %v3900 = vsel %vm1297, %v3896, 0
        %v3903 = vsel %vm1297, %v3898, 0
        %3905 = vmatprep.subr.bf16.mxu0 0
        %3906 = vmatpush1.bf16.xpose.msra.mxu0 %v3903
        %3907 = vmatprep.subr.bf16.mxu0 0
        %3908 = vmatpush1.bf16.xpose.msra.mxu0 0
        %3909 = vmatprep.subr.bf16.mxu0 0
        %3910 = vmatpush1.bf16.xpose.msra.mxu0 0
        %3911 = vmatprep.subr.bf16.mxu0 0
        %3912 = vmatpush1.bf16.xpose.msra.mxu0 0
        %3913 = vmatprep.subr.bf16.mxu0 0
        %3914 = vmatpush1.bf16.xpose.msra.mxu0 0
        %3915 = vmatprep.subr.bf16.mxu0 0
        %3916 = vmatpush1.bf16.xpose.msra.mxu0 0
        %3917 = vmatprep.subr.bf16.mxu0 0
        %3918 = vmatpush1.bf16.xpose.msra.mxu0 0
        %3919 = vmatprep.subr.bf16.mxu0 0
        %3920 = vmatpush1.bf16.xpose.msra.mxu0 0
        %3921 = vmatprep.subr.bf16.mxu0 0
        %3922 = vmatpush1.bf16.xpose.msra.mxu0 0
        %3923 = vmatprep.subr.bf16.mxu0 0
        %3924 = vmatpush1.bf16.xpose.msra.mxu0 0
        %3925 = vmatprep.subr.bf16.mxu0 0
        %3926 = vmatpush1.bf16.xpose.msra.mxu0 0
        %3927 = vmatprep.subr.bf16.mxu0 0
        %3928 = vmatpush1.bf16.xpose.msra.mxu0 0
        %3929 = vmatprep.subr.bf16.mxu0 0
        %3930 = vmatpush1.bf16.xpose.msra.mxu0 0
        %3931 = vmatprep.subr.bf16.mxu0 0
        %3932 = vmatpush1.bf16.xpose.msra.mxu0 0
        %3933 = vmatprep.subr.bf16.mxu0 0
        %3934 = vmatpush1.bf16.xpose.msra.mxu0 0
        %3935 = vmatprep.subr.bf16.mxu0 0
        %3936 = vmatpush1.bf16.xpose.msra.mxu0 0
        %3937 = vmatprep.mubr.bf16.mxu0 0
        %3938 = vmatmul.mubr.bf16.gmra.mrb[0].mxu0 %v3900
        %v3939 = vpop.f32.mrb[0].mxu0
        %v3940 = vadd.f32 %v1208, %v3939
        %v3941 = vpop.f32.mrb[0].mxu0
        %v3942 = vpop.f32.mrb[0].mxu0
        %v3943 = vadd.f32 %v1209, %v3942
        %v3944 = vpop.f32.mrb[0].mxu0
        %3945 = vdwg.mxu0
        %3946 = vrot.lane.b32.xlu0 %v1292, 120
        %v3947 = vpop.permute.xlu0 %3946
        %3948 = vrot.lane.b32.xlu0 %v1292, 88
        %v3949 = vpop.permute.xlu0 %3948
        %v3951 = vsel %vm1297, %v3947, 0
        %v3954 = vsel %vm1297, %v3949, 0
        %3956 = vmatprep.subr.bf16.mxu0 0
        %3957 = vmatpush1.bf16.xpose.msra.mxu0 %v3954
        %3958 = vmatprep.subr.bf16.mxu0 0
        %3959 = vmatpush1.bf16.xpose.msra.mxu0 0
        %3960 = vmatprep.subr.bf16.mxu0 0
        %3961 = vmatpush1.bf16.xpose.msra.mxu0 0
        %3962 = vmatprep.subr.bf16.mxu0 0
        %3963 = vmatpush1.bf16.xpose.msra.mxu0 0
        %3964 = vmatprep.subr.bf16.mxu0 0
        %3965 = vmatpush1.bf16.xpose.msra.mxu0 0
        %3966 = vmatprep.subr.bf16.mxu0 0
        %3967 = vmatpush1.bf16.xpose.msra.mxu0 0
        %3968 = vmatprep.subr.bf16.mxu0 0
        %3969 = vmatpush1.bf16.xpose.msra.mxu0 0
        %3970 = vmatprep.subr.bf16.mxu0 0
        %3971 = vmatpush1.bf16.xpose.msra.mxu0 0
        %3972 = vmatprep.subr.bf16.mxu0 0
        %3973 = vmatpush1.bf16.xpose.msra.mxu0 0
        %3974 = vmatprep.subr.bf16.mxu0 0
        %3975 = vmatpush1.bf16.xpose.msra.mxu0 0
        %3976 = vmatprep.subr.bf16.mxu0 0
        %3977 = vmatpush1.bf16.xpose.msra.mxu0 0
        %3978 = vmatprep.subr.bf16.mxu0 0
        %3979 = vmatpush1.bf16.xpose.msra.mxu0 0
        %3980 = vmatprep.subr.bf16.mxu0 0
        %3981 = vmatpush1.bf16.xpose.msra.mxu0 0
        %3982 = vmatprep.subr.bf16.mxu0 0
        %3983 = vmatpush1.bf16.xpose.msra.mxu0 0
        %3984 = vmatprep.subr.bf16.mxu0 0
        %3985 = vmatpush1.bf16.xpose.msra.mxu0 0
        %3986 = vmatprep.subr.bf16.mxu0 0
        %3987 = vmatpush1.bf16.xpose.msra.mxu0 0
        %3988 = vmatprep.mubr.bf16.mxu0 0
        %3989 = vmatmul.mubr.bf16.gmra.mrb[0].mxu0 %v3951
        %v3990 = vpop.f32.mrb[0].mxu0
        %v3991 = vadd.f32 %v1210, %v3990
        %v3992 = vpop.f32.mrb[0].mxu0
        %v3993 = vpop.f32.mrb[0].mxu0
        %v3994 = vadd.f32 %v1211, %v3993
        %v3995 = vpop.f32.mrb[0].mxu0
        %3996 = vdwg.mxu0
        %3997 = vrot.lane.b32.xlu0 %v1293, 120
        %v3998 = vpop.permute.xlu0 %3997
        %3999 = vrot.lane.b32.xlu0 %v1293, 88
        %v4000 = vpop.permute.xlu0 %3999
        %v4002 = vsel %vm1297, %v3998, 0
        %v4005 = vsel %vm1297, %v4000, 0
        %4007 = vmatprep.subr.bf16.mxu0 0
        %4008 = vmatpush1.bf16.xpose.msra.mxu0 %v4005
        %4009 = vmatprep.subr.bf16.mxu0 0
        %4010 = vmatpush1.bf16.xpose.msra.mxu0 0
        %4011 = vmatprep.subr.bf16.mxu0 0
        %4012 = vmatpush1.bf16.xpose.msra.mxu0 0
        %4013 = vmatprep.subr.bf16.mxu0 0
        %4014 = vmatpush1.bf16.xpose.msra.mxu0 0
        %4015 = vmatprep.subr.bf16.mxu0 0
        %4016 = vmatpush1.bf16.xpose.msra.mxu0 0
        %4017 = vmatprep.subr.bf16.mxu0 0
        %4018 = vmatpush1.bf16.xpose.msra.mxu0 0
        %4019 = vmatprep.subr.bf16.mxu0 0
        %4020 = vmatpush1.bf16.xpose.msra.mxu0 0
        %4021 = vmatprep.subr.bf16.mxu0 0
        %4022 = vmatpush1.bf16.xpose.msra.mxu0 0
        %4023 = vmatprep.subr.bf16.mxu0 0
        %4024 = vmatpush1.bf16.xpose.msra.mxu0 0
        %4025 = vmatprep.subr.bf16.mxu0 0
        %4026 = vmatpush1.bf16.xpose.msra.mxu0 0
        %4027 = vmatprep.subr.bf16.mxu0 0
        %4028 = vmatpush1.bf16.xpose.msra.mxu0 0
        %4029 = vmatprep.subr.bf16.mxu0 0
        %4030 = vmatpush1.bf16.xpose.msra.mxu0 0
        %4031 = vmatprep.subr.bf16.mxu0 0
        %4032 = vmatpush1.bf16.xpose.msra.mxu0 0
        %4033 = vmatprep.subr.bf16.mxu0 0
        %4034 = vmatpush1.bf16.xpose.msra.mxu0 0
        %4035 = vmatprep.subr.bf16.mxu0 0
        %4036 = vmatpush1.bf16.xpose.msra.mxu0 0
        %4037 = vmatprep.subr.bf16.mxu0 0
        %4038 = vmatpush1.bf16.xpose.msra.mxu0 0
        %4039 = vmatprep.mubr.bf16.mxu0 0
        %4040 = vmatmul.mubr.bf16.gmra.mrb[0].mxu0 %v4002
        %v4041 = vpop.f32.mrb[0].mxu0
        %v4042 = vadd.f32 %v1212, %v4041
        %v4043 = vpop.f32.mrb[0].mxu0
        %v4044 = vpop.f32.mrb[0].mxu0
        %v4045 = vadd.f32 %v1213, %v4044
        %v4046 = vpop.f32.mrb[0].mxu0
        %4047 = vdwg.mxu0
        %v4048 = vsel %vm2095, %v3277, -inf
        %4049 = vmax.xlane.f32.xlu0 %v4048
        %v4050 = vpop.xlane.xlu0 %4049
        %v4051 = vsel %vm2095, %v3280, -inf
        %4052 = vmax.xlane.f32.xlu0 %v4051
        %v4053 = vpop.xlane.xlu0 %4052
        %v4054 = vsel %vm2095, %v3328, -inf
        %4055 = vmax.xlane.f32.xlu0 %v4054
        %v4056 = vpop.xlane.xlu0 %4055
        %v4057 = vsel %vm2095, %v3331, -inf
        %4058 = vmax.xlane.f32.xlu0 %v4057
        %v4059 = vpop.xlane.xlu0 %4058
        %v4060 = vsel %vm2095, %v3379, -inf
        %4061 = vmax.xlane.f32.xlu0 %v4060
        %v4062 = vpop.xlane.xlu0 %4061
        %v4063 = vsel %vm2095, %v3382, -inf
        %4064 = vmax.xlane.f32.xlu0 %v4063
        %v4065 = vpop.xlane.xlu0 %4064
        %v4066 = vsel %vm2095, %v3430, -inf
        %4067 = vmax.xlane.f32.xlu0 %v4066
        %v4068 = vpop.xlane.xlu0 %4067
        %v4069 = vsel %vm2095, %v3433, -inf
        %4070 = vmax.xlane.f32.xlu0 %v4069
        %v4071 = vpop.xlane.xlu0 %4070
        %v4072 = vsel %vm2095, %v3481, -inf
        %4073 = vmax.xlane.f32.xlu0 %v4072
        %v4074 = vpop.xlane.xlu0 %4073
        %v4075 = vsel %vm2095, %v3484, -inf
        %4076 = vmax.xlane.f32.xlu0 %v4075
        %v4077 = vpop.xlane.xlu0 %4076
        %v4078 = vsel %vm2095, %v3532, -inf
        %4079 = vmax.xlane.f32.xlu0 %v4078
        %v4080 = vpop.xlane.xlu0 %4079
        %v4081 = vsel %vm2095, %v3535, -inf
        %4082 = vmax.xlane.f32.xlu0 %v4081
        %v4083 = vpop.xlane.xlu0 %4082
        %v4084 = vsel %vm2095, %v3583, -inf
        %4085 = vmax.xlane.f32.xlu0 %v4084
        %v4086 = vpop.xlane.xlu0 %4085
        %v4087 = vsel %vm2095, %v3586, -inf
        %4088 = vmax.xlane.f32.xlu0 %v4087
        %v4089 = vpop.xlane.xlu0 %4088
        %v4090 = vsel %vm2095, %v3634, -inf
        %4091 = vmax.xlane.f32.xlu0 %v4090
        %v4092 = vpop.xlane.xlu0 %4091
        %v4093 = vsel %vm2095, %v3637, -inf
        %4094 = vmax.xlane.f32.xlu0 %v4093
        %v4095 = vpop.xlane.xlu0 %4094
        %v4096 = vsel %vm2095, %v3685, -inf
        %4097 = vmax.xlane.f32.xlu0 %v4096
        %v4098 = vpop.xlane.xlu0 %4097
        %v4099 = vsel %vm2095, %v3688, -inf
        %4100 = vmax.xlane.f32.xlu0 %v4099
        %v4101 = vpop.xlane.xlu0 %4100
        %v4102 = vsel %vm2095, %v3736, -inf
        %4103 = vmax.xlane.f32.xlu0 %v4102
        %v4104 = vpop.xlane.xlu0 %4103
        %v4105 = vsel %vm2095, %v3739, -inf
        %4106 = vmax.xlane.f32.xlu0 %v4105
        %v4107 = vpop.xlane.xlu0 %4106
        %v4108 = vsel %vm2095, %v3787, -inf
        %4109 = vmax.xlane.f32.xlu0 %v4108
        %v4110 = vpop.xlane.xlu0 %4109
        %v4111 = vsel %vm2095, %v3790, -inf
        %4112 = vmax.xlane.f32.xlu0 %v4111
        %v4113 = vpop.xlane.xlu0 %4112
        %v4114 = vsel %vm2095, %v3838, -inf
        %4115 = vmax.xlane.f32.xlu0 %v4114
        %v4116 = vpop.xlane.xlu0 %4115
        %v4117 = vsel %vm2095, %v3841, -inf
        %4118 = vmax.xlane.f32.xlu0 %v4117
        %v4119 = vpop.xlane.xlu0 %4118
        %v4120 = vsel %vm2095, %v3889, -inf
        %4121 = vmax.xlane.f32.xlu0 %v4120
        %v4122 = vpop.xlane.xlu0 %4121
        %v4123 = vsel %vm2095, %v3892, -inf
        %4124 = vmax.xlane.f32.xlu0 %v4123
        %v4125 = vpop.xlane.xlu0 %4124
        %v4126 = vsel %vm2095, %v3940, -inf
        %4127 = vmax.xlane.f32.xlu0 %v4126
        %v4128 = vpop.xlane.xlu0 %4127
        %v4129 = vsel %vm2095, %v3943, -inf
        %4130 = vmax.xlane.f32.xlu0 %v4129
        %v4131 = vpop.xlane.xlu0 %4130
        %v4132 = vsel %vm2095, %v3991, -inf
        %4133 = vmax.xlane.f32.xlu0 %v4132
        %v4134 = vpop.xlane.xlu0 %4133
        %v4135 = vsel %vm2095, %v3994, -inf
        %4136 = vmax.xlane.f32.xlu0 %v4135
        %v4137 = vpop.xlane.xlu0 %4136
        %v4138 = vsel %vm2095, %v4042, -inf
        %4139 = vmax.xlane.f32.xlu0 %v4138
        %v4140 = vpop.xlane.xlu0 %4139
        %v4141 = vsel %vm2095, %v4045, -inf
        %4142 = vmax.xlane.f32.xlu0 %v4141
        %v4143 = vpop.xlane.xlu0 %4142
        %v4144 = vsub.f32 %v3277, %v4050
        %v4145 = vsub.f32 %v3280, %v4053
        %v4146 = vsub.f32 %v3328, %v4056
        %v4147 = vsub.f32 %v3331, %v4059
        %v4148 = vsub.f32 %v3379, %v4062
        %v4149 = vsub.f32 %v3382, %v4065
        %v4150 = vsub.f32 %v3430, %v4068
        %v4151 = vsub.f32 %v3433, %v4071
        %v4152 = vsub.f32 %v3481, %v4074
        %v4153 = vsub.f32 %v3484, %v4077
        %v4154 = vsub.f32 %v3532, %v4080
        %v4155 = vsub.f32 %v3535, %v4083
        %v4156 = vsub.f32 %v3583, %v4086
        %v4157 = vsub.f32 %v3586, %v4089
        %v4158 = vsub.f32 %v3634, %v4092
        %v4159 = vsub.f32 %v3637, %v4095
        %v4160 = vsub.f32 %v3685, %v4098
        %v4161 = vsub.f32 %v3688, %v4101
        %v4162 = vsub.f32 %v3736, %v4104
        %v4163 = vsub.f32 %v3739, %v4107
        %v4164 = vsub.f32 %v3787, %v4110
        %v4165 = vsub.f32 %v3790, %v4113
        %v4166 = vsub.f32 %v3838, %v4116
        %v4167 = vsub.f32 %v3841, %v4119
        %v4168 = vsub.f32 %v3889, %v4122
        %v4169 = vsub.f32 %v3892, %v4125
        %v4170 = vsub.f32 %v3940, %v4128
        %v4171 = vsub.f32 %v3943, %v4131
        %v4172 = vsub.f32 %v3991, %v4134
        %v4173 = vsub.f32 %v3994, %v4137
        %v4174 = vsub.f32 %v4042, %v4140
        %v4175 = vsub.f32 %v4045, %v4143
        %v4176 = vmul.f32 %v4144, 1.442695
        %v4177 = vpow.pop %v4176
        %v4178 = vmul.f32 %v4145, 1.442695
        %v4179 = vpow.pop %v4178
        %v4180 = vmul.f32 %v4146, 1.442695
        %v4181 = vpow.pop %v4180
        %v4182 = vmul.f32 %v4147, 1.442695
        %v4183 = vpow.pop %v4182
        %v4184 = vmul.f32 %v4148, 1.442695
        %v4185 = vpow.pop %v4184
        %v4186 = vmul.f32 %v4149, 1.442695
        %v4187 = vpow.pop %v4186
        %v4188 = vmul.f32 %v4150, 1.442695
        %v4189 = vpow.pop %v4188
        %v4190 = vmul.f32 %v4151, 1.442695
        %v4191 = vpow.pop %v4190
        %v4192 = vmul.f32 %v4152, 1.442695
        %v4193 = vpow.pop %v4192
        %v4194 = vmul.f32 %v4153, 1.442695
        %v4195 = vpow.pop %v4194
        %v4196 = vmul.f32 %v4154, 1.442695
        %v4197 = vpow.pop %v4196
        %v4198 = vmul.f32 %v4155, 1.442695
        %v4199 = vpow.pop %v4198
        %v4200 = vmul.f32 %v4156, 1.442695
        %v4201 = vpow.pop %v4200
        %v4202 = vmul.f32 %v4157, 1.442695
        %v4203 = vpow.pop %v4202
        %v4204 = vmul.f32 %v4158, 1.442695
        %v4205 = vpow.pop %v4204
        %v4206 = vmul.f32 %v4159, 1.442695
        %v4207 = vpow.pop %v4206
        %v4208 = vmul.f32 %v4160, 1.442695
        %v4209 = vpow.pop %v4208
        %v4210 = vmul.f32 %v4161, 1.442695
        %v4211 = vpow.pop %v4210
        %v4212 = vmul.f32 %v4162, 1.442695
        %v4213 = vpow.pop %v4212
        %v4214 = vmul.f32 %v4163, 1.442695
        %v4215 = vpow.pop %v4214
        %v4216 = vmul.f32 %v4164, 1.442695
        %v4217 = vpow.pop %v4216
        %v4218 = vmul.f32 %v4165, 1.442695
        %v4219 = vpow.pop %v4218
        %v4220 = vmul.f32 %v4166, 1.442695
        %v4221 = vpow.pop %v4220
        %v4222 = vmul.f32 %v4167, 1.442695
        %v4223 = vpow.pop %v4222
        %v4224 = vmul.f32 %v4168, 1.442695
        %v4225 = vpow.pop %v4224
        %v4226 = vmul.f32 %v4169, 1.442695
        %v4227 = vpow.pop %v4226
        %v4228 = vmul.f32 %v4170, 1.442695
        %v4229 = vpow.pop %v4228
        %v4230 = vmul.f32 %v4171, 1.442695
        %v4231 = vpow.pop %v4230
        %v4232 = vmul.f32 %v4172, 1.442695
        %v4233 = vpow.pop %v4232
        %v4234 = vmul.f32 %v4173, 1.442695
        %v4235 = vpow.pop %v4234
        %v4236 = vmul.f32 %v4174, 1.442695
        %v4237 = vpow.pop %v4236
        %v4238 = vmul.f32 %v4175, 1.442695
        %v4239 = vpow.pop %v4238
        %v4240 = vsel %vm2095, %v4177, 0.0
        %4241 = vadd.xlane.f32.xlu0 %v4240
        %v4242 = vpop.xlane.xlu0 %4241
        %v4243 = vsel %vm2095, %v4179, 0.0
        %4244 = vadd.xlane.f32.xlu0 %v4243
        %v4245 = vpop.xlane.xlu0 %4244
        %v4246 = vsel %vm2095, %v4181, 0.0
        %4247 = vadd.xlane.f32.xlu0 %v4246
        %v4248 = vpop.xlane.xlu0 %4247
        %v4249 = vsel %vm2095, %v4183, 0.0
        %4250 = vadd.xlane.f32.xlu0 %v4249
        %v4251 = vpop.xlane.xlu0 %4250
        %v4252 = vsel %vm2095, %v4185, 0.0
        %4253 = vadd.xlane.f32.xlu0 %v4252
        %v4254 = vpop.xlane.xlu0 %4253
        %v4255 = vsel %vm2095, %v4187, 0.0
        %4256 = vadd.xlane.f32.xlu0 %v4255
        %v4257 = vpop.xlane.xlu0 %4256
        %v4258 = vsel %vm2095, %v4189, 0.0
        %4259 = vadd.xlane.f32.xlu0 %v4258
        %v4260 = vpop.xlane.xlu0 %4259
        %v4261 = vsel %vm2095, %v4191, 0.0
        %4262 = vadd.xlane.f32.xlu0 %v4261
        %v4263 = vpop.xlane.xlu0 %4262
        %v4264 = vsel %vm2095, %v4193, 0.0
        %4265 = vadd.xlane.f32.xlu0 %v4264
        %v4266 = vpop.xlane.xlu0 %4265
        %v4267 = vsel %vm2095, %v4195, 0.0
        %4268 = vadd.xlane.f32.xlu0 %v4267
        %v4269 = vpop.xlane.xlu0 %4268
        %v4270 = vsel %vm2095, %v4197, 0.0
        %4271 = vadd.xlane.f32.xlu0 %v4270
        %v4272 = vpop.xlane.xlu0 %4271
        %v4273 = vsel %vm2095, %v4199, 0.0
        %4274 = vadd.xlane.f32.xlu0 %v4273
        %v4275 = vpop.xlane.xlu0 %4274
        %v4276 = vsel %vm2095, %v4201, 0.0
        %4277 = vadd.xlane.f32.xlu0 %v4276
        %v4278 = vpop.xlane.xlu0 %4277
        %v4279 = vsel %vm2095, %v4203, 0.0
        %4280 = vadd.xlane.f32.xlu0 %v4279
        %v4281 = vpop.xlane.xlu0 %4280
        %v4282 = vsel %vm2095, %v4205, 0.0
        %4283 = vadd.xlane.f32.xlu0 %v4282
        %v4284 = vpop.xlane.xlu0 %4283
        %v4285 = vsel %vm2095, %v4207, 0.0
        %4286 = vadd.xlane.f32.xlu0 %v4285
        %v4287 = vpop.xlane.xlu0 %4286
        %v4288 = vsel %vm2095, %v4209, 0.0
        %4289 = vadd.xlane.f32.xlu0 %v4288
        %v4290 = vpop.xlane.xlu0 %4289
        %v4291 = vsel %vm2095, %v4211, 0.0
        %4292 = vadd.xlane.f32.xlu0 %v4291
        %v4293 = vpop.xlane.xlu0 %4292
        %v4294 = vsel %vm2095, %v4213, 0.0
        %4295 = vadd.xlane.f32.xlu0 %v4294
        %v4296 = vpop.xlane.xlu0 %4295
        %v4297 = vsel %vm2095, %v4215, 0.0
        %4298 = vadd.xlane.f32.xlu0 %v4297
        %v4299 = vpop.xlane.xlu0 %4298
        %v4300 = vsel %vm2095, %v4217, 0.0
        %4301 = vadd.xlane.f32.xlu0 %v4300
        %v4302 = vpop.xlane.xlu0 %4301
        %v4303 = vsel %vm2095, %v4219, 0.0
        %4304 = vadd.xlane.f32.xlu0 %v4303
        %v4305 = vpop.xlane.xlu0 %4304
        %v4306 = vsel %vm2095, %v4221, 0.0
        %4307 = vadd.xlane.f32.xlu0 %v4306
        %v4308 = vpop.xlane.xlu0 %4307
        %v4309 = vsel %vm2095, %v4223, 0.0
        %4310 = vadd.xlane.f32.xlu0 %v4309
        %v4311 = vpop.xlane.xlu0 %4310
        %v4312 = vsel %vm2095, %v4225, 0.0
        %4313 = vadd.xlane.f32.xlu0 %v4312
        %v4314 = vpop.xlane.xlu0 %4313
        %v4315 = vsel %vm2095, %v4227, 0.0
        %4316 = vadd.xlane.f32.xlu0 %v4315
        %v4317 = vpop.xlane.xlu0 %4316
        %v4318 = vsel %vm2095, %v4229, 0.0
        %4319 = vadd.xlane.f32.xlu0 %v4318
        %v4320 = vpop.xlane.xlu0 %4319
        %v4321 = vsel %vm2095, %v4231, 0.0
        %4322 = vadd.xlane.f32.xlu0 %v4321
        %v4323 = vpop.xlane.xlu0 %4322
        %v4324 = vsel %vm2095, %v4233, 0.0
        %4325 = vadd.xlane.f32.xlu0 %v4324
        %v4326 = vpop.xlane.xlu0 %4325
        %v4327 = vsel %vm2095, %v4235, 0.0
        %4328 = vadd.xlane.f32.xlu0 %v4327
        %v4329 = vpop.xlane.xlu0 %4328
        %v4330 = vsel %vm2095, %v4237, 0.0
        %4331 = vadd.xlane.f32.xlu0 %v4330
        %v4332 = vpop.xlane.xlu0 %4331
        %v4333 = vsel %vm2095, %v4239, 0.0
        %4334 = vadd.xlane.f32.xlu0 %v4333
        %v4335 = vpop.xlane.xlu0 %4334
        %v4336 = vrcp.pop %v4242
        %v4337 = vrcp.pop %v4245
        %v4338 = vrcp.pop %v4248
        %v4339 = vrcp.pop %v4251
        %v4340 = vrcp.pop %v4254
        %v4341 = vrcp.pop %v4257
        %v4342 = vrcp.pop %v4260
        %v4343 = vrcp.pop %v4263
        %v4344 = vrcp.pop %v4266
        %v4345 = vrcp.pop %v4269
        %v4346 = vrcp.pop %v4272
        %v4347 = vrcp.pop %v4275
        %v4348 = vrcp.pop %v4278
        %v4349 = vrcp.pop %v4281
        %v4350 = vrcp.pop %v4284
        %v4351 = vrcp.pop %v4287
        %v4352 = vrcp.pop %v4290
        %v4353 = vrcp.pop %v4293
        %v4354 = vrcp.pop %v4296
        %v4355 = vrcp.pop %v4299
        %v4356 = vrcp.pop %v4302
        %v4357 = vrcp.pop %v4305
        %v4358 = vrcp.pop %v4308
        %v4359 = vrcp.pop %v4311
        %v4360 = vrcp.pop %v4314
        %v4361 = vrcp.pop %v4317
        %v4362 = vrcp.pop %v4320
        %v4363 = vrcp.pop %v4323
        %v4364 = vrcp.pop %v4326
        %v4365 = vrcp.pop %v4329
        %v4366 = vrcp.pop %v4332
        %v4367 = vrcp.pop %v4335
        %v4368 = vmul.f32 %v4177, %v4336
        %v4369 = vmul.f32 %v4179, %v4337
        %v4370 = vmul.f32 %v4181, %v4338
        %v4371 = vmul.f32 %v4183, %v4339
        %v4372 = vmul.f32 %v4185, %v4340
        %v4373 = vmul.f32 %v4187, %v4341
        %v4374 = vmul.f32 %v4189, %v4342
        %v4375 = vmul.f32 %v4191, %v4343
        %v4376 = vmul.f32 %v4193, %v4344
        %v4377 = vmul.f32 %v4195, %v4345
        %v4378 = vmul.f32 %v4197, %v4346
        %v4379 = vmul.f32 %v4199, %v4347
        %v4380 = vmul.f32 %v4201, %v4348
        %v4381 = vmul.f32 %v4203, %v4349
        %v4382 = vmul.f32 %v4205, %v4350
        %v4383 = vmul.f32 %v4207, %v4351
        %v4384 = vmul.f32 %v4209, %v4352
        %v4385 = vmul.f32 %v4211, %v4353
        %v4386 = vmul.f32 %v4213, %v4354
        %v4387 = vmul.f32 %v4215, %v4355
        %v4388 = vmul.f32 %v4217, %v4356
        %v4389 = vmul.f32 %v4219, %v4357
        %v4390 = vmul.f32 %v4221, %v4358
        %v4391 = vmul.f32 %v4223, %v4359
        %v4392 = vmul.f32 %v4225, %v4360
        %v4393 = vmul.f32 %v4227, %v4361
        %v4394 = vmul.f32 %v4229, %v4362
        %v4395 = vmul.f32 %v4231, %v4363
        %v4396 = vmul.f32 %v4233, %v4364
        %v4397 = vmul.f32 %v4235, %v4365
        %v4398 = vmul.f32 %v4237, %v4366
        %v4399 = vmul.f32 %v4239, %v4367
        %v4400 = vpack.c.bf16 %v4369, %v4368
        %v4401 = vpack.c.bf16 %v4371, %v4370
        %v4402 = vpack.c.bf16 %v4373, %v4372
        %v4403 = vpack.c.bf16 %v4375, %v4374
        %v4404 = vpack.c.bf16 %v4377, %v4376
        %v4405 = vpack.c.bf16 %v4379, %v4378
        %v4406 = vpack.c.bf16 %v4381, %v4380
        %v4407 = vpack.c.bf16 %v4383, %v4382
        %v4408 = vpack.c.bf16 %v4385, %v4384
        %v4409 = vpack.c.bf16 %v4387, %v4386
        %v4410 = vpack.c.bf16 %v4389, %v4388
        %v4411 = vpack.c.bf16 %v4391, %v4390
        %v4412 = vpack.c.bf16 %v4393, %v4392
        %v4413 = vpack.c.bf16 %v4395, %v4394
        %v4414 = vpack.c.bf16 %v4397, %v4396
        %v4415 = vpack.c.bf16 %v4399, %v4398
        %4416 = vrot.lane.b32.xlu0 %v1278, 56
        %v4417 = vpop.permute.xlu0 %4416
        %v4420 = vsel %vm2095, %v4400, 0
        %4422 = vmatprep.subr.bf16.mxu0 0
        %4423 = vmatpush1.bf16.msra.mxu0 %v4417
        %4424 = vmatprep.subr.bf16.mxu0 0
        %4425 = vmatpush1.bf16.msra.mxu0 0
        %4426 = vmatprep.subr.bf16.mxu0 0
        %4427 = vmatpush1.bf16.msra.mxu0 0
        %4428 = vmatprep.subr.bf16.mxu0 0
        %4429 = vmatpush1.bf16.msra.mxu0 0
        %4430 = vmatprep.subr.bf16.mxu0 0
        %4431 = vmatpush1.bf16.msra.mxu0 0
        %4432 = vmatprep.subr.bf16.mxu0 0
        %4433 = vmatpush1.bf16.msra.mxu0 0
        %4434 = vmatprep.subr.bf16.mxu0 0
        %4435 = vmatpush1.bf16.msra.mxu0 0
        %4436 = vmatprep.subr.bf16.mxu0 0
        %4437 = vmatpush1.bf16.msra.mxu0 0
        %4438 = vmatprep.subr.bf16.mxu0 0
        %4439 = vmatpush1.bf16.msra.mxu0 0
        %4440 = vmatprep.subr.bf16.mxu0 0
        %4441 = vmatpush1.bf16.msra.mxu0 0
        %4442 = vmatprep.subr.bf16.mxu0 0
        %4443 = vmatpush1.bf16.msra.mxu0 0
        %4444 = vmatprep.subr.bf16.mxu0 0
        %4445 = vmatpush1.bf16.msra.mxu0 0
        %4446 = vmatprep.subr.bf16.mxu0 0
        %4447 = vmatpush1.bf16.msra.mxu0 0
        %4448 = vmatprep.subr.bf16.mxu0 0
        %4449 = vmatpush1.bf16.msra.mxu0 0
        %4450 = vmatprep.subr.bf16.mxu0 0
        %4451 = vmatpush1.bf16.msra.mxu0 0
        %4452 = vmatprep.subr.bf16.mxu0 0
        %4453 = vmatpush1.bf16.msra.mxu0 0
        %4454 = vmatprep.mubr.bf16.mxu0 0
        %4455 = vmatmul.mubr.bf16.gmra.mrb[0].mxu0 %v4420
        %v4456 = vpop.f32.mrb[0].mxu0
        %v4457 = vadd.f32 0.0, %v4456
        %v4458 = vpop.f32.mrb[0].mxu0
        %v4459 = vpop.f32.mrb[0].mxu0
        %v4460 = vadd.f32 0.0, %v4459
        %v4461 = vpop.f32.mrb[0].mxu0
        %4462 = vdwg.mxu0
        %4463 = vrot.lane.b32.xlu0 %v1279, 56
        %v4464 = vpop.permute.xlu0 %4463
        %v4467 = vsel %vm2095, %v4401, 0
        %4469 = vmatprep.subr.bf16.mxu0 0
        %4470 = vmatpush1.bf16.msra.mxu0 %v4464
        %4471 = vmatprep.subr.bf16.mxu0 0
        %4472 = vmatpush1.bf16.msra.mxu0 0
        %4473 = vmatprep.subr.bf16.mxu0 0
        %4474 = vmatpush1.bf16.msra.mxu0 0
        %4475 = vmatprep.subr.bf16.mxu0 0
        %4476 = vmatpush1.bf16.msra.mxu0 0
        %4477 = vmatprep.subr.bf16.mxu0 0
        %4478 = vmatpush1.bf16.msra.mxu0 0
        %4479 = vmatprep.subr.bf16.mxu0 0
        %4480 = vmatpush1.bf16.msra.mxu0 0
        %4481 = vmatprep.subr.bf16.mxu0 0
        %4482 = vmatpush1.bf16.msra.mxu0 0
        %4483 = vmatprep.subr.bf16.mxu0 0
        %4484 = vmatpush1.bf16.msra.mxu0 0
        %4485 = vmatprep.subr.bf16.mxu0 0
        %4486 = vmatpush1.bf16.msra.mxu0 0
        %4487 = vmatprep.subr.bf16.mxu0 0
        %4488 = vmatpush1.bf16.msra.mxu0 0
        %4489 = vmatprep.subr.bf16.mxu0 0
        %4490 = vmatpush1.bf16.msra.mxu0 0
        %4491 = vmatprep.subr.bf16.mxu0 0
        %4492 = vmatpush1.bf16.msra.mxu0 0
        %4493 = vmatprep.subr.bf16.mxu0 0
        %4494 = vmatpush1.bf16.msra.mxu0 0
        %4495 = vmatprep.subr.bf16.mxu0 0
        %4496 = vmatpush1.bf16.msra.mxu0 0
        %4497 = vmatprep.subr.bf16.mxu0 0
        %4498 = vmatpush1.bf16.msra.mxu0 0
        %4499 = vmatprep.subr.bf16.mxu0 0
        %4500 = vmatpush1.bf16.msra.mxu0 0
        %4501 = vmatprep.mubr.bf16.mxu0 0
        %4502 = vmatmul.mubr.bf16.gmra.mrb[0].mxu0 %v4467
        %v4503 = vpop.f32.mrb[0].mxu0
        %v4504 = vadd.f32 0.0, %v4503
        %v4505 = vpop.f32.mrb[0].mxu0
        %v4506 = vpop.f32.mrb[0].mxu0
        %v4507 = vadd.f32 0.0, %v4506
        %v4508 = vpop.f32.mrb[0].mxu0
        %4509 = vdwg.mxu0
        %4510 = vrot.lane.b32.xlu0 %v1280, 56
        %v4511 = vpop.permute.xlu0 %4510
        %v4514 = vsel %vm2095, %v4402, 0
        %4516 = vmatprep.subr.bf16.mxu0 0
        %4517 = vmatpush1.bf16.msra.mxu0 %v4511
        %4518 = vmatprep.subr.bf16.mxu0 0
        %4519 = vmatpush1.bf16.msra.mxu0 0
        %4520 = vmatprep.subr.bf16.mxu0 0
        %4521 = vmatpush1.bf16.msra.mxu0 0
        %4522 = vmatprep.subr.bf16.mxu0 0
        %4523 = vmatpush1.bf16.msra.mxu0 0
        %4524 = vmatprep.subr.bf16.mxu0 0
        %4525 = vmatpush1.bf16.msra.mxu0 0
        %4526 = vmatprep.subr.bf16.mxu0 0
        %4527 = vmatpush1.bf16.msra.mxu0 0
        %4528 = vmatprep.subr.bf16.mxu0 0
        %4529 = vmatpush1.bf16.msra.mxu0 0
        %4530 = vmatprep.subr.bf16.mxu0 0
        %4531 = vmatpush1.bf16.msra.mxu0 0
        %4532 = vmatprep.subr.bf16.mxu0 0
        %4533 = vmatpush1.bf16.msra.mxu0 0
        %4534 = vmatprep.subr.bf16.mxu0 0
        %4535 = vmatpush1.bf16.msra.mxu0 0
        %4536 = vmatprep.subr.bf16.mxu0 0
        %4537 = vmatpush1.bf16.msra.mxu0 0
        %4538 = vmatprep.subr.bf16.mxu0 0
        %4539 = vmatpush1.bf16.msra.mxu0 0
        %4540 = vmatprep.subr.bf16.mxu0 0
        %4541 = vmatpush1.bf16.msra.mxu0 0
        %4542 = vmatprep.subr.bf16.mxu0 0
        %4543 = vmatpush1.bf16.msra.mxu0 0
        %4544 = vmatprep.subr.bf16.mxu0 0
        %4545 = vmatpush1.bf16.msra.mxu0 0
        %4546 = vmatprep.subr.bf16.mxu0 0
        %4547 = vmatpush1.bf16.msra.mxu0 0
        %4548 = vmatprep.mubr.bf16.mxu0 0
        %4549 = vmatmul.mubr.bf16.gmra.mrb[0].mxu0 %v4514
        %v4550 = vpop.f32.mrb[0].mxu0
        %v4551 = vadd.f32 0.0, %v4550
        %v4552 = vpop.f32.mrb[0].mxu0
        %v4553 = vpop.f32.mrb[0].mxu0
        %v4554 = vadd.f32 0.0, %v4553
        %v4555 = vpop.f32.mrb[0].mxu0
        %4556 = vdwg.mxu0
        %4557 = vrot.lane.b32.xlu0 %v1281, 56
        %v4558 = vpop.permute.xlu0 %4557
        %v4561 = vsel %vm2095, %v4403, 0
        %4563 = vmatprep.subr.bf16.mxu0 0
        %4564 = vmatpush1.bf16.msra.mxu0 %v4558
        %4565 = vmatprep.subr.bf16.mxu0 0
        %4566 = vmatpush1.bf16.msra.mxu0 0
        %4567 = vmatprep.subr.bf16.mxu0 0
        %4568 = vmatpush1.bf16.msra.mxu0 0
        %4569 = vmatprep.subr.bf16.mxu0 0
        %4570 = vmatpush1.bf16.msra.mxu0 0
        %4571 = vmatprep.subr.bf16.mxu0 0
        %4572 = vmatpush1.bf16.msra.mxu0 0
        %4573 = vmatprep.subr.bf16.mxu0 0
        %4574 = vmatpush1.bf16.msra.mxu0 0
        %4575 = vmatprep.subr.bf16.mxu0 0
        %4576 = vmatpush1.bf16.msra.mxu0 0
        %4577 = vmatprep.subr.bf16.mxu0 0
        %4578 = vmatpush1.bf16.msra.mxu0 0
        %4579 = vmatprep.subr.bf16.mxu0 0
        %4580 = vmatpush1.bf16.msra.mxu0 0
        %4581 = vmatprep.subr.bf16.mxu0 0
        %4582 = vmatpush1.bf16.msra.mxu0 0
        %4583 = vmatprep.subr.bf16.mxu0 0
        %4584 = vmatpush1.bf16.msra.mxu0 0
        %4585 = vmatprep.subr.bf16.mxu0 0
        %4586 = vmatpush1.bf16.msra.mxu0 0
        %4587 = vmatprep.subr.bf16.mxu0 0
        %4588 = vmatpush1.bf16.msra.mxu0 0
        %4589 = vmatprep.subr.bf16.mxu0 0
        %4590 = vmatpush1.bf16.msra.mxu0 0
        %4591 = vmatprep.subr.bf16.mxu0 0
        %4592 = vmatpush1.bf16.msra.mxu0 0
        %4593 = vmatprep.subr.bf16.mxu0 0
        %4594 = vmatpush1.bf16.msra.mxu0 0
        %4595 = vmatprep.mubr.bf16.mxu0 0
        %4596 = vmatmul.mubr.bf16.gmra.mrb[0].mxu0 %v4561
        %v4597 = vpop.f32.mrb[0].mxu0
        %v4598 = vadd.f32 0.0, %v4597
        %v4599 = vpop.f32.mrb[0].mxu0
        %v4600 = vpop.f32.mrb[0].mxu0
        %v4601 = vadd.f32 0.0, %v4600
        %v4602 = vpop.f32.mrb[0].mxu0
        %4603 = vdwg.mxu0
        %4604 = vrot.lane.b32.xlu0 %v1282, 56
        %v4605 = vpop.permute.xlu0 %4604
        %v4608 = vsel %vm2095, %v4404, 0
        %4610 = vmatprep.subr.bf16.mxu0 0
        %4611 = vmatpush1.bf16.msra.mxu0 %v4605
        %4612 = vmatprep.subr.bf16.mxu0 0
        %4613 = vmatpush1.bf16.msra.mxu0 0
        %4614 = vmatprep.subr.bf16.mxu0 0
        %4615 = vmatpush1.bf16.msra.mxu0 0
        %4616 = vmatprep.subr.bf16.mxu0 0
        %4617 = vmatpush1.bf16.msra.mxu0 0
        %4618 = vmatprep.subr.bf16.mxu0 0
        %4619 = vmatpush1.bf16.msra.mxu0 0
        %4620 = vmatprep.subr.bf16.mxu0 0
        %4621 = vmatpush1.bf16.msra.mxu0 0
        %4622 = vmatprep.subr.bf16.mxu0 0
        %4623 = vmatpush1.bf16.msra.mxu0 0
        %4624 = vmatprep.subr.bf16.mxu0 0
        %4625 = vmatpush1.bf16.msra.mxu0 0
        %4626 = vmatprep.subr.bf16.mxu0 0
        %4627 = vmatpush1.bf16.msra.mxu0 0
        %4628 = vmatprep.subr.bf16.mxu0 0
        %4629 = vmatpush1.bf16.msra.mxu0 0
        %4630 = vmatprep.subr.bf16.mxu0 0
        %4631 = vmatpush1.bf16.msra.mxu0 0
        %4632 = vmatprep.subr.bf16.mxu0 0
        %4633 = vmatpush1.bf16.msra.mxu0 0
        %4634 = vmatprep.subr.bf16.mxu0 0
        %4635 = vmatpush1.bf16.msra.mxu0 0
        %4636 = vmatprep.subr.bf16.mxu0 0
        %4637 = vmatpush1.bf16.msra.mxu0 0
        %4638 = vmatprep.subr.bf16.mxu0 0
        %4639 = vmatpush1.bf16.msra.mxu0 0
        %4640 = vmatprep.subr.bf16.mxu0 0
        %4641 = vmatpush1.bf16.msra.mxu0 0
        %4642 = vmatprep.mubr.bf16.mxu0 0
        %4643 = vmatmul.mubr.bf16.gmra.mrb[0].mxu0 %v4608
        %v4644 = vpop.f32.mrb[0].mxu0
        %v4645 = vadd.f32 0.0, %v4644
        %v4646 = vpop.f32.mrb[0].mxu0
        %v4647 = vpop.f32.mrb[0].mxu0
        %v4648 = vadd.f32 0.0, %v4647
        %v4649 = vpop.f32.mrb[0].mxu0
        %4650 = vdwg.mxu0
        %4651 = vrot.lane.b32.xlu0 %v1283, 56
        %v4652 = vpop.permute.xlu0 %4651
        %v4655 = vsel %vm2095, %v4405, 0
        %4657 = vmatprep.subr.bf16.mxu0 0
        %4658 = vmatpush1.bf16.msra.mxu0 %v4652
        %4659 = vmatprep.subr.bf16.mxu0 0
        %4660 = vmatpush1.bf16.msra.mxu0 0
        %4661 = vmatprep.subr.bf16.mxu0 0
        %4662 = vmatpush1.bf16.msra.mxu0 0
        %4663 = vmatprep.subr.bf16.mxu0 0
        %4664 = vmatpush1.bf16.msra.mxu0 0
        %4665 = vmatprep.subr.bf16.mxu0 0
        %4666 = vmatpush1.bf16.msra.mxu0 0
        %4667 = vmatprep.subr.bf16.mxu0 0
        %4668 = vmatpush1.bf16.msra.mxu0 0
        %4669 = vmatprep.subr.bf16.mxu0 0
        %4670 = vmatpush1.bf16.msra.mxu0 0
        %4671 = vmatprep.subr.bf16.mxu0 0
        %4672 = vmatpush1.bf16.msra.mxu0 0
        %4673 = vmatprep.subr.bf16.mxu0 0
        %4674 = vmatpush1.bf16.msra.mxu0 0
        %4675 = vmatprep.subr.bf16.mxu0 0
        %4676 = vmatpush1.bf16.msra.mxu0 0
        %4677 = vmatprep.subr.bf16.mxu0 0
        %4678 = vmatpush1.bf16.msra.mxu0 0
        %4679 = vmatprep.subr.bf16.mxu0 0
        %4680 = vmatpush1.bf16.msra.mxu0 0
        %4681 = vmatprep.subr.bf16.mxu0 0
        %4682 = vmatpush1.bf16.msra.mxu0 0
        %4683 = vmatprep.subr.bf16.mxu0 0
        %4684 = vmatpush1.bf16.msra.mxu0 0
        %4685 = vmatprep.subr.bf16.mxu0 0
        %4686 = vmatpush1.bf16.msra.mxu0 0
        %4687 = vmatprep.subr.bf16.mxu0 0
        %4688 = vmatpush1.bf16.msra.mxu0 0
        %4689 = vmatprep.mubr.bf16.mxu0 0
        %4690 = vmatmul.mubr.bf16.gmra.mrb[0].mxu0 %v4655
        %v4691 = vpop.f32.mrb[0].mxu0
        %v4692 = vadd.f32 0.0, %v4691
        %v4693 = vpop.f32.mrb[0].mxu0
        %v4694 = vpop.f32.mrb[0].mxu0
        %v4695 = vadd.f32 0.0, %v4694
        %v4696 = vpop.f32.mrb[0].mxu0
        %4697 = vdwg.mxu0
        %4698 = vrot.lane.b32.xlu0 %v1284, 56
        %v4699 = vpop.permute.xlu0 %4698
        %v4702 = vsel %vm2095, %v4406, 0
        %4704 = vmatprep.subr.bf16.mxu0 0
        %4705 = vmatpush1.bf16.msra.mxu0 %v4699
        %4706 = vmatprep.subr.bf16.mxu0 0
        %4707 = vmatpush1.bf16.msra.mxu0 0
        %4708 = vmatprep.subr.bf16.mxu0 0
        %4709 = vmatpush1.bf16.msra.mxu0 0
        %4710 = vmatprep.subr.bf16.mxu0 0
        %4711 = vmatpush1.bf16.msra.mxu0 0
        %4712 = vmatprep.subr.bf16.mxu0 0
        %4713 = vmatpush1.bf16.msra.mxu0 0
        %4714 = vmatprep.subr.bf16.mxu0 0
        %4715 = vmatpush1.bf16.msra.mxu0 0
        %4716 = vmatprep.subr.bf16.mxu0 0
        %4717 = vmatpush1.bf16.msra.mxu0 0
        %4718 = vmatprep.subr.bf16.mxu0 0
        %4719 = vmatpush1.bf16.msra.mxu0 0
        %4720 = vmatprep.subr.bf16.mxu0 0
        %4721 = vmatpush1.bf16.msra.mxu0 0
        %4722 = vmatprep.subr.bf16.mxu0 0
        %4723 = vmatpush1.bf16.msra.mxu0 0
        %4724 = vmatprep.subr.bf16.mxu0 0
        %4725 = vmatpush1.bf16.msra.mxu0 0
        %4726 = vmatprep.subr.bf16.mxu0 0
        %4727 = vmatpush1.bf16.msra.mxu0 0
        %4728 = vmatprep.subr.bf16.mxu0 0
        %4729 = vmatpush1.bf16.msra.mxu0 0
        %4730 = vmatprep.subr.bf16.mxu0 0
        %4731 = vmatpush1.bf16.msra.mxu0 0
        %4732 = vmatprep.subr.bf16.mxu0 0
        %4733 = vmatpush1.bf16.msra.mxu0 0
        %4734 = vmatprep.subr.bf16.mxu0 0
        %4735 = vmatpush1.bf16.msra.mxu0 0
        %4736 = vmatprep.mubr.bf16.mxu0 0
        %4737 = vmatmul.mubr.bf16.gmra.mrb[0].mxu0 %v4702
        %v4738 = vpop.f32.mrb[0].mxu0
        %v4739 = vadd.f32 0.0, %v4738
        %v4740 = vpop.f32.mrb[0].mxu0
        %v4741 = vpop.f32.mrb[0].mxu0
        %v4742 = vadd.f32 0.0, %v4741
        %v4743 = vpop.f32.mrb[0].mxu0
        %4744 = vdwg.mxu0
        %4745 = vrot.lane.b32.xlu0 %v1285, 56
        %v4746 = vpop.permute.xlu0 %4745
        %v4749 = vsel %vm2095, %v4407, 0
        %4751 = vmatprep.subr.bf16.mxu0 0
        %4752 = vmatpush1.bf16.msra.mxu0 %v4746
        %4753 = vmatprep.subr.bf16.mxu0 0
        %4754 = vmatpush1.bf16.msra.mxu0 0
        %4755 = vmatprep.subr.bf16.mxu0 0
        %4756 = vmatpush1.bf16.msra.mxu0 0
        %4757 = vmatprep.subr.bf16.mxu0 0
        %4758 = vmatpush1.bf16.msra.mxu0 0
        %4759 = vmatprep.subr.bf16.mxu0 0
        %4760 = vmatpush1.bf16.msra.mxu0 0
        %4761 = vmatprep.subr.bf16.mxu0 0
        %4762 = vmatpush1.bf16.msra.mxu0 0
        %4763 = vmatprep.subr.bf16.mxu0 0
        %4764 = vmatpush1.bf16.msra.mxu0 0
        %4765 = vmatprep.subr.bf16.mxu0 0
        %4766 = vmatpush1.bf16.msra.mxu0 0
        %4767 = vmatprep.subr.bf16.mxu0 0
        %4768 = vmatpush1.bf16.msra.mxu0 0
        %4769 = vmatprep.subr.bf16.mxu0 0
        %4770 = vmatpush1.bf16.msra.mxu0 0
        %4771 = vmatprep.subr.bf16.mxu0 0
        %4772 = vmatpush1.bf16.msra.mxu0 0
        %4773 = vmatprep.subr.bf16.mxu0 0
        %4774 = vmatpush1.bf16.msra.mxu0 0
        %4775 = vmatprep.subr.bf16.mxu0 0
        %4776 = vmatpush1.bf16.msra.mxu0 0
        %4777 = vmatprep.subr.bf16.mxu0 0
        %4778 = vmatpush1.bf16.msra.mxu0 0
        %4779 = vmatprep.subr.bf16.mxu0 0
        %4780 = vmatpush1.bf16.msra.mxu0 0
        %4781 = vmatprep.subr.bf16.mxu0 0
        %4782 = vmatpush1.bf16.msra.mxu0 0
        %4783 = vmatprep.mubr.bf16.mxu0 0
        %4784 = vmatmul.mubr.bf16.gmra.mrb[0].mxu0 %v4749
        %v4785 = vpop.f32.mrb[0].mxu0
        %v4786 = vadd.f32 0.0, %v4785
        %v4787 = vpop.f32.mrb[0].mxu0
        %v4788 = vpop.f32.mrb[0].mxu0
        %v4789 = vadd.f32 0.0, %v4788
        %v4790 = vpop.f32.mrb[0].mxu0
        %4791 = vdwg.mxu0
        %4792 = vrot.lane.b32.xlu0 %v1286, 56
        %v4793 = vpop.permute.xlu0 %4792
        %v4796 = vsel %vm2095, %v4408, 0
        %4798 = vmatprep.subr.bf16.mxu0 0
        %4799 = vmatpush1.bf16.msra.mxu0 %v4793
        %4800 = vmatprep.subr.bf16.mxu0 0
        %4801 = vmatpush1.bf16.msra.mxu0 0
        %4802 = vmatprep.subr.bf16.mxu0 0
        %4803 = vmatpush1.bf16.msra.mxu0 0
        %4804 = vmatprep.subr.bf16.mxu0 0
        %4805 = vmatpush1.bf16.msra.mxu0 0
        %4806 = vmatprep.subr.bf16.mxu0 0
        %4807 = vmatpush1.bf16.msra.mxu0 0
        %4808 = vmatprep.subr.bf16.mxu0 0
        %4809 = vmatpush1.bf16.msra.mxu0 0
        %4810 = vmatprep.subr.bf16.mxu0 0
        %4811 = vmatpush1.bf16.msra.mxu0 0
        %4812 = vmatprep.subr.bf16.mxu0 0
        %4813 = vmatpush1.bf16.msra.mxu0 0
        %4814 = vmatprep.subr.bf16.mxu0 0
        %4815 = vmatpush1.bf16.msra.mxu0 0
        %4816 = vmatprep.subr.bf16.mxu0 0
        %4817 = vmatpush1.bf16.msra.mxu0 0
        %4818 = vmatprep.subr.bf16.mxu0 0
        %4819 = vmatpush1.bf16.msra.mxu0 0
        %4820 = vmatprep.subr.bf16.mxu0 0
        %4821 = vmatpush1.bf16.msra.mxu0 0
        %4822 = vmatprep.subr.bf16.mxu0 0
        %4823 = vmatpush1.bf16.msra.mxu0 0
        %4824 = vmatprep.subr.bf16.mxu0 0
        %4825 = vmatpush1.bf16.msra.mxu0 0
        %4826 = vmatprep.subr.bf16.mxu0 0
        %4827 = vmatpush1.bf16.msra.mxu0 0
        %4828 = vmatprep.subr.bf16.mxu0 0
        %4829 = vmatpush1.bf16.msra.mxu0 0
        %4830 = vmatprep.mubr.bf16.mxu0 0
        %4831 = vmatmul.mubr.bf16.gmra.mrb[0].mxu0 %v4796
        %v4832 = vpop.f32.mrb[0].mxu0
        %v4833 = vadd.f32 0.0, %v4832
        %v4834 = vpop.f32.mrb[0].mxu0
        %v4835 = vpop.f32.mrb[0].mxu0
        %v4836 = vadd.f32 0.0, %v4835
        %v4837 = vpop.f32.mrb[0].mxu0
        %4838 = vdwg.mxu0
        %4839 = vrot.lane.b32.xlu0 %v1287, 56
        %v4840 = vpop.permute.xlu0 %4839
        %v4843 = vsel %vm2095, %v4409, 0
        %4845 = vmatprep.subr.bf16.mxu0 0
        %4846 = vmatpush1.bf16.msra.mxu0 %v4840
        %4847 = vmatprep.subr.bf16.mxu0 0
        %4848 = vmatpush1.bf16.msra.mxu0 0
        %4849 = vmatprep.subr.bf16.mxu0 0
        %4850 = vmatpush1.bf16.msra.mxu0 0
        %4851 = vmatprep.subr.bf16.mxu0 0
        %4852 = vmatpush1.bf16.msra.mxu0 0
        %4853 = vmatprep.subr.bf16.mxu0 0
        %4854 = vmatpush1.bf16.msra.mxu0 0
        %4855 = vmatprep.subr.bf16.mxu0 0
        %4856 = vmatpush1.bf16.msra.mxu0 0
        %4857 = vmatprep.subr.bf16.mxu0 0
        %4858 = vmatpush1.bf16.msra.mxu0 0
        %4859 = vmatprep.subr.bf16.mxu0 0
        %4860 = vmatpush1.bf16.msra.mxu0 0
        %4861 = vmatprep.subr.bf16.mxu0 0
        %4862 = vmatpush1.bf16.msra.mxu0 0
        %4863 = vmatprep.subr.bf16.mxu0 0
        %4864 = vmatpush1.bf16.msra.mxu0 0
        %4865 = vmatprep.subr.bf16.mxu0 0
        %4866 = vmatpush1.bf16.msra.mxu0 0
        %4867 = vmatprep.subr.bf16.mxu0 0
        %4868 = vmatpush1.bf16.msra.mxu0 0
        %4869 = vmatprep.subr.bf16.mxu0 0
        %4870 = vmatpush1.bf16.msra.mxu0 0
        %4871 = vmatprep.subr.bf16.mxu0 0
        %4872 = vmatpush1.bf16.msra.mxu0 0
        %4873 = vmatprep.subr.bf16.mxu0 0
        %4874 = vmatpush1.bf16.msra.mxu0 0
        %4875 = vmatprep.subr.bf16.mxu0 0
        %4876 = vmatpush1.bf16.msra.mxu0 0
        %4877 = vmatprep.mubr.bf16.mxu0 0
        %4878 = vmatmul.mubr.bf16.gmra.mrb[0].mxu0 %v4843
        %v4879 = vpop.f32.mrb[0].mxu0
        %v4880 = vadd.f32 0.0, %v4879
        %v4881 = vpop.f32.mrb[0].mxu0
        %v4882 = vpop.f32.mrb[0].mxu0
        %v4883 = vadd.f32 0.0, %v4882
        %v4884 = vpop.f32.mrb[0].mxu0
        %4885 = vdwg.mxu0
        %4886 = vrot.lane.b32.xlu0 %v1288, 56
        %v4887 = vpop.permute.xlu0 %4886
        %v4890 = vsel %vm2095, %v4410, 0
        %4892 = vmatprep.subr.bf16.mxu0 0
        %4893 = vmatpush1.bf16.msra.mxu0 %v4887
        %4894 = vmatprep.subr.bf16.mxu0 0
        %4895 = vmatpush1.bf16.msra.mxu0 0
        %4896 = vmatprep.subr.bf16.mxu0 0
        %4897 = vmatpush1.bf16.msra.mxu0 0
        %4898 = vmatprep.subr.bf16.mxu0 0
        %4899 = vmatpush1.bf16.msra.mxu0 0
        %4900 = vmatprep.subr.bf16.mxu0 0
        %4901 = vmatpush1.bf16.msra.mxu0 0
        %4902 = vmatprep.subr.bf16.mxu0 0
        %4903 = vmatpush1.bf16.msra.mxu0 0
        %4904 = vmatprep.subr.bf16.mxu0 0
        %4905 = vmatpush1.bf16.msra.mxu0 0
        %4906 = vmatprep.subr.bf16.mxu0 0
        %4907 = vmatpush1.bf16.msra.mxu0 0
        %4908 = vmatprep.subr.bf16.mxu0 0
        %4909 = vmatpush1.bf16.msra.mxu0 0
        %4910 = vmatprep.subr.bf16.mxu0 0
        %4911 = vmatpush1.bf16.msra.mxu0 0
        %4912 = vmatprep.subr.bf16.mxu0 0
        %4913 = vmatpush1.bf16.msra.mxu0 0
        %4914 = vmatprep.subr.bf16.mxu0 0
        %4915 = vmatpush1.bf16.msra.mxu0 0
        %4916 = vmatprep.subr.bf16.mxu0 0
        %4917 = vmatpush1.bf16.msra.mxu0 0
        %4918 = vmatprep.subr.bf16.mxu0 0
        %4919 = vmatpush1.bf16.msra.mxu0 0
        %4920 = vmatprep.subr.bf16.mxu0 0
        %4921 = vmatpush1.bf16.msra.mxu0 0
        %4922 = vmatprep.subr.bf16.mxu0 0
        %4923 = vmatpush1.bf16.msra.mxu0 0
        %4924 = vmatprep.mubr.bf16.mxu0 0
        %4925 = vmatmul.mubr.bf16.gmra.mrb[0].mxu0 %v4890
        %v4926 = vpop.f32.mrb[0].mxu0
        %v4927 = vadd.f32 0.0, %v4926
        %v4928 = vpop.f32.mrb[0].mxu0
        %v4929 = vpop.f32.mrb[0].mxu0
        %v4930 = vadd.f32 0.0, %v4929
        %v4931 = vpop.f32.mrb[0].mxu0
        %4932 = vdwg.mxu0
        %4933 = vrot.lane.b32.xlu0 %v1289, 56
        %v4934 = vpop.permute.xlu0 %4933
        %v4937 = vsel %vm2095, %v4411, 0
        %4939 = vmatprep.subr.bf16.mxu0 0
        %4940 = vmatpush1.bf16.msra.mxu0 %v4934
        %4941 = vmatprep.subr.bf16.mxu0 0
        %4942 = vmatpush1.bf16.msra.mxu0 0
        %4943 = vmatprep.subr.bf16.mxu0 0
        %4944 = vmatpush1.bf16.msra.mxu0 0
        %4945 = vmatprep.subr.bf16.mxu0 0
        %4946 = vmatpush1.bf16.msra.mxu0 0
        %4947 = vmatprep.subr.bf16.mxu0 0
        %4948 = vmatpush1.bf16.msra.mxu0 0
        %4949 = vmatprep.subr.bf16.mxu0 0
        %4950 = vmatpush1.bf16.msra.mxu0 0
        %4951 = vmatprep.subr.bf16.mxu0 0
        %4952 = vmatpush1.bf16.msra.mxu0 0
        %4953 = vmatprep.subr.bf16.mxu0 0
        %4954 = vmatpush1.bf16.msra.mxu0 0
        %4955 = vmatprep.subr.bf16.mxu0 0
        %4956 = vmatpush1.bf16.msra.mxu0 0
        %4957 = vmatprep.subr.bf16.mxu0 0
        %4958 = vmatpush1.bf16.msra.mxu0 0
        %4959 = vmatprep.subr.bf16.mxu0 0
        %4960 = vmatpush1.bf16.msra.mxu0 0
        %4961 = vmatprep.subr.bf16.mxu0 0
        %4962 = vmatpush1.bf16.msra.mxu0 0
        %4963 = vmatprep.subr.bf16.mxu0 0
        %4964 = vmatpush1.bf16.msra.mxu0 0
        %4965 = vmatprep.subr.bf16.mxu0 0
        %4966 = vmatpush1.bf16.msra.mxu0 0
        %4967 = vmatprep.subr.bf16.mxu0 0
        %4968 = vmatpush1.bf16.msra.mxu0 0
        %4969 = vmatprep.subr.bf16.mxu0 0
        %4970 = vmatpush1.bf16.msra.mxu0 0
        %4971 = vmatprep.mubr.bf16.mxu0 0
        %4972 = vmatmul.mubr.bf16.gmra.mrb[0].mxu0 %v4937
        %v4973 = vpop.f32.mrb[0].mxu0
        %v4974 = vadd.f32 0.0, %v4973
        %v4975 = vpop.f32.mrb[0].mxu0
        %v4976 = vpop.f32.mrb[0].mxu0
        %v4977 = vadd.f32 0.0, %v4976
        %v4978 = vpop.f32.mrb[0].mxu0
        %4979 = vdwg.mxu0
        %4980 = vrot.lane.b32.xlu0 %v1290, 56
        %v4981 = vpop.permute.xlu0 %4980
        %v4984 = vsel %vm2095, %v4412, 0
        %4986 = vmatprep.subr.bf16.mxu0 0
        %4987 = vmatpush1.bf16.msra.mxu0 %v4981
        %4988 = vmatprep.subr.bf16.mxu0 0
        %4989 = vmatpush1.bf16.msra.mxu0 0
        %4990 = vmatprep.subr.bf16.mxu0 0
        %4991 = vmatpush1.bf16.msra.mxu0 0
        %4992 = vmatprep.subr.bf16.mxu0 0
        %4993 = vmatpush1.bf16.msra.mxu0 0
        %4994 = vmatprep.subr.bf16.mxu0 0
        %4995 = vmatpush1.bf16.msra.mxu0 0
        %4996 = vmatprep.subr.bf16.mxu0 0
        %4997 = vmatpush1.bf16.msra.mxu0 0
        %4998 = vmatprep.subr.bf16.mxu0 0
        %4999 = vmatpush1.bf16.msra.mxu0 0
        %5000 = vmatprep.subr.bf16.mxu0 0
        %5001 = vmatpush1.bf16.msra.mxu0 0
        %5002 = vmatprep.subr.bf16.mxu0 0
        %5003 = vmatpush1.bf16.msra.mxu0 0
        %5004 = vmatprep.subr.bf16.mxu0 0
        %5005 = vmatpush1.bf16.msra.mxu0 0
        %5006 = vmatprep.subr.bf16.mxu0 0
        %5007 = vmatpush1.bf16.msra.mxu0 0
        %5008 = vmatprep.subr.bf16.mxu0 0
        %5009 = vmatpush1.bf16.msra.mxu0 0
        %5010 = vmatprep.subr.bf16.mxu0 0
        %5011 = vmatpush1.bf16.msra.mxu0 0
        %5012 = vmatprep.subr.bf16.mxu0 0
        %5013 = vmatpush1.bf16.msra.mxu0 0
        %5014 = vmatprep.subr.bf16.mxu0 0
        %5015 = vmatpush1.bf16.msra.mxu0 0
        %5016 = vmatprep.subr.bf16.mxu0 0
        %5017 = vmatpush1.bf16.msra.mxu0 0
        %5018 = vmatprep.mubr.bf16.mxu0 0
        %5019 = vmatmul.mubr.bf16.gmra.mrb[0].mxu0 %v4984
        %v5020 = vpop.f32.mrb[0].mxu0
        %v5021 = vadd.f32 0.0, %v5020
        %v5022 = vpop.f32.mrb[0].mxu0
        %v5023 = vpop.f32.mrb[0].mxu0
        %v5024 = vadd.f32 0.0, %v5023
        %v5025 = vpop.f32.mrb[0].mxu0
        %5026 = vdwg.mxu0
        %5027 = vrot.lane.b32.xlu0 %v1291, 56
        %v5028 = vpop.permute.xlu0 %5027
        %v5031 = vsel %vm2095, %v4413, 0
        %5033 = vmatprep.subr.bf16.mxu0 0
        %5034 = vmatpush1.bf16.msra.mxu0 %v5028
        %5035 = vmatprep.subr.bf16.mxu0 0
        %5036 = vmatpush1.bf16.msra.mxu0 0
        %5037 = vmatprep.subr.bf16.mxu0 0
        %5038 = vmatpush1.bf16.msra.mxu0 0
        %5039 = vmatprep.subr.bf16.mxu0 0
        %5040 = vmatpush1.bf16.msra.mxu0 0
        %5041 = vmatprep.subr.bf16.mxu0 0
        %5042 = vmatpush1.bf16.msra.mxu0 0
        %5043 = vmatprep.subr.bf16.mxu0 0
        %5044 = vmatpush1.bf16.msra.mxu0 0
        %5045 = vmatprep.subr.bf16.mxu0 0
        %5046 = vmatpush1.bf16.msra.mxu0 0
        %5047 = vmatprep.subr.bf16.mxu0 0
        %5048 = vmatpush1.bf16.msra.mxu0 0
        %5049 = vmatprep.subr.bf16.mxu0 0
        %5050 = vmatpush1.bf16.msra.mxu0 0
        %5051 = vmatprep.subr.bf16.mxu0 0
        %5052 = vmatpush1.bf16.msra.mxu0 0
        %5053 = vmatprep.subr.bf16.mxu0 0
        %5054 = vmatpush1.bf16.msra.mxu0 0
        %5055 = vmatprep.subr.bf16.mxu0 0
        %5056 = vmatpush1.bf16.msra.mxu0 0
        %5057 = vmatprep.subr.bf16.mxu0 0
        %5058 = vmatpush1.bf16.msra.mxu0 0
        %5059 = vmatprep.subr.bf16.mxu0 0
        %5060 = vmatpush1.bf16.msra.mxu0 0
        %5061 = vmatprep.subr.bf16.mxu0 0
        %5062 = vmatpush1.bf16.msra.mxu0 0
        %5063 = vmatprep.subr.bf16.mxu0 0
        %5064 = vmatpush1.bf16.msra.mxu0 0
        %5065 = vmatprep.mubr.bf16.mxu0 0
        %5066 = vmatmul.mubr.bf16.gmra.mrb[0].mxu0 %v5031
        %v5067 = vpop.f32.mrb[0].mxu0
        %v5068 = vadd.f32 0.0, %v5067
        %v5069 = vpop.f32.mrb[0].mxu0
        %v5070 = vpop.f32.mrb[0].mxu0
        %v5071 = vadd.f32 0.0, %v5070
        %v5072 = vpop.f32.mrb[0].mxu0
        %5073 = vdwg.mxu0
        %5074 = vrot.lane.b32.xlu0 %v1292, 56
        %v5075 = vpop.permute.xlu0 %5074
        %v5078 = vsel %vm2095, %v4414, 0
        %5080 = vmatprep.subr.bf16.mxu0 0
        %5081 = vmatpush1.bf16.msra.mxu0 %v5075
        %5082 = vmatprep.subr.bf16.mxu0 0
        %5083 = vmatpush1.bf16.msra.mxu0 0
        %5084 = vmatprep.subr.bf16.mxu0 0
        %5085 = vmatpush1.bf16.msra.mxu0 0
        %5086 = vmatprep.subr.bf16.mxu0 0
        %5087 = vmatpush1.bf16.msra.mxu0 0
        %5088 = vmatprep.subr.bf16.mxu0 0
        %5089 = vmatpush1.bf16.msra.mxu0 0
        %5090 = vmatprep.subr.bf16.mxu0 0
        %5091 = vmatpush1.bf16.msra.mxu0 0
        %5092 = vmatprep.subr.bf16.mxu0 0
        %5093 = vmatpush1.bf16.msra.mxu0 0
        %5094 = vmatprep.subr.bf16.mxu0 0
        %5095 = vmatpush1.bf16.msra.mxu0 0
        %5096 = vmatprep.subr.bf16.mxu0 0
        %5097 = vmatpush1.bf16.msra.mxu0 0
        %5098 = vmatprep.subr.bf16.mxu0 0
        %5099 = vmatpush1.bf16.msra.mxu0 0
        %5100 = vmatprep.subr.bf16.mxu0 0
        %5101 = vmatpush1.bf16.msra.mxu0 0
        %5102 = vmatprep.subr.bf16.mxu0 0
        %5103 = vmatpush1.bf16.msra.mxu0 0
        %5104 = vmatprep.subr.bf16.mxu0 0
        %5105 = vmatpush1.bf16.msra.mxu0 0
        %5106 = vmatprep.subr.bf16.mxu0 0
        %5107 = vmatpush1.bf16.msra.mxu0 0
        %5108 = vmatprep.subr.bf16.mxu0 0
        %5109 = vmatpush1.bf16.msra.mxu0 0
        %5110 = vmatprep.subr.bf16.mxu0 0
        %5111 = vmatpush1.bf16.msra.mxu0 0
        %5112 = vmatprep.mubr.bf16.mxu0 0
        %5113 = vmatmul.mubr.bf16.gmra.mrb[0].mxu0 %v5078
        %v5114 = vpop.f32.mrb[0].mxu0
        %v5115 = vadd.f32 0.0, %v5114
        %v5116 = vpop.f32.mrb[0].mxu0
        %v5117 = vpop.f32.mrb[0].mxu0
        %v5118 = vadd.f32 0.0, %v5117
        %v5119 = vpop.f32.mrb[0].mxu0
        %5120 = vdwg.mxu0
        %5121 = vrot.lane.b32.xlu0 %v1293, 56
        %v5122 = vpop.permute.xlu0 %5121
        %v5125 = vsel %vm2095, %v4415, 0
        %5127 = vmatprep.subr.bf16.mxu0 0
        %5128 = vmatpush1.bf16.msra.mxu0 %v5122
        %5129 = vmatprep.subr.bf16.mxu0 0
        %5130 = vmatpush1.bf16.msra.mxu0 0
        %5131 = vmatprep.subr.bf16.mxu0 0
        %5132 = vmatpush1.bf16.msra.mxu0 0
        %5133 = vmatprep.subr.bf16.mxu0 0
        %5134 = vmatpush1.bf16.msra.mxu0 0
        %5135 = vmatprep.subr.bf16.mxu0 0
        %5136 = vmatpush1.bf16.msra.mxu0 0
        %5137 = vmatprep.subr.bf16.mxu0 0
        %5138 = vmatpush1.bf16.msra.mxu0 0
        %5139 = vmatprep.subr.bf16.mxu0 0
        %5140 = vmatpush1.bf16.msra.mxu0 0
        %5141 = vmatprep.subr.bf16.mxu0 0
        %5142 = vmatpush1.bf16.msra.mxu0 0
        %5143 = vmatprep.subr.bf16.mxu0 0
        %5144 = vmatpush1.bf16.msra.mxu0 0
        %5145 = vmatprep.subr.bf16.mxu0 0
        %5146 = vmatpush1.bf16.msra.mxu0 0
        %5147 = vmatprep.subr.bf16.mxu0 0
        %5148 = vmatpush1.bf16.msra.mxu0 0
        %5149 = vmatprep.subr.bf16.mxu0 0
        %5150 = vmatpush1.bf16.msra.mxu0 0
        %5151 = vmatprep.subr.bf16.mxu0 0
        %5152 = vmatpush1.bf16.msra.mxu0 0
        %5153 = vmatprep.subr.bf16.mxu0 0
        %5154 = vmatpush1.bf16.msra.mxu0 0
        %5155 = vmatprep.subr.bf16.mxu0 0
        %5156 = vmatpush1.bf16.msra.mxu0 0
        %5157 = vmatprep.subr.bf16.mxu0 0
        %5158 = vmatpush1.bf16.msra.mxu0 0
        %5159 = vmatprep.mubr.bf16.mxu0 0
        %5160 = vmatmul.mubr.bf16.gmra.mrb[0].mxu0 %v5125
        %v5161 = vpop.f32.mrb[0].mxu0
        %v5162 = vadd.f32 0.0, %v5161
        %v5163 = vpop.f32.mrb[0].mxu0
        %v5164 = vpop.f32.mrb[0].mxu0
        %v5165 = vadd.f32 0.0, %v5164
        %v5166 = vpop.f32.mrb[0].mxu0
        %5167 = vdwg.mxu0
        %v5168 = vpack.c.bf16 %v4460, %v4457
        %v5169 = vpack.c.bf16 %v4507, %v4504
        %v5170 = vpack.c.bf16 %v4554, %v4551
        %v5171 = vpack.c.bf16 %v4601, %v4598
        %v5172 = vpack.c.bf16 %v4648, %v4645
        %v5173 = vpack.c.bf16 %v4695, %v4692
        %v5174 = vpack.c.bf16 %v4742, %v4739
        %v5175 = vpack.c.bf16 %v4789, %v4786
        %v5176 = vpack.c.bf16 %v4836, %v4833
        %v5177 = vpack.c.bf16 %v4883, %v4880
        %v5178 = vpack.c.bf16 %v4930, %v4927
        %v5179 = vpack.c.bf16 %v4977, %v4974
        %v5180 = vpack.c.bf16 %v5024, %v5021
        %v5181 = vpack.c.bf16 %v5071, %v5068
        %v5182 = vpack.c.bf16 %v5118, %v5115
        %v5183 = vpack.c.bf16 %v5165, %v5162
        %v5185 = vsel %vm1297, %v5168, 0
        %v5188 = vsel %vm1297, %v5169, 0
        %v5191 = vsel %vm1297, %v5170, 0
        %v5194 = vsel %vm1297, %v5171, 0
        %v5197 = vsel %vm1297, %v5172, 0
        %v5200 = vsel %vm1297, %v5173, 0
        %v5203 = vsel %vm1297, %v5174, 0
        %v5206 = vsel %vm1297, %v5175, 0
        %v5209 = vsel %vm1297, %v5176, 0
        %v5212 = vsel %vm1297, %v5177, 0
        %v5215 = vsel %vm1297, %v5178, 0
        %v5218 = vsel %vm1297, %v5179, 0
        %v5221 = vsel %vm1297, %v5180, 0
        %v5224 = vsel %vm1297, %v5181, 0
        %v5227 = vsel %vm1297, %v5182, 0
        %v5230 = vsel %vm1297, %v5183, 0
        %vm5232 = vcmask 1043456
        %v5234 = vsel %vm5232, %v1147, 0
        %5236 = vmatprep.subr.bf16.mxu0 0
        %5237 = vmatpush1.bf16.msra.mxu0 %v5234
        %5238 = vmatprep.subr.bf16.mxu0 0
        %5239 = vmatpush1.bf16.msra.mxu0 0
        %5240 = vmatprep.subr.bf16.mxu0 0
        %5241 = vmatpush1.bf16.msra.mxu0 0
        %5242 = vmatprep.subr.bf16.mxu0 0
        %5243 = vmatpush1.bf16.msra.mxu0 0
        %5244 = vmatprep.subr.bf16.mxu0 0
        %5245 = vmatpush1.bf16.msra.mxu0 0
        %5246 = vmatprep.subr.bf16.mxu0 0
        %5247 = vmatpush1.bf16.msra.mxu0 0
        %5248 = vmatprep.subr.bf16.mxu0 0
        %5249 = vmatpush1.bf16.msra.mxu0 0
        %5250 = vmatprep.subr.bf16.mxu0 0
        %5251 = vmatpush1.bf16.msra.mxu0 0
        %5252 = vmatprep.subr.bf16.mxu0 0
        %5253 = vmatpush1.bf16.msra.mxu0 0
        %5254 = vmatprep.subr.bf16.mxu0 0
        %5255 = vmatpush1.bf16.msra.mxu0 0
        %5256 = vmatprep.subr.bf16.mxu0 0
        %5257 = vmatpush1.bf16.msra.mxu0 0
        %5258 = vmatprep.subr.bf16.mxu0 0
        %5259 = vmatpush1.bf16.msra.mxu0 0
        %5260 = vmatprep.subr.bf16.mxu0 0
        %5261 = vmatpush1.bf16.msra.mxu0 0
        %5262 = vmatprep.subr.bf16.mxu0 0
        %5263 = vmatpush1.bf16.msra.mxu0 0
        %5264 = vmatprep.subr.bf16.mxu0 0
        %5265 = vmatpush1.bf16.msra.mxu0 0
        %5266 = vmatprep.subr.bf16.mxu0 0
        %5267 = vmatpush1.bf16.msra.mxu0 0
        %5268 = vmatprep.mubr.bf16.mxu0 0
        %5269 = vmatmul.mubr.bf16.gmra.mrb[0].mxu0 %v5185
        %v5270 = vpop.f32.mrb[0].mxu0
        %v5271 = vadd.f32 0.0, %v5270
        %v5272 = vpop.f32.mrb[0].mxu0
        %v5273 = vpop.f32.mrb[0].mxu0
        %v5274 = vadd.f32 0.0, %v5273
        %v5275 = vpop.f32.mrb[0].mxu0
        %5276 = vmatprep.mubr.bf16.mxu0 0
        %5277 = vmatmul.mubr.bf16.gmra.mrb[0].mxu0 %v5188
        %v5278 = vpop.f32.mrb[0].mxu0
        %v5279 = vadd.f32 0.0, %v5278
        %v5280 = vpop.f32.mrb[0].mxu0
        %v5281 = vpop.f32.mrb[0].mxu0
        %v5282 = vadd.f32 0.0, %v5281
        %v5283 = vpop.f32.mrb[0].mxu0
        %5284 = vmatprep.mubr.bf16.mxu0 0
        %5285 = vmatmul.mubr.bf16.gmra.mrb[0].mxu0 %v5191
        %v5286 = vpop.f32.mrb[0].mxu0
        %v5287 = vadd.f32 0.0, %v5286
        %v5288 = vpop.f32.mrb[0].mxu0
        %v5289 = vpop.f32.mrb[0].mxu0
        %v5290 = vadd.f32 0.0, %v5289
        %v5291 = vpop.f32.mrb[0].mxu0
        %5292 = vmatprep.mubr.bf16.mxu0 0
        %5293 = vmatmul.mubr.bf16.gmra.mrb[0].mxu0 %v5194
        %v5294 = vpop.f32.mrb[0].mxu0
        %v5295 = vadd.f32 0.0, %v5294
        %v5296 = vpop.f32.mrb[0].mxu0
        %v5297 = vpop.f32.mrb[0].mxu0
        %v5298 = vadd.f32 0.0, %v5297
        %v5299 = vpop.f32.mrb[0].mxu0
        %5300 = vmatprep.mubr.bf16.mxu0 0
        %5301 = vmatmul.mubr.bf16.gmra.mrb[0].mxu0 %v5197
        %v5302 = vpop.f32.mrb[0].mxu0
        %v5303 = vadd.f32 0.0, %v5302
        %v5304 = vpop.f32.mrb[0].mxu0
        %v5305 = vpop.f32.mrb[0].mxu0
        %v5306 = vadd.f32 0.0, %v5305
        %v5307 = vpop.f32.mrb[0].mxu0
        %5308 = vmatprep.mubr.bf16.mxu0 0
        %5309 = vmatmul.mubr.bf16.gmra.mrb[0].mxu0 %v5200
        %v5310 = vpop.f32.mrb[0].mxu0
        %v5311 = vadd.f32 0.0, %v5310
        %v5312 = vpop.f32.mrb[0].mxu0
        %v5313 = vpop.f32.mrb[0].mxu0
        %v5314 = vadd.f32 0.0, %v5313
        %v5315 = vpop.f32.mrb[0].mxu0
        %5316 = vmatprep.mubr.bf16.mxu0 0
        %5317 = vmatmul.mubr.bf16.gmra.mrb[0].mxu0 %v5203
        %v5318 = vpop.f32.mrb[0].mxu0
        %v5319 = vadd.f32 0.0, %v5318
        %v5320 = vpop.f32.mrb[0].mxu0
        %v5321 = vpop.f32.mrb[0].mxu0
        %v5322 = vadd.f32 0.0, %v5321
        %v5323 = vpop.f32.mrb[0].mxu0
        %5324 = vmatprep.mubr.bf16.mxu0 0
        %5325 = vmatmul.mubr.bf16.gmra.mrb[0].mxu0 %v5206
        %v5326 = vpop.f32.mrb[0].mxu0
        %v5327 = vadd.f32 0.0, %v5326
        %v5328 = vpop.f32.mrb[0].mxu0
        %v5329 = vpop.f32.mrb[0].mxu0
        %v5330 = vadd.f32 0.0, %v5329
        %v5331 = vpop.f32.mrb[0].mxu0
        %5332 = vmatprep.mubr.bf16.mxu0 0
        %5333 = vmatmul.mubr.bf16.gmra.mrb[0].mxu0 %v5209
        %v5334 = vpop.f32.mrb[0].mxu0
        %v5335 = vadd.f32 0.0, %v5334
        %v5336 = vpop.f32.mrb[0].mxu0
        %v5337 = vpop.f32.mrb[0].mxu0
        %v5338 = vadd.f32 0.0, %v5337
        %v5339 = vpop.f32.mrb[0].mxu0
        %5340 = vmatprep.mubr.bf16.mxu0 0
        %5341 = vmatmul.mubr.bf16.gmra.mrb[0].mxu0 %v5212
        %v5342 = vpop.f32.mrb[0].mxu0
        %v5343 = vadd.f32 0.0, %v5342
        %v5344 = vpop.f32.mrb[0].mxu0
        %v5345 = vpop.f32.mrb[0].mxu0
        %v5346 = vadd.f32 0.0, %v5345
        %v5347 = vpop.f32.mrb[0].mxu0
        %5348 = vmatprep.mubr.bf16.mxu0 0
        %5349 = vmatmul.mubr.bf16.gmra.mrb[0].mxu0 %v5215
        %v5350 = vpop.f32.mrb[0].mxu0
        %v5351 = vadd.f32 0.0, %v5350
        %v5352 = vpop.f32.mrb[0].mxu0
        %v5353 = vpop.f32.mrb[0].mxu0
        %v5354 = vadd.f32 0.0, %v5353
        %v5355 = vpop.f32.mrb[0].mxu0
        %5356 = vmatprep.mubr.bf16.mxu0 0
        %5357 = vmatmul.mubr.bf16.gmra.mrb[0].mxu0 %v5218
        %v5358 = vpop.f32.mrb[0].mxu0
        %v5359 = vadd.f32 0.0, %v5358
        %v5360 = vpop.f32.mrb[0].mxu0
        %v5361 = vpop.f32.mrb[0].mxu0
        %v5362 = vadd.f32 0.0, %v5361
        %v5363 = vpop.f32.mrb[0].mxu0
        %5364 = vmatprep.mubr.bf16.mxu0 0
        %5365 = vmatmul.mubr.bf16.gmra.mrb[0].mxu0 %v5221
        %v5366 = vpop.f32.mrb[0].mxu0
        %v5367 = vadd.f32 0.0, %v5366
        %v5368 = vpop.f32.mrb[0].mxu0
        %v5369 = vpop.f32.mrb[0].mxu0
        %v5370 = vadd.f32 0.0, %v5369
        %v5371 = vpop.f32.mrb[0].mxu0
        %5372 = vmatprep.mubr.bf16.mxu0 0
        %5373 = vmatmul.mubr.bf16.gmra.mrb[0].mxu0 %v5224
        %v5374 = vpop.f32.mrb[0].mxu0
        %v5375 = vadd.f32 0.0, %v5374
        %v5376 = vpop.f32.mrb[0].mxu0
        %v5377 = vpop.f32.mrb[0].mxu0
        %v5378 = vadd.f32 0.0, %v5377
        %v5379 = vpop.f32.mrb[0].mxu0
        %5380 = vmatprep.mubr.bf16.mxu0 0
        %5381 = vmatmul.mubr.bf16.gmra.mrb[0].mxu0 %v5227
        %v5382 = vpop.f32.mrb[0].mxu0
        %v5383 = vadd.f32 0.0, %v5382
        %v5384 = vpop.f32.mrb[0].mxu0
        %v5385 = vpop.f32.mrb[0].mxu0
        %v5386 = vadd.f32 0.0, %v5385
        %v5387 = vpop.f32.mrb[0].mxu0
        %5388 = vmatprep.mubr.bf16.mxu0 0
        %5389 = vmatmul.mubr.bf16.gmra.mrb[0].mxu0 %v5230
        %v5390 = vpop.f32.mrb[0].mxu0
        %v5391 = vadd.f32 0.0, %v5390
        %v5392 = vpop.f32.mrb[0].mxu0
        %v5393 = vpop.f32.mrb[0].mxu0
        %v5394 = vadd.f32 0.0, %v5393
        %v5395 = vpop.f32.mrb[0].mxu0
        %5396 = vdwg.mxu0
        %v5398 = vsel %vm1297, %v3216, 0
        %v5401 = vsel %vm1297, %v3217, 0
        %v5404 = vsel %vm1297, %v3218, 0
        %v5407 = vsel %vm1297, %v3219, 0
        %v5410 = vsel %vm1297, %v3220, 0
        %v5413 = vsel %vm1297, %v3221, 0
        %v5416 = vsel %vm1297, %v3222, 0
        %v5419 = vsel %vm1297, %v3223, 0
        %v5422 = vsel %vm1297, %v3224, 0
        %v5425 = vsel %vm1297, %v3225, 0
        %v5428 = vsel %vm1297, %v3226, 0
        %v5431 = vsel %vm1297, %v3227, 0
        %v5434 = vsel %vm1297, %v3228, 0
        %v5437 = vsel %vm1297, %v3229, 0
        %v5440 = vsel %vm1297, %v3230, 0
        %v5443 = vsel %vm1297, %v3231, 0
        %v5446 = vsel %vm5232, %v1146, 0
        %5448 = vmatprep.subr.bf16.mxu0 0
        %5449 = vmatpush1.bf16.msra.mxu0 %v5446
        %5450 = vmatprep.subr.bf16.mxu0 0
        %5451 = vmatpush1.bf16.msra.mxu0 0
        %5452 = vmatprep.subr.bf16.mxu0 0
        %5453 = vmatpush1.bf16.msra.mxu0 0
        %5454 = vmatprep.subr.bf16.mxu0 0
        %5455 = vmatpush1.bf16.msra.mxu0 0
        %5456 = vmatprep.subr.bf16.mxu0 0
        %5457 = vmatpush1.bf16.msra.mxu0 0
        %5458 = vmatprep.subr.bf16.mxu0 0
        %5459 = vmatpush1.bf16.msra.mxu0 0
        %5460 = vmatprep.subr.bf16.mxu0 0
        %5461 = vmatpush1.bf16.msra.mxu0 0
        %5462 = vmatprep.subr.bf16.mxu0 0
        %5463 = vmatpush1.bf16.msra.mxu0 0
        %5464 = vmatprep.subr.bf16.mxu0 0
        %5465 = vmatpush1.bf16.msra.mxu0 0
        %5466 = vmatprep.subr.bf16.mxu0 0
        %5467 = vmatpush1.bf16.msra.mxu0 0
        %5468 = vmatprep.subr.bf16.mxu0 0
        %5469 = vmatpush1.bf16.msra.mxu0 0
        %5470 = vmatprep.subr.bf16.mxu0 0
        %5471 = vmatpush1.bf16.msra.mxu0 0
        %5472 = vmatprep.subr.bf16.mxu0 0
        %5473 = vmatpush1.bf16.msra.mxu0 0
        %5474 = vmatprep.subr.bf16.mxu0 0
        %5475 = vmatpush1.bf16.msra.mxu0 0
        %5476 = vmatprep.subr.bf16.mxu0 0
        %5477 = vmatpush1.bf16.msra.mxu0 0
        %5478 = vmatprep.subr.bf16.mxu0 0
        %5479 = vmatpush1.bf16.msra.mxu0 0
        %5480 = vmatprep.mubr.bf16.mxu0 0
        %5481 = vmatmul.mubr.bf16.gmra.mrb[0].mxu0 %v5398
        %v5482 = vpop.f32.mrb[0].mxu0
        %v5483 = vadd.f32 %v5271, %v5482
        %v5484 = vpop.f32.mrb[0].mxu0
        %v5485 = vpop.f32.mrb[0].mxu0
        %v5486 = vadd.f32 %v5274, %v5485
        %v5487 = vpop.f32.mrb[0].mxu0
        %5488 = vmatprep.mubr.bf16.mxu0 0
        %5489 = vmatmul.mubr.bf16.gmra.mrb[0].mxu0 %v5401
        %v5490 = vpop.f32.mrb[0].mxu0
        %v5491 = vadd.f32 %v5279, %v5490
        %v5492 = vpop.f32.mrb[0].mxu0
        %v5493 = vpop.f32.mrb[0].mxu0
        %v5494 = vadd.f32 %v5282, %v5493
        %v5495 = vpop.f32.mrb[0].mxu0
        %5496 = vmatprep.mubr.bf16.mxu0 0
        %5497 = vmatmul.mubr.bf16.gmra.mrb[0].mxu0 %v5404
        %v5498 = vpop.f32.mrb[0].mxu0
        %v5499 = vadd.f32 %v5287, %v5498
        %v5500 = vpop.f32.mrb[0].mxu0
        %v5501 = vpop.f32.mrb[0].mxu0
        %v5502 = vadd.f32 %v5290, %v5501
        %v5503 = vpop.f32.mrb[0].mxu0
        %5504 = vmatprep.mubr.bf16.mxu0 0
        %5505 = vmatmul.mubr.bf16.gmra.mrb[0].mxu0 %v5407
        %v5506 = vpop.f32.mrb[0].mxu0
        %v5507 = vadd.f32 %v5295, %v5506
        %v5508 = vpop.f32.mrb[0].mxu0
        %v5509 = vpop.f32.mrb[0].mxu0
        %v5510 = vadd.f32 %v5298, %v5509
        %v5511 = vpop.f32.mrb[0].mxu0
        %5512 = vmatprep.mubr.bf16.mxu0 0
        %5513 = vmatmul.mubr.bf16.gmra.mrb[0].mxu0 %v5410
        %v5514 = vpop.f32.mrb[0].mxu0
        %v5515 = vadd.f32 %v5303, %v5514
        %v5516 = vpop.f32.mrb[0].mxu0
        %v5517 = vpop.f32.mrb[0].mxu0
        %v5518 = vadd.f32 %v5306, %v5517
        %v5519 = vpop.f32.mrb[0].mxu0
        %5520 = vmatprep.mubr.bf16.mxu0 0
        %5521 = vmatmul.mubr.bf16.gmra.mrb[0].mxu0 %v5413
        %v5522 = vpop.f32.mrb[0].mxu0
        %v5523 = vadd.f32 %v5311, %v5522
        %v5524 = vpop.f32.mrb[0].mxu0
        %v5525 = vpop.f32.mrb[0].mxu0
        %v5526 = vadd.f32 %v5314, %v5525
        %v5527 = vpop.f32.mrb[0].mxu0
        %5528 = vmatprep.mubr.bf16.mxu0 0
        %5529 = vmatmul.mubr.bf16.gmra.mrb[0].mxu0 %v5416
        %v5530 = vpop.f32.mrb[0].mxu0
        %v5531 = vadd.f32 %v5319, %v5530
        %v5532 = vpop.f32.mrb[0].mxu0
        %v5533 = vpop.f32.mrb[0].mxu0
        %v5534 = vadd.f32 %v5322, %v5533
        %v5535 = vpop.f32.mrb[0].mxu0
        %5536 = vmatprep.mubr.bf16.mxu0 0
        %5537 = vmatmul.mubr.bf16.gmra.mrb[0].mxu0 %v5419
        %v5538 = vpop.f32.mrb[0].mxu0
        %v5539 = vadd.f32 %v5327, %v5538
        %v5540 = vpop.f32.mrb[0].mxu0
        %v5541 = vpop.f32.mrb[0].mxu0
        %v5542 = vadd.f32 %v5330, %v5541
        %v5543 = vpop.f32.mrb[0].mxu0
        %5544 = vmatprep.mubr.bf16.mxu0 0
        %5545 = vmatmul.mubr.bf16.gmra.mrb[0].mxu0 %v5422
        %v5546 = vpop.f32.mrb[0].mxu0
        %v5547 = vadd.f32 %v5335, %v5546
        %v5548 = vpop.f32.mrb[0].mxu0
        %v5549 = vpop.f32.mrb[0].mxu0
        %v5550 = vadd.f32 %v5338, %v5549
        %v5551 = vpop.f32.mrb[0].mxu0
        %5552 = vmatprep.mubr.bf16.mxu0 0
        %5553 = vmatmul.mubr.bf16.gmra.mrb[0].mxu0 %v5425
        %v5554 = vpop.f32.mrb[0].mxu0
        %v5555 = vadd.f32 %v5343, %v5554
        %v5556 = vpop.f32.mrb[0].mxu0
        %v5557 = vpop.f32.mrb[0].mxu0
        %v5558 = vadd.f32 %v5346, %v5557
        %v5559 = vpop.f32.mrb[0].mxu0
        %5560 = vmatprep.mubr.bf16.mxu0 0
        %5561 = vmatmul.mubr.bf16.gmra.mrb[0].mxu0 %v5428
        %v5562 = vpop.f32.mrb[0].mxu0
        %v5563 = vadd.f32 %v5351, %v5562
        %v5564 = vpop.f32.mrb[0].mxu0
        %v5565 = vpop.f32.mrb[0].mxu0
        %v5566 = vadd.f32 %v5354, %v5565
        %v5567 = vpop.f32.mrb[0].mxu0
        %5568 = vmatprep.mubr.bf16.mxu0 0
        %5569 = vmatmul.mubr.bf16.gmra.mrb[0].mxu0 %v5431
        %v5570 = vpop.f32.mrb[0].mxu0
        %v5571 = vadd.f32 %v5359, %v5570
        %v5572 = vpop.f32.mrb[0].mxu0
        %v5573 = vpop.f32.mrb[0].mxu0
        %v5574 = vadd.f32 %v5362, %v5573
        %v5575 = vpop.f32.mrb[0].mxu0
        %5576 = vmatprep.mubr.bf16.mxu0 0
        %5577 = vmatmul.mubr.bf16.gmra.mrb[0].mxu0 %v5434
        %v5578 = vpop.f32.mrb[0].mxu0
        %v5579 = vadd.f32 %v5367, %v5578
        %v5580 = vpop.f32.mrb[0].mxu0
        %v5581 = vpop.f32.mrb[0].mxu0
        %v5582 = vadd.f32 %v5370, %v5581
        %v5583 = vpop.f32.mrb[0].mxu0
        %5584 = vmatprep.mubr.bf16.mxu0 0
        %5585 = vmatmul.mubr.bf16.gmra.mrb[0].mxu0 %v5437
        %v5586 = vpop.f32.mrb[0].mxu0
        %v5587 = vadd.f32 %v5375, %v5586
        %v5588 = vpop.f32.mrb[0].mxu0
        %v5589 = vpop.f32.mrb[0].mxu0
        %v5590 = vadd.f32 %v5378, %v5589
        %v5591 = vpop.f32.mrb[0].mxu0
        %5592 = vmatprep.mubr.bf16.mxu0 0
        %5593 = vmatmul.mubr.bf16.gmra.mrb[0].mxu0 %v5440
        %v5594 = vpop.f32.mrb[0].mxu0
        %v5595 = vadd.f32 %v5383, %v5594
        %v5596 = vpop.f32.mrb[0].mxu0
        %v5597 = vpop.f32.mrb[0].mxu0
        %v5598 = vadd.f32 %v5386, %v5597
        %v5599 = vpop.f32.mrb[0].mxu0
        %5600 = vmatprep.mubr.bf16.mxu0 0
        %5601 = vmatmul.mubr.bf16.gmra.mrb[0].mxu0 %v5443
        %v5602 = vpop.f32.mrb[0].mxu0
        %v5603 = vadd.f32 %v5391, %v5602
        %v5604 = vpop.f32.mrb[0].mxu0
        %v5605 = vpop.f32.mrb[0].mxu0
        %v5606 = vadd.f32 %v5394, %v5605
        %v5607 = vpop.f32.mrb[0].mxu0
        %5608 = vdwg.mxu0
        %5609 = vrot.lane.b32.xlu0 %v1278, 112
        %v5610 = vpop.permute.xlu0 %5609
        %5611 = vrot.lane.b32.xlu0 %v1278, 80
        %v5612 = vpop.permute.xlu0 %5611
        %v5614 = vsel %vm1297, %v5610, 0
        %v5617 = vsel %vm1297, %v5612, 0
        %5619 = vmatprep.subr.bf16.mxu0 0
        %5620 = vmatpush1.bf16.xpose.msra.mxu0 %v5617
        %5621 = vmatprep.subr.bf16.mxu0 0
        %5622 = vmatpush1.bf16.xpose.msra.mxu0 0
        %5623 = vmatprep.subr.bf16.mxu0 0
        %5624 = vmatpush1.bf16.xpose.msra.mxu0 0
        %5625 = vmatprep.subr.bf16.mxu0 0
        %5626 = vmatpush1.bf16.xpose.msra.mxu0 0
        %5627 = vmatprep.subr.bf16.mxu0 0
        %5628 = vmatpush1.bf16.xpose.msra.mxu0 0
        %5629 = vmatprep.subr.bf16.mxu0 0
        %5630 = vmatpush1.bf16.xpose.msra.mxu0 0
        %5631 = vmatprep.subr.bf16.mxu0 0
        %5632 = vmatpush1.bf16.xpose.msra.mxu0 0
        %5633 = vmatprep.subr.bf16.mxu0 0
        %5634 = vmatpush1.bf16.xpose.msra.mxu0 0
        %5635 = vmatprep.subr.bf16.mxu0 0
        %5636 = vmatpush1.bf16.xpose.msra.mxu0 0
        %5637 = vmatprep.subr.bf16.mxu0 0
        %5638 = vmatpush1.bf16.xpose.msra.mxu0 0
        %5639 = vmatprep.subr.bf16.mxu0 0
        %5640 = vmatpush1.bf16.xpose.msra.mxu0 0
        %5641 = vmatprep.subr.bf16.mxu0 0
        %5642 = vmatpush1.bf16.xpose.msra.mxu0 0
        %5643 = vmatprep.subr.bf16.mxu0 0
        %5644 = vmatpush1.bf16.xpose.msra.mxu0 0
        %5645 = vmatprep.subr.bf16.mxu0 0
        %5646 = vmatpush1.bf16.xpose.msra.mxu0 0
        %5647 = vmatprep.subr.bf16.mxu0 0
        %5648 = vmatpush1.bf16.xpose.msra.mxu0 0
        %5649 = vmatprep.subr.bf16.mxu0 0
        %5650 = vmatpush1.bf16.xpose.msra.mxu0 0
        %5651 = vmatprep.mubr.bf16.mxu0 0
        %5652 = vmatmul.mubr.bf16.gmra.mrb[0].mxu0 %v5614
        %v5653 = vpop.f32.mrb[0].mxu0
        %v5654 = vadd.f32 %v1214, %v5653
        %v5655 = vpop.f32.mrb[0].mxu0
        %v5656 = vpop.f32.mrb[0].mxu0
        %v5657 = vadd.f32 %v1215, %v5656
        %v5658 = vpop.f32.mrb[0].mxu0
        %5659 = vdwg.mxu0
        %5660 = vrot.lane.b32.xlu0 %v1279, 112
        %v5661 = vpop.permute.xlu0 %5660
        %5662 = vrot.lane.b32.xlu0 %v1279, 80
        %v5663 = vpop.permute.xlu0 %5662
        %v5665 = vsel %vm1297, %v5661, 0
        %v5668 = vsel %vm1297, %v5663, 0
        %5670 = vmatprep.subr.bf16.mxu0 0
        %5671 = vmatpush1.bf16.xpose.msra.mxu0 %v5668
        %5672 = vmatprep.subr.bf16.mxu0 0
        %5673 = vmatpush1.bf16.xpose.msra.mxu0 0
        %5674 = vmatprep.subr.bf16.mxu0 0
        %5675 = vmatpush1.bf16.xpose.msra.mxu0 0
        %5676 = vmatprep.subr.bf16.mxu0 0
        %5677 = vmatpush1.bf16.xpose.msra.mxu0 0
        %5678 = vmatprep.subr.bf16.mxu0 0
        %5679 = vmatpush1.bf16.xpose.msra.mxu0 0
        %5680 = vmatprep.subr.bf16.mxu0 0
        %5681 = vmatpush1.bf16.xpose.msra.mxu0 0
        %5682 = vmatprep.subr.bf16.mxu0 0
        %5683 = vmatpush1.bf16.xpose.msra.mxu0 0
        %5684 = vmatprep.subr.bf16.mxu0 0
        %5685 = vmatpush1.bf16.xpose.msra.mxu0 0
        %5686 = vmatprep.subr.bf16.mxu0 0
        %5687 = vmatpush1.bf16.xpose.msra.mxu0 0
        %5688 = vmatprep.subr.bf16.mxu0 0
        %5689 = vmatpush1.bf16.xpose.msra.mxu0 0
        %5690 = vmatprep.subr.bf16.mxu0 0
        %5691 = vmatpush1.bf16.xpose.msra.mxu0 0
        %5692 = vmatprep.subr.bf16.mxu0 0
        %5693 = vmatpush1.bf16.xpose.msra.mxu0 0
        %5694 = vmatprep.subr.bf16.mxu0 0
        %5695 = vmatpush1.bf16.xpose.msra.mxu0 0
        %5696 = vmatprep.subr.bf16.mxu0 0
        %5697 = vmatpush1.bf16.xpose.msra.mxu0 0
        %5698 = vmatprep.subr.bf16.mxu0 0
        %5699 = vmatpush1.bf16.xpose.msra.mxu0 0
        %5700 = vmatprep.subr.bf16.mxu0 0
        %5701 = vmatpush1.bf16.xpose.msra.mxu0 0
        %5702 = vmatprep.mubr.bf16.mxu0 0
        %5703 = vmatmul.mubr.bf16.gmra.mrb[0].mxu0 %v5665
        %v5704 = vpop.f32.mrb[0].mxu0
        %v5705 = vadd.f32 %v1216, %v5704
        %v5706 = vpop.f32.mrb[0].mxu0
        %v5707 = vpop.f32.mrb[0].mxu0
        %v5708 = vadd.f32 %v1217, %v5707
        %v5709 = vpop.f32.mrb[0].mxu0
        %5710 = vdwg.mxu0
        %5711 = vrot.lane.b32.xlu0 %v1280, 112
        %v5712 = vpop.permute.xlu0 %5711
        %5713 = vrot.lane.b32.xlu0 %v1280, 80
        %v5714 = vpop.permute.xlu0 %5713
        %v5716 = vsel %vm1297, %v5712, 0
        %v5719 = vsel %vm1297, %v5714, 0
        %5721 = vmatprep.subr.bf16.mxu0 0
        %5722 = vmatpush1.bf16.xpose.msra.mxu0 %v5719
        %5723 = vmatprep.subr.bf16.mxu0 0
        %5724 = vmatpush1.bf16.xpose.msra.mxu0 0
        %5725 = vmatprep.subr.bf16.mxu0 0
        %5726 = vmatpush1.bf16.xpose.msra.mxu0 0
        %5727 = vmatprep.subr.bf16.mxu0 0
        %5728 = vmatpush1.bf16.xpose.msra.mxu0 0
        %5729 = vmatprep.subr.bf16.mxu0 0
        %5730 = vmatpush1.bf16.xpose.msra.mxu0 0
        %5731 = vmatprep.subr.bf16.mxu0 0
        %5732 = vmatpush1.bf16.xpose.msra.mxu0 0
        %5733 = vmatprep.subr.bf16.mxu0 0
        %5734 = vmatpush1.bf16.xpose.msra.mxu0 0
        %5735 = vmatprep.subr.bf16.mxu0 0
        %5736 = vmatpush1.bf16.xpose.msra.mxu0 0
        %5737 = vmatprep.subr.bf16.mxu0 0
        %5738 = vmatpush1.bf16.xpose.msra.mxu0 0
        %5739 = vmatprep.subr.bf16.mxu0 0
        %5740 = vmatpush1.bf16.xpose.msra.mxu0 0
        %5741 = vmatprep.subr.bf16.mxu0 0
        %5742 = vmatpush1.bf16.xpose.msra.mxu0 0
        %5743 = vmatprep.subr.bf16.mxu0 0
        %5744 = vmatpush1.bf16.xpose.msra.mxu0 0
        %5745 = vmatprep.subr.bf16.mxu0 0
        %5746 = vmatpush1.bf16.xpose.msra.mxu0 0
        %5747 = vmatprep.subr.bf16.mxu0 0
        %5748 = vmatpush1.bf16.xpose.msra.mxu0 0
        %5749 = vmatprep.subr.bf16.mxu0 0
        %5750 = vmatpush1.bf16.xpose.msra.mxu0 0
        %5751 = vmatprep.subr.bf16.mxu0 0
        %5752 = vmatpush1.bf16.xpose.msra.mxu0 0
        %5753 = vmatprep.mubr.bf16.mxu0 0
        %5754 = vmatmul.mubr.bf16.gmra.mrb[0].mxu0 %v5716
        %v5755 = vpop.f32.mrb[0].mxu0
        %v5756 = vadd.f32 %v1218, %v5755
        %v5757 = vpop.f32.mrb[0].mxu0
        %v5758 = vpop.f32.mrb[0].mxu0
        %v5759 = vadd.f32 %v1219, %v5758
        %v5760 = vpop.f32.mrb[0].mxu0
        %5761 = vdwg.mxu0
        %5762 = vrot.lane.b32.xlu0 %v1281, 112
        %v5763 = vpop.permute.xlu0 %5762
        %5764 = vrot.lane.b32.xlu0 %v1281, 80
        %v5765 = vpop.permute.xlu0 %5764
        %v5767 = vsel %vm1297, %v5763, 0
        %v5770 = vsel %vm1297, %v5765, 0
        %5772 = vmatprep.subr.bf16.mxu0 0
        %5773 = vmatpush1.bf16.xpose.msra.mxu0 %v5770
        %5774 = vmatprep.subr.bf16.mxu0 0
        %5775 = vmatpush1.bf16.xpose.msra.mxu0 0
        %5776 = vmatprep.subr.bf16.mxu0 0
        %5777 = vmatpush1.bf16.xpose.msra.mxu0 0
        %5778 = vmatprep.subr.bf16.mxu0 0
        %5779 = vmatpush1.bf16.xpose.msra.mxu0 0
        %5780 = vmatprep.subr.bf16.mxu0 0
        %5781 = vmatpush1.bf16.xpose.msra.mxu0 0
        %5782 = vmatprep.subr.bf16.mxu0 0
        %5783 = vmatpush1.bf16.xpose.msra.mxu0 0
        %5784 = vmatprep.subr.bf16.mxu0 0
        %5785 = vmatpush1.bf16.xpose.msra.mxu0 0
        %5786 = vmatprep.subr.bf16.mxu0 0
        %5787 = vmatpush1.bf16.xpose.msra.mxu0 0
        %5788 = vmatprep.subr.bf16.mxu0 0
        %5789 = vmatpush1.bf16.xpose.msra.mxu0 0
        %5790 = vmatprep.subr.bf16.mxu0 0
        %5791 = vmatpush1.bf16.xpose.msra.mxu0 0
        %5792 = vmatprep.subr.bf16.mxu0 0
        %5793 = vmatpush1.bf16.xpose.msra.mxu0 0
        %5794 = vmatprep.subr.bf16.mxu0 0
        %5795 = vmatpush1.bf16.xpose.msra.mxu0 0
        %5796 = vmatprep.subr.bf16.mxu0 0
        %5797 = vmatpush1.bf16.xpose.msra.mxu0 0
        %5798 = vmatprep.subr.bf16.mxu0 0
        %5799 = vmatpush1.bf16.xpose.msra.mxu0 0
        %5800 = vmatprep.subr.bf16.mxu0 0
        %5801 = vmatpush1.bf16.xpose.msra.mxu0 0
        %5802 = vmatprep.subr.bf16.mxu0 0
        %5803 = vmatpush1.bf16.xpose.msra.mxu0 0
        %5804 = vmatprep.mubr.bf16.mxu0 0
        %5805 = vmatmul.mubr.bf16.gmra.mrb[0].mxu0 %v5767
        %v5806 = vpop.f32.mrb[0].mxu0
        %v5807 = vadd.f32 %v1220, %v5806
        %v5808 = vpop.f32.mrb[0].mxu0
        %v5809 = vpop.f32.mrb[0].mxu0
        %v5810 = vadd.f32 %v1221, %v5809
        %v5811 = vpop.f32.mrb[0].mxu0
        %5812 = vdwg.mxu0
        %5813 = vrot.lane.b32.xlu0 %v1282, 112
        %v5814 = vpop.permute.xlu0 %5813
        %5815 = vrot.lane.b32.xlu0 %v1282, 80
        %v5816 = vpop.permute.xlu0 %5815
        %v5818 = vsel %vm1297, %v5814, 0
        %v5821 = vsel %vm1297, %v5816, 0
        %5823 = vmatprep.subr.bf16.mxu0 0
        %5824 = vmatpush1.bf16.xpose.msra.mxu0 %v5821
        %5825 = vmatprep.subr.bf16.mxu0 0
        %5826 = vmatpush1.bf16.xpose.msra.mxu0 0
        %5827 = vmatprep.subr.bf16.mxu0 0
        %5828 = vmatpush1.bf16.xpose.msra.mxu0 0
        %5829 = vmatprep.subr.bf16.mxu0 0
        %5830 = vmatpush1.bf16.xpose.msra.mxu0 0
        %5831 = vmatprep.subr.bf16.mxu0 0
        %5832 = vmatpush1.bf16.xpose.msra.mxu0 0
        %5833 = vmatprep.subr.bf16.mxu0 0
        %5834 = vmatpush1.bf16.xpose.msra.mxu0 0
        %5835 = vmatprep.subr.bf16.mxu0 0
        %5836 = vmatpush1.bf16.xpose.msra.mxu0 0
        %5837 = vmatprep.subr.bf16.mxu0 0
        %5838 = vmatpush1.bf16.xpose.msra.mxu0 0
        %5839 = vmatprep.subr.bf16.mxu0 0
        %5840 = vmatpush1.bf16.xpose.msra.mxu0 0
        %5841 = vmatprep.subr.bf16.mxu0 0
        %5842 = vmatpush1.bf16.xpose.msra.mxu0 0
        %5843 = vmatprep.subr.bf16.mxu0 0
        %5844 = vmatpush1.bf16.xpose.msra.mxu0 0
        %5845 = vmatprep.subr.bf16.mxu0 0
        %5846 = vmatpush1.bf16.xpose.msra.mxu0 0
        %5847 = vmatprep.subr.bf16.mxu0 0
        %5848 = vmatpush1.bf16.xpose.msra.mxu0 0
        %5849 = vmatprep.subr.bf16.mxu0 0
        %5850 = vmatpush1.bf16.xpose.msra.mxu0 0
        %5851 = vmatprep.subr.bf16.mxu0 0
        %5852 = vmatpush1.bf16.xpose.msra.mxu0 0
        %5853 = vmatprep.subr.bf16.mxu0 0
        %5854 = vmatpush1.bf16.xpose.msra.mxu0 0
        %5855 = vmatprep.mubr.bf16.mxu0 0
        %5856 = vmatmul.mubr.bf16.gmra.mrb[0].mxu0 %v5818
        %v5857 = vpop.f32.mrb[0].mxu0
        %v5858 = vadd.f32 %v1222, %v5857
        %v5859 = vpop.f32.mrb[0].mxu0
        %v5860 = vpop.f32.mrb[0].mxu0
        %v5861 = vadd.f32 %v1223, %v5860
        %v5862 = vpop.f32.mrb[0].mxu0
        %5863 = vdwg.mxu0
        %5864 = vrot.lane.b32.xlu0 %v1283, 112
        %v5865 = vpop.permute.xlu0 %5864
        %5866 = vrot.lane.b32.xlu0 %v1283, 80
        %v5867 = vpop.permute.xlu0 %5866
        %v5869 = vsel %vm1297, %v5865, 0
        %v5872 = vsel %vm1297, %v5867, 0
        %5874 = vmatprep.subr.bf16.mxu0 0
        %5875 = vmatpush1.bf16.xpose.msra.mxu0 %v5872
        %5876 = vmatprep.subr.bf16.mxu0 0
        %5877 = vmatpush1.bf16.xpose.msra.mxu0 0
        %5878 = vmatprep.subr.bf16.mxu0 0
        %5879 = vmatpush1.bf16.xpose.msra.mxu0 0
        %5880 = vmatprep.subr.bf16.mxu0 0
        %5881 = vmatpush1.bf16.xpose.msra.mxu0 0
        %5882 = vmatprep.subr.bf16.mxu0 0
        %5883 = vmatpush1.bf16.xpose.msra.mxu0 0
        %5884 = vmatprep.subr.bf16.mxu0 0
        %5885 = vmatpush1.bf16.xpose.msra.mxu0 0
        %5886 = vmatprep.subr.bf16.mxu0 0
        %5887 = vmatpush1.bf16.xpose.msra.mxu0 0
        %5888 = vmatprep.subr.bf16.mxu0 0
        %5889 = vmatpush1.bf16.xpose.msra.mxu0 0
        %5890 = vmatprep.subr.bf16.mxu0 0
        %5891 = vmatpush1.bf16.xpose.msra.mxu0 0
        %5892 = vmatprep.subr.bf16.mxu0 0
        %5893 = vmatpush1.bf16.xpose.msra.mxu0 0
        %5894 = vmatprep.subr.bf16.mxu0 0
        %5895 = vmatpush1.bf16.xpose.msra.mxu0 0
        %5896 = vmatprep.subr.bf16.mxu0 0
        %5897 = vmatpush1.bf16.xpose.msra.mxu0 0
        %5898 = vmatprep.subr.bf16.mxu0 0
        %5899 = vmatpush1.bf16.xpose.msra.mxu0 0
        %5900 = vmatprep.subr.bf16.mxu0 0
        %5901 = vmatpush1.bf16.xpose.msra.mxu0 0
        %5902 = vmatprep.subr.bf16.mxu0 0
        %5903 = vmatpush1.bf16.xpose.msra.mxu0 0
        %5904 = vmatprep.subr.bf16.mxu0 0
        %5905 = vmatpush1.bf16.xpose.msra.mxu0 0
        %5906 = vmatprep.mubr.bf16.mxu0 0
        %5907 = vmatmul.mubr.bf16.gmra.mrb[0].mxu0 %v5869
        %v5908 = vpop.f32.mrb[0].mxu0
        %v5909 = vadd.f32 %v1224, %v5908
        %v5910 = vpop.f32.mrb[0].mxu0
        %v5911 = vpop.f32.mrb[0].mxu0
        %v5912 = vadd.f32 %v1225, %v5911
        %v5913 = vpop.f32.mrb[0].mxu0
        %5914 = vdwg.mxu0
        %5915 = vrot.lane.b32.xlu0 %v1284, 112
        %v5916 = vpop.permute.xlu0 %5915
        %5917 = vrot.lane.b32.xlu0 %v1284, 80
        %v5918 = vpop.permute.xlu0 %5917
        %v5920 = vsel %vm1297, %v5916, 0
        %v5923 = vsel %vm1297, %v5918, 0
        %5925 = vmatprep.subr.bf16.mxu0 0
        %5926 = vmatpush1.bf16.xpose.msra.mxu0 %v5923
        %5927 = vmatprep.subr.bf16.mxu0 0
        %5928 = vmatpush1.bf16.xpose.msra.mxu0 0
        %5929 = vmatprep.subr.bf16.mxu0 0
        %5930 = vmatpush1.bf16.xpose.msra.mxu0 0
        %5931 = vmatprep.subr.bf16.mxu0 0
        %5932 = vmatpush1.bf16.xpose.msra.mxu0 0
        %5933 = vmatprep.subr.bf16.mxu0 0
        %5934 = vmatpush1.bf16.xpose.msra.mxu0 0
        %5935 = vmatprep.subr.bf16.mxu0 0
        %5936 = vmatpush1.bf16.xpose.msra.mxu0 0
        %5937 = vmatprep.subr.bf16.mxu0 0
        %5938 = vmatpush1.bf16.xpose.msra.mxu0 0
        %5939 = vmatprep.subr.bf16.mxu0 0
        %5940 = vmatpush1.bf16.xpose.msra.mxu0 0
        %5941 = vmatprep.subr.bf16.mxu0 0
        %5942 = vmatpush1.bf16.xpose.msra.mxu0 0
        %5943 = vmatprep.subr.bf16.mxu0 0
        %5944 = vmatpush1.bf16.xpose.msra.mxu0 0
        %5945 = vmatprep.subr.bf16.mxu0 0
        %5946 = vmatpush1.bf16.xpose.msra.mxu0 0
        %5947 = vmatprep.subr.bf16.mxu0 0
        %5948 = vmatpush1.bf16.xpose.msra.mxu0 0
        %5949 = vmatprep.subr.bf16.mxu0 0
        %5950 = vmatpush1.bf16.xpose.msra.mxu0 0
        %5951 = vmatprep.subr.bf16.mxu0 0
        %5952 = vmatpush1.bf16.xpose.msra.mxu0 0
        %5953 = vmatprep.subr.bf16.mxu0 0
        %5954 = vmatpush1.bf16.xpose.msra.mxu0 0
        %5955 = vmatprep.subr.bf16.mxu0 0
        %5956 = vmatpush1.bf16.xpose.msra.mxu0 0
        %5957 = vmatprep.mubr.bf16.mxu0 0
        %5958 = vmatmul.mubr.bf16.gmra.mrb[0].mxu0 %v5920
        %v5959 = vpop.f32.mrb[0].mxu0
        %v5960 = vadd.f32 %v1226, %v5959
        %v5961 = vpop.f32.mrb[0].mxu0
        %v5962 = vpop.f32.mrb[0].mxu0
        %v5963 = vadd.f32 %v1227, %v5962
        %v5964 = vpop.f32.mrb[0].mxu0
        %5965 = vdwg.mxu0
        %5966 = vrot.lane.b32.xlu0 %v1285, 112
        %v5967 = vpop.permute.xlu0 %5966
        %5968 = vrot.lane.b32.xlu0 %v1285, 80
        %v5969 = vpop.permute.xlu0 %5968
        %v5971 = vsel %vm1297, %v5967, 0
        %v5974 = vsel %vm1297, %v5969, 0
        %5976 = vmatprep.subr.bf16.mxu0 0
        %5977 = vmatpush1.bf16.xpose.msra.mxu0 %v5974
        %5978 = vmatprep.subr.bf16.mxu0 0
        %5979 = vmatpush1.bf16.xpose.msra.mxu0 0
        %5980 = vmatprep.subr.bf16.mxu0 0
        %5981 = vmatpush1.bf16.xpose.msra.mxu0 0
        %5982 = vmatprep.subr.bf16.mxu0 0
        %5983 = vmatpush1.bf16.xpose.msra.mxu0 0
        %5984 = vmatprep.subr.bf16.mxu0 0
        %5985 = vmatpush1.bf16.xpose.msra.mxu0 0
        %5986 = vmatprep.subr.bf16.mxu0 0
        %5987 = vmatpush1.bf16.xpose.msra.mxu0 0
        %5988 = vmatprep.subr.bf16.mxu0 0
        %5989 = vmatpush1.bf16.xpose.msra.mxu0 0
        %5990 = vmatprep.subr.bf16.mxu0 0
        %5991 = vmatpush1.bf16.xpose.msra.mxu0 0
        %5992 = vmatprep.subr.bf16.mxu0 0
        %5993 = vmatpush1.bf16.xpose.msra.mxu0 0
        %5994 = vmatprep.subr.bf16.mxu0 0
        %5995 = vmatpush1.bf16.xpose.msra.mxu0 0
        %5996 = vmatprep.subr.bf16.mxu0 0
        %5997 = vmatpush1.bf16.xpose.msra.mxu0 0
        %5998 = vmatprep.subr.bf16.mxu0 0
        %5999 = vmatpush1.bf16.xpose.msra.mxu0 0
        %6000 = vmatprep.subr.bf16.mxu0 0
        %6001 = vmatpush1.bf16.xpose.msra.mxu0 0
        %6002 = vmatprep.subr.bf16.mxu0 0
        %6003 = vmatpush1.bf16.xpose.msra.mxu0 0
        %6004 = vmatprep.subr.bf16.mxu0 0
        %6005 = vmatpush1.bf16.xpose.msra.mxu0 0
        %6006 = vmatprep.subr.bf16.mxu0 0
        %6007 = vmatpush1.bf16.xpose.msra.mxu0 0
        %6008 = vmatprep.mubr.bf16.mxu0 0
        %6009 = vmatmul.mubr.bf16.gmra.mrb[0].mxu0 %v5971
        %v6010 = vpop.f32.mrb[0].mxu0
        %v6011 = vadd.f32 %v1228, %v6010
        %v6012 = vpop.f32.mrb[0].mxu0
        %v6013 = vpop.f32.mrb[0].mxu0
        %v6014 = vadd.f32 %v1229, %v6013
        %v6015 = vpop.f32.mrb[0].mxu0
        %6016 = vdwg.mxu0
        %6017 = vrot.lane.b32.xlu0 %v1286, 112
        %v6018 = vpop.permute.xlu0 %6017
        %6019 = vrot.lane.b32.xlu0 %v1286, 80
        %v6020 = vpop.permute.xlu0 %6019
        %v6022 = vsel %vm1297, %v6018, 0
        %v6025 = vsel %vm1297, %v6020, 0
        %6027 = vmatprep.subr.bf16.mxu0 0
        %6028 = vmatpush1.bf16.xpose.msra.mxu0 %v6025
        %6029 = vmatprep.subr.bf16.mxu0 0
        %6030 = vmatpush1.bf16.xpose.msra.mxu0 0
        %6031 = vmatprep.subr.bf16.mxu0 0
        %6032 = vmatpush1.bf16.xpose.msra.mxu0 0
        %6033 = vmatprep.subr.bf16.mxu0 0
        %6034 = vmatpush1.bf16.xpose.msra.mxu0 0
        %6035 = vmatprep.subr.bf16.mxu0 0
        %6036 = vmatpush1.bf16.xpose.msra.mxu0 0
        %6037 = vmatprep.subr.bf16.mxu0 0
        %6038 = vmatpush1.bf16.xpose.msra.mxu0 0
        %6039 = vmatprep.subr.bf16.mxu0 0
        %6040 = vmatpush1.bf16.xpose.msra.mxu0 0
        %6041 = vmatprep.subr.bf16.mxu0 0
        %6042 = vmatpush1.bf16.xpose.msra.mxu0 0
        %6043 = vmatprep.subr.bf16.mxu0 0
        %6044 = vmatpush1.bf16.xpose.msra.mxu0 0
        %6045 = vmatprep.subr.bf16.mxu0 0
        %6046 = vmatpush1.bf16.xpose.msra.mxu0 0
        %6047 = vmatprep.subr.bf16.mxu0 0
        %6048 = vmatpush1.bf16.xpose.msra.mxu0 0
        %6049 = vmatprep.subr.bf16.mxu0 0
        %6050 = vmatpush1.bf16.xpose.msra.mxu0 0
        %6051 = vmatprep.subr.bf16.mxu0 0
        %6052 = vmatpush1.bf16.xpose.msra.mxu0 0
        %6053 = vmatprep.subr.bf16.mxu0 0
        %6054 = vmatpush1.bf16.xpose.msra.mxu0 0
        %6055 = vmatprep.subr.bf16.mxu0 0
        %6056 = vmatpush1.bf16.xpose.msra.mxu0 0
        %6057 = vmatprep.subr.bf16.mxu0 0
        %6058 = vmatpush1.bf16.xpose.msra.mxu0 0
        %6059 = vmatprep.mubr.bf16.mxu0 0
        %6060 = vmatmul.mubr.bf16.gmra.mrb[0].mxu0 %v6022
        %v6061 = vpop.f32.mrb[0].mxu0
        %v6062 = vadd.f32 %v1230, %v6061
        %v6063 = vpop.f32.mrb[0].mxu0
        %v6064 = vpop.f32.mrb[0].mxu0
        %v6065 = vadd.f32 %v1231, %v6064
        %v6066 = vpop.f32.mrb[0].mxu0
        %6067 = vdwg.mxu0
        %6068 = vrot.lane.b32.xlu0 %v1287, 112
        %v6069 = vpop.permute.xlu0 %6068
        %6070 = vrot.lane.b32.xlu0 %v1287, 80
        %v6071 = vpop.permute.xlu0 %6070
        %v6073 = vsel %vm1297, %v6069, 0
        %v6076 = vsel %vm1297, %v6071, 0
        %6078 = vmatprep.subr.bf16.mxu0 0
        %6079 = vmatpush1.bf16.xpose.msra.mxu0 %v6076
        %6080 = vmatprep.subr.bf16.mxu0 0
        %6081 = vmatpush1.bf16.xpose.msra.mxu0 0
        %6082 = vmatprep.subr.bf16.mxu0 0
        %6083 = vmatpush1.bf16.xpose.msra.mxu0 0
        %6084 = vmatprep.subr.bf16.mxu0 0
        %6085 = vmatpush1.bf16.xpose.msra.mxu0 0
        %6086 = vmatprep.subr.bf16.mxu0 0
        %6087 = vmatpush1.bf16.xpose.msra.mxu0 0
        %6088 = vmatprep.subr.bf16.mxu0 0
        %6089 = vmatpush1.bf16.xpose.msra.mxu0 0
        %6090 = vmatprep.subr.bf16.mxu0 0
        %6091 = vmatpush1.bf16.xpose.msra.mxu0 0
        %6092 = vmatprep.subr.bf16.mxu0 0
        %6093 = vmatpush1.bf16.xpose.msra.mxu0 0
        %6094 = vmatprep.subr.bf16.mxu0 0
        %6095 = vmatpush1.bf16.xpose.msra.mxu0 0
        %6096 = vmatprep.subr.bf16.mxu0 0
        %6097 = vmatpush1.bf16.xpose.msra.mxu0 0
        %6098 = vmatprep.subr.bf16.mxu0 0
        %6099 = vmatpush1.bf16.xpose.msra.mxu0 0
        %6100 = vmatprep.subr.bf16.mxu0 0
        %6101 = vmatpush1.bf16.xpose.msra.mxu0 0
        %6102 = vmatprep.subr.bf16.mxu0 0
        %6103 = vmatpush1.bf16.xpose.msra.mxu0 0
        %6104 = vmatprep.subr.bf16.mxu0 0
        %6105 = vmatpush1.bf16.xpose.msra.mxu0 0
        %6106 = vmatprep.subr.bf16.mxu0 0
        %6107 = vmatpush1.bf16.xpose.msra.mxu0 0
        %6108 = vmatprep.subr.bf16.mxu0 0
        %6109 = vmatpush1.bf16.xpose.msra.mxu0 0
        %6110 = vmatprep.mubr.bf16.mxu0 0
        %6111 = vmatmul.mubr.bf16.gmra.mrb[0].mxu0 %v6073
        %v6112 = vpop.f32.mrb[0].mxu0
        %v6113 = vadd.f32 %v1232, %v6112
        %v6114 = vpop.f32.mrb[0].mxu0
        %v6115 = vpop.f32.mrb[0].mxu0
        %v6116 = vadd.f32 %v1233, %v6115
        %v6117 = vpop.f32.mrb[0].mxu0
        %6118 = vdwg.mxu0
        %6119 = vrot.lane.b32.xlu0 %v1288, 112
        %v6120 = vpop.permute.xlu0 %6119
        %6121 = vrot.lane.b32.xlu0 %v1288, 80
        %v6122 = vpop.permute.xlu0 %6121
        %v6124 = vsel %vm1297, %v6120, 0
        %v6127 = vsel %vm1297, %v6122, 0
        %6129 = vmatprep.subr.bf16.mxu0 0
        %6130 = vmatpush1.bf16.xpose.msra.mxu0 %v6127
        %6131 = vmatprep.subr.bf16.mxu0 0
        %6132 = vmatpush1.bf16.xpose.msra.mxu0 0
        %6133 = vmatprep.subr.bf16.mxu0 0
        %6134 = vmatpush1.bf16.xpose.msra.mxu0 0
        %6135 = vmatprep.subr.bf16.mxu0 0
        %6136 = vmatpush1.bf16.xpose.msra.mxu0 0
        %6137 = vmatprep.subr.bf16.mxu0 0
        %6138 = vmatpush1.bf16.xpose.msra.mxu0 0
        %6139 = vmatprep.subr.bf16.mxu0 0
        %6140 = vmatpush1.bf16.xpose.msra.mxu0 0
        %6141 = vmatprep.subr.bf16.mxu0 0
        %6142 = vmatpush1.bf16.xpose.msra.mxu0 0
        %6143 = vmatprep.subr.bf16.mxu0 0
        %6144 = vmatpush1.bf16.xpose.msra.mxu0 0
        %6145 = vmatprep.subr.bf16.mxu0 0
        %6146 = vmatpush1.bf16.xpose.msra.mxu0 0
        %6147 = vmatprep.subr.bf16.mxu0 0
        %6148 = vmatpush1.bf16.xpose.msra.mxu0 0
        %6149 = vmatprep.subr.bf16.mxu0 0
        %6150 = vmatpush1.bf16.xpose.msra.mxu0 0
        %6151 = vmatprep.subr.bf16.mxu0 0
        %6152 = vmatpush1.bf16.xpose.msra.mxu0 0
        %6153 = vmatprep.subr.bf16.mxu0 0
        %6154 = vmatpush1.bf16.xpose.msra.mxu0 0
        %6155 = vmatprep.subr.bf16.mxu0 0
        %6156 = vmatpush1.bf16.xpose.msra.mxu0 0
        %6157 = vmatprep.subr.bf16.mxu0 0
        %6158 = vmatpush1.bf16.xpose.msra.mxu0 0
        %6159 = vmatprep.subr.bf16.mxu0 0
        %6160 = vmatpush1.bf16.xpose.msra.mxu0 0
        %6161 = vmatprep.mubr.bf16.mxu0 0
        %6162 = vmatmul.mubr.bf16.gmra.mrb[0].mxu0 %v6124
        %v6163 = vpop.f32.mrb[0].mxu0
        %v6164 = vadd.f32 %v1234, %v6163
        %v6165 = vpop.f32.mrb[0].mxu0
        %v6166 = vpop.f32.mrb[0].mxu0
        %v6167 = vadd.f32 %v1235, %v6166
        %v6168 = vpop.f32.mrb[0].mxu0
        %6169 = vdwg.mxu0
        %6170 = vrot.lane.b32.xlu0 %v1289, 112
        %v6171 = vpop.permute.xlu0 %6170
        %6172 = vrot.lane.b32.xlu0 %v1289, 80
        %v6173 = vpop.permute.xlu0 %6172
        %v6175 = vsel %vm1297, %v6171, 0
        %v6178 = vsel %vm1297, %v6173, 0
        %6180 = vmatprep.subr.bf16.mxu0 0
        %6181 = vmatpush1.bf16.xpose.msra.mxu0 %v6178
        %6182 = vmatprep.subr.bf16.mxu0 0
        %6183 = vmatpush1.bf16.xpose.msra.mxu0 0
        %6184 = vmatprep.subr.bf16.mxu0 0
        %6185 = vmatpush1.bf16.xpose.msra.mxu0 0
        %6186 = vmatprep.subr.bf16.mxu0 0
        %6187 = vmatpush1.bf16.xpose.msra.mxu0 0
        %6188 = vmatprep.subr.bf16.mxu0 0
        %6189 = vmatpush1.bf16.xpose.msra.mxu0 0
        %6190 = vmatprep.subr.bf16.mxu0 0
        %6191 = vmatpush1.bf16.xpose.msra.mxu0 0
        %6192 = vmatprep.subr.bf16.mxu0 0
        %6193 = vmatpush1.bf16.xpose.msra.mxu0 0
        %6194 = vmatprep.subr.bf16.mxu0 0
        %6195 = vmatpush1.bf16.xpose.msra.mxu0 0
        %6196 = vmatprep.subr.bf16.mxu0 0
        %6197 = vmatpush1.bf16.xpose.msra.mxu0 0
        %6198 = vmatprep.subr.bf16.mxu0 0
        %6199 = vmatpush1.bf16.xpose.msra.mxu0 0
        %6200 = vmatprep.subr.bf16.mxu0 0
        %6201 = vmatpush1.bf16.xpose.msra.mxu0 0
        %6202 = vmatprep.subr.bf16.mxu0 0
        %6203 = vmatpush1.bf16.xpose.msra.mxu0 0
        %6204 = vmatprep.subr.bf16.mxu0 0
        %6205 = vmatpush1.bf16.xpose.msra.mxu0 0
        %6206 = vmatprep.subr.bf16.mxu0 0
        %6207 = vmatpush1.bf16.xpose.msra.mxu0 0
        %6208 = vmatprep.subr.bf16.mxu0 0
        %6209 = vmatpush1.bf16.xpose.msra.mxu0 0
        %6210 = vmatprep.subr.bf16.mxu0 0
        %6211 = vmatpush1.bf16.xpose.msra.mxu0 0
        %6212 = vmatprep.mubr.bf16.mxu0 0
        %6213 = vmatmul.mubr.bf16.gmra.mrb[0].mxu0 %v6175
        %v6214 = vpop.f32.mrb[0].mxu0
        %v6215 = vadd.f32 %v1236, %v6214
        %v6216 = vpop.f32.mrb[0].mxu0
        %v6217 = vpop.f32.mrb[0].mxu0
        %v6218 = vadd.f32 %v1237, %v6217
        %v6219 = vpop.f32.mrb[0].mxu0
        %6220 = vdwg.mxu0
        %6221 = vrot.lane.b32.xlu0 %v1290, 112
        %v6222 = vpop.permute.xlu0 %6221
        %6223 = vrot.lane.b32.xlu0 %v1290, 80
        %v6224 = vpop.permute.xlu0 %6223
        %v6226 = vsel %vm1297, %v6222, 0
        %v6229 = vsel %vm1297, %v6224, 0
        %6231 = vmatprep.subr.bf16.mxu0 0
        %6232 = vmatpush1.bf16.xpose.msra.mxu0 %v6229
        %6233 = vmatprep.subr.bf16.mxu0 0
        %6234 = vmatpush1.bf16.xpose.msra.mxu0 0
        %6235 = vmatprep.subr.bf16.mxu0 0
        %6236 = vmatpush1.bf16.xpose.msra.mxu0 0
        %6237 = vmatprep.subr.bf16.mxu0 0
        %6238 = vmatpush1.bf16.xpose.msra.mxu0 0
        %6239 = vmatprep.subr.bf16.mxu0 0
        %6240 = vmatpush1.bf16.xpose.msra.mxu0 0
        %6241 = vmatprep.subr.bf16.mxu0 0
        %6242 = vmatpush1.bf16.xpose.msra.mxu0 0
        %6243 = vmatprep.subr.bf16.mxu0 0
        %6244 = vmatpush1.bf16.xpose.msra.mxu0 0
        %6245 = vmatprep.subr.bf16.mxu0 0
        %6246 = vmatpush1.bf16.xpose.msra.mxu0 0
        %6247 = vmatprep.subr.bf16.mxu0 0
        %6248 = vmatpush1.bf16.xpose.msra.mxu0 0
        %6249 = vmatprep.subr.bf16.mxu0 0
        %6250 = vmatpush1.bf16.xpose.msra.mxu0 0
        %6251 = vmatprep.subr.bf16.mxu0 0
        %6252 = vmatpush1.bf16.xpose.msra.mxu0 0
        %6253 = vmatprep.subr.bf16.mxu0 0
        %6254 = vmatpush1.bf16.xpose.msra.mxu0 0
        %6255 = vmatprep.subr.bf16.mxu0 0
        %6256 = vmatpush1.bf16.xpose.msra.mxu0 0
        %6257 = vmatprep.subr.bf16.mxu0 0
        %6258 = vmatpush1.bf16.xpose.msra.mxu0 0
        %6259 = vmatprep.subr.bf16.mxu0 0
        %6260 = vmatpush1.bf16.xpose.msra.mxu0 0
        %6261 = vmatprep.subr.bf16.mxu0 0
        %6262 = vmatpush1.bf16.xpose.msra.mxu0 0
        %6263 = vmatprep.mubr.bf16.mxu0 0
        %6264 = vmatmul.mubr.bf16.gmra.mrb[0].mxu0 %v6226
        %v6265 = vpop.f32.mrb[0].mxu0
        %v6266 = vadd.f32 %v1238, %v6265
        %v6267 = vpop.f32.mrb[0].mxu0
        %v6268 = vpop.f32.mrb[0].mxu0
        %v6269 = vadd.f32 %v1239, %v6268
        %v6270 = vpop.f32.mrb[0].mxu0
        %6271 = vdwg.mxu0
        %6272 = vrot.lane.b32.xlu0 %v1291, 112
        %v6273 = vpop.permute.xlu0 %6272
        %6274 = vrot.lane.b32.xlu0 %v1291, 80
        %v6275 = vpop.permute.xlu0 %6274
        %v6277 = vsel %vm1297, %v6273, 0
        %v6280 = vsel %vm1297, %v6275, 0
        %6282 = vmatprep.subr.bf16.mxu0 0
        %6283 = vmatpush1.bf16.xpose.msra.mxu0 %v6280
        %6284 = vmatprep.subr.bf16.mxu0 0
        %6285 = vmatpush1.bf16.xpose.msra.mxu0 0
        %6286 = vmatprep.subr.bf16.mxu0 0
        %6287 = vmatpush1.bf16.xpose.msra.mxu0 0
        %6288 = vmatprep.subr.bf16.mxu0 0
        %6289 = vmatpush1.bf16.xpose.msra.mxu0 0
        %6290 = vmatprep.subr.bf16.mxu0 0
        %6291 = vmatpush1.bf16.xpose.msra.mxu0 0
        %6292 = vmatprep.subr.bf16.mxu0 0
        %6293 = vmatpush1.bf16.xpose.msra.mxu0 0
        %6294 = vmatprep.subr.bf16.mxu0 0
        %6295 = vmatpush1.bf16.xpose.msra.mxu0 0
        %6296 = vmatprep.subr.bf16.mxu0 0
        %6297 = vmatpush1.bf16.xpose.msra.mxu0 0
        %6298 = vmatprep.subr.bf16.mxu0 0
        %6299 = vmatpush1.bf16.xpose.msra.mxu0 0
        %6300 = vmatprep.subr.bf16.mxu0 0
        %6301 = vmatpush1.bf16.xpose.msra.mxu0 0
        %6302 = vmatprep.subr.bf16.mxu0 0
        %6303 = vmatpush1.bf16.xpose.msra.mxu0 0
        %6304 = vmatprep.subr.bf16.mxu0 0
        %6305 = vmatpush1.bf16.xpose.msra.mxu0 0
        %6306 = vmatprep.subr.bf16.mxu0 0
        %6307 = vmatpush1.bf16.xpose.msra.mxu0 0
        %6308 = vmatprep.subr.bf16.mxu0 0
        %6309 = vmatpush1.bf16.xpose.msra.mxu0 0
        %6310 = vmatprep.subr.bf16.mxu0 0
        %6311 = vmatpush1.bf16.xpose.msra.mxu0 0
        %6312 = vmatprep.subr.bf16.mxu0 0
        %6313 = vmatpush1.bf16.xpose.msra.mxu0 0
        %6314 = vmatprep.mubr.bf16.mxu0 0
        %6315 = vmatmul.mubr.bf16.gmra.mrb[0].mxu0 %v6277
        %v6316 = vpop.f32.mrb[0].mxu0
        %v6317 = vadd.f32 %v1240, %v6316
        %v6318 = vpop.f32.mrb[0].mxu0
        %v6319 = vpop.f32.mrb[0].mxu0
        %v6320 = vadd.f32 %v1241, %v6319
        %v6321 = vpop.f32.mrb[0].mxu0
        %6322 = vdwg.mxu0
        %6323 = vrot.lane.b32.xlu0 %v1292, 112
        %v6324 = vpop.permute.xlu0 %6323
        %6325 = vrot.lane.b32.xlu0 %v1292, 80
        %v6326 = vpop.permute.xlu0 %6325
        %v6328 = vsel %vm1297, %v6324, 0
        %v6331 = vsel %vm1297, %v6326, 0
        %6333 = vmatprep.subr.bf16.mxu0 0
        %6334 = vmatpush1.bf16.xpose.msra.mxu0 %v6331
        %6335 = vmatprep.subr.bf16.mxu0 0
        %6336 = vmatpush1.bf16.xpose.msra.mxu0 0
        %6337 = vmatprep.subr.bf16.mxu0 0
        %6338 = vmatpush1.bf16.xpose.msra.mxu0 0
        %6339 = vmatprep.subr.bf16.mxu0 0
        %6340 = vmatpush1.bf16.xpose.msra.mxu0 0
        %6341 = vmatprep.subr.bf16.mxu0 0
        %6342 = vmatpush1.bf16.xpose.msra.mxu0 0
        %6343 = vmatprep.subr.bf16.mxu0 0
        %6344 = vmatpush1.bf16.xpose.msra.mxu0 0
        %6345 = vmatprep.subr.bf16.mxu0 0
        %6346 = vmatpush1.bf16.xpose.msra.mxu0 0
        %6347 = vmatprep.subr.bf16.mxu0 0
        %6348 = vmatpush1.bf16.xpose.msra.mxu0 0
        %6349 = vmatprep.subr.bf16.mxu0 0
        %6350 = vmatpush1.bf16.xpose.msra.mxu0 0
        %6351 = vmatprep.subr.bf16.mxu0 0
        %6352 = vmatpush1.bf16.xpose.msra.mxu0 0
        %6353 = vmatprep.subr.bf16.mxu0 0
        %6354 = vmatpush1.bf16.xpose.msra.mxu0 0
        %6355 = vmatprep.subr.bf16.mxu0 0
        %6356 = vmatpush1.bf16.xpose.msra.mxu0 0
        %6357 = vmatprep.subr.bf16.mxu0 0
        %6358 = vmatpush1.bf16.xpose.msra.mxu0 0
        %6359 = vmatprep.subr.bf16.mxu0 0
        %6360 = vmatpush1.bf16.xpose.msra.mxu0 0
        %6361 = vmatprep.subr.bf16.mxu0 0
        %6362 = vmatpush1.bf16.xpose.msra.mxu0 0
        %6363 = vmatprep.subr.bf16.mxu0 0
        %6364 = vmatpush1.bf16.xpose.msra.mxu0 0
        %6365 = vmatprep.mubr.bf16.mxu0 0
        %6366 = vmatmul.mubr.bf16.gmra.mrb[0].mxu0 %v6328
        %v6367 = vpop.f32.mrb[0].mxu0
        %v6368 = vadd.f32 %v1242, %v6367
        %v6369 = vpop.f32.mrb[0].mxu0
        %v6370 = vpop.f32.mrb[0].mxu0
        %v6371 = vadd.f32 %v1243, %v6370
        %v6372 = vpop.f32.mrb[0].mxu0
        %6373 = vdwg.mxu0
        %6374 = vrot.lane.b32.xlu0 %v1293, 112
        %v6375 = vpop.permute.xlu0 %6374
        %6376 = vrot.lane.b32.xlu0 %v1293, 80
        %v6377 = vpop.permute.xlu0 %6376
        %v6379 = vsel %vm1297, %v6375, 0
        %v6382 = vsel %vm1297, %v6377, 0
        %6384 = vmatprep.subr.bf16.mxu0 0
        %6385 = vmatpush1.bf16.xpose.msra.mxu0 %v6382
        %6386 = vmatprep.subr.bf16.mxu0 0
        %6387 = vmatpush1.bf16.xpose.msra.mxu0 0
        %6388 = vmatprep.subr.bf16.mxu0 0
        %6389 = vmatpush1.bf16.xpose.msra.mxu0 0
        %6390 = vmatprep.subr.bf16.mxu0 0
        %6391 = vmatpush1.bf16.xpose.msra.mxu0 0
        %6392 = vmatprep.subr.bf16.mxu0 0
        %6393 = vmatpush1.bf16.xpose.msra.mxu0 0
        %6394 = vmatprep.subr.bf16.mxu0 0
        %6395 = vmatpush1.bf16.xpose.msra.mxu0 0
        %6396 = vmatprep.subr.bf16.mxu0 0
        %6397 = vmatpush1.bf16.xpose.msra.mxu0 0
        %6398 = vmatprep.subr.bf16.mxu0 0
        %6399 = vmatpush1.bf16.xpose.msra.mxu0 0
        %6400 = vmatprep.subr.bf16.mxu0 0
        %6401 = vmatpush1.bf16.xpose.msra.mxu0 0
        %6402 = vmatprep.subr.bf16.mxu0 0
        %6403 = vmatpush1.bf16.xpose.msra.mxu0 0
        %6404 = vmatprep.subr.bf16.mxu0 0
        %6405 = vmatpush1.bf16.xpose.msra.mxu0 0
        %6406 = vmatprep.subr.bf16.mxu0 0
        %6407 = vmatpush1.bf16.xpose.msra.mxu0 0
        %6408 = vmatprep.subr.bf16.mxu0 0
        %6409 = vmatpush1.bf16.xpose.msra.mxu0 0
        %6410 = vmatprep.subr.bf16.mxu0 0
        %6411 = vmatpush1.bf16.xpose.msra.mxu0 0
        %6412 = vmatprep.subr.bf16.mxu0 0
        %6413 = vmatpush1.bf16.xpose.msra.mxu0 0
        %6414 = vmatprep.subr.bf16.mxu0 0
        %6415 = vmatpush1.bf16.xpose.msra.mxu0 0
        %6416 = vmatprep.mubr.bf16.mxu0 0
        %6417 = vmatmul.mubr.bf16.gmra.mrb[0].mxu0 %v6379
        %v6418 = vpop.f32.mrb[0].mxu0
        %v6419 = vadd.f32 %v1244, %v6418
        %v6420 = vpop.f32.mrb[0].mxu0
        %v6421 = vpop.f32.mrb[0].mxu0
        %v6422 = vadd.f32 %v1245, %v6421
        %v6423 = vpop.f32.mrb[0].mxu0
        %6424 = vdwg.mxu0
        %v6425 = vsel %vm2095, %v5654, -inf
        %6426 = vmax.xlane.f32.xlu0 %v6425
        %v6427 = vpop.xlane.xlu0 %6426
        %v6428 = vsel %vm2095, %v5657, -inf
        %6429 = vmax.xlane.f32.xlu0 %v6428
        %v6430 = vpop.xlane.xlu0 %6429
        %v6431 = vsel %vm2095, %v5705, -inf
        %6432 = vmax.xlane.f32.xlu0 %v6431
        %v6433 = vpop.xlane.xlu0 %6432
        %v6434 = vsel %vm2095, %v5708, -inf
        %6435 = vmax.xlane.f32.xlu0 %v6434
        %v6436 = vpop.xlane.xlu0 %6435
        %v6437 = vsel %vm2095, %v5756, -inf
        %6438 = vmax.xlane.f32.xlu0 %v6437
        %v6439 = vpop.xlane.xlu0 %6438
        %v6440 = vsel %vm2095, %v5759, -inf
        %6441 = vmax.xlane.f32.xlu0 %v6440
        %v6442 = vpop.xlane.xlu0 %6441
        %v6443 = vsel %vm2095, %v5807, -inf
        %6444 = vmax.xlane.f32.xlu0 %v6443
        %v6445 = vpop.xlane.xlu0 %6444
        %v6446 = vsel %vm2095, %v5810, -inf
        %6447 = vmax.xlane.f32.xlu0 %v6446
        %v6448 = vpop.xlane.xlu0 %6447
        %v6449 = vsel %vm2095, %v5858, -inf
        %6450 = vmax.xlane.f32.xlu0 %v6449
        %v6451 = vpop.xlane.xlu0 %6450
        %v6452 = vsel %vm2095, %v5861, -inf
        %6453 = vmax.xlane.f32.xlu0 %v6452
        %v6454 = vpop.xlane.xlu0 %6453
        %v6455 = vsel %vm2095, %v5909, -inf
        %6456 = vmax.xlane.f32.xlu0 %v6455
        %v6457 = vpop.xlane.xlu0 %6456
        %v6458 = vsel %vm2095, %v5912, -inf
        %6459 = vmax.xlane.f32.xlu0 %v6458
        %v6460 = vpop.xlane.xlu0 %6459
        %v6461 = vsel %vm2095, %v5960, -inf
        %6462 = vmax.xlane.f32.xlu0 %v6461
        %v6463 = vpop.xlane.xlu0 %6462
        %v6464 = vsel %vm2095, %v5963, -inf
        %6465 = vmax.xlane.f32.xlu0 %v6464
        %v6466 = vpop.xlane.xlu0 %6465
        %v6467 = vsel %vm2095, %v6011, -inf
        %6468 = vmax.xlane.f32.xlu0 %v6467
        %v6469 = vpop.xlane.xlu0 %6468
        %v6470 = vsel %vm2095, %v6014, -inf
        %6471 = vmax.xlane.f32.xlu0 %v6470
        %v6472 = vpop.xlane.xlu0 %6471
        %v6473 = vsel %vm2095, %v6062, -inf
        %6474 = vmax.xlane.f32.xlu0 %v6473
        %v6475 = vpop.xlane.xlu0 %6474
        %v6476 = vsel %vm2095, %v6065, -inf
        %6477 = vmax.xlane.f32.xlu0 %v6476
        %v6478 = vpop.xlane.xlu0 %6477
        %v6479 = vsel %vm2095, %v6113, -inf
        %6480 = vmax.xlane.f32.xlu0 %v6479
        %v6481 = vpop.xlane.xlu0 %6480
        %v6482 = vsel %vm2095, %v6116, -inf
        %6483 = vmax.xlane.f32.xlu0 %v6482
        %v6484 = vpop.xlane.xlu0 %6483
        %v6485 = vsel %vm2095, %v6164, -inf
        %6486 = vmax.xlane.f32.xlu0 %v6485
        %v6487 = vpop.xlane.xlu0 %6486
        %v6488 = vsel %vm2095, %v6167, -inf
        %6489 = vmax.xlane.f32.xlu0 %v6488
        %v6490 = vpop.xlane.xlu0 %6489
        %v6491 = vsel %vm2095, %v6215, -inf
        %6492 = vmax.xlane.f32.xlu0 %v6491
        %v6493 = vpop.xlane.xlu0 %6492
        %v6494 = vsel %vm2095, %v6218, -inf
        %6495 = vmax.xlane.f32.xlu0 %v6494
        %v6496 = vpop.xlane.xlu0 %6495
        %v6497 = vsel %vm2095, %v6266, -inf
        %6498 = vmax.xlane.f32.xlu0 %v6497
        %v6499 = vpop.xlane.xlu0 %6498
        %v6500 = vsel %vm2095, %v6269, -inf
        %6501 = vmax.xlane.f32.xlu0 %v6500
        %v6502 = vpop.xlane.xlu0 %6501
        %v6503 = vsel %vm2095, %v6317, -inf
        %6504 = vmax.xlane.f32.xlu0 %v6503
        %v6505 = vpop.xlane.xlu0 %6504
        %v6506 = vsel %vm2095, %v6320, -inf
        %6507 = vmax.xlane.f32.xlu0 %v6506
        %v6508 = vpop.xlane.xlu0 %6507
        %v6509 = vsel %vm2095, %v6368, -inf
        %6510 = vmax.xlane.f32.xlu0 %v6509
        %v6511 = vpop.xlane.xlu0 %6510
        %v6512 = vsel %vm2095, %v6371, -inf
        %6513 = vmax.xlane.f32.xlu0 %v6512
        %v6514 = vpop.xlane.xlu0 %6513
        %v6515 = vsel %vm2095, %v6419, -inf
        %6516 = vmax.xlane.f32.xlu0 %v6515
        %v6517 = vpop.xlane.xlu0 %6516
        %v6518 = vsel %vm2095, %v6422, -inf
        %6519 = vmax.xlane.f32.xlu0 %v6518
        %v6520 = vpop.xlane.xlu0 %6519
        %v6521 = vsub.f32 %v5654, %v6427
        %v6522 = vsub.f32 %v5657, %v6430
        %v6523 = vsub.f32 %v5705, %v6433
        %v6524 = vsub.f32 %v5708, %v6436
        %v6525 = vsub.f32 %v5756, %v6439
        %v6526 = vsub.f32 %v5759, %v6442
        %v6527 = vsub.f32 %v5807, %v6445
        %v6528 = vsub.f32 %v5810, %v6448
        %v6529 = vsub.f32 %v5858, %v6451
        %v6530 = vsub.f32 %v5861, %v6454
        %v6531 = vsub.f32 %v5909, %v6457
        %v6532 = vsub.f32 %v5912, %v6460
        %v6533 = vsub.f32 %v5960, %v6463
        %v6534 = vsub.f32 %v5963, %v6466
        %v6535 = vsub.f32 %v6011, %v6469
        %v6536 = vsub.f32 %v6014, %v6472
        %v6537 = vsub.f32 %v6062, %v6475
        %v6538 = vsub.f32 %v6065, %v6478
        %v6539 = vsub.f32 %v6113, %v6481
        %v6540 = vsub.f32 %v6116, %v6484
        %v6541 = vsub.f32 %v6164, %v6487
        %v6542 = vsub.f32 %v6167, %v6490
        %v6543 = vsub.f32 %v6215, %v6493
        %v6544 = vsub.f32 %v6218, %v6496
        %v6545 = vsub.f32 %v6266, %v6499
        %v6546 = vsub.f32 %v6269, %v6502
        %v6547 = vsub.f32 %v6317, %v6505
        %v6548 = vsub.f32 %v6320, %v6508
        %v6549 = vsub.f32 %v6368, %v6511
        %v6550 = vsub.f32 %v6371, %v6514
        %v6551 = vsub.f32 %v6419, %v6517
        %v6552 = vsub.f32 %v6422, %v6520
        %v6553 = vmul.f32 %v6521, 1.442695
        %v6554 = vpow.pop %v6553
        %v6555 = vmul.f32 %v6522, 1.442695
        %v6556 = vpow.pop %v6555
        %v6557 = vmul.f32 %v6523, 1.442695
        %v6558 = vpow.pop %v6557
        %v6559 = vmul.f32 %v6524, 1.442695
        %v6560 = vpow.pop %v6559
        %v6561 = vmul.f32 %v6525, 1.442695
        %v6562 = vpow.pop %v6561
        %v6563 = vmul.f32 %v6526, 1.442695
        %v6564 = vpow.pop %v6563
        %v6565 = vmul.f32 %v6527, 1.442695
        %v6566 = vpow.pop %v6565
        %v6567 = vmul.f32 %v6528, 1.442695
        %v6568 = vpow.pop %v6567
        %v6569 = vmul.f32 %v6529, 1.442695
        %v6570 = vpow.pop %v6569
        %v6571 = vmul.f32 %v6530, 1.442695
        %v6572 = vpow.pop %v6571
        %v6573 = vmul.f32 %v6531, 1.442695
        %v6574 = vpow.pop %v6573
        %v6575 = vmul.f32 %v6532, 1.442695
        %v6576 = vpow.pop %v6575
        %v6577 = vmul.f32 %v6533, 1.442695
        %v6578 = vpow.pop %v6577
        %v6579 = vmul.f32 %v6534, 1.442695
        %v6580 = vpow.pop %v6579
        %v6581 = vmul.f32 %v6535, 1.442695
        %v6582 = vpow.pop %v6581
        %v6583 = vmul.f32 %v6536, 1.442695
        %v6584 = vpow.pop %v6583
        %v6585 = vmul.f32 %v6537, 1.442695
        %v6586 = vpow.pop %v6585
        %v6587 = vmul.f32 %v6538, 1.442695
        %v6588 = vpow.pop %v6587
        %v6589 = vmul.f32 %v6539, 1.442695
        %v6590 = vpow.pop %v6589
        %v6591 = vmul.f32 %v6540, 1.442695
        %v6592 = vpow.pop %v6591
        %v6593 = vmul.f32 %v6541, 1.442695
        %v6594 = vpow.pop %v6593
        %v6595 = vmul.f32 %v6542, 1.442695
        %v6596 = vpow.pop %v6595
        %v6597 = vmul.f32 %v6543, 1.442695
        %v6598 = vpow.pop %v6597
        %v6599 = vmul.f32 %v6544, 1.442695
        %v6600 = vpow.pop %v6599
        %v6601 = vmul.f32 %v6545, 1.442695
        %v6602 = vpow.pop %v6601
        %v6603 = vmul.f32 %v6546, 1.442695
        %v6604 = vpow.pop %v6603
        %v6605 = vmul.f32 %v6547, 1.442695
        %v6606 = vpow.pop %v6605
        %v6607 = vmul.f32 %v6548, 1.442695
        %v6608 = vpow.pop %v6607
        %v6609 = vmul.f32 %v6549, 1.442695
        %v6610 = vpow.pop %v6609
        %v6611 = vmul.f32 %v6550, 1.442695
        %v6612 = vpow.pop %v6611
        %v6613 = vmul.f32 %v6551, 1.442695
        %v6614 = vpow.pop %v6613
        %v6615 = vmul.f32 %v6552, 1.442695
        %v6616 = vpow.pop %v6615
        %v6617 = vsel %vm2095, %v6554, 0.0
        %6618 = vadd.xlane.f32.xlu0 %v6617
        %v6619 = vpop.xlane.xlu0 %6618
        %v6620 = vsel %vm2095, %v6556, 0.0
        %6621 = vadd.xlane.f32.xlu0 %v6620
        %v6622 = vpop.xlane.xlu0 %6621
        %v6623 = vsel %vm2095, %v6558, 0.0
        %6624 = vadd.xlane.f32.xlu0 %v6623
        %v6625 = vpop.xlane.xlu0 %6624
        %v6626 = vsel %vm2095, %v6560, 0.0
        %6627 = vadd.xlane.f32.xlu0 %v6626
        %v6628 = vpop.xlane.xlu0 %6627
        %v6629 = vsel %vm2095, %v6562, 0.0
        %6630 = vadd.xlane.f32.xlu0 %v6629
        %v6631 = vpop.xlane.xlu0 %6630
        %v6632 = vsel %vm2095, %v6564, 0.0
        %6633 = vadd.xlane.f32.xlu0 %v6632
        %v6634 = vpop.xlane.xlu0 %6633
        %v6635 = vsel %vm2095, %v6566, 0.0
        %6636 = vadd.xlane.f32.xlu0 %v6635
        %v6637 = vpop.xlane.xlu0 %6636
        %v6638 = vsel %vm2095, %v6568, 0.0
        %6639 = vadd.xlane.f32.xlu0 %v6638
        %v6640 = vpop.xlane.xlu0 %6639
        %v6641 = vsel %vm2095, %v6570, 0.0
        %6642 = vadd.xlane.f32.xlu0 %v6641
        %v6643 = vpop.xlane.xlu0 %6642
        %v6644 = vsel %vm2095, %v6572, 0.0
        %6645 = vadd.xlane.f32.xlu0 %v6644
        %v6646 = vpop.xlane.xlu0 %6645
        %v6647 = vsel %vm2095, %v6574, 0.0
        %6648 = vadd.xlane.f32.xlu0 %v6647
        %v6649 = vpop.xlane.xlu0 %6648
        %v6650 = vsel %vm2095, %v6576, 0.0
        %6651 = vadd.xlane.f32.xlu0 %v6650
        %v6652 = vpop.xlane.xlu0 %6651
        %v6653 = vsel %vm2095, %v6578, 0.0
        %6654 = vadd.xlane.f32.xlu0 %v6653
        %v6655 = vpop.xlane.xlu0 %6654
        %v6656 = vsel %vm2095, %v6580, 0.0
        %6657 = vadd.xlane.f32.xlu0 %v6656
        %v6658 = vpop.xlane.xlu0 %6657
        %v6659 = vsel %vm2095, %v6582, 0.0
        %6660 = vadd.xlane.f32.xlu0 %v6659
        %v6661 = vpop.xlane.xlu0 %6660
        %v6662 = vsel %vm2095, %v6584, 0.0
        %6663 = vadd.xlane.f32.xlu0 %v6662
        %v6664 = vpop.xlane.xlu0 %6663
        %v6665 = vsel %vm2095, %v6586, 0.0
        %6666 = vadd.xlane.f32.xlu0 %v6665
        %v6667 = vpop.xlane.xlu0 %6666
        %v6668 = vsel %vm2095, %v6588, 0.0
        %6669 = vadd.xlane.f32.xlu0 %v6668
        %v6670 = vpop.xlane.xlu0 %6669
        %v6671 = vsel %vm2095, %v6590, 0.0
        %6672 = vadd.xlane.f32.xlu0 %v6671
        %v6673 = vpop.xlane.xlu0 %6672
        %v6674 = vsel %vm2095, %v6592, 0.0
        %6675 = vadd.xlane.f32.xlu0 %v6674
        %v6676 = vpop.xlane.xlu0 %6675
        %v6677 = vsel %vm2095, %v6594, 0.0
        %6678 = vadd.xlane.f32.xlu0 %v6677
        %v6679 = vpop.xlane.xlu0 %6678
        %v6680 = vsel %vm2095, %v6596, 0.0
        %6681 = vadd.xlane.f32.xlu0 %v6680
        %v6682 = vpop.xlane.xlu0 %6681
        %v6683 = vsel %vm2095, %v6598, 0.0
        %6684 = vadd.xlane.f32.xlu0 %v6683
        %v6685 = vpop.xlane.xlu0 %6684
        %v6686 = vsel %vm2095, %v6600, 0.0
        %6687 = vadd.xlane.f32.xlu0 %v6686
        %v6688 = vpop.xlane.xlu0 %6687
        %v6689 = vsel %vm2095, %v6602, 0.0
        %6690 = vadd.xlane.f32.xlu0 %v6689
        %v6691 = vpop.xlane.xlu0 %6690
        %v6692 = vsel %vm2095, %v6604, 0.0
        %6693 = vadd.xlane.f32.xlu0 %v6692
        %v6694 = vpop.xlane.xlu0 %6693
        %v6695 = vsel %vm2095, %v6606, 0.0
        %6696 = vadd.xlane.f32.xlu0 %v6695
        %v6697 = vpop.xlane.xlu0 %6696
        %v6698 = vsel %vm2095, %v6608, 0.0
        %6699 = vadd.xlane.f32.xlu0 %v6698
        %v6700 = vpop.xlane.xlu0 %6699
        %v6701 = vsel %vm2095, %v6610, 0.0
        %6702 = vadd.xlane.f32.xlu0 %v6701
        %v6703 = vpop.xlane.xlu0 %6702
        %v6704 = vsel %vm2095, %v6612, 0.0
        %6705 = vadd.xlane.f32.xlu0 %v6704
        %v6706 = vpop.xlane.xlu0 %6705
        %v6707 = vsel %vm2095, %v6614, 0.0
        %6708 = vadd.xlane.f32.xlu0 %v6707
        %v6709 = vpop.xlane.xlu0 %6708
        %v6710 = vsel %vm2095, %v6616, 0.0
        %6711 = vadd.xlane.f32.xlu0 %v6710
        %v6712 = vpop.xlane.xlu0 %6711
        %v6713 = vrcp.pop %v6619
        %v6714 = vrcp.pop %v6622
        %v6715 = vrcp.pop %v6625
        %v6716 = vrcp.pop %v6628
        %v6717 = vrcp.pop %v6631
        %v6718 = vrcp.pop %v6634
        %v6719 = vrcp.pop %v6637
        %v6720 = vrcp.pop %v6640
        %v6721 = vrcp.pop %v6643
        %v6722 = vrcp.pop %v6646
        %v6723 = vrcp.pop %v6649
        %v6724 = vrcp.pop %v6652
        %v6725 = vrcp.pop %v6655
        %v6726 = vrcp.pop %v6658
        %v6727 = vrcp.pop %v6661
        %v6728 = vrcp.pop %v6664
        %v6729 = vrcp.pop %v6667
        %v6730 = vrcp.pop %v6670
        %v6731 = vrcp.pop %v6673
        %v6732 = vrcp.pop %v6676
        %v6733 = vrcp.pop %v6679
        %v6734 = vrcp.pop %v6682
        %v6735 = vrcp.pop %v6685
        %v6736 = vrcp.pop %v6688
        %v6737 = vrcp.pop %v6691
        %v6738 = vrcp.pop %v6694
        %v6739 = vrcp.pop %v6697
        %v6740 = vrcp.pop %v6700
        %v6741 = vrcp.pop %v6703
        %v6742 = vrcp.pop %v6706
        %v6743 = vrcp.pop %v6709
        %v6744 = vrcp.pop %v6712
        %v6745 = vmul.f32 %v6554, %v6713
        %v6746 = vmul.f32 %v6556, %v6714
        %v6747 = vmul.f32 %v6558, %v6715
        %v6748 = vmul.f32 %v6560, %v6716
        %v6749 = vmul.f32 %v6562, %v6717
        %v6750 = vmul.f32 %v6564, %v6718
        %v6751 = vmul.f32 %v6566, %v6719
        %v6752 = vmul.f32 %v6568, %v6720
        %v6753 = vmul.f32 %v6570, %v6721
        %v6754 = vmul.f32 %v6572, %v6722
        %v6755 = vmul.f32 %v6574, %v6723
        %v6756 = vmul.f32 %v6576, %v6724
        %v6757 = vmul.f32 %v6578, %v6725
        %v6758 = vmul.f32 %v6580, %v6726
        %v6759 = vmul.f32 %v6582, %v6727
        %v6760 = vmul.f32 %v6584, %v6728
        %v6761 = vmul.f32 %v6586, %v6729
        %v6762 = vmul.f32 %v6588, %v6730
        %v6763 = vmul.f32 %v6590, %v6731
        %v6764 = vmul.f32 %v6592, %v6732
        %v6765 = vmul.f32 %v6594, %v6733
        %v6766 = vmul.f32 %v6596, %v6734
        %v6767 = vmul.f32 %v6598, %v6735
        %v6768 = vmul.f32 %v6600, %v6736
        %v6769 = vmul.f32 %v6602, %v6737
        %v6770 = vmul.f32 %v6604, %v6738
        %v6771 = vmul.f32 %v6606, %v6739
        %v6772 = vmul.f32 %v6608, %v6740
        %v6773 = vmul.f32 %v6610, %v6741
        %v6774 = vmul.f32 %v6612, %v6742
        %v6775 = vmul.f32 %v6614, %v6743
        %v6776 = vmul.f32 %v6616, %v6744
        %v6777 = vpack.c.bf16 %v6746, %v6745
        %v6778 = vpack.c.bf16 %v6748, %v6747
        %v6779 = vpack.c.bf16 %v6750, %v6749
        %v6780 = vpack.c.bf16 %v6752, %v6751
        %v6781 = vpack.c.bf16 %v6754, %v6753
        %v6782 = vpack.c.bf16 %v6756, %v6755
        %v6783 = vpack.c.bf16 %v6758, %v6757
        %v6784 = vpack.c.bf16 %v6760, %v6759
        %v6785 = vpack.c.bf16 %v6762, %v6761
        %v6786 = vpack.c.bf16 %v6764, %v6763
        %v6787 = vpack.c.bf16 %v6766, %v6765
        %v6788 = vpack.c.bf16 %v6768, %v6767
        %v6789 = vpack.c.bf16 %v6770, %v6769
        %v6790 = vpack.c.bf16 %v6772, %v6771
        %v6791 = vpack.c.bf16 %v6774, %v6773
        %v6792 = vpack.c.bf16 %v6776, %v6775
        %6793 = vrot.lane.b32.xlu0 %v1278, 48
        %v6794 = vpop.permute.xlu0 %6793
        %v6797 = vsel %vm2095, %v6777, 0
        %6799 = vmatprep.subr.bf16.mxu0 0
        %6800 = vmatpush1.bf16.msra.mxu0 %v6794
        %6801 = vmatprep.subr.bf16.mxu0 0
        %6802 = vmatpush1.bf16.msra.mxu0 0
        %6803 = vmatprep.subr.bf16.mxu0 0
        %6804 = vmatpush1.bf16.msra.mxu0 0
        %6805 = vmatprep.subr.bf16.mxu0 0
        %6806 = vmatpush1.bf16.msra.mxu0 0
        %6807 = vmatprep.subr.bf16.mxu0 0
        %6808 = vmatpush1.bf16.msra.mxu0 0
        %6809 = vmatprep.subr.bf16.mxu0 0
        %6810 = vmatpush1.bf16.msra.mxu0 0
        %6811 = vmatprep.subr.bf16.mxu0 0
        %6812 = vmatpush1.bf16.msra.mxu0 0
        %6813 = vmatprep.subr.bf16.mxu0 0
        %6814 = vmatpush1.bf16.msra.mxu0 0
        %6815 = vmatprep.subr.bf16.mxu0 0
        %6816 = vmatpush1.bf16.msra.mxu0 0
        %6817 = vmatprep.subr.bf16.mxu0 0
        %6818 = vmatpush1.bf16.msra.mxu0 0
        %6819 = vmatprep.subr.bf16.mxu0 0
        %6820 = vmatpush1.bf16.msra.mxu0 0
        %6821 = vmatprep.subr.bf16.mxu0 0
        %6822 = vmatpush1.bf16.msra.mxu0 0
        %6823 = vmatprep.subr.bf16.mxu0 0
        %6824 = vmatpush1.bf16.msra.mxu0 0
        %6825 = vmatprep.subr.bf16.mxu0 0
        %6826 = vmatpush1.bf16.msra.mxu0 0
        %6827 = vmatprep.subr.bf16.mxu0 0
        %6828 = vmatpush1.bf16.msra.mxu0 0
        %6829 = vmatprep.subr.bf16.mxu0 0
        %6830 = vmatpush1.bf16.msra.mxu0 0
        %6831 = vmatprep.mubr.bf16.mxu0 0
        %6832 = vmatmul.mubr.bf16.gmra.mrb[0].mxu0 %v6797
        %v6833 = vpop.f32.mrb[0].mxu0
        %v6834 = vadd.f32 0.0, %v6833
        %v6835 = vpop.f32.mrb[0].mxu0
        %v6836 = vpop.f32.mrb[0].mxu0
        %v6837 = vadd.f32 0.0, %v6836
        %v6838 = vpop.f32.mrb[0].mxu0
        %6839 = vdwg.mxu0
        %6840 = vrot.lane.b32.xlu0 %v1279, 48
        %v6841 = vpop.permute.xlu0 %6840
        %v6844 = vsel %vm2095, %v6778, 0
        %6846 = vmatprep.subr.bf16.mxu0 0
        %6847 = vmatpush1.bf16.msra.mxu0 %v6841
        %6848 = vmatprep.subr.bf16.mxu0 0
        %6849 = vmatpush1.bf16.msra.mxu0 0
        %6850 = vmatprep.subr.bf16.mxu0 0
        %6851 = vmatpush1.bf16.msra.mxu0 0
        %6852 = vmatprep.subr.bf16.mxu0 0
        %6853 = vmatpush1.bf16.msra.mxu0 0
        %6854 = vmatprep.subr.bf16.mxu0 0
        %6855 = vmatpush1.bf16.msra.mxu0 0
        %6856 = vmatprep.subr.bf16.mxu0 0
        %6857 = vmatpush1.bf16.msra.mxu0 0
        %6858 = vmatprep.subr.bf16.mxu0 0
        %6859 = vmatpush1.bf16.msra.mxu0 0
        %6860 = vmatprep.subr.bf16.mxu0 0
        %6861 = vmatpush1.bf16.msra.mxu0 0
        %6862 = vmatprep.subr.bf16.mxu0 0
        %6863 = vmatpush1.bf16.msra.mxu0 0
        %6864 = vmatprep.subr.bf16.mxu0 0
        %6865 = vmatpush1.bf16.msra.mxu0 0
        %6866 = vmatprep.subr.bf16.mxu0 0
        %6867 = vmatpush1.bf16.msra.mxu0 0
        %6868 = vmatprep.subr.bf16.mxu0 0
        %6869 = vmatpush1.bf16.msra.mxu0 0
        %6870 = vmatprep.subr.bf16.mxu0 0
        %6871 = vmatpush1.bf16.msra.mxu0 0
        %6872 = vmatprep.subr.bf16.mxu0 0
        %6873 = vmatpush1.bf16.msra.mxu0 0
        %6874 = vmatprep.subr.bf16.mxu0 0
        %6875 = vmatpush1.bf16.msra.mxu0 0
        %6876 = vmatprep.subr.bf16.mxu0 0
        %6877 = vmatpush1.bf16.msra.mxu0 0
        %6878 = vmatprep.mubr.bf16.mxu0 0
        %6879 = vmatmul.mubr.bf16.gmra.mrb[0].mxu0 %v6844
        %v6880 = vpop.f32.mrb[0].mxu0
        %v6881 = vadd.f32 0.0, %v6880
        %v6882 = vpop.f32.mrb[0].mxu0
        %v6883 = vpop.f32.mrb[0].mxu0
        %v6884 = vadd.f32 0.0, %v6883
        %v6885 = vpop.f32.mrb[0].mxu0
        %6886 = vdwg.mxu0
        %6887 = vrot.lane.b32.xlu0 %v1280, 48
        %v6888 = vpop.permute.xlu0 %6887
        %v6891 = vsel %vm2095, %v6779, 0
        %6893 = vmatprep.subr.bf16.mxu0 0
        %6894 = vmatpush1.bf16.msra.mxu0 %v6888
        %6895 = vmatprep.subr.bf16.mxu0 0
        %6896 = vmatpush1.bf16.msra.mxu0 0
        %6897 = vmatprep.subr.bf16.mxu0 0
        %6898 = vmatpush1.bf16.msra.mxu0 0
        %6899 = vmatprep.subr.bf16.mxu0 0
        %6900 = vmatpush1.bf16.msra.mxu0 0
        %6901 = vmatprep.subr.bf16.mxu0 0
        %6902 = vmatpush1.bf16.msra.mxu0 0
        %6903 = vmatprep.subr.bf16.mxu0 0
        %6904 = vmatpush1.bf16.msra.mxu0 0
        %6905 = vmatprep.subr.bf16.mxu0 0
        %6906 = vmatpush1.bf16.msra.mxu0 0
        %6907 = vmatprep.subr.bf16.mxu0 0
        %6908 = vmatpush1.bf16.msra.mxu0 0
        %6909 = vmatprep.subr.bf16.mxu0 0
        %6910 = vmatpush1.bf16.msra.mxu0 0
        %6911 = vmatprep.subr.bf16.mxu0 0
        %6912 = vmatpush1.bf16.msra.mxu0 0
        %6913 = vmatprep.subr.bf16.mxu0 0
        %6914 = vmatpush1.bf16.msra.mxu0 0
        %6915 = vmatprep.subr.bf16.mxu0 0
        %6916 = vmatpush1.bf16.msra.mxu0 0
        %6917 = vmatprep.subr.bf16.mxu0 0
        %6918 = vmatpush1.bf16.msra.mxu0 0
        %6919 = vmatprep.subr.bf16.mxu0 0
        %6920 = vmatpush1.bf16.msra.mxu0 0
        %6921 = vmatprep.subr.bf16.mxu0 0
        %6922 = vmatpush1.bf16.msra.mxu0 0
        %6923 = vmatprep.subr.bf16.mxu0 0
        %6924 = vmatpush1.bf16.msra.mxu0 0
        %6925 = vmatprep.mubr.bf16.mxu0 0
        %6926 = vmatmul.mubr.bf16.gmra.mrb[0].mxu0 %v6891
        %v6927 = vpop.f32.mrb[0].mxu0
        %v6928 = vadd.f32 0.0, %v6927
        %v6929 = vpop.f32.mrb[0].mxu0
        %v6930 = vpop.f32.mrb[0].mxu0
        %v6931 = vadd.f32 0.0, %v6930
        %v6932 = vpop.f32.mrb[0].mxu0
        %6933 = vdwg.mxu0
        %6934 = vrot.lane.b32.xlu0 %v1281, 48
        %v6935 = vpop.permute.xlu0 %6934
        %v6938 = vsel %vm2095, %v6780, 0
        %6940 = vmatprep.subr.bf16.mxu0 0
        %6941 = vmatpush1.bf16.msra.mxu0 %v6935
        %6942 = vmatprep.subr.bf16.mxu0 0
        %6943 = vmatpush1.bf16.msra.mxu0 0
        %6944 = vmatprep.subr.bf16.mxu0 0
        %6945 = vmatpush1.bf16.msra.mxu0 0
        %6946 = vmatprep.subr.bf16.mxu0 0
        %6947 = vmatpush1.bf16.msra.mxu0 0
        %6948 = vmatprep.subr.bf16.mxu0 0
        %6949 = vmatpush1.bf16.msra.mxu0 0
        %6950 = vmatprep.subr.bf16.mxu0 0
        %6951 = vmatpush1.bf16.msra.mxu0 0
        %6952 = vmatprep.subr.bf16.mxu0 0
        %6953 = vmatpush1.bf16.msra.mxu0 0
        %6954 = vmatprep.subr.bf16.mxu0 0
        %6955 = vmatpush1.bf16.msra.mxu0 0
        %6956 = vmatprep.subr.bf16.mxu0 0
        %6957 = vmatpush1.bf16.msra.mxu0 0
        %6958 = vmatprep.subr.bf16.mxu0 0
        %6959 = vmatpush1.bf16.msra.mxu0 0
        %6960 = vmatprep.subr.bf16.mxu0 0
        %6961 = vmatpush1.bf16.msra.mxu0 0
        %6962 = vmatprep.subr.bf16.mxu0 0
        %6963 = vmatpush1.bf16.msra.mxu0 0
        %6964 = vmatprep.subr.bf16.mxu0 0
        %6965 = vmatpush1.bf16.msra.mxu0 0
        %6966 = vmatprep.subr.bf16.mxu0 0
        %6967 = vmatpush1.bf16.msra.mxu0 0
        %6968 = vmatprep.subr.bf16.mxu0 0
        %6969 = vmatpush1.bf16.msra.mxu0 0
        %6970 = vmatprep.subr.bf16.mxu0 0
        %6971 = vmatpush1.bf16.msra.mxu0 0
        %6972 = vmatprep.mubr.bf16.mxu0 0
        %6973 = vmatmul.mubr.bf16.gmra.mrb[0].mxu0 %v6938
        %v6974 = vpop.f32.mrb[0].mxu0
        %v6975 = vadd.f32 0.0, %v6974
        %v6976 = vpop.f32.mrb[0].mxu0
        %v6977 = vpop.f32.mrb[0].mxu0
        %v6978 = vadd.f32 0.0, %v6977
        %v6979 = vpop.f32.mrb[0].mxu0
        %6980 = vdwg.mxu0
        %6981 = vrot.lane.b32.xlu0 %v1282, 48
        %v6982 = vpop.permute.xlu0 %6981
        %v6985 = vsel %vm2095, %v6781, 0
        %6987 = vmatprep.subr.bf16.mxu0 0
        %6988 = vmatpush1.bf16.msra.mxu0 %v6982
        %6989 = vmatprep.subr.bf16.mxu0 0
        %6990 = vmatpush1.bf16.msra.mxu0 0
        %6991 = vmatprep.subr.bf16.mxu0 0
        %6992 = vmatpush1.bf16.msra.mxu0 0
        %6993 = vmatprep.subr.bf16.mxu0 0
        %6994 = vmatpush1.bf16.msra.mxu0 0
        %6995 = vmatprep.subr.bf16.mxu0 0
        %6996 = vmatpush1.bf16.msra.mxu0 0
        %6997 = vmatprep.subr.bf16.mxu0 0
        %6998 = vmatpush1.bf16.msra.mxu0 0
        %6999 = vmatprep.subr.bf16.mxu0 0
        %7000 = vmatpush1.bf16.msra.mxu0 0
        %7001 = vmatprep.subr.bf16.mxu0 0
        %7002 = vmatpush1.bf16.msra.mxu0 0
        %7003 = vmatprep.subr.bf16.mxu0 0
        %7004 = vmatpush1.bf16.msra.mxu0 0
        %7005 = vmatprep.subr.bf16.mxu0 0
        %7006 = vmatpush1.bf16.msra.mxu0 0
        %7007 = vmatprep.subr.bf16.mxu0 0
        %7008 = vmatpush1.bf16.msra.mxu0 0
        %7009 = vmatprep.subr.bf16.mxu0 0
        %7010 = vmatpush1.bf16.msra.mxu0 0
        %7011 = vmatprep.subr.bf16.mxu0 0
        %7012 = vmatpush1.bf16.msra.mxu0 0
        %7013 = vmatprep.subr.bf16.mxu0 0
        %7014 = vmatpush1.bf16.msra.mxu0 0
        %7015 = vmatprep.subr.bf16.mxu0 0
        %7016 = vmatpush1.bf16.msra.mxu0 0
        %7017 = vmatprep.subr.bf16.mxu0 0
        %7018 = vmatpush1.bf16.msra.mxu0 0
        %7019 = vmatprep.mubr.bf16.mxu0 0
        %7020 = vmatmul.mubr.bf16.gmra.mrb[0].mxu0 %v6985
        %v7021 = vpop.f32.mrb[0].mxu0
        %v7022 = vadd.f32 0.0, %v7021
        %v7023 = vpop.f32.mrb[0].mxu0
        %v7024 = vpop.f32.mrb[0].mxu0
        %v7025 = vadd.f32 0.0, %v7024
        %v7026 = vpop.f32.mrb[0].mxu0
        %7027 = vdwg.mxu0
        %7028 = vrot.lane.b32.xlu0 %v1283, 48
        %v7029 = vpop.permute.xlu0 %7028
        %v7032 = vsel %vm2095, %v6782, 0
        %7034 = vmatprep.subr.bf16.mxu0 0
        %7035 = vmatpush1.bf16.msra.mxu0 %v7029
        %7036 = vmatprep.subr.bf16.mxu0 0
        %7037 = vmatpush1.bf16.msra.mxu0 0
        %7038 = vmatprep.subr.bf16.mxu0 0
        %7039 = vmatpush1.bf16.msra.mxu0 0
        %7040 = vmatprep.subr.bf16.mxu0 0
        %7041 = vmatpush1.bf16.msra.mxu0 0
        %7042 = vmatprep.subr.bf16.mxu0 0
        %7043 = vmatpush1.bf16.msra.mxu0 0
        %7044 = vmatprep.subr.bf16.mxu0 0
        %7045 = vmatpush1.bf16.msra.mxu0 0
        %7046 = vmatprep.subr.bf16.mxu0 0
        %7047 = vmatpush1.bf16.msra.mxu0 0
        %7048 = vmatprep.subr.bf16.mxu0 0
        %7049 = vmatpush1.bf16.msra.mxu0 0
        %7050 = vmatprep.subr.bf16.mxu0 0
        %7051 = vmatpush1.bf16.msra.mxu0 0
        %7052 = vmatprep.subr.bf16.mxu0 0
        %7053 = vmatpush1.bf16.msra.mxu0 0
        %7054 = vmatprep.subr.bf16.mxu0 0
        %7055 = vmatpush1.bf16.msra.mxu0 0
        %7056 = vmatprep.subr.bf16.mxu0 0
        %7057 = vmatpush1.bf16.msra.mxu0 0
        %7058 = vmatprep.subr.bf16.mxu0 0
        %7059 = vmatpush1.bf16.msra.mxu0 0
        %7060 = vmatprep.subr.bf16.mxu0 0
        %7061 = vmatpush1.bf16.msra.mxu0 0
        %7062 = vmatprep.subr.bf16.mxu0 0
        %7063 = vmatpush1.bf16.msra.mxu0 0
        %7064 = vmatprep.subr.bf16.mxu0 0
        %7065 = vmatpush1.bf16.msra.mxu0 0
        %7066 = vmatprep.mubr.bf16.mxu0 0
        %7067 = vmatmul.mubr.bf16.gmra.mrb[0].mxu0 %v7032
        %v7068 = vpop.f32.mrb[0].mxu0
        %v7069 = vadd.f32 0.0, %v7068
        %v7070 = vpop.f32.mrb[0].mxu0
        %v7071 = vpop.f32.mrb[0].mxu0
        %v7072 = vadd.f32 0.0, %v7071
        %v7073 = vpop.f32.mrb[0].mxu0
        %7074 = vdwg.mxu0
        %7075 = vrot.lane.b32.xlu0 %v1284, 48
        %v7076 = vpop.permute.xlu0 %7075
        %v7079 = vsel %vm2095, %v6783, 0
        %7081 = vmatprep.subr.bf16.mxu0 0
        %7082 = vmatpush1.bf16.msra.mxu0 %v7076
        %7083 = vmatprep.subr.bf16.mxu0 0
        %7084 = vmatpush1.bf16.msra.mxu0 0
        %7085 = vmatprep.subr.bf16.mxu0 0
        %7086 = vmatpush1.bf16.msra.mxu0 0
        %7087 = vmatprep.subr.bf16.mxu0 0
        %7088 = vmatpush1.bf16.msra.mxu0 0
        %7089 = vmatprep.subr.bf16.mxu0 0
        %7090 = vmatpush1.bf16.msra.mxu0 0
        %7091 = vmatprep.subr.bf16.mxu0 0
        %7092 = vmatpush1.bf16.msra.mxu0 0
        %7093 = vmatprep.subr.bf16.mxu0 0
        %7094 = vmatpush1.bf16.msra.mxu0 0
        %7095 = vmatprep.subr.bf16.mxu0 0
        %7096 = vmatpush1.bf16.msra.mxu0 0
        %7097 = vmatprep.subr.bf16.mxu0 0
        %7098 = vmatpush1.bf16.msra.mxu0 0
        %7099 = vmatprep.subr.bf16.mxu0 0
        %7100 = vmatpush1.bf16.msra.mxu0 0
        %7101 = vmatprep.subr.bf16.mxu0 0
        %7102 = vmatpush1.bf16.msra.mxu0 0
        %7103 = vmatprep.subr.bf16.mxu0 0
        %7104 = vmatpush1.bf16.msra.mxu0 0
        %7105 = vmatprep.subr.bf16.mxu0 0
        %7106 = vmatpush1.bf16.msra.mxu0 0
        %7107 = vmatprep.subr.bf16.mxu0 0
        %7108 = vmatpush1.bf16.msra.mxu0 0
        %7109 = vmatprep.subr.bf16.mxu0 0
        %7110 = vmatpush1.bf16.msra.mxu0 0
        %7111 = vmatprep.subr.bf16.mxu0 0
        %7112 = vmatpush1.bf16.msra.mxu0 0
        %7113 = vmatprep.mubr.bf16.mxu0 0
        %7114 = vmatmul.mubr.bf16.gmra.mrb[0].mxu0 %v7079
        %v7115 = vpop.f32.mrb[0].mxu0
        %v7116 = vadd.f32 0.0, %v7115
        %v7117 = vpop.f32.mrb[0].mxu0
        %v7118 = vpop.f32.mrb[0].mxu0
        %v7119 = vadd.f32 0.0, %v7118
        %v7120 = vpop.f32.mrb[0].mxu0
        %7121 = vdwg.mxu0
        %7122 = vrot.lane.b32.xlu0 %v1285, 48
        %v7123 = vpop.permute.xlu0 %7122
        %v7126 = vsel %vm2095, %v6784, 0
        %7128 = vmatprep.subr.bf16.mxu0 0
        %7129 = vmatpush1.bf16.msra.mxu0 %v7123
        %7130 = vmatprep.subr.bf16.mxu0 0
        %7131 = vmatpush1.bf16.msra.mxu0 0
        %7132 = vmatprep.subr.bf16.mxu0 0
        %7133 = vmatpush1.bf16.msra.mxu0 0
        %7134 = vmatprep.subr.bf16.mxu0 0
        %7135 = vmatpush1.bf16.msra.mxu0 0
        %7136 = vmatprep.subr.bf16.mxu0 0
        %7137 = vmatpush1.bf16.msra.mxu0 0
        %7138 = vmatprep.subr.bf16.mxu0 0
        %7139 = vmatpush1.bf16.msra.mxu0 0
        %7140 = vmatprep.subr.bf16.mxu0 0
        %7141 = vmatpush1.bf16.msra.mxu0 0
        %7142 = vmatprep.subr.bf16.mxu0 0
        %7143 = vmatpush1.bf16.msra.mxu0 0
        %7144 = vmatprep.subr.bf16.mxu0 0
        %7145 = vmatpush1.bf16.msra.mxu0 0
        %7146 = vmatprep.subr.bf16.mxu0 0
        %7147 = vmatpush1.bf16.msra.mxu0 0
        %7148 = vmatprep.subr.bf16.mxu0 0
        %7149 = vmatpush1.bf16.msra.mxu0 0
        %7150 = vmatprep.subr.bf16.mxu0 0
        %7151 = vmatpush1.bf16.msra.mxu0 0
        %7152 = vmatprep.subr.bf16.mxu0 0
        %7153 = vmatpush1.bf16.msra.mxu0 0
        %7154 = vmatprep.subr.bf16.mxu0 0
        %7155 = vmatpush1.bf16.msra.mxu0 0
        %7156 = vmatprep.subr.bf16.mxu0 0
        %7157 = vmatpush1.bf16.msra.mxu0 0
        %7158 = vmatprep.subr.bf16.mxu0 0
        %7159 = vmatpush1.bf16.msra.mxu0 0
        %7160 = vmatprep.mubr.bf16.mxu0 0
        %7161 = vmatmul.mubr.bf16.gmra.mrb[0].mxu0 %v7126
        %v7162 = vpop.f32.mrb[0].mxu0
        %v7163 = vadd.f32 0.0, %v7162
        %v7164 = vpop.f32.mrb[0].mxu0
        %v7165 = vpop.f32.mrb[0].mxu0
        %v7166 = vadd.f32 0.0, %v7165
        %v7167 = vpop.f32.mrb[0].mxu0
        %7168 = vdwg.mxu0
        %7169 = vrot.lane.b32.xlu0 %v1286, 48
        %v7170 = vpop.permute.xlu0 %7169
        %v7173 = vsel %vm2095, %v6785, 0
        %7175 = vmatprep.subr.bf16.mxu0 0
        %7176 = vmatpush1.bf16.msra.mxu0 %v7170
        %7177 = vmatprep.subr.bf16.mxu0 0
        %7178 = vmatpush1.bf16.msra.mxu0 0
        %7179 = vmatprep.subr.bf16.mxu0 0
        %7180 = vmatpush1.bf16.msra.mxu0 0
        %7181 = vmatprep.subr.bf16.mxu0 0
        %7182 = vmatpush1.bf16.msra.mxu0 0
        %7183 = vmatprep.subr.bf16.mxu0 0
        %7184 = vmatpush1.bf16.msra.mxu0 0
        %7185 = vmatprep.subr.bf16.mxu0 0
        %7186 = vmatpush1.bf16.msra.mxu0 0
        %7187 = vmatprep.subr.bf16.mxu0 0
        %7188 = vmatpush1.bf16.msra.mxu0 0
        %7189 = vmatprep.subr.bf16.mxu0 0
        %7190 = vmatpush1.bf16.msra.mxu0 0
        %7191 = vmatprep.subr.bf16.mxu0 0
        %7192 = vmatpush1.bf16.msra.mxu0 0
        %7193 = vmatprep.subr.bf16.mxu0 0
        %7194 = vmatpush1.bf16.msra.mxu0 0
        %7195 = vmatprep.subr.bf16.mxu0 0
        %7196 = vmatpush1.bf16.msra.mxu0 0
        %7197 = vmatprep.subr.bf16.mxu0 0
        %7198 = vmatpush1.bf16.msra.mxu0 0
        %7199 = vmatprep.subr.bf16.mxu0 0
        %7200 = vmatpush1.bf16.msra.mxu0 0
        %7201 = vmatprep.subr.bf16.mxu0 0
        %7202 = vmatpush1.bf16.msra.mxu0 0
        %7203 = vmatprep.subr.bf16.mxu0 0
        %7204 = vmatpush1.bf16.msra.mxu0 0
        %7205 = vmatprep.subr.bf16.mxu0 0
        %7206 = vmatpush1.bf16.msra.mxu0 0
        %7207 = vmatprep.mubr.bf16.mxu0 0
        %7208 = vmatmul.mubr.bf16.gmra.mrb[0].mxu0 %v7173
        %v7209 = vpop.f32.mrb[0].mxu0
        %v7210 = vadd.f32 0.0, %v7209
        %v7211 = vpop.f32.mrb[0].mxu0
        %v7212 = vpop.f32.mrb[0].mxu0
        %v7213 = vadd.f32 0.0, %v7212
        %v7214 = vpop.f32.mrb[0].mxu0
        %7215 = vdwg.mxu0
        %7216 = vrot.lane.b32.xlu0 %v1287, 48
        %v7217 = vpop.permute.xlu0 %7216
        %v7220 = vsel %vm2095, %v6786, 0
        %7222 = vmatprep.subr.bf16.mxu0 0
        %7223 = vmatpush1.bf16.msra.mxu0 %v7217
        %7224 = vmatprep.subr.bf16.mxu0 0
        %7225 = vmatpush1.bf16.msra.mxu0 0
        %7226 = vmatprep.subr.bf16.mxu0 0
        %7227 = vmatpush1.bf16.msra.mxu0 0
        %7228 = vmatprep.subr.bf16.mxu0 0
        %7229 = vmatpush1.bf16.msra.mxu0 0
        %7230 = vmatprep.subr.bf16.mxu0 0
        %7231 = vmatpush1.bf16.msra.mxu0 0
        %7232 = vmatprep.subr.bf16.mxu0 0
        %7233 = vmatpush1.bf16.msra.mxu0 0
        %7234 = vmatprep.subr.bf16.mxu0 0
        %7235 = vmatpush1.bf16.msra.mxu0 0
        %7236 = vmatprep.subr.bf16.mxu0 0
        %7237 = vmatpush1.bf16.msra.mxu0 0
        %7238 = vmatprep.subr.bf16.mxu0 0
        %7239 = vmatpush1.bf16.msra.mxu0 0
        %7240 = vmatprep.subr.bf16.mxu0 0
        %7241 = vmatpush1.bf16.msra.mxu0 0
        %7242 = vmatprep.subr.bf16.mxu0 0
        %7243 = vmatpush1.bf16.msra.mxu0 0
        %7244 = vmatprep.subr.bf16.mxu0 0
        %7245 = vmatpush1.bf16.msra.mxu0 0
        %7246 = vmatprep.subr.bf16.mxu0 0
        %7247 = vmatpush1.bf16.msra.mxu0 0
        %7248 = vmatprep.subr.bf16.mxu0 0
        %7249 = vmatpush1.bf16.msra.mxu0 0
        %7250 = vmatprep.subr.bf16.mxu0 0
        %7251 = vmatpush1.bf16.msra.mxu0 0
        %7252 = vmatprep.subr.bf16.mxu0 0
        %7253 = vmatpush1.bf16.msra.mxu0 0
        %7254 = vmatprep.mubr.bf16.mxu0 0
        %7255 = vmatmul.mubr.bf16.gmra.mrb[0].mxu0 %v7220
        %v7256 = vpop.f32.mrb[0].mxu0
        %v7257 = vadd.f32 0.0, %v7256
        %v7258 = vpop.f32.mrb[0].mxu0
        %v7259 = vpop.f32.mrb[0].mxu0
        %v7260 = vadd.f32 0.0, %v7259
        %v7261 = vpop.f32.mrb[0].mxu0
        %7262 = vdwg.mxu0
        %7263 = vrot.lane.b32.xlu0 %v1288, 48
        %v7264 = vpop.permute.xlu0 %7263
        %v7267 = vsel %vm2095, %v6787, 0
        %7269 = vmatprep.subr.bf16.mxu0 0
        %7270 = vmatpush1.bf16.msra.mxu0 %v7264
        %7271 = vmatprep.subr.bf16.mxu0 0
        %7272 = vmatpush1.bf16.msra.mxu0 0
        %7273 = vmatprep.subr.bf16.mxu0 0
        %7274 = vmatpush1.bf16.msra.mxu0 0
        %7275 = vmatprep.subr.bf16.mxu0 0
        %7276 = vmatpush1.bf16.msra.mxu0 0
        %7277 = vmatprep.subr.bf16.mxu0 0
        %7278 = vmatpush1.bf16.msra.mxu0 0
        %7279 = vmatprep.subr.bf16.mxu0 0
        %7280 = vmatpush1.bf16.msra.mxu0 0
        %7281 = vmatprep.subr.bf16.mxu0 0
        %7282 = vmatpush1.bf16.msra.mxu0 0
        %7283 = vmatprep.subr.bf16.mxu0 0
        %7284 = vmatpush1.bf16.msra.mxu0 0
        %7285 = vmatprep.subr.bf16.mxu0 0
        %7286 = vmatpush1.bf16.msra.mxu0 0
        %7287 = vmatprep.subr.bf16.mxu0 0
        %7288 = vmatpush1.bf16.msra.mxu0 0
        %7289 = vmatprep.subr.bf16.mxu0 0
        %7290 = vmatpush1.bf16.msra.mxu0 0
        %7291 = vmatprep.subr.bf16.mxu0 0
        %7292 = vmatpush1.bf16.msra.mxu0 0
        %7293 = vmatprep.subr.bf16.mxu0 0
        %7294 = vmatpush1.bf16.msra.mxu0 0
        %7295 = vmatprep.subr.bf16.mxu0 0
        %7296 = vmatpush1.bf16.msra.mxu0 0
        %7297 = vmatprep.subr.bf16.mxu0 0
        %7298 = vmatpush1.bf16.msra.mxu0 0
        %7299 = vmatprep.subr.bf16.mxu0 0
        %7300 = vmatpush1.bf16.msra.mxu0 0
        %7301 = vmatprep.mubr.bf16.mxu0 0
        %7302 = vmatmul.mubr.bf16.gmra.mrb[0].mxu0 %v7267
        %v7303 = vpop.f32.mrb[0].mxu0
        %v7304 = vadd.f32 0.0, %v7303
        %v7305 = vpop.f32.mrb[0].mxu0
        %v7306 = vpop.f32.mrb[0].mxu0
        %v7307 = vadd.f32 0.0, %v7306
        %v7308 = vpop.f32.mrb[0].mxu0
        %7309 = vdwg.mxu0
        %7310 = vrot.lane.b32.xlu0 %v1289, 48
        %v7311 = vpop.permute.xlu0 %7310
        %v7314 = vsel %vm2095, %v6788, 0
        %7316 = vmatprep.subr.bf16.mxu0 0
        %7317 = vmatpush1.bf16.msra.mxu0 %v7311
        %7318 = vmatprep.subr.bf16.mxu0 0
        %7319 = vmatpush1.bf16.msra.mxu0 0
        %7320 = vmatprep.subr.bf16.mxu0 0
        %7321 = vmatpush1.bf16.msra.mxu0 0
        %7322 = vmatprep.subr.bf16.mxu0 0
        %7323 = vmatpush1.bf16.msra.mxu0 0
        %7324 = vmatprep.subr.bf16.mxu0 0
        %7325 = vmatpush1.bf16.msra.mxu0 0
        %7326 = vmatprep.subr.bf16.mxu0 0
        %7327 = vmatpush1.bf16.msra.mxu0 0
        %7328 = vmatprep.subr.bf16.mxu0 0
        %7329 = vmatpush1.bf16.msra.mxu0 0
        %7330 = vmatprep.subr.bf16.mxu0 0
        %7331 = vmatpush1.bf16.msra.mxu0 0
        %7332 = vmatprep.subr.bf16.mxu0 0
        %7333 = vmatpush1.bf16.msra.mxu0 0
        %7334 = vmatprep.subr.bf16.mxu0 0
        %7335 = vmatpush1.bf16.msra.mxu0 0
        %7336 = vmatprep.subr.bf16.mxu0 0
        %7337 = vmatpush1.bf16.msra.mxu0 0
        %7338 = vmatprep.subr.bf16.mxu0 0
        %7339 = vmatpush1.bf16.msra.mxu0 0
        %7340 = vmatprep.subr.bf16.mxu0 0
        %7341 = vmatpush1.bf16.msra.mxu0 0
        %7342 = vmatprep.subr.bf16.mxu0 0
        %7343 = vmatpush1.bf16.msra.mxu0 0
        %7344 = vmatprep.subr.bf16.mxu0 0
        %7345 = vmatpush1.bf16.msra.mxu0 0
        %7346 = vmatprep.subr.bf16.mxu0 0
        %7347 = vmatpush1.bf16.msra.mxu0 0
        %7348 = vmatprep.mubr.bf16.mxu0 0
        %7349 = vmatmul.mubr.bf16.gmra.mrb[0].mxu0 %v7314
        %v7350 = vpop.f32.mrb[0].mxu0
        %v7351 = vadd.f32 0.0, %v7350
        %v7352 = vpop.f32.mrb[0].mxu0
        %v7353 = vpop.f32.mrb[0].mxu0
        %v7354 = vadd.f32 0.0, %v7353
        %v7355 = vpop.f32.mrb[0].mxu0
        %7356 = vdwg.mxu0
        %7357 = vrot.lane.b32.xlu0 %v1290, 48
        %v7358 = vpop.permute.xlu0 %7357
        %v7361 = vsel %vm2095, %v6789, 0
        %7363 = vmatprep.subr.bf16.mxu0 0
        %7364 = vmatpush1.bf16.msra.mxu0 %v7358
        %7365 = vmatprep.subr.bf16.mxu0 0
        %7366 = vmatpush1.bf16.msra.mxu0 0
        %7367 = vmatprep.subr.bf16.mxu0 0
        %7368 = vmatpush1.bf16.msra.mxu0 0
        %7369 = vmatprep.subr.bf16.mxu0 0
        %7370 = vmatpush1.bf16.msra.mxu0 0
        %7371 = vmatprep.subr.bf16.mxu0 0
        %7372 = vmatpush1.bf16.msra.mxu0 0
        %7373 = vmatprep.subr.bf16.mxu0 0
        %7374 = vmatpush1.bf16.msra.mxu0 0
        %7375 = vmatprep.subr.bf16.mxu0 0
        %7376 = vmatpush1.bf16.msra.mxu0 0
        %7377 = vmatprep.subr.bf16.mxu0 0
        %7378 = vmatpush1.bf16.msra.mxu0 0
        %7379 = vmatprep.subr.bf16.mxu0 0
        %7380 = vmatpush1.bf16.msra.mxu0 0
        %7381 = vmatprep.subr.bf16.mxu0 0
        %7382 = vmatpush1.bf16.msra.mxu0 0
        %7383 = vmatprep.subr.bf16.mxu0 0
        %7384 = vmatpush1.bf16.msra.mxu0 0
        %7385 = vmatprep.subr.bf16.mxu0 0
        %7386 = vmatpush1.bf16.msra.mxu0 0
        %7387 = vmatprep.subr.bf16.mxu0 0
        %7388 = vmatpush1.bf16.msra.mxu0 0
        %7389 = vmatprep.subr.bf16.mxu0 0
        %7390 = vmatpush1.bf16.msra.mxu0 0
        %7391 = vmatprep.subr.bf16.mxu0 0
        %7392 = vmatpush1.bf16.msra.mxu0 0
        %7393 = vmatprep.subr.bf16.mxu0 0
        %7394 = vmatpush1.bf16.msra.mxu0 0
        %7395 = vmatprep.mubr.bf16.mxu0 0
        %7396 = vmatmul.mubr.bf16.gmra.mrb[0].mxu0 %v7361
        %v7397 = vpop.f32.mrb[0].mxu0
        %v7398 = vadd.f32 0.0, %v7397
        %v7399 = vpop.f32.mrb[0].mxu0
        %v7400 = vpop.f32.mrb[0].mxu0
        %v7401 = vadd.f32 0.0, %v7400
        %v7402 = vpop.f32.mrb[0].mxu0
        %7403 = vdwg.mxu0
        %7404 = vrot.lane.b32.xlu0 %v1291, 48
        %v7405 = vpop.permute.xlu0 %7404
        %v7408 = vsel %vm2095, %v6790, 0
        %7410 = vmatprep.subr.bf16.mxu0 0
        %7411 = vmatpush1.bf16.msra.mxu0 %v7405
        %7412 = vmatprep.subr.bf16.mxu0 0
        %7413 = vmatpush1.bf16.msra.mxu0 0
        %7414 = vmatprep.subr.bf16.mxu0 0
        %7415 = vmatpush1.bf16.msra.mxu0 0
        %7416 = vmatprep.subr.bf16.mxu0 0
        %7417 = vmatpush1.bf16.msra.mxu0 0
        %7418 = vmatprep.subr.bf16.mxu0 0
        %7419 = vmatpush1.bf16.msra.mxu0 0
        %7420 = vmatprep.subr.bf16.mxu0 0
        %7421 = vmatpush1.bf16.msra.mxu0 0
        %7422 = vmatprep.subr.bf16.mxu0 0
        %7423 = vmatpush1.bf16.msra.mxu0 0
        %7424 = vmatprep.subr.bf16.mxu0 0
        %7425 = vmatpush1.bf16.msra.mxu0 0
        %7426 = vmatprep.subr.bf16.mxu0 0
        %7427 = vmatpush1.bf16.msra.mxu0 0
        %7428 = vmatprep.subr.bf16.mxu0 0
        %7429 = vmatpush1.bf16.msra.mxu0 0
        %7430 = vmatprep.subr.bf16.mxu0 0
        %7431 = vmatpush1.bf16.msra.mxu0 0
        %7432 = vmatprep.subr.bf16.mxu0 0
        %7433 = vmatpush1.bf16.msra.mxu0 0
        %7434 = vmatprep.subr.bf16.mxu0 0
        %7435 = vmatpush1.bf16.msra.mxu0 0
        %7436 = vmatprep.subr.bf16.mxu0 0
        %7437 = vmatpush1.bf16.msra.mxu0 0
        %7438 = vmatprep.subr.bf16.mxu0 0
        %7439 = vmatpush1.bf16.msra.mxu0 0
        %7440 = vmatprep.subr.bf16.mxu0 0
        %7441 = vmatpush1.bf16.msra.mxu0 0
        %7442 = vmatprep.mubr.bf16.mxu0 0
        %7443 = vmatmul.mubr.bf16.gmra.mrb[0].mxu0 %v7408
        %v7444 = vpop.f32.mrb[0].mxu0
        %v7445 = vadd.f32 0.0, %v7444
        %v7446 = vpop.f32.mrb[0].mxu0
        %v7447 = vpop.f32.mrb[0].mxu0
        %v7448 = vadd.f32 0.0, %v7447
        %v7449 = vpop.f32.mrb[0].mxu0
        %7450 = vdwg.mxu0
        %7451 = vrot.lane.b32.xlu0 %v1292, 48
        %v7452 = vpop.permute.xlu0 %7451
        %v7455 = vsel %vm2095, %v6791, 0
        %7457 = vmatprep.subr.bf16.mxu0 0
        %7458 = vmatpush1.bf16.msra.mxu0 %v7452
        %7459 = vmatprep.subr.bf16.mxu0 0
        %7460 = vmatpush1.bf16.msra.mxu0 0
        %7461 = vmatprep.subr.bf16.mxu0 0
        %7462 = vmatpush1.bf16.msra.mxu0 0
        %7463 = vmatprep.subr.bf16.mxu0 0
        %7464 = vmatpush1.bf16.msra.mxu0 0
        %7465 = vmatprep.subr.bf16.mxu0 0
        %7466 = vmatpush1.bf16.msra.mxu0 0
        %7467 = vmatprep.subr.bf16.mxu0 0
        %7468 = vmatpush1.bf16.msra.mxu0 0
        %7469 = vmatprep.subr.bf16.mxu0 0
        %7470 = vmatpush1.bf16.msra.mxu0 0
        %7471 = vmatprep.subr.bf16.mxu0 0
        %7472 = vmatpush1.bf16.msra.mxu0 0
        %7473 = vmatprep.subr.bf16.mxu0 0
        %7474 = vmatpush1.bf16.msra.mxu0 0
        %7475 = vmatprep.subr.bf16.mxu0 0
        %7476 = vmatpush1.bf16.msra.mxu0 0
        %7477 = vmatprep.subr.bf16.mxu0 0
        %7478 = vmatpush1.bf16.msra.mxu0 0
        %7479 = vmatprep.subr.bf16.mxu0 0
        %7480 = vmatpush1.bf16.msra.mxu0 0
        %7481 = vmatprep.subr.bf16.mxu0 0
        %7482 = vmatpush1.bf16.msra.mxu0 0
        %7483 = vmatprep.subr.bf16.mxu0 0
        %7484 = vmatpush1.bf16.msra.mxu0 0
        %7485 = vmatprep.subr.bf16.mxu0 0
        %7486 = vmatpush1.bf16.msra.mxu0 0
        %7487 = vmatprep.subr.bf16.mxu0 0
        %7488 = vmatpush1.bf16.msra.mxu0 0
        %7489 = vmatprep.mubr.bf16.mxu0 0
        %7490 = vmatmul.mubr.bf16.gmra.mrb[0].mxu0 %v7455
        %v7491 = vpop.f32.mrb[0].mxu0
        %v7492 = vadd.f32 0.0, %v7491
        %v7493 = vpop.f32.mrb[0].mxu0
        %v7494 = vpop.f32.mrb[0].mxu0
        %v7495 = vadd.f32 0.0, %v7494
        %v7496 = vpop.f32.mrb[0].mxu0
        %7497 = vdwg.mxu0
        %7498 = vrot.lane.b32.xlu0 %v1293, 48
        %v7499 = vpop.permute.xlu0 %7498
        %v7502 = vsel %vm2095, %v6792, 0
        %7504 = vmatprep.subr.bf16.mxu0 0
        %7505 = vmatpush1.bf16.msra.mxu0 %v7499
        %7506 = vmatprep.subr.bf16.mxu0 0
        %7507 = vmatpush1.bf16.msra.mxu0 0
        %7508 = vmatprep.subr.bf16.mxu0 0
        %7509 = vmatpush1.bf16.msra.mxu0 0
        %7510 = vmatprep.subr.bf16.mxu0 0
        %7511 = vmatpush1.bf16.msra.mxu0 0
        %7512 = vmatprep.subr.bf16.mxu0 0
        %7513 = vmatpush1.bf16.msra.mxu0 0
        %7514 = vmatprep.subr.bf16.mxu0 0
        %7515 = vmatpush1.bf16.msra.mxu0 0
        %7516 = vmatprep.subr.bf16.mxu0 0
        %7517 = vmatpush1.bf16.msra.mxu0 0
        %7518 = vmatprep.subr.bf16.mxu0 0
        %7519 = vmatpush1.bf16.msra.mxu0 0
        %7520 = vmatprep.subr.bf16.mxu0 0
        %7521 = vmatpush1.bf16.msra.mxu0 0
        %7522 = vmatprep.subr.bf16.mxu0 0
        %7523 = vmatpush1.bf16.msra.mxu0 0
        %7524 = vmatprep.subr.bf16.mxu0 0
        %7525 = vmatpush1.bf16.msra.mxu0 0
        %7526 = vmatprep.subr.bf16.mxu0 0
        %7527 = vmatpush1.bf16.msra.mxu0 0
        %7528 = vmatprep.subr.bf16.mxu0 0
        %7529 = vmatpush1.bf16.msra.mxu0 0
        %7530 = vmatprep.subr.bf16.mxu0 0
        %7531 = vmatpush1.bf16.msra.mxu0 0
        %7532 = vmatprep.subr.bf16.mxu0 0
        %7533 = vmatpush1.bf16.msra.mxu0 0
        %7534 = vmatprep.subr.bf16.mxu0 0
        %7535 = vmatpush1.bf16.msra.mxu0 0
        %7536 = vmatprep.mubr.bf16.mxu0 0
        %7537 = vmatmul.mubr.bf16.gmra.mrb[0].mxu0 %v7502
        %v7538 = vpop.f32.mrb[0].mxu0
        %v7539 = vadd.f32 0.0, %v7538
        %v7540 = vpop.f32.mrb[0].mxu0
        %v7541 = vpop.f32.mrb[0].mxu0
        %v7542 = vadd.f32 0.0, %v7541
        %v7543 = vpop.f32.mrb[0].mxu0
        %7544 = vdwg.mxu0
        %v7545 = vpack.c.bf16 %v6837, %v6834
        %v7546 = vpack.c.bf16 %v6884, %v6881
        %v7547 = vpack.c.bf16 %v6931, %v6928
        %v7548 = vpack.c.bf16 %v6978, %v6975
        %v7549 = vpack.c.bf16 %v7025, %v7022
        %v7550 = vpack.c.bf16 %v7072, %v7069
        %v7551 = vpack.c.bf16 %v7119, %v7116
        %v7552 = vpack.c.bf16 %v7166, %v7163
        %v7553 = vpack.c.bf16 %v7213, %v7210
        %v7554 = vpack.c.bf16 %v7260, %v7257
        %v7555 = vpack.c.bf16 %v7307, %v7304
        %v7556 = vpack.c.bf16 %v7354, %v7351
        %v7557 = vpack.c.bf16 %v7401, %v7398
        %v7558 = vpack.c.bf16 %v7448, %v7445
        %v7559 = vpack.c.bf16 %v7495, %v7492
        %v7560 = vpack.c.bf16 %v7542, %v7539
        %v7562 = vsel %vm1297, %v7545, 0
        %v7565 = vsel %vm1297, %v7546, 0
        %v7568 = vsel %vm1297, %v7547, 0
        %v7571 = vsel %vm1297, %v7548, 0
        %v7574 = vsel %vm1297, %v7549, 0
        %v7577 = vsel %vm1297, %v7550, 0
        %v7580 = vsel %vm1297, %v7551, 0
        %v7583 = vsel %vm1297, %v7552, 0
        %v7586 = vsel %vm1297, %v7553, 0
        %v7589 = vsel %vm1297, %v7554, 0
        %v7592 = vsel %vm1297, %v7555, 0
        %v7595 = vsel %vm1297, %v7556, 0
        %v7598 = vsel %vm1297, %v7557, 0
        %v7601 = vsel %vm1297, %v7558, 0
        %v7604 = vsel %vm1297, %v7559, 0
        %v7607 = vsel %vm1297, %v7560, 0
        %v7610 = vsel %vm5232, %v1148, 0
        %7612 = vmatprep.subr.bf16.mxu0 0
        %7613 = vmatpush1.bf16.msra.mxu0 %v7610
        %7614 = vmatprep.subr.bf16.mxu0 0
        %7615 = vmatpush1.bf16.msra.mxu0 0
        %7616 = vmatprep.subr.bf16.mxu0 0
        %7617 = vmatpush1.bf16.msra.mxu0 0
        %7618 = vmatprep.subr.bf16.mxu0 0
        %7619 = vmatpush1.bf16.msra.mxu0 0
        %7620 = vmatprep.subr.bf16.mxu0 0
        %7621 = vmatpush1.bf16.msra.mxu0 0
        %7622 = vmatprep.subr.bf16.mxu0 0
        %7623 = vmatpush1.bf16.msra.mxu0 0
        %7624 = vmatprep.subr.bf16.mxu0 0
        %7625 = vmatpush1.bf16.msra.mxu0 0
        %7626 = vmatprep.subr.bf16.mxu0 0
        %7627 = vmatpush1.bf16.msra.mxu0 0
        %7628 = vmatprep.subr.bf16.mxu0 0
        %7629 = vmatpush1.bf16.msra.mxu0 0
        %7630 = vmatprep.subr.bf16.mxu0 0
        %7631 = vmatpush1.bf16.msra.mxu0 0
        %7632 = vmatprep.subr.bf16.mxu0 0
        %7633 = vmatpush1.bf16.msra.mxu0 0
        %7634 = vmatprep.subr.bf16.mxu0 0
        %7635 = vmatpush1.bf16.msra.mxu0 0
        %7636 = vmatprep.subr.bf16.mxu0 0
        %7637 = vmatpush1.bf16.msra.mxu0 0
        %7638 = vmatprep.subr.bf16.mxu0 0
        %7639 = vmatpush1.bf16.msra.mxu0 0
        %7640 = vmatprep.subr.bf16.mxu0 0
        %7641 = vmatpush1.bf16.msra.mxu0 0
        %7642 = vmatprep.subr.bf16.mxu0 0
        %7643 = vmatpush1.bf16.msra.mxu0 0
        %7644 = vmatprep.mubr.bf16.mxu0 0
        %7645 = vmatmul.mubr.bf16.gmra.mrb[0].mxu0 %v7562
        %v7646 = vpop.f32.mrb[0].mxu0
        %v7647 = vadd.f32 0.0, %v7646
        %v7648 = vpop.f32.mrb[0].mxu0
        %v7649 = vpop.f32.mrb[0].mxu0
        %v7650 = vadd.f32 0.0, %v7649
        %v7651 = vpop.f32.mrb[0].mxu0
        %7652 = vmatprep.mubr.bf16.mxu0 0
        %7653 = vmatmul.mubr.bf16.gmra.mrb[0].mxu0 %v7565
        %v7654 = vpop.f32.mrb[0].mxu0
        %v7655 = vadd.f32 0.0, %v7654
        %v7656 = vpop.f32.mrb[0].mxu0
        %v7657 = vpop.f32.mrb[0].mxu0
        %v7658 = vadd.f32 0.0, %v7657
        %v7659 = vpop.f32.mrb[0].mxu0
        %7660 = vmatprep.mubr.bf16.mxu0 0
        %7661 = vmatmul.mubr.bf16.gmra.mrb[0].mxu0 %v7568
        %v7662 = vpop.f32.mrb[0].mxu0
        %v7663 = vadd.f32 0.0, %v7662
        %v7664 = vpop.f32.mrb[0].mxu0
        %v7665 = vpop.f32.mrb[0].mxu0
        %v7666 = vadd.f32 0.0, %v7665
        %v7667 = vpop.f32.mrb[0].mxu0
        %7668 = vmatprep.mubr.bf16.mxu0 0
        %7669 = vmatmul.mubr.bf16.gmra.mrb[0].mxu0 %v7571
        %v7670 = vpop.f32.mrb[0].mxu0
        %v7671 = vadd.f32 0.0, %v7670
        %v7672 = vpop.f32.mrb[0].mxu0
        %v7673 = vpop.f32.mrb[0].mxu0
        %v7674 = vadd.f32 0.0, %v7673
        %v7675 = vpop.f32.mrb[0].mxu0
        %7676 = vmatprep.mubr.bf16.mxu0 0
        %7677 = vmatmul.mubr.bf16.gmra.mrb[0].mxu0 %v7574
        %v7678 = vpop.f32.mrb[0].mxu0
        %v7679 = vadd.f32 0.0, %v7678
        %v7680 = vpop.f32.mrb[0].mxu0
        %v7681 = vpop.f32.mrb[0].mxu0
        %v7682 = vadd.f32 0.0, %v7681
        %v7683 = vpop.f32.mrb[0].mxu0
        %7684 = vmatprep.mubr.bf16.mxu0 0
        %7685 = vmatmul.mubr.bf16.gmra.mrb[0].mxu0 %v7577
        %v7686 = vpop.f32.mrb[0].mxu0
        %v7687 = vadd.f32 0.0, %v7686
        %v7688 = vpop.f32.mrb[0].mxu0
        %v7689 = vpop.f32.mrb[0].mxu0
        %v7690 = vadd.f32 0.0, %v7689
        %v7691 = vpop.f32.mrb[0].mxu0
        %7692 = vmatprep.mubr.bf16.mxu0 0
        %7693 = vmatmul.mubr.bf16.gmra.mrb[0].mxu0 %v7580
        %v7694 = vpop.f32.mrb[0].mxu0
        %v7695 = vadd.f32 0.0, %v7694
        %v7696 = vpop.f32.mrb[0].mxu0
        %v7697 = vpop.f32.mrb[0].mxu0
        %v7698 = vadd.f32 0.0, %v7697
        %v7699 = vpop.f32.mrb[0].mxu0
        %7700 = vmatprep.mubr.bf16.mxu0 0
        %7701 = vmatmul.mubr.bf16.gmra.mrb[0].mxu0 %v7583
        %v7702 = vpop.f32.mrb[0].mxu0
        %v7703 = vadd.f32 0.0, %v7702
        %v7704 = vpop.f32.mrb[0].mxu0
        %v7705 = vpop.f32.mrb[0].mxu0
        %v7706 = vadd.f32 0.0, %v7705
        %v7707 = vpop.f32.mrb[0].mxu0
        %7708 = vmatprep.mubr.bf16.mxu0 0
        %7709 = vmatmul.mubr.bf16.gmra.mrb[0].mxu0 %v7586
        %v7710 = vpop.f32.mrb[0].mxu0
        %v7711 = vadd.f32 0.0, %v7710
        %v7712 = vpop.f32.mrb[0].mxu0
        %v7713 = vpop.f32.mrb[0].mxu0
        %v7714 = vadd.f32 0.0, %v7713
        %v7715 = vpop.f32.mrb[0].mxu0
        %7716 = vmatprep.mubr.bf16.mxu0 0
        %7717 = vmatmul.mubr.bf16.gmra.mrb[0].mxu0 %v7589
        %v7718 = vpop.f32.mrb[0].mxu0
        %v7719 = vadd.f32 0.0, %v7718
        %v7720 = vpop.f32.mrb[0].mxu0
        %v7721 = vpop.f32.mrb[0].mxu0
        %v7722 = vadd.f32 0.0, %v7721
        %v7723 = vpop.f32.mrb[0].mxu0
        %7724 = vmatprep.mubr.bf16.mxu0 0
        %7725 = vmatmul.mubr.bf16.gmra.mrb[0].mxu0 %v7592
        %v7726 = vpop.f32.mrb[0].mxu0
        %v7727 = vadd.f32 0.0, %v7726
        %v7728 = vpop.f32.mrb[0].mxu0
        %v7729 = vpop.f32.mrb[0].mxu0
        %v7730 = vadd.f32 0.0, %v7729
        %v7731 = vpop.f32.mrb[0].mxu0
        %7732 = vmatprep.mubr.bf16.mxu0 0
        %7733 = vmatmul.mubr.bf16.gmra.mrb[0].mxu0 %v7595
        %v7734 = vpop.f32.mrb[0].mxu0
        %v7735 = vadd.f32 0.0, %v7734
        %v7736 = vpop.f32.mrb[0].mxu0
        %v7737 = vpop.f32.mrb[0].mxu0
        %v7738 = vadd.f32 0.0, %v7737
        %v7739 = vpop.f32.mrb[0].mxu0
        %7740 = vmatprep.mubr.bf16.mxu0 0
        %7741 = vmatmul.mubr.bf16.gmra.mrb[0].mxu0 %v7598
        %v7742 = vpop.f32.mrb[0].mxu0
        %v7743 = vadd.f32 0.0, %v7742
        %v7744 = vpop.f32.mrb[0].mxu0
        %v7745 = vpop.f32.mrb[0].mxu0
        %v7746 = vadd.f32 0.0, %v7745
        %v7747 = vpop.f32.mrb[0].mxu0
        %7748 = vmatprep.mubr.bf16.mxu0 0
        %7749 = vmatmul.mubr.bf16.gmra.mrb[0].mxu0 %v7601
        %v7750 = vpop.f32.mrb[0].mxu0
        %v7751 = vadd.f32 0.0, %v7750
        %v7752 = vpop.f32.mrb[0].mxu0
        %v7753 = vpop.f32.mrb[0].mxu0
        %v7754 = vadd.f32 0.0, %v7753
        %v7755 = vpop.f32.mrb[0].mxu0
        %7756 = vmatprep.mubr.bf16.mxu0 0
        %7757 = vmatmul.mubr.bf16.gmra.mrb[0].mxu0 %v7604
        %v7758 = vpop.f32.mrb[0].mxu0
        %v7759 = vadd.f32 0.0, %v7758
        %v7760 = vpop.f32.mrb[0].mxu0
        %v7761 = vpop.f32.mrb[0].mxu0
        %v7762 = vadd.f32 0.0, %v7761
        %v7763 = vpop.f32.mrb[0].mxu0
        %7764 = vmatprep.mubr.bf16.mxu0 0
        %7765 = vmatmul.mubr.bf16.gmra.mrb[0].mxu0 %v7607
        %v7766 = vpop.f32.mrb[0].mxu0
        %v7767 = vadd.f32 0.0, %v7766
        %v7768 = vpop.f32.mrb[0].mxu0
        %v7769 = vpop.f32.mrb[0].mxu0
        %v7770 = vadd.f32 0.0, %v7769
        %v7771 = vpop.f32.mrb[0].mxu0
        %7772 = vdwg.mxu0
        %v7773 = vadd.f32 %v5483, %v7647
        %v7774 = vadd.f32 %v5486, %v7650
        %v7775 = vadd.f32 %v5491, %v7655
        %v7776 = vadd.f32 %v5494, %v7658
        %v7777 = vadd.f32 %v5499, %v7663
        %v7778 = vadd.f32 %v5502, %v7666
        %v7779 = vadd.f32 %v5507, %v7671
        %v7780 = vadd.f32 %v5510, %v7674
        %v7781 = vadd.f32 %v5515, %v7679
        %v7782 = vadd.f32 %v5518, %v7682
        %v7783 = vadd.f32 %v5523, %v7687
        %v7784 = vadd.f32 %v5526, %v7690
        %v7785 = vadd.f32 %v5531, %v7695
        %v7786 = vadd.f32 %v5534, %v7698
        %v7787 = vadd.f32 %v5539, %v7703
        %v7788 = vadd.f32 %v5542, %v7706
        %v7789 = vadd.f32 %v5547, %v7711
        %v7790 = vadd.f32 %v5550, %v7714
        %v7791 = vadd.f32 %v5555, %v7719
        %v7792 = vadd.f32 %v5558, %v7722
        %v7793 = vadd.f32 %v5563, %v7727
        %v7794 = vadd.f32 %v5566, %v7730
        %v7795 = vadd.f32 %v5571, %v7735
        %v7796 = vadd.f32 %v5574, %v7738
        %v7797 = vadd.f32 %v5579, %v7743
        %v7798 = vadd.f32 %v5582, %v7746
        %v7799 = vadd.f32 %v5587, %v7751
        %v7800 = vadd.f32 %v5590, %v7754
        %v7801 = vadd.f32 %v5595, %v7759
        %v7802 = vadd.f32 %v5598, %v7762
        %v7803 = vadd.f32 %v5603, %v7767
        %v7804 = vadd.f32 %v5606, %v7770
        %7805 = vrot.lane.b32.xlu0 %v1278, 104
        %v7806 = vpop.permute.xlu0 %7805
        %7807 = vrot.lane.b32.xlu0 %v1278, 72
        %v7808 = vpop.permute.xlu0 %7807
        %v7810 = vsel %vm1297, %v7806, 0
        %v7813 = vsel %vm1297, %v7808, 0
        %7815 = vmatprep.subr.bf16.mxu0 0
        %7816 = vmatpush1.bf16.xpose.msra.mxu0 %v7813
        %7817 = vmatprep.subr.bf16.mxu0 0
        %7818 = vmatpush1.bf16.xpose.msra.mxu0 0
        %7819 = vmatprep.subr.bf16.mxu0 0
        %7820 = vmatpush1.bf16.xpose.msra.mxu0 0
        %7821 = vmatprep.subr.bf16.mxu0 0
        %7822 = vmatpush1.bf16.xpose.msra.mxu0 0
        %7823 = vmatprep.subr.bf16.mxu0 0
        %7824 = vmatpush1.bf16.xpose.msra.mxu0 0
        %7825 = vmatprep.subr.bf16.mxu0 0
        %7826 = vmatpush1.bf16.xpose.msra.mxu0 0
        %7827 = vmatprep.subr.bf16.mxu0 0
        %7828 = vmatpush1.bf16.xpose.msra.mxu0 0
        %7829 = vmatprep.subr.bf16.mxu0 0
        %7830 = vmatpush1.bf16.xpose.msra.mxu0 0
        %7831 = vmatprep.subr.bf16.mxu0 0
        %7832 = vmatpush1.bf16.xpose.msra.mxu0 0
        %7833 = vmatprep.subr.bf16.mxu0 0
        %7834 = vmatpush1.bf16.xpose.msra.mxu0 0
        %7835 = vmatprep.subr.bf16.mxu0 0
        %7836 = vmatpush1.bf16.xpose.msra.mxu0 0
        %7837 = vmatprep.subr.bf16.mxu0 0
        %7838 = vmatpush1.bf16.xpose.msra.mxu0 0
        %7839 = vmatprep.subr.bf16.mxu0 0
        %7840 = vmatpush1.bf16.xpose.msra.mxu0 0
        %7841 = vmatprep.subr.bf16.mxu0 0
        %7842 = vmatpush1.bf16.xpose.msra.mxu0 0
        %7843 = vmatprep.subr.bf16.mxu0 0
        %7844 = vmatpush1.bf16.xpose.msra.mxu0 0
        %7845 = vmatprep.subr.bf16.mxu0 0
        %7846 = vmatpush1.bf16.xpose.msra.mxu0 0
        %7847 = vmatprep.mubr.bf16.mxu0 0
        %7848 = vmatmul.mubr.bf16.gmra.mrb[0].mxu0 %v7810
        %v7849 = vpop.f32.mrb[0].mxu0
        %v7850 = vadd.f32 %v1246, %v7849
        %v7851 = vpop.f32.mrb[0].mxu0
        %v7852 = vpop.f32.mrb[0].mxu0
        %v7853 = vadd.f32 %v1247, %v7852
        %v7854 = vpop.f32.mrb[0].mxu0
        %7855 = vdwg.mxu0
        %7856 = vrot.lane.b32.xlu0 %v1279, 104
        %v7857 = vpop.permute.xlu0 %7856
        %7858 = vrot.lane.b32.xlu0 %v1279, 72
        %v7859 = vpop.permute.xlu0 %7858
        %v7861 = vsel %vm1297, %v7857, 0
        %v7864 = vsel %vm1297, %v7859, 0
        %7866 = vmatprep.subr.bf16.mxu0 0
        %7867 = vmatpush1.bf16.xpose.msra.mxu0 %v7864
        %7868 = vmatprep.subr.bf16.mxu0 0
        %7869 = vmatpush1.bf16.xpose.msra.mxu0 0
        %7870 = vmatprep.subr.bf16.mxu0 0
        %7871 = vmatpush1.bf16.xpose.msra.mxu0 0
        %7872 = vmatprep.subr.bf16.mxu0 0
        %7873 = vmatpush1.bf16.xpose.msra.mxu0 0
        %7874 = vmatprep.subr.bf16.mxu0 0
        %7875 = vmatpush1.bf16.xpose.msra.mxu0 0
        %7876 = vmatprep.subr.bf16.mxu0 0
        %7877 = vmatpush1.bf16.xpose.msra.mxu0 0
        %7878 = vmatprep.subr.bf16.mxu0 0
        %7879 = vmatpush1.bf16.xpose.msra.mxu0 0
        %7880 = vmatprep.subr.bf16.mxu0 0
        %7881 = vmatpush1.bf16.xpose.msra.mxu0 0
        %7882 = vmatprep.subr.bf16.mxu0 0
        %7883 = vmatpush1.bf16.xpose.msra.mxu0 0
        %7884 = vmatprep.subr.bf16.mxu0 0
        %7885 = vmatpush1.bf16.xpose.msra.mxu0 0
        %7886 = vmatprep.subr.bf16.mxu0 0
        %7887 = vmatpush1.bf16.xpose.msra.mxu0 0
        %7888 = vmatprep.subr.bf16.mxu0 0
        %7889 = vmatpush1.bf16.xpose.msra.mxu0 0
        %7890 = vmatprep.subr.bf16.mxu0 0
        %7891 = vmatpush1.bf16.xpose.msra.mxu0 0
        %7892 = vmatprep.subr.bf16.mxu0 0
        %7893 = vmatpush1.bf16.xpose.msra.mxu0 0
        %7894 = vmatprep.subr.bf16.mxu0 0
        %7895 = vmatpush1.bf16.xpose.msra.mxu0 0
        %7896 = vmatprep.subr.bf16.mxu0 0
        %7897 = vmatpush1.bf16.xpose.msra.mxu0 0
        %7898 = vmatprep.mubr.bf16.mxu0 0
        %7899 = vmatmul.mubr.bf16.gmra.mrb[0].mxu0 %v7861
        %v7900 = vpop.f32.mrb[0].mxu0
        %v7901 = vadd.f32 %v1248, %v7900
        %v7902 = vpop.f32.mrb[0].mxu0
        %v7903 = vpop.f32.mrb[0].mxu0
        %v7904 = vadd.f32 %v1249, %v7903
        %v7905 = vpop.f32.mrb[0].mxu0
        %7906 = vdwg.mxu0
        %7907 = vrot.lane.b32.xlu0 %v1280, 104
        %v7908 = vpop.permute.xlu0 %7907
        %7909 = vrot.lane.b32.xlu0 %v1280, 72
        %v7910 = vpop.permute.xlu0 %7909
        %v7912 = vsel %vm1297, %v7908, 0
        %v7915 = vsel %vm1297, %v7910, 0
        %7917 = vmatprep.subr.bf16.mxu0 0
        %7918 = vmatpush1.bf16.xpose.msra.mxu0 %v7915
        %7919 = vmatprep.subr.bf16.mxu0 0
        %7920 = vmatpush1.bf16.xpose.msra.mxu0 0
        %7921 = vmatprep.subr.bf16.mxu0 0
        %7922 = vmatpush1.bf16.xpose.msra.mxu0 0
        %7923 = vmatprep.subr.bf16.mxu0 0
        %7924 = vmatpush1.bf16.xpose.msra.mxu0 0
        %7925 = vmatprep.subr.bf16.mxu0 0
        %7926 = vmatpush1.bf16.xpose.msra.mxu0 0
        %7927 = vmatprep.subr.bf16.mxu0 0
        %7928 = vmatpush1.bf16.xpose.msra.mxu0 0
        %7929 = vmatprep.subr.bf16.mxu0 0
        %7930 = vmatpush1.bf16.xpose.msra.mxu0 0
        %7931 = vmatprep.subr.bf16.mxu0 0
        %7932 = vmatpush1.bf16.xpose.msra.mxu0 0
        %7933 = vmatprep.subr.bf16.mxu0 0
        %7934 = vmatpush1.bf16.xpose.msra.mxu0 0
        %7935 = vmatprep.subr.bf16.mxu0 0
        %7936 = vmatpush1.bf16.xpose.msra.mxu0 0
        %7937 = vmatprep.subr.bf16.mxu0 0
        %7938 = vmatpush1.bf16.xpose.msra.mxu0 0
        %7939 = vmatprep.subr.bf16.mxu0 0
        %7940 = vmatpush1.bf16.xpose.msra.mxu0 0
        %7941 = vmatprep.subr.bf16.mxu0 0
        %7942 = vmatpush1.bf16.xpose.msra.mxu0 0
        %7943 = vmatprep.subr.bf16.mxu0 0
        %7944 = vmatpush1.bf16.xpose.msra.mxu0 0
        %7945 = vmatprep.subr.bf16.mxu0 0
        %7946 = vmatpush1.bf16.xpose.msra.mxu0 0
        %7947 = vmatprep.subr.bf16.mxu0 0
        %7948 = vmatpush1.bf16.xpose.msra.mxu0 0
        %7949 = vmatprep.mubr.bf16.mxu0 0
        %7950 = vmatmul.mubr.bf16.gmra.mrb[0].mxu0 %v7912
        %v7951 = vpop.f32.mrb[0].mxu0
        %v7952 = vadd.f32 %v1250, %v7951
        %v7953 = vpop.f32.mrb[0].mxu0
        %v7954 = vpop.f32.mrb[0].mxu0
        %v7955 = vadd.f32 %v1251, %v7954
        %v7956 = vpop.f32.mrb[0].mxu0
        %7957 = vdwg.mxu0
        %7958 = vrot.lane.b32.xlu0 %v1281, 104
        %v7959 = vpop.permute.xlu0 %7958
        %7960 = vrot.lane.b32.xlu0 %v1281, 72
        %v7961 = vpop.permute.xlu0 %7960
        %v7963 = vsel %vm1297, %v7959, 0
        %v7966 = vsel %vm1297, %v7961, 0
        %7968 = vmatprep.subr.bf16.mxu0 0
        %7969 = vmatpush1.bf16.xpose.msra.mxu0 %v7966
        %7970 = vmatprep.subr.bf16.mxu0 0
        %7971 = vmatpush1.bf16.xpose.msra.mxu0 0
        %7972 = vmatprep.subr.bf16.mxu0 0
        %7973 = vmatpush1.bf16.xpose.msra.mxu0 0
        %7974 = vmatprep.subr.bf16.mxu0 0
        %7975 = vmatpush1.bf16.xpose.msra.mxu0 0
        %7976 = vmatprep.subr.bf16.mxu0 0
        %7977 = vmatpush1.bf16.xpose.msra.mxu0 0
        %7978 = vmatprep.subr.bf16.mxu0 0
        %7979 = vmatpush1.bf16.xpose.msra.mxu0 0
        %7980 = vmatprep.subr.bf16.mxu0 0
        %7981 = vmatpush1.bf16.xpose.msra.mxu0 0
        %7982 = vmatprep.subr.bf16.mxu0 0
        %7983 = vmatpush1.bf16.xpose.msra.mxu0 0
        %7984 = vmatprep.subr.bf16.mxu0 0
        %7985 = vmatpush1.bf16.xpose.msra.mxu0 0
        %7986 = vmatprep.subr.bf16.mxu0 0
        %7987 = vmatpush1.bf16.xpose.msra.mxu0 0
        %7988 = vmatprep.subr.bf16.mxu0 0
        %7989 = vmatpush1.bf16.xpose.msra.mxu0 0
        %7990 = vmatprep.subr.bf16.mxu0 0
        %7991 = vmatpush1.bf16.xpose.msra.mxu0 0
        %7992 = vmatprep.subr.bf16.mxu0 0
        %7993 = vmatpush1.bf16.xpose.msra.mxu0 0
        %7994 = vmatprep.subr.bf16.mxu0 0
        %7995 = vmatpush1.bf16.xpose.msra.mxu0 0
        %7996 = vmatprep.subr.bf16.mxu0 0
        %7997 = vmatpush1.bf16.xpose.msra.mxu0 0
        %7998 = vmatprep.subr.bf16.mxu0 0
        %7999 = vmatpush1.bf16.xpose.msra.mxu0 0
        %8000 = vmatprep.mubr.bf16.mxu0 0
        %8001 = vmatmul.mubr.bf16.gmra.mrb[0].mxu0 %v7963
        %v8002 = vpop.f32.mrb[0].mxu0
        %v8003 = vadd.f32 %v1252, %v8002
        %v8004 = vpop.f32.mrb[0].mxu0
        %v8005 = vpop.f32.mrb[0].mxu0
        %v8006 = vadd.f32 %v1253, %v8005
        %v8007 = vpop.f32.mrb[0].mxu0
        %8008 = vdwg.mxu0
        %8009 = vrot.lane.b32.xlu0 %v1282, 104
        %v8010 = vpop.permute.xlu0 %8009
        %8011 = vrot.lane.b32.xlu0 %v1282, 72
        %v8012 = vpop.permute.xlu0 %8011
        %v8014 = vsel %vm1297, %v8010, 0
        %v8017 = vsel %vm1297, %v8012, 0
        %8019 = vmatprep.subr.bf16.mxu0 0
        %8020 = vmatpush1.bf16.xpose.msra.mxu0 %v8017
        %8021 = vmatprep.subr.bf16.mxu0 0
        %8022 = vmatpush1.bf16.xpose.msra.mxu0 0
        %8023 = vmatprep.subr.bf16.mxu0 0
        %8024 = vmatpush1.bf16.xpose.msra.mxu0 0
        %8025 = vmatprep.subr.bf16.mxu0 0
        %8026 = vmatpush1.bf16.xpose.msra.mxu0 0
        %8027 = vmatprep.subr.bf16.mxu0 0
        %8028 = vmatpush1.bf16.xpose.msra.mxu0 0
        %8029 = vmatprep.subr.bf16.mxu0 0
        %8030 = vmatpush1.bf16.xpose.msra.mxu0 0
        %8031 = vmatprep.subr.bf16.mxu0 0
        %8032 = vmatpush1.bf16.xpose.msra.mxu0 0
        %8033 = vmatprep.subr.bf16.mxu0 0
        %8034 = vmatpush1.bf16.xpose.msra.mxu0 0
        %8035 = vmatprep.subr.bf16.mxu0 0
        %8036 = vmatpush1.bf16.xpose.msra.mxu0 0
        %8037 = vmatprep.subr.bf16.mxu0 0
        %8038 = vmatpush1.bf16.xpose.msra.mxu0 0
        %8039 = vmatprep.subr.bf16.mxu0 0
        %8040 = vmatpush1.bf16.xpose.msra.mxu0 0
        %8041 = vmatprep.subr.bf16.mxu0 0
        %8042 = vmatpush1.bf16.xpose.msra.mxu0 0
        %8043 = vmatprep.subr.bf16.mxu0 0
        %8044 = vmatpush1.bf16.xpose.msra.mxu0 0
        %8045 = vmatprep.subr.bf16.mxu0 0
        %8046 = vmatpush1.bf16.xpose.msra.mxu0 0
        %8047 = vmatprep.subr.bf16.mxu0 0
        %8048 = vmatpush1.bf16.xpose.msra.mxu0 0
        %8049 = vmatprep.subr.bf16.mxu0 0
        %8050 = vmatpush1.bf16.xpose.msra.mxu0 0
        %8051 = vmatprep.mubr.bf16.mxu0 0
        %8052 = vmatmul.mubr.bf16.gmra.mrb[0].mxu0 %v8014
        %v8053 = vpop.f32.mrb[0].mxu0
        %v8054 = vadd.f32 %v1254, %v8053
        %v8055 = vpop.f32.mrb[0].mxu0
        %v8056 = vpop.f32.mrb[0].mxu0
        %v8057 = vadd.f32 %v1255, %v8056
        %v8058 = vpop.f32.mrb[0].mxu0
        %8059 = vdwg.mxu0
        %8060 = vrot.lane.b32.xlu0 %v1283, 104
        %v8061 = vpop.permute.xlu0 %8060
        %8062 = vrot.lane.b32.xlu0 %v1283, 72
        %v8063 = vpop.permute.xlu0 %8062
        %v8065 = vsel %vm1297, %v8061, 0
        %v8068 = vsel %vm1297, %v8063, 0
        %8070 = vmatprep.subr.bf16.mxu0 0
        %8071 = vmatpush1.bf16.xpose.msra.mxu0 %v8068
        %8072 = vmatprep.subr.bf16.mxu0 0
        %8073 = vmatpush1.bf16.xpose.msra.mxu0 0
        %8074 = vmatprep.subr.bf16.mxu0 0
        %8075 = vmatpush1.bf16.xpose.msra.mxu0 0
        %8076 = vmatprep.subr.bf16.mxu0 0
        %8077 = vmatpush1.bf16.xpose.msra.mxu0 0
        %8078 = vmatprep.subr.bf16.mxu0 0
        %8079 = vmatpush1.bf16.xpose.msra.mxu0 0
        %8080 = vmatprep.subr.bf16.mxu0 0
        %8081 = vmatpush1.bf16.xpose.msra.mxu0 0
        %8082 = vmatprep.subr.bf16.mxu0 0
        %8083 = vmatpush1.bf16.xpose.msra.mxu0 0
        %8084 = vmatprep.subr.bf16.mxu0 0
        %8085 = vmatpush1.bf16.xpose.msra.mxu0 0
        %8086 = vmatprep.subr.bf16.mxu0 0
        %8087 = vmatpush1.bf16.xpose.msra.mxu0 0
        %8088 = vmatprep.subr.bf16.mxu0 0
        %8089 = vmatpush1.bf16.xpose.msra.mxu0 0
        %8090 = vmatprep.subr.bf16.mxu0 0
        %8091 = vmatpush1.bf16.xpose.msra.mxu0 0
        %8092 = vmatprep.subr.bf16.mxu0 0
        %8093 = vmatpush1.bf16.xpose.msra.mxu0 0
        %8094 = vmatprep.subr.bf16.mxu0 0
        %8095 = vmatpush1.bf16.xpose.msra.mxu0 0
        %8096 = vmatprep.subr.bf16.mxu0 0
        %8097 = vmatpush1.bf16.xpose.msra.mxu0 0
        %8098 = vmatprep.subr.bf16.mxu0 0
        %8099 = vmatpush1.bf16.xpose.msra.mxu0 0
        %8100 = vmatprep.subr.bf16.mxu0 0
        %8101 = vmatpush1.bf16.xpose.msra.mxu0 0
        %8102 = vmatprep.mubr.bf16.mxu0 0
        %8103 = vmatmul.mubr.bf16.gmra.mrb[0].mxu0 %v8065
        %v8104 = vpop.f32.mrb[0].mxu0
        %v8105 = vadd.f32 %v1256, %v8104
        %v8106 = vpop.f32.mrb[0].mxu0
        %v8107 = vpop.f32.mrb[0].mxu0
        %v8108 = vadd.f32 %v1257, %v8107
        %v8109 = vpop.f32.mrb[0].mxu0
        %8110 = vdwg.mxu0
        %8111 = vrot.lane.b32.xlu0 %v1284, 104
        %v8112 = vpop.permute.xlu0 %8111
        %8113 = vrot.lane.b32.xlu0 %v1284, 72
        %v8114 = vpop.permute.xlu0 %8113
        %v8116 = vsel %vm1297, %v8112, 0
        %v8119 = vsel %vm1297, %v8114, 0
        %8121 = vmatprep.subr.bf16.mxu0 0
        %8122 = vmatpush1.bf16.xpose.msra.mxu0 %v8119
        %8123 = vmatprep.subr.bf16.mxu0 0
        %8124 = vmatpush1.bf16.xpose.msra.mxu0 0
        %8125 = vmatprep.subr.bf16.mxu0 0
        %8126 = vmatpush1.bf16.xpose.msra.mxu0 0
        %8127 = vmatprep.subr.bf16.mxu0 0
        %8128 = vmatpush1.bf16.xpose.msra.mxu0 0
        %8129 = vmatprep.subr.bf16.mxu0 0
        %8130 = vmatpush1.bf16.xpose.msra.mxu0 0
        %8131 = vmatprep.subr.bf16.mxu0 0
        %8132 = vmatpush1.bf16.xpose.msra.mxu0 0
        %8133 = vmatprep.subr.bf16.mxu0 0
        %8134 = vmatpush1.bf16.xpose.msra.mxu0 0
        %8135 = vmatprep.subr.bf16.mxu0 0
        %8136 = vmatpush1.bf16.xpose.msra.mxu0 0
        %8137 = vmatprep.subr.bf16.mxu0 0
        %8138 = vmatpush1.bf16.xpose.msra.mxu0 0
        %8139 = vmatprep.subr.bf16.mxu0 0
        %8140 = vmatpush1.bf16.xpose.msra.mxu0 0
        %8141 = vmatprep.subr.bf16.mxu0 0
        %8142 = vmatpush1.bf16.xpose.msra.mxu0 0
        %8143 = vmatprep.subr.bf16.mxu0 0
        %8144 = vmatpush1.bf16.xpose.msra.mxu0 0
        %8145 = vmatprep.subr.bf16.mxu0 0
        %8146 = vmatpush1.bf16.xpose.msra.mxu0 0
        %8147 = vmatprep.subr.bf16.mxu0 0
        %8148 = vmatpush1.bf16.xpose.msra.mxu0 0
        %8149 = vmatprep.subr.bf16.mxu0 0
        %8150 = vmatpush1.bf16.xpose.msra.mxu0 0
        %8151 = vmatprep.subr.bf16.mxu0 0
        %8152 = vmatpush1.bf16.xpose.msra.mxu0 0
        %8153 = vmatprep.mubr.bf16.mxu0 0
        %8154 = vmatmul.mubr.bf16.gmra.mrb[0].mxu0 %v8116
        %v8155 = vpop.f32.mrb[0].mxu0
        %v8156 = vadd.f32 %v1258, %v8155
        %v8157 = vpop.f32.mrb[0].mxu0
        %v8158 = vpop.f32.mrb[0].mxu0
        %v8159 = vadd.f32 %v1259, %v8158
        %v8160 = vpop.f32.mrb[0].mxu0
        %8161 = vdwg.mxu0
        %8162 = vrot.lane.b32.xlu0 %v1285, 104
        %v8163 = vpop.permute.xlu0 %8162
        %8164 = vrot.lane.b32.xlu0 %v1285, 72
        %v8165 = vpop.permute.xlu0 %8164
        %v8167 = vsel %vm1297, %v8163, 0
        %v8170 = vsel %vm1297, %v8165, 0
        %8172 = vmatprep.subr.bf16.mxu0 0
        %8173 = vmatpush1.bf16.xpose.msra.mxu0 %v8170
        %8174 = vmatprep.subr.bf16.mxu0 0
        %8175 = vmatpush1.bf16.xpose.msra.mxu0 0
        %8176 = vmatprep.subr.bf16.mxu0 0
        %8177 = vmatpush1.bf16.xpose.msra.mxu0 0
        %8178 = vmatprep.subr.bf16.mxu0 0
        %8179 = vmatpush1.bf16.xpose.msra.mxu0 0
        %8180 = vmatprep.subr.bf16.mxu0 0
        %8181 = vmatpush1.bf16.xpose.msra.mxu0 0
        %8182 = vmatprep.subr.bf16.mxu0 0
        %8183 = vmatpush1.bf16.xpose.msra.mxu0 0
        %8184 = vmatprep.subr.bf16.mxu0 0
        %8185 = vmatpush1.bf16.xpose.msra.mxu0 0
        %8186 = vmatprep.subr.bf16.mxu0 0
        %8187 = vmatpush1.bf16.xpose.msra.mxu0 0
        %8188 = vmatprep.subr.bf16.mxu0 0
        %8189 = vmatpush1.bf16.xpose.msra.mxu0 0
        %8190 = vmatprep.subr.bf16.mxu0 0
        %8191 = vmatpush1.bf16.xpose.msra.mxu0 0
        %8192 = vmatprep.subr.bf16.mxu0 0
        %8193 = vmatpush1.bf16.xpose.msra.mxu0 0
        %8194 = vmatprep.subr.bf16.mxu0 0
        %8195 = vmatpush1.bf16.xpose.msra.mxu0 0
        %8196 = vmatprep.subr.bf16.mxu0 0
        %8197 = vmatpush1.bf16.xpose.msra.mxu0 0
        %8198 = vmatprep.subr.bf16.mxu0 0
        %8199 = vmatpush1.bf16.xpose.msra.mxu0 0
        %8200 = vmatprep.subr.bf16.mxu0 0
        %8201 = vmatpush1.bf16.xpose.msra.mxu0 0
        %8202 = vmatprep.subr.bf16.mxu0 0
        %8203 = vmatpush1.bf16.xpose.msra.mxu0 0
        %8204 = vmatprep.mubr.bf16.mxu0 0
        %8205 = vmatmul.mubr.bf16.gmra.mrb[0].mxu0 %v8167
        %v8206 = vpop.f32.mrb[0].mxu0
        %v8207 = vadd.f32 %v1260, %v8206
        %v8208 = vpop.f32.mrb[0].mxu0
        %v8209 = vpop.f32.mrb[0].mxu0
        %v8210 = vadd.f32 %v1261, %v8209
        %v8211 = vpop.f32.mrb[0].mxu0
        %8212 = vdwg.mxu0
        %8213 = vrot.lane.b32.xlu0 %v1286, 104
        %v8214 = vpop.permute.xlu0 %8213
        %8215 = vrot.lane.b32.xlu0 %v1286, 72
        %v8216 = vpop.permute.xlu0 %8215
        %v8218 = vsel %vm1297, %v8214, 0
        %v8221 = vsel %vm1297, %v8216, 0
        %8223 = vmatprep.subr.bf16.mxu0 0
        %8224 = vmatpush1.bf16.xpose.msra.mxu0 %v8221
        %8225 = vmatprep.subr.bf16.mxu0 0
        %8226 = vmatpush1.bf16.xpose.msra.mxu0 0
        %8227 = vmatprep.subr.bf16.mxu0 0
        %8228 = vmatpush1.bf16.xpose.msra.mxu0 0
        %8229 = vmatprep.subr.bf16.mxu0 0
        %8230 = vmatpush1.bf16.xpose.msra.mxu0 0
        %8231 = vmatprep.subr.bf16.mxu0 0
        %8232 = vmatpush1.bf16.xpose.msra.mxu0 0
        %8233 = vmatprep.subr.bf16.mxu0 0
        %8234 = vmatpush1.bf16.xpose.msra.mxu0 0
        %8235 = vmatprep.subr.bf16.mxu0 0
        %8236 = vmatpush1.bf16.xpose.msra.mxu0 0
        %8237 = vmatprep.subr.bf16.mxu0 0
        %8238 = vmatpush1.bf16.xpose.msra.mxu0 0
        %8239 = vmatprep.subr.bf16.mxu0 0
        %8240 = vmatpush1.bf16.xpose.msra.mxu0 0
        %8241 = vmatprep.subr.bf16.mxu0 0
        %8242 = vmatpush1.bf16.xpose.msra.mxu0 0
        %8243 = vmatprep.subr.bf16.mxu0 0
        %8244 = vmatpush1.bf16.xpose.msra.mxu0 0
        %8245 = vmatprep.subr.bf16.mxu0 0
        %8246 = vmatpush1.bf16.xpose.msra.mxu0 0
        %8247 = vmatprep.subr.bf16.mxu0 0
        %8248 = vmatpush1.bf16.xpose.msra.mxu0 0
        %8249 = vmatprep.subr.bf16.mxu0 0
        %8250 = vmatpush1.bf16.xpose.msra.mxu0 0
        %8251 = vmatprep.subr.bf16.mxu0 0
        %8252 = vmatpush1.bf16.xpose.msra.mxu0 0
        %8253 = vmatprep.subr.bf16.mxu0 0
        %8254 = vmatpush1.bf16.xpose.msra.mxu0 0
        %8255 = vmatprep.mubr.bf16.mxu0 0
        %8256 = vmatmul.mubr.bf16.gmra.mrb[0].mxu0 %v8218
        %v8257 = vpop.f32.mrb[0].mxu0
        %v8258 = vadd.f32 %v1262, %v8257
        %v8259 = vpop.f32.mrb[0].mxu0
        %v8260 = vpop.f32.mrb[0].mxu0
        %v8261 = vadd.f32 %v1263, %v8260
        %v8262 = vpop.f32.mrb[0].mxu0
        %8263 = vdwg.mxu0
        %8264 = vrot.lane.b32.xlu0 %v1287, 104
        %v8265 = vpop.permute.xlu0 %8264
        %8266 = vrot.lane.b32.xlu0 %v1287, 72
        %v8267 = vpop.permute.xlu0 %8266
        %v8269 = vsel %vm1297, %v8265, 0
        %v8272 = vsel %vm1297, %v8267, 0
        %8274 = vmatprep.subr.bf16.mxu0 0
        %8275 = vmatpush1.bf16.xpose.msra.mxu0 %v8272
        %8276 = vmatprep.subr.bf16.mxu0 0
        %8277 = vmatpush1.bf16.xpose.msra.mxu0 0
        %8278 = vmatprep.subr.bf16.mxu0 0
        %8279 = vmatpush1.bf16.xpose.msra.mxu0 0
        %8280 = vmatprep.subr.bf16.mxu0 0
        %8281 = vmatpush1.bf16.xpose.msra.mxu0 0
        %8282 = vmatprep.subr.bf16.mxu0 0
        %8283 = vmatpush1.bf16.xpose.msra.mxu0 0
        %8284 = vmatprep.subr.bf16.mxu0 0
        %8285 = vmatpush1.bf16.xpose.msra.mxu0 0
        %8286 = vmatprep.subr.bf16.mxu0 0
        %8287 = vmatpush1.bf16.xpose.msra.mxu0 0
        %8288 = vmatprep.subr.bf16.mxu0 0
        %8289 = vmatpush1.bf16.xpose.msra.mxu0 0
        %8290 = vmatprep.subr.bf16.mxu0 0
        %8291 = vmatpush1.bf16.xpose.msra.mxu0 0
        %8292 = vmatprep.subr.bf16.mxu0 0
        %8293 = vmatpush1.bf16.xpose.msra.mxu0 0
        %8294 = vmatprep.subr.bf16.mxu0 0
        %8295 = vmatpush1.bf16.xpose.msra.mxu0 0
        %8296 = vmatprep.subr.bf16.mxu0 0
        %8297 = vmatpush1.bf16.xpose.msra.mxu0 0
        %8298 = vmatprep.subr.bf16.mxu0 0
        %8299 = vmatpush1.bf16.xpose.msra.mxu0 0
        %8300 = vmatprep.subr.bf16.mxu0 0
        %8301 = vmatpush1.bf16.xpose.msra.mxu0 0
        %8302 = vmatprep.subr.bf16.mxu0 0
        %8303 = vmatpush1.bf16.xpose.msra.mxu0 0
        %8304 = vmatprep.subr.bf16.mxu0 0
        %8305 = vmatpush1.bf16.xpose.msra.mxu0 0
        %8306 = vmatprep.mubr.bf16.mxu0 0
        %8307 = vmatmul.mubr.bf16.gmra.mrb[0].mxu0 %v8269
        %v8308 = vpop.f32.mrb[0].mxu0
        %v8309 = vadd.f32 %v1264, %v8308
        %v8310 = vpop.f32.mrb[0].mxu0
        %v8311 = vpop.f32.mrb[0].mxu0
        %v8312 = vadd.f32 %v1265, %v8311
        %v8313 = vpop.f32.mrb[0].mxu0
        %8314 = vdwg.mxu0
        %8315 = vrot.lane.b32.xlu0 %v1288, 104
        %v8316 = vpop.permute.xlu0 %8315
        %8317 = vrot.lane.b32.xlu0 %v1288, 72
        %v8318 = vpop.permute.xlu0 %8317
        %v8320 = vsel %vm1297, %v8316, 0
        %v8323 = vsel %vm1297, %v8318, 0
        %8325 = vmatprep.subr.bf16.mxu0 0
        %8326 = vmatpush1.bf16.xpose.msra.mxu0 %v8323
        %8327 = vmatprep.subr.bf16.mxu0 0
        %8328 = vmatpush1.bf16.xpose.msra.mxu0 0
        %8329 = vmatprep.subr.bf16.mxu0 0
        %8330 = vmatpush1.bf16.xpose.msra.mxu0 0
        %8331 = vmatprep.subr.bf16.mxu0 0
        %8332 = vmatpush1.bf16.xpose.msra.mxu0 0
        %8333 = vmatprep.subr.bf16.mxu0 0
        %8334 = vmatpush1.bf16.xpose.msra.mxu0 0
        %8335 = vmatprep.subr.bf16.mxu0 0
        %8336 = vmatpush1.bf16.xpose.msra.mxu0 0
        %8337 = vmatprep.subr.bf16.mxu0 0
        %8338 = vmatpush1.bf16.xpose.msra.mxu0 0
        %8339 = vmatprep.subr.bf16.mxu0 0
        %8340 = vmatpush1.bf16.xpose.msra.mxu0 0
        %8341 = vmatprep.subr.bf16.mxu0 0
        %8342 = vmatpush1.bf16.xpose.msra.mxu0 0
        %8343 = vmatprep.subr.bf16.mxu0 0
        %8344 = vmatpush1.bf16.xpose.msra.mxu0 0
        %8345 = vmatprep.subr.bf16.mxu0 0
        %8346 = vmatpush1.bf16.xpose.msra.mxu0 0
        %8347 = vmatprep.subr.bf16.mxu0 0
        %8348 = vmatpush1.bf16.xpose.msra.mxu0 0
        %8349 = vmatprep.subr.bf16.mxu0 0
        %8350 = vmatpush1.bf16.xpose.msra.mxu0 0
        %8351 = vmatprep.subr.bf16.mxu0 0
        %8352 = vmatpush1.bf16.xpose.msra.mxu0 0
        %8353 = vmatprep.subr.bf16.mxu0 0
        %8354 = vmatpush1.bf16.xpose.msra.mxu0 0
        %8355 = vmatprep.subr.bf16.mxu0 0
        %8356 = vmatpush1.bf16.xpose.msra.mxu0 0
        %8357 = vmatprep.mubr.bf16.mxu0 0
        %8358 = vmatmul.mubr.bf16.gmra.mrb[0].mxu0 %v8320
        %v8359 = vpop.f32.mrb[0].mxu0
        %v8360 = vadd.f32 %v1266, %v8359
        %v8361 = vpop.f32.mrb[0].mxu0
        %v8362 = vpop.f32.mrb[0].mxu0
        %v8363 = vadd.f32 %v1267, %v8362
        %v8364 = vpop.f32.mrb[0].mxu0
        %8365 = vdwg.mxu0
        %8366 = vrot.lane.b32.xlu0 %v1289, 104
        %v8367 = vpop.permute.xlu0 %8366
        %8368 = vrot.lane.b32.xlu0 %v1289, 72
        %v8369 = vpop.permute.xlu0 %8368
        %v8371 = vsel %vm1297, %v8367, 0
        %v8374 = vsel %vm1297, %v8369, 0
        %8376 = vmatprep.subr.bf16.mxu0 0
        %8377 = vmatpush1.bf16.xpose.msra.mxu0 %v8374
        %8378 = vmatprep.subr.bf16.mxu0 0
        %8379 = vmatpush1.bf16.xpose.msra.mxu0 0
        %8380 = vmatprep.subr.bf16.mxu0 0
        %8381 = vmatpush1.bf16.xpose.msra.mxu0 0
        %8382 = vmatprep.subr.bf16.mxu0 0
        %8383 = vmatpush1.bf16.xpose.msra.mxu0 0
        %8384 = vmatprep.subr.bf16.mxu0 0
        %8385 = vmatpush1.bf16.xpose.msra.mxu0 0
        %8386 = vmatprep.subr.bf16.mxu0 0
        %8387 = vmatpush1.bf16.xpose.msra.mxu0 0
        %8388 = vmatprep.subr.bf16.mxu0 0
        %8389 = vmatpush1.bf16.xpose.msra.mxu0 0
        %8390 = vmatprep.subr.bf16.mxu0 0
        %8391 = vmatpush1.bf16.xpose.msra.mxu0 0
        %8392 = vmatprep.subr.bf16.mxu0 0
        %8393 = vmatpush1.bf16.xpose.msra.mxu0 0
        %8394 = vmatprep.subr.bf16.mxu0 0
        %8395 = vmatpush1.bf16.xpose.msra.mxu0 0
        %8396 = vmatprep.subr.bf16.mxu0 0
        %8397 = vmatpush1.bf16.xpose.msra.mxu0 0
        %8398 = vmatprep.subr.bf16.mxu0 0
        %8399 = vmatpush1.bf16.xpose.msra.mxu0 0
        %8400 = vmatprep.subr.bf16.mxu0 0
        %8401 = vmatpush1.bf16.xpose.msra.mxu0 0
        %8402 = vmatprep.subr.bf16.mxu0 0
        %8403 = vmatpush1.bf16.xpose.msra.mxu0 0
        %8404 = vmatprep.subr.bf16.mxu0 0
        %8405 = vmatpush1.bf16.xpose.msra.mxu0 0
        %8406 = vmatprep.subr.bf16.mxu0 0
        %8407 = vmatpush1.bf16.xpose.msra.mxu0 0
        %8408 = vmatprep.mubr.bf16.mxu0 0
        %8409 = vmatmul.mubr.bf16.gmra.mrb[0].mxu0 %v8371
        %v8410 = vpop.f32.mrb[0].mxu0
        %v8411 = vadd.f32 %v1268, %v8410
        %v8412 = vpop.f32.mrb[0].mxu0
        %v8413 = vpop.f32.mrb[0].mxu0
        %v8414 = vadd.f32 %v1269, %v8413
        %v8415 = vpop.f32.mrb[0].mxu0
        %8416 = vdwg.mxu0
        %8417 = vrot.lane.b32.xlu0 %v1290, 104
        %v8418 = vpop.permute.xlu0 %8417
        %8419 = vrot.lane.b32.xlu0 %v1290, 72
        %v8420 = vpop.permute.xlu0 %8419
        %v8422 = vsel %vm1297, %v8418, 0
        %v8425 = vsel %vm1297, %v8420, 0
        %8427 = vmatprep.subr.bf16.mxu0 0
        %8428 = vmatpush1.bf16.xpose.msra.mxu0 %v8425
        %8429 = vmatprep.subr.bf16.mxu0 0
        %8430 = vmatpush1.bf16.xpose.msra.mxu0 0
        %8431 = vmatprep.subr.bf16.mxu0 0
        %8432 = vmatpush1.bf16.xpose.msra.mxu0 0
        %8433 = vmatprep.subr.bf16.mxu0 0
        %8434 = vmatpush1.bf16.xpose.msra.mxu0 0
        %8435 = vmatprep.subr.bf16.mxu0 0
        %8436 = vmatpush1.bf16.xpose.msra.mxu0 0
        %8437 = vmatprep.subr.bf16.mxu0 0
        %8438 = vmatpush1.bf16.xpose.msra.mxu0 0
        %8439 = vmatprep.subr.bf16.mxu0 0
        %8440 = vmatpush1.bf16.xpose.msra.mxu0 0
        %8441 = vmatprep.subr.bf16.mxu0 0
        %8442 = vmatpush1.bf16.xpose.msra.mxu0 0
        %8443 = vmatprep.subr.bf16.mxu0 0
        %8444 = vmatpush1.bf16.xpose.msra.mxu0 0
        %8445 = vmatprep.subr.bf16.mxu0 0
        %8446 = vmatpush1.bf16.xpose.msra.mxu0 0
        %8447 = vmatprep.subr.bf16.mxu0 0
        %8448 = vmatpush1.bf16.xpose.msra.mxu0 0
        %8449 = vmatprep.subr.bf16.mxu0 0
        %8450 = vmatpush1.bf16.xpose.msra.mxu0 0
        %8451 = vmatprep.subr.bf16.mxu0 0
        %8452 = vmatpush1.bf16.xpose.msra.mxu0 0
        %8453 = vmatprep.subr.bf16.mxu0 0
        %8454 = vmatpush1.bf16.xpose.msra.mxu0 0
        %8455 = vmatprep.subr.bf16.mxu0 0
        %8456 = vmatpush1.bf16.xpose.msra.mxu0 0
        %8457 = vmatprep.subr.bf16.mxu0 0
        %8458 = vmatpush1.bf16.xpose.msra.mxu0 0
        %8459 = vmatprep.mubr.bf16.mxu0 0
        %8460 = vmatmul.mubr.bf16.gmra.mrb[0].mxu0 %v8422
        %v8461 = vpop.f32.mrb[0].mxu0
        %v8462 = vadd.f32 %v1270, %v8461
        %v8463 = vpop.f32.mrb[0].mxu0
        %v8464 = vpop.f32.mrb[0].mxu0
        %v8465 = vadd.f32 %v1271, %v8464
        %v8466 = vpop.f32.mrb[0].mxu0
        %8467 = vdwg.mxu0
        %8468 = vrot.lane.b32.xlu0 %v1291, 104
        %v8469 = vpop.permute.xlu0 %8468
        %8470 = vrot.lane.b32.xlu0 %v1291, 72
        %v8471 = vpop.permute.xlu0 %8470
        %v8473 = vsel %vm1297, %v8469, 0
        %v8476 = vsel %vm1297, %v8471, 0
        %8478 = vmatprep.subr.bf16.mxu0 0
        %8479 = vmatpush1.bf16.xpose.msra.mxu0 %v8476
        %8480 = vmatprep.subr.bf16.mxu0 0
        %8481 = vmatpush1.bf16.xpose.msra.mxu0 0
        %8482 = vmatprep.subr.bf16.mxu0 0
        %8483 = vmatpush1.bf16.xpose.msra.mxu0 0
        %8484 = vmatprep.subr.bf16.mxu0 0
        %8485 = vmatpush1.bf16.xpose.msra.mxu0 0
        %8486 = vmatprep.subr.bf16.mxu0 0
        %8487 = vmatpush1.bf16.xpose.msra.mxu0 0
        %8488 = vmatprep.subr.bf16.mxu0 0
        %8489 = vmatpush1.bf16.xpose.msra.mxu0 0
        %8490 = vmatprep.subr.bf16.mxu0 0
        %8491 = vmatpush1.bf16.xpose.msra.mxu0 0
        %8492 = vmatprep.subr.bf16.mxu0 0
        %8493 = vmatpush1.bf16.xpose.msra.mxu0 0
        %8494 = vmatprep.subr.bf16.mxu0 0
        %8495 = vmatpush1.bf16.xpose.msra.mxu0 0
        %8496 = vmatprep.subr.bf16.mxu0 0
        %8497 = vmatpush1.bf16.xpose.msra.mxu0 0
        %8498 = vmatprep.subr.bf16.mxu0 0
        %8499 = vmatpush1.bf16.xpose.msra.mxu0 0
        %8500 = vmatprep.subr.bf16.mxu0 0
        %8501 = vmatpush1.bf16.xpose.msra.mxu0 0
        %8502 = vmatprep.subr.bf16.mxu0 0
        %8503 = vmatpush1.bf16.xpose.msra.mxu0 0
        %8504 = vmatprep.subr.bf16.mxu0 0
        %8505 = vmatpush1.bf16.xpose.msra.mxu0 0
        %8506 = vmatprep.subr.bf16.mxu0 0
        %8507 = vmatpush1.bf16.xpose.msra.mxu0 0
        %8508 = vmatprep.subr.bf16.mxu0 0
        %8509 = vmatpush1.bf16.xpose.msra.mxu0 0
        %8510 = vmatprep.mubr.bf16.mxu0 0
        %8511 = vmatmul.mubr.bf16.gmra.mrb[0].mxu0 %v8473
        %v8512 = vpop.f32.mrb[0].mxu0
        %v8513 = vadd.f32 %v1272, %v8512
        %v8514 = vpop.f32.mrb[0].mxu0
        %v8515 = vpop.f32.mrb[0].mxu0
        %v8516 = vadd.f32 %v1273, %v8515
        %v8517 = vpop.f32.mrb[0].mxu0
        %8518 = vdwg.mxu0
        %8519 = vrot.lane.b32.xlu0 %v1292, 104
        %v8520 = vpop.permute.xlu0 %8519
        %8521 = vrot.lane.b32.xlu0 %v1292, 72
        %v8522 = vpop.permute.xlu0 %8521
        %v8524 = vsel %vm1297, %v8520, 0
        %v8527 = vsel %vm1297, %v8522, 0
        %8529 = vmatprep.subr.bf16.mxu0 0
        %8530 = vmatpush1.bf16.xpose.msra.mxu0 %v8527
        %8531 = vmatprep.subr.bf16.mxu0 0
        %8532 = vmatpush1.bf16.xpose.msra.mxu0 0
        %8533 = vmatprep.subr.bf16.mxu0 0
        %8534 = vmatpush1.bf16.xpose.msra.mxu0 0
        %8535 = vmatprep.subr.bf16.mxu0 0
        %8536 = vmatpush1.bf16.xpose.msra.mxu0 0
        %8537 = vmatprep.subr.bf16.mxu0 0
        %8538 = vmatpush1.bf16.xpose.msra.mxu0 0
        %8539 = vmatprep.subr.bf16.mxu0 0
        %8540 = vmatpush1.bf16.xpose.msra.mxu0 0
        %8541 = vmatprep.subr.bf16.mxu0 0
        %8542 = vmatpush1.bf16.xpose.msra.mxu0 0
        %8543 = vmatprep.subr.bf16.mxu0 0
        %8544 = vmatpush1.bf16.xpose.msra.mxu0 0
        %8545 = vmatprep.subr.bf16.mxu0 0
        %8546 = vmatpush1.bf16.xpose.msra.mxu0 0
        %8547 = vmatprep.subr.bf16.mxu0 0
        %8548 = vmatpush1.bf16.xpose.msra.mxu0 0
        %8549 = vmatprep.subr.bf16.mxu0 0
        %8550 = vmatpush1.bf16.xpose.msra.mxu0 0
        %8551 = vmatprep.subr.bf16.mxu0 0
        %8552 = vmatpush1.bf16.xpose.msra.mxu0 0
        %8553 = vmatprep.subr.bf16.mxu0 0
        %8554 = vmatpush1.bf16.xpose.msra.mxu0 0
        %8555 = vmatprep.subr.bf16.mxu0 0
        %8556 = vmatpush1.bf16.xpose.msra.mxu0 0
        %8557 = vmatprep.subr.bf16.mxu0 0
        %8558 = vmatpush1.bf16.xpose.msra.mxu0 0
        %8559 = vmatprep.subr.bf16.mxu0 0
        %8560 = vmatpush1.bf16.xpose.msra.mxu0 0
        %8561 = vmatprep.mubr.bf16.mxu0 0
        %8562 = vmatmul.mubr.bf16.gmra.mrb[0].mxu0 %v8524
        %v8563 = vpop.f32.mrb[0].mxu0
        %v8564 = vadd.f32 %v1274, %v8563
        %v8565 = vpop.f32.mrb[0].mxu0
        %v8566 = vpop.f32.mrb[0].mxu0
        %v8567 = vadd.f32 %v1275, %v8566
        %v8568 = vpop.f32.mrb[0].mxu0
        %8569 = vdwg.mxu0
        %8570 = vrot.lane.b32.xlu0 %v1293, 104
        %v8571 = vpop.permute.xlu0 %8570
        %8572 = vrot.lane.b32.xlu0 %v1293, 72
        %v8573 = vpop.permute.xlu0 %8572
        %v8575 = vsel %vm1297, %v8571, 0
        %v8578 = vsel %vm1297, %v8573, 0
        %8580 = vmatprep.subr.bf16.mxu0 0
        %8581 = vmatpush1.bf16.xpose.msra.mxu0 %v8578
        %8582 = vmatprep.subr.bf16.mxu0 0
        %8583 = vmatpush1.bf16.xpose.msra.mxu0 0
        %8584 = vmatprep.subr.bf16.mxu0 0
        %8585 = vmatpush1.bf16.xpose.msra.mxu0 0
        %8586 = vmatprep.subr.bf16.mxu0 0
        %8587 = vmatpush1.bf16.xpose.msra.mxu0 0
        %8588 = vmatprep.subr.bf16.mxu0 0
        %8589 = vmatpush1.bf16.xpose.msra.mxu0 0
        %8590 = vmatprep.subr.bf16.mxu0 0
        %8591 = vmatpush1.bf16.xpose.msra.mxu0 0
        %8592 = vmatprep.subr.bf16.mxu0 0
        %8593 = vmatpush1.bf16.xpose.msra.mxu0 0
        %8594 = vmatprep.subr.bf16.mxu0 0
        %8595 = vmatpush1.bf16.xpose.msra.mxu0 0
        %8596 = vmatprep.subr.bf16.mxu0 0
        %8597 = vmatpush1.bf16.xpose.msra.mxu0 0
        %8598 = vmatprep.subr.bf16.mxu0 0
        %8599 = vmatpush1.bf16.xpose.msra.mxu0 0
        %8600 = vmatprep.subr.bf16.mxu0 0
        %8601 = vmatpush1.bf16.xpose.msra.mxu0 0
        %8602 = vmatprep.subr.bf16.mxu0 0
        %8603 = vmatpush1.bf16.xpose.msra.mxu0 0
        %8604 = vmatprep.subr.bf16.mxu0 0
        %8605 = vmatpush1.bf16.xpose.msra.mxu0 0
        %8606 = vmatprep.subr.bf16.mxu0 0
        %8607 = vmatpush1.bf16.xpose.msra.mxu0 0
        %8608 = vmatprep.subr.bf16.mxu0 0
        %8609 = vmatpush1.bf16.xpose.msra.mxu0 0
        %8610 = vmatprep.subr.bf16.mxu0 0
        %8611 = vmatpush1.bf16.xpose.msra.mxu0 0
        %8612 = vmatprep.mubr.bf16.mxu0 0
        %8613 = vmatmul.mubr.bf16.gmra.mrb[0].mxu0 %v8575
        %v8614 = vpop.f32.mrb[0].mxu0
        %v8615 = vadd.f32 %v1276, %v8614
        %v8616 = vpop.f32.mrb[0].mxu0
        %v8617 = vpop.f32.mrb[0].mxu0
        %v8618 = vadd.f32 %v1277, %v8617
        %v8619 = vpop.f32.mrb[0].mxu0
        %8620 = vdwg.mxu0
        %v8621 = vsel %vm2095, %v7850, -inf
        %8622 = vmax.xlane.f32.xlu0 %v8621
        %v8623 = vpop.xlane.xlu0 %8622
        %v8624 = vsel %vm2095, %v7853, -inf
        %8625 = vmax.xlane.f32.xlu0 %v8624
        %v8626 = vpop.xlane.xlu0 %8625
        %v8627 = vsel %vm2095, %v7901, -inf
        %8628 = vmax.xlane.f32.xlu0 %v8627
        %v8629 = vpop.xlane.xlu0 %8628
        %v8630 = vsel %vm2095, %v7904, -inf
        %8631 = vmax.xlane.f32.xlu0 %v8630
        %v8632 = vpop.xlane.xlu0 %8631
        %v8633 = vsel %vm2095, %v7952, -inf
        %8634 = vmax.xlane.f32.xlu0 %v8633
        %v8635 = vpop.xlane.xlu0 %8634
        %v8636 = vsel %vm2095, %v7955, -inf
        %8637 = vmax.xlane.f32.xlu0 %v8636
        %v8638 = vpop.xlane.xlu0 %8637
        %v8639 = vsel %vm2095, %v8003, -inf
        %8640 = vmax.xlane.f32.xlu0 %v8639
        %v8641 = vpop.xlane.xlu0 %8640
        %v8642 = vsel %vm2095, %v8006, -inf
        %8643 = vmax.xlane.f32.xlu0 %v8642
        %v8644 = vpop.xlane.xlu0 %8643
        %v8645 = vsel %vm2095, %v8054, -inf
        %8646 = vmax.xlane.f32.xlu0 %v8645
        %v8647 = vpop.xlane.xlu0 %8646
        %v8648 = vsel %vm2095, %v8057, -inf
        %8649 = vmax.xlane.f32.xlu0 %v8648
        %v8650 = vpop.xlane.xlu0 %8649
        %v8651 = vsel %vm2095, %v8105, -inf
        %8652 = vmax.xlane.f32.xlu0 %v8651
        %v8653 = vpop.xlane.xlu0 %8652
        %v8654 = vsel %vm2095, %v8108, -inf
        %8655 = vmax.xlane.f32.xlu0 %v8654
        %v8656 = vpop.xlane.xlu0 %8655
        %v8657 = vsel %vm2095, %v8156, -inf
        %8658 = vmax.xlane.f32.xlu0 %v8657
        %v8659 = vpop.xlane.xlu0 %8658
        %v8660 = vsel %vm2095, %v8159, -inf
        %8661 = vmax.xlane.f32.xlu0 %v8660
        %v8662 = vpop.xlane.xlu0 %8661
        %v8663 = vsel %vm2095, %v8207, -inf
        %8664 = vmax.xlane.f32.xlu0 %v8663
        %v8665 = vpop.xlane.xlu0 %8664
        %v8666 = vsel %vm2095, %v8210, -inf
        %8667 = vmax.xlane.f32.xlu0 %v8666
        %v8668 = vpop.xlane.xlu0 %8667
        %v8669 = vsel %vm2095, %v8258, -inf
        %8670 = vmax.xlane.f32.xlu0 %v8669
        %v8671 = vpop.xlane.xlu0 %8670
        %v8672 = vsel %vm2095, %v8261, -inf
        %8673 = vmax.xlane.f32.xlu0 %v8672
        %v8674 = vpop.xlane.xlu0 %8673
        %v8675 = vsel %vm2095, %v8309, -inf
        %8676 = vmax.xlane.f32.xlu0 %v8675
        %v8677 = vpop.xlane.xlu0 %8676
        %v8678 = vsel %vm2095, %v8312, -inf
        %8679 = vmax.xlane.f32.xlu0 %v8678
        %v8680 = vpop.xlane.xlu0 %8679
        %v8681 = vsel %vm2095, %v8360, -inf
        %8682 = vmax.xlane.f32.xlu0 %v8681
        %v8683 = vpop.xlane.xlu0 %8682
        %v8684 = vsel %vm2095, %v8363, -inf
        %8685 = vmax.xlane.f32.xlu0 %v8684
        %v8686 = vpop.xlane.xlu0 %8685
        %v8687 = vsel %vm2095, %v8411, -inf
        %8688 = vmax.xlane.f32.xlu0 %v8687
        %v8689 = vpop.xlane.xlu0 %8688
        %v8690 = vsel %vm2095, %v8414, -inf
        %8691 = vmax.xlane.f32.xlu0 %v8690
        %v8692 = vpop.xlane.xlu0 %8691
        %v8693 = vsel %vm2095, %v8462, -inf
        %8694 = vmax.xlane.f32.xlu0 %v8693
        %v8695 = vpop.xlane.xlu0 %8694
        %v8696 = vsel %vm2095, %v8465, -inf
        %8697 = vmax.xlane.f32.xlu0 %v8696
        %v8698 = vpop.xlane.xlu0 %8697
        %v8699 = vsel %vm2095, %v8513, -inf
        %8700 = vmax.xlane.f32.xlu0 %v8699
        %v8701 = vpop.xlane.xlu0 %8700
        %v8702 = vsel %vm2095, %v8516, -inf
        %8703 = vmax.xlane.f32.xlu0 %v8702
        %v8704 = vpop.xlane.xlu0 %8703
        %v8705 = vsel %vm2095, %v8564, -inf
        %8706 = vmax.xlane.f32.xlu0 %v8705
        %v8707 = vpop.xlane.xlu0 %8706
        %v8708 = vsel %vm2095, %v8567, -inf
        %8709 = vmax.xlane.f32.xlu0 %v8708
        %v8710 = vpop.xlane.xlu0 %8709
        %v8711 = vsel %vm2095, %v8615, -inf
        %8712 = vmax.xlane.f32.xlu0 %v8711
        %v8713 = vpop.xlane.xlu0 %8712
        %v8714 = vsel %vm2095, %v8618, -inf
        %8715 = vmax.xlane.f32.xlu0 %v8714
        %v8716 = vpop.xlane.xlu0 %8715
        %v8717 = vsub.f32 %v7850, %v8623
        %v8718 = vsub.f32 %v7853, %v8626
        %v8719 = vsub.f32 %v7901, %v8629
        %v8720 = vsub.f32 %v7904, %v8632
        %v8721 = vsub.f32 %v7952, %v8635
        %v8722 = vsub.f32 %v7955, %v8638
        %v8723 = vsub.f32 %v8003, %v8641
        %v8724 = vsub.f32 %v8006, %v8644
        %v8725 = vsub.f32 %v8054, %v8647
        %v8726 = vsub.f32 %v8057, %v8650
        %v8727 = vsub.f32 %v8105, %v8653
        %v8728 = vsub.f32 %v8108, %v8656
        %v8729 = vsub.f32 %v8156, %v8659
        %v8730 = vsub.f32 %v8159, %v8662
        %v8731 = vsub.f32 %v8207, %v8665
        %v8732 = vsub.f32 %v8210, %v8668
        %v8733 = vsub.f32 %v8258, %v8671
        %v8734 = vsub.f32 %v8261, %v8674
        %v8735 = vsub.f32 %v8309, %v8677
        %v8736 = vsub.f32 %v8312, %v8680
        %v8737 = vsub.f32 %v8360, %v8683
        %v8738 = vsub.f32 %v8363, %v8686
        %v8739 = vsub.f32 %v8411, %v8689
        %v8740 = vsub.f32 %v8414, %v8692
        %v8741 = vsub.f32 %v8462, %v8695
        %v8742 = vsub.f32 %v8465, %v8698
        %v8743 = vsub.f32 %v8513, %v8701
        %v8744 = vsub.f32 %v8516, %v8704
        %v8745 = vsub.f32 %v8564, %v8707
        %v8746 = vsub.f32 %v8567, %v8710
        %v8747 = vsub.f32 %v8615, %v8713
        %v8748 = vsub.f32 %v8618, %v8716
        %v8749 = vmul.f32 %v8717, 1.442695
        %v8750 = vpow.pop %v8749
        %v8751 = vmul.f32 %v8718, 1.442695
        %v8752 = vpow.pop %v8751
        %v8753 = vmul.f32 %v8719, 1.442695
        %v8754 = vpow.pop %v8753
        %v8755 = vmul.f32 %v8720, 1.442695
        %v8756 = vpow.pop %v8755
        %v8757 = vmul.f32 %v8721, 1.442695
        %v8758 = vpow.pop %v8757
        %v8759 = vmul.f32 %v8722, 1.442695
        %v8760 = vpow.pop %v8759
        %v8761 = vmul.f32 %v8723, 1.442695
        %v8762 = vpow.pop %v8761
        %v8763 = vmul.f32 %v8724, 1.442695
        %v8764 = vpow.pop %v8763
        %v8765 = vmul.f32 %v8725, 1.442695
        %v8766 = vpow.pop %v8765
        %v8767 = vmul.f32 %v8726, 1.442695
        %v8768 = vpow.pop %v8767
        %v8769 = vmul.f32 %v8727, 1.442695
        %v8770 = vpow.pop %v8769
        %v8771 = vmul.f32 %v8728, 1.442695
        %v8772 = vpow.pop %v8771
        %v8773 = vmul.f32 %v8729, 1.442695
        %v8774 = vpow.pop %v8773
        %v8775 = vmul.f32 %v8730, 1.442695
        %v8776 = vpow.pop %v8775
        %v8777 = vmul.f32 %v8731, 1.442695
        %v8778 = vpow.pop %v8777
        %v8779 = vmul.f32 %v8732, 1.442695
        %v8780 = vpow.pop %v8779
        %v8781 = vmul.f32 %v8733, 1.442695
        %v8782 = vpow.pop %v8781
        %v8783 = vmul.f32 %v8734, 1.442695
        %v8784 = vpow.pop %v8783
        %v8785 = vmul.f32 %v8735, 1.442695
        %v8786 = vpow.pop %v8785
        %v8787 = vmul.f32 %v8736, 1.442695
        %v8788 = vpow.pop %v8787
        %v8789 = vmul.f32 %v8737, 1.442695
        %v8790 = vpow.pop %v8789
        %v8791 = vmul.f32 %v8738, 1.442695
        %v8792 = vpow.pop %v8791
        %v8793 = vmul.f32 %v8739, 1.442695
        %v8794 = vpow.pop %v8793
        %v8795 = vmul.f32 %v8740, 1.442695
        %v8796 = vpow.pop %v8795
        %v8797 = vmul.f32 %v8741, 1.442695
        %v8798 = vpow.pop %v8797
        %v8799 = vmul.f32 %v8742, 1.442695
        %v8800 = vpow.pop %v8799
        %v8801 = vmul.f32 %v8743, 1.442695
        %v8802 = vpow.pop %v8801
        %v8803 = vmul.f32 %v8744, 1.442695
        %v8804 = vpow.pop %v8803
        %v8805 = vmul.f32 %v8745, 1.442695
        %v8806 = vpow.pop %v8805
        %v8807 = vmul.f32 %v8746, 1.442695
        %v8808 = vpow.pop %v8807
        %v8809 = vmul.f32 %v8747, 1.442695
        %v8810 = vpow.pop %v8809
        %v8811 = vmul.f32 %v8748, 1.442695
        %v8812 = vpow.pop %v8811
        %v8813 = vsel %vm2095, %v8750, 0.0
        %8814 = vadd.xlane.f32.xlu0 %v8813
        %v8815 = vpop.xlane.xlu0 %8814
        %v8816 = vsel %vm2095, %v8752, 0.0
        %8817 = vadd.xlane.f32.xlu0 %v8816
        %v8818 = vpop.xlane.xlu0 %8817
        %v8819 = vsel %vm2095, %v8754, 0.0
        %8820 = vadd.xlane.f32.xlu0 %v8819
        %v8821 = vpop.xlane.xlu0 %8820
        %v8822 = vsel %vm2095, %v8756, 0.0
        %8823 = vadd.xlane.f32.xlu0 %v8822
        %v8824 = vpop.xlane.xlu0 %8823
        %v8825 = vsel %vm2095, %v8758, 0.0
        %8826 = vadd.xlane.f32.xlu0 %v8825
        %v8827 = vpop.xlane.xlu0 %8826
        %v8828 = vsel %vm2095, %v8760, 0.0
        %8829 = vadd.xlane.f32.xlu0 %v8828
        %v8830 = vpop.xlane.xlu0 %8829
        %v8831 = vsel %vm2095, %v8762, 0.0
        %8832 = vadd.xlane.f32.xlu0 %v8831
        %v8833 = vpop.xlane.xlu0 %8832
        %v8834 = vsel %vm2095, %v8764, 0.0
        %8835 = vadd.xlane.f32.xlu0 %v8834
        %v8836 = vpop.xlane.xlu0 %8835
        %v8837 = vsel %vm2095, %v8766, 0.0
        %8838 = vadd.xlane.f32.xlu0 %v8837
        %v8839 = vpop.xlane.xlu0 %8838
        %v8840 = vsel %vm2095, %v8768, 0.0
        %8841 = vadd.xlane.f32.xlu0 %v8840
        %v8842 = vpop.xlane.xlu0 %8841
        %v8843 = vsel %vm2095, %v8770, 0.0
        %8844 = vadd.xlane.f32.xlu0 %v8843
        %v8845 = vpop.xlane.xlu0 %8844
        %v8846 = vsel %vm2095, %v8772, 0.0
        %8847 = vadd.xlane.f32.xlu0 %v8846
        %v8848 = vpop.xlane.xlu0 %8847
        %v8849 = vsel %vm2095, %v8774, 0.0
        %8850 = vadd.xlane.f32.xlu0 %v8849
        %v8851 = vpop.xlane.xlu0 %8850
        %v8852 = vsel %vm2095, %v8776, 0.0
        %8853 = vadd.xlane.f32.xlu0 %v8852
        %v8854 = vpop.xlane.xlu0 %8853
        %v8855 = vsel %vm2095, %v8778, 0.0
        %8856 = vadd.xlane.f32.xlu0 %v8855
        %v8857 = vpop.xlane.xlu0 %8856
        %v8858 = vsel %vm2095, %v8780, 0.0
        %8859 = vadd.xlane.f32.xlu0 %v8858
        %v8860 = vpop.xlane.xlu0 %8859
        %v8861 = vsel %vm2095, %v8782, 0.0
        %8862 = vadd.xlane.f32.xlu0 %v8861
        %v8863 = vpop.xlane.xlu0 %8862
        %v8864 = vsel %vm2095, %v8784, 0.0
        %8865 = vadd.xlane.f32.xlu0 %v8864
        %v8866 = vpop.xlane.xlu0 %8865
        %v8867 = vsel %vm2095, %v8786, 0.0
        %8868 = vadd.xlane.f32.xlu0 %v8867
        %v8869 = vpop.xlane.xlu0 %8868
        %v8870 = vsel %vm2095, %v8788, 0.0
        %8871 = vadd.xlane.f32.xlu0 %v8870
        %v8872 = vpop.xlane.xlu0 %8871
        %v8873 = vsel %vm2095, %v8790, 0.0
        %8874 = vadd.xlane.f32.xlu0 %v8873
        %v8875 = vpop.xlane.xlu0 %8874
        %v8876 = vsel %vm2095, %v8792, 0.0
        %8877 = vadd.xlane.f32.xlu0 %v8876
        %v8878 = vpop.xlane.xlu0 %8877
        %v8879 = vsel %vm2095, %v8794, 0.0
        %8880 = vadd.xlane.f32.xlu0 %v8879
        %v8881 = vpop.xlane.xlu0 %8880
        %v8882 = vsel %vm2095, %v8796, 0.0
        %8883 = vadd.xlane.f32.xlu0 %v8882
        %v8884 = vpop.xlane.xlu0 %8883
        %v8885 = vsel %vm2095, %v8798, 0.0
        %8886 = vadd.xlane.f32.xlu0 %v8885
        %v8887 = vpop.xlane.xlu0 %8886
        %v8888 = vsel %vm2095, %v8800, 0.0
        %8889 = vadd.xlane.f32.xlu0 %v8888
        %v8890 = vpop.xlane.xlu0 %8889
        %v8891 = vsel %vm2095, %v8802, 0.0
        %8892 = vadd.xlane.f32.xlu0 %v8891
        %v8893 = vpop.xlane.xlu0 %8892
        %v8894 = vsel %vm2095, %v8804, 0.0
        %8895 = vadd.xlane.f32.xlu0 %v8894
        %v8896 = vpop.xlane.xlu0 %8895
        %v8897 = vsel %vm2095, %v8806, 0.0
        %8898 = vadd.xlane.f32.xlu0 %v8897
        %v8899 = vpop.xlane.xlu0 %8898
        %v8900 = vsel %vm2095, %v8808, 0.0
        %8901 = vadd.xlane.f32.xlu0 %v8900
        %v8902 = vpop.xlane.xlu0 %8901
        %v8903 = vsel %vm2095, %v8810, 0.0
        %8904 = vadd.xlane.f32.xlu0 %v8903
        %v8905 = vpop.xlane.xlu0 %8904
        %v8906 = vsel %vm2095, %v8812, 0.0
        %8907 = vadd.xlane.f32.xlu0 %v8906
        %v8908 = vpop.xlane.xlu0 %8907
        %v8909 = vrcp.pop %v8815
        %v8910 = vrcp.pop %v8818
        %v8911 = vrcp.pop %v8821
        %v8912 = vrcp.pop %v8824
        %v8913 = vrcp.pop %v8827
        %v8914 = vrcp.pop %v8830
        %v8915 = vrcp.pop %v8833
        %v8916 = vrcp.pop %v8836
        %v8917 = vrcp.pop %v8839
        %v8918 = vrcp.pop %v8842
        %v8919 = vrcp.pop %v8845
        %v8920 = vrcp.pop %v8848
        %v8921 = vrcp.pop %v8851
        %v8922 = vrcp.pop %v8854
        %v8923 = vrcp.pop %v8857
        %v8924 = vrcp.pop %v8860
        %v8925 = vrcp.pop %v8863
        %v8926 = vrcp.pop %v8866
        %v8927 = vrcp.pop %v8869
        %v8928 = vrcp.pop %v8872
        %v8929 = vrcp.pop %v8875
        %v8930 = vrcp.pop %v8878
        %v8931 = vrcp.pop %v8881
        %v8932 = vrcp.pop %v8884
        %v8933 = vrcp.pop %v8887
        %v8934 = vrcp.pop %v8890
        %v8935 = vrcp.pop %v8893
        %v8936 = vrcp.pop %v8896
        %v8937 = vrcp.pop %v8899
        %v8938 = vrcp.pop %v8902
        %v8939 = vrcp.pop %v8905
        %v8940 = vrcp.pop %v8908
        %v8941 = vmul.f32 %v8750, %v8909
        %v8942 = vmul.f32 %v8752, %v8910
        %v8943 = vmul.f32 %v8754, %v8911
        %v8944 = vmul.f32 %v8756, %v8912
        %v8945 = vmul.f32 %v8758, %v8913
        %v8946 = vmul.f32 %v8760, %v8914
        %v8947 = vmul.f32 %v8762, %v8915
        %v8948 = vmul.f32 %v8764, %v8916
        %v8949 = vmul.f32 %v8766, %v8917
        %v8950 = vmul.f32 %v8768, %v8918
        %v8951 = vmul.f32 %v8770, %v8919
        %v8952 = vmul.f32 %v8772, %v8920
        %v8953 = vmul.f32 %v8774, %v8921
        %v8954 = vmul.f32 %v8776, %v8922
        %v8955 = vmul.f32 %v8778, %v8923
        %v8956 = vmul.f32 %v8780, %v8924
        %v8957 = vmul.f32 %v8782, %v8925
        %v8958 = vmul.f32 %v8784, %v8926
        %v8959 = vmul.f32 %v8786, %v8927
        %v8960 = vmul.f32 %v8788, %v8928
        %v8961 = vmul.f32 %v8790, %v8929
        %v8962 = vmul.f32 %v8792, %v8930
        %v8963 = vmul.f32 %v8794, %v8931
        %v8964 = vmul.f32 %v8796, %v8932
        %v8965 = vmul.f32 %v8798, %v8933
        %v8966 = vmul.f32 %v8800, %v8934
        %v8967 = vmul.f32 %v8802, %v8935
        %v8968 = vmul.f32 %v8804, %v8936
        %v8969 = vmul.f32 %v8806, %v8937
        %v8970 = vmul.f32 %v8808, %v8938
        %v8971 = vmul.f32 %v8810, %v8939
        %v8972 = vmul.f32 %v8812, %v8940
        %v8973 = vpack.c.bf16 %v8942, %v8941
        %v8974 = vpack.c.bf16 %v8944, %v8943
        %v8975 = vpack.c.bf16 %v8946, %v8945
        %v8976 = vpack.c.bf16 %v8948, %v8947
        %v8977 = vpack.c.bf16 %v8950, %v8949
        %v8978 = vpack.c.bf16 %v8952, %v8951
        %v8979 = vpack.c.bf16 %v8954, %v8953
        %v8980 = vpack.c.bf16 %v8956, %v8955
        %v8981 = vpack.c.bf16 %v8958, %v8957
        %v8982 = vpack.c.bf16 %v8960, %v8959
        %v8983 = vpack.c.bf16 %v8962, %v8961
        %v8984 = vpack.c.bf16 %v8964, %v8963
        %v8985 = vpack.c.bf16 %v8966, %v8965
        %v8986 = vpack.c.bf16 %v8968, %v8967
        %v8987 = vpack.c.bf16 %v8970, %v8969
        %v8988 = vpack.c.bf16 %v8972, %v8971
        %8989 = vrot.lane.b32.xlu0 %v1278, 40
        %v8990 = vpop.permute.xlu0 %8989
        %v8993 = vsel %vm2095, %v8973, 0
        %8995 = vmatprep.subr.bf16.mxu0 0
        %8996 = vmatpush1.bf16.msra.mxu0 %v8990
        %8997 = vmatprep.subr.bf16.mxu0 0
        %8998 = vmatpush1.bf16.msra.mxu0 0
        %8999 = vmatprep.subr.bf16.mxu0 0
        %9000 = vmatpush1.bf16.msra.mxu0 0
        %9001 = vmatprep.subr.bf16.mxu0 0
        %9002 = vmatpush1.bf16.msra.mxu0 0
        %9003 = vmatprep.subr.bf16.mxu0 0
        %9004 = vmatpush1.bf16.msra.mxu0 0
        %9005 = vmatprep.subr.bf16.mxu0 0
        %9006 = vmatpush1.bf16.msra.mxu0 0
        %9007 = vmatprep.subr.bf16.mxu0 0
        %9008 = vmatpush1.bf16.msra.mxu0 0
        %9009 = vmatprep.subr.bf16.mxu0 0
        %9010 = vmatpush1.bf16.msra.mxu0 0
        %9011 = vmatprep.subr.bf16.mxu0 0
        %9012 = vmatpush1.bf16.msra.mxu0 0
        %9013 = vmatprep.subr.bf16.mxu0 0
        %9014 = vmatpush1.bf16.msra.mxu0 0
        %9015 = vmatprep.subr.bf16.mxu0 0
        %9016 = vmatpush1.bf16.msra.mxu0 0
        %9017 = vmatprep.subr.bf16.mxu0 0
        %9018 = vmatpush1.bf16.msra.mxu0 0
        %9019 = vmatprep.subr.bf16.mxu0 0
        %9020 = vmatpush1.bf16.msra.mxu0 0
        %9021 = vmatprep.subr.bf16.mxu0 0
        %9022 = vmatpush1.bf16.msra.mxu0 0
        %9023 = vmatprep.subr.bf16.mxu0 0
        %9024 = vmatpush1.bf16.msra.mxu0 0
        %9025 = vmatprep.subr.bf16.mxu0 0
        %9026 = vmatpush1.bf16.msra.mxu0 0
        %9027 = vmatprep.mubr.bf16.mxu0 0
        %9028 = vmatmul.mubr.bf16.gmra.mrb[0].mxu0 %v8993
        %v9029 = vpop.f32.mrb[0].mxu0
        %v9030 = vadd.f32 0.0, %v9029
        %v9031 = vpop.f32.mrb[0].mxu0
        %v9032 = vpop.f32.mrb[0].mxu0
        %v9033 = vadd.f32 0.0, %v9032
        %v9034 = vpop.f32.mrb[0].mxu0
        %9035 = vdwg.mxu0
        %9036 = vrot.lane.b32.xlu0 %v1279, 40
        %v9037 = vpop.permute.xlu0 %9036
        %v9040 = vsel %vm2095, %v8974, 0
        %9042 = vmatprep.subr.bf16.mxu0 0
        %9043 = vmatpush1.bf16.msra.mxu0 %v9037
        %9044 = vmatprep.subr.bf16.mxu0 0
        %9045 = vmatpush1.bf16.msra.mxu0 0
        %9046 = vmatprep.subr.bf16.mxu0 0
        %9047 = vmatpush1.bf16.msra.mxu0 0
        %9048 = vmatprep.subr.bf16.mxu0 0
        %9049 = vmatpush1.bf16.msra.mxu0 0
        %9050 = vmatprep.subr.bf16.mxu0 0
        %9051 = vmatpush1.bf16.msra.mxu0 0
        %9052 = vmatprep.subr.bf16.mxu0 0
        %9053 = vmatpush1.bf16.msra.mxu0 0
        %9054 = vmatprep.subr.bf16.mxu0 0
        %9055 = vmatpush1.bf16.msra.mxu0 0
        %9056 = vmatprep.subr.bf16.mxu0 0
        %9057 = vmatpush1.bf16.msra.mxu0 0
        %9058 = vmatprep.subr.bf16.mxu0 0
        %9059 = vmatpush1.bf16.msra.mxu0 0
        %9060 = vmatprep.subr.bf16.mxu0 0
        %9061 = vmatpush1.bf16.msra.mxu0 0
        %9062 = vmatprep.subr.bf16.mxu0 0
        %9063 = vmatpush1.bf16.msra.mxu0 0
        %9064 = vmatprep.subr.bf16.mxu0 0
        %9065 = vmatpush1.bf16.msra.mxu0 0
        %9066 = vmatprep.subr.bf16.mxu0 0
        %9067 = vmatpush1.bf16.msra.mxu0 0
        %9068 = vmatprep.subr.bf16.mxu0 0
        %9069 = vmatpush1.bf16.msra.mxu0 0
        %9070 = vmatprep.subr.bf16.mxu0 0
        %9071 = vmatpush1.bf16.msra.mxu0 0
        %9072 = vmatprep.subr.bf16.mxu0 0
        %9073 = vmatpush1.bf16.msra.mxu0 0
        %9074 = vmatprep.mubr.bf16.mxu0 0
        %9075 = vmatmul.mubr.bf16.gmra.mrb[0].mxu0 %v9040
        %v9076 = vpop.f32.mrb[0].mxu0
        %v9077 = vadd.f32 0.0, %v9076
        %v9078 = vpop.f32.mrb[0].mxu0
        %v9079 = vpop.f32.mrb[0].mxu0
        %v9080 = vadd.f32 0.0, %v9079
        %v9081 = vpop.f32.mrb[0].mxu0
        %9082 = vdwg.mxu0
        %9083 = vrot.lane.b32.xlu0 %v1280, 40
        %v9084 = vpop.permute.xlu0 %9083
        %v9087 = vsel %vm2095, %v8975, 0
        %9089 = vmatprep.subr.bf16.mxu0 0
        %9090 = vmatpush1.bf16.msra.mxu0 %v9084
        %9091 = vmatprep.subr.bf16.mxu0 0
        %9092 = vmatpush1.bf16.msra.mxu0 0
        %9093 = vmatprep.subr.bf16.mxu0 0
        %9094 = vmatpush1.bf16.msra.mxu0 0
        %9095 = vmatprep.subr.bf16.mxu0 0
        %9096 = vmatpush1.bf16.msra.mxu0 0
        %9097 = vmatprep.subr.bf16.mxu0 0
        %9098 = vmatpush1.bf16.msra.mxu0 0
        %9099 = vmatprep.subr.bf16.mxu0 0
        %9100 = vmatpush1.bf16.msra.mxu0 0
        %9101 = vmatprep.subr.bf16.mxu0 0
        %9102 = vmatpush1.bf16.msra.mxu0 0
        %9103 = vmatprep.subr.bf16.mxu0 0
        %9104 = vmatpush1.bf16.msra.mxu0 0
        %9105 = vmatprep.subr.bf16.mxu0 0
        %9106 = vmatpush1.bf16.msra.mxu0 0
        %9107 = vmatprep.subr.bf16.mxu0 0
        %9108 = vmatpush1.bf16.msra.mxu0 0
        %9109 = vmatprep.subr.bf16.mxu0 0
        %9110 = vmatpush1.bf16.msra.mxu0 0
        %9111 = vmatprep.subr.bf16.mxu0 0
        %9112 = vmatpush1.bf16.msra.mxu0 0
        %9113 = vmatprep.subr.bf16.mxu0 0
        %9114 = vmatpush1.bf16.msra.mxu0 0
        %9115 = vmatprep.subr.bf16.mxu0 0
        %9116 = vmatpush1.bf16.msra.mxu0 0
        %9117 = vmatprep.subr.bf16.mxu0 0
        %9118 = vmatpush1.bf16.msra.mxu0 0
        %9119 = vmatprep.subr.bf16.mxu0 0
        %9120 = vmatpush1.bf16.msra.mxu0 0
        %9121 = vmatprep.mubr.bf16.mxu0 0
        %9122 = vmatmul.mubr.bf16.gmra.mrb[0].mxu0 %v9087
        %v9123 = vpop.f32.mrb[0].mxu0
        %v9124 = vadd.f32 0.0, %v9123
        %v9125 = vpop.f32.mrb[0].mxu0
        %v9126 = vpop.f32.mrb[0].mxu0
        %v9127 = vadd.f32 0.0, %v9126
        %v9128 = vpop.f32.mrb[0].mxu0
        %9129 = vdwg.mxu0
        %9130 = vrot.lane.b32.xlu0 %v1281, 40
        %v9131 = vpop.permute.xlu0 %9130
        %v9134 = vsel %vm2095, %v8976, 0
        %9136 = vmatprep.subr.bf16.mxu0 0
        %9137 = vmatpush1.bf16.msra.mxu0 %v9131
        %9138 = vmatprep.subr.bf16.mxu0 0
        %9139 = vmatpush1.bf16.msra.mxu0 0
        %9140 = vmatprep.subr.bf16.mxu0 0
        %9141 = vmatpush1.bf16.msra.mxu0 0
        %9142 = vmatprep.subr.bf16.mxu0 0
        %9143 = vmatpush1.bf16.msra.mxu0 0
        %9144 = vmatprep.subr.bf16.mxu0 0
        %9145 = vmatpush1.bf16.msra.mxu0 0
        %9146 = vmatprep.subr.bf16.mxu0 0
        %9147 = vmatpush1.bf16.msra.mxu0 0
        %9148 = vmatprep.subr.bf16.mxu0 0
        %9149 = vmatpush1.bf16.msra.mxu0 0
        %9150 = vmatprep.subr.bf16.mxu0 0
        %9151 = vmatpush1.bf16.msra.mxu0 0
        %9152 = vmatprep.subr.bf16.mxu0 0
        %9153 = vmatpush1.bf16.msra.mxu0 0
        %9154 = vmatprep.subr.bf16.mxu0 0
        %9155 = vmatpush1.bf16.msra.mxu0 0
        %9156 = vmatprep.subr.bf16.mxu0 0
        %9157 = vmatpush1.bf16.msra.mxu0 0
        %9158 = vmatprep.subr.bf16.mxu0 0
        %9159 = vmatpush1.bf16.msra.mxu0 0
        %9160 = vmatprep.subr.bf16.mxu0 0
        %9161 = vmatpush1.bf16.msra.mxu0 0
        %9162 = vmatprep.subr.bf16.mxu0 0
        %9163 = vmatpush1.bf16.msra.mxu0 0
        %9164 = vmatprep.subr.bf16.mxu0 0
        %9165 = vmatpush1.bf16.msra.mxu0 0
        %9166 = vmatprep.subr.bf16.mxu0 0
        %9167 = vmatpush1.bf16.msra.mxu0 0
        %9168 = vmatprep.mubr.bf16.mxu0 0
        %9169 = vmatmul.mubr.bf16.gmra.mrb[0].mxu0 %v9134
        %v9170 = vpop.f32.mrb[0].mxu0
        %v9171 = vadd.f32 0.0, %v9170
        %v9172 = vpop.f32.mrb[0].mxu0
        %v9173 = vpop.f32.mrb[0].mxu0
        %v9174 = vadd.f32 0.0, %v9173
        %v9175 = vpop.f32.mrb[0].mxu0
        %9176 = vdwg.mxu0
        %9177 = vrot.lane.b32.xlu0 %v1282, 40
        %v9178 = vpop.permute.xlu0 %9177
        %v9181 = vsel %vm2095, %v8977, 0
        %9183 = vmatprep.subr.bf16.mxu0 0
        %9184 = vmatpush1.bf16.msra.mxu0 %v9178
        %9185 = vmatprep.subr.bf16.mxu0 0
        %9186 = vmatpush1.bf16.msra.mxu0 0
        %9187 = vmatprep.subr.bf16.mxu0 0
        %9188 = vmatpush1.bf16.msra.mxu0 0
        %9189 = vmatprep.subr.bf16.mxu0 0
        %9190 = vmatpush1.bf16.msra.mxu0 0
        %9191 = vmatprep.subr.bf16.mxu0 0
        %9192 = vmatpush1.bf16.msra.mxu0 0
        %9193 = vmatprep.subr.bf16.mxu0 0
        %9194 = vmatpush1.bf16.msra.mxu0 0
        %9195 = vmatprep.subr.bf16.mxu0 0
        %9196 = vmatpush1.bf16.msra.mxu0 0
        %9197 = vmatprep.subr.bf16.mxu0 0
        %9198 = vmatpush1.bf16.msra.mxu0 0
        %9199 = vmatprep.subr.bf16.mxu0 0
        %9200 = vmatpush1.bf16.msra.mxu0 0
        %9201 = vmatprep.subr.bf16.mxu0 0
        %9202 = vmatpush1.bf16.msra.mxu0 0
        %9203 = vmatprep.subr.bf16.mxu0 0
        %9204 = vmatpush1.bf16.msra.mxu0 0
        %9205 = vmatprep.subr.bf16.mxu0 0
        %9206 = vmatpush1.bf16.msra.mxu0 0
        %9207 = vmatprep.subr.bf16.mxu0 0
        %9208 = vmatpush1.bf16.msra.mxu0 0
        %9209 = vmatprep.subr.bf16.mxu0 0
        %9210 = vmatpush1.bf16.msra.mxu0 0
        %9211 = vmatprep.subr.bf16.mxu0 0
        %9212 = vmatpush1.bf16.msra.mxu0 0
        %9213 = vmatprep.subr.bf16.mxu0 0
        %9214 = vmatpush1.bf16.msra.mxu0 0
        %9215 = vmatprep.mubr.bf16.mxu0 0
        %9216 = vmatmul.mubr.bf16.gmra.mrb[0].mxu0 %v9181
        %v9217 = vpop.f32.mrb[0].mxu0
        %v9218 = vadd.f32 0.0, %v9217
        %v9219 = vpop.f32.mrb[0].mxu0
        %v9220 = vpop.f32.mrb[0].mxu0
        %v9221 = vadd.f32 0.0, %v9220
        %v9222 = vpop.f32.mrb[0].mxu0
        %9223 = vdwg.mxu0
        %9224 = vrot.lane.b32.xlu0 %v1283, 40
        %v9225 = vpop.permute.xlu0 %9224
        %v9228 = vsel %vm2095, %v8978, 0
        %9230 = vmatprep.subr.bf16.mxu0 0
        %9231 = vmatpush1.bf16.msra.mxu0 %v9225
        %9232 = vmatprep.subr.bf16.mxu0 0
        %9233 = vmatpush1.bf16.msra.mxu0 0
        %9234 = vmatprep.subr.bf16.mxu0 0
        %9235 = vmatpush1.bf16.msra.mxu0 0
        %9236 = vmatprep.subr.bf16.mxu0 0
        %9237 = vmatpush1.bf16.msra.mxu0 0
        %9238 = vmatprep.subr.bf16.mxu0 0
        %9239 = vmatpush1.bf16.msra.mxu0 0
        %9240 = vmatprep.subr.bf16.mxu0 0
        %9241 = vmatpush1.bf16.msra.mxu0 0
        %9242 = vmatprep.subr.bf16.mxu0 0
        %9243 = vmatpush1.bf16.msra.mxu0 0
        %9244 = vmatprep.subr.bf16.mxu0 0
        %9245 = vmatpush1.bf16.msra.mxu0 0
        %9246 = vmatprep.subr.bf16.mxu0 0
        %9247 = vmatpush1.bf16.msra.mxu0 0
        %9248 = vmatprep.subr.bf16.mxu0 0
        %9249 = vmatpush1.bf16.msra.mxu0 0
        %9250 = vmatprep.subr.bf16.mxu0 0
        %9251 = vmatpush1.bf16.msra.mxu0 0
        %9252 = vmatprep.subr.bf16.mxu0 0
        %9253 = vmatpush1.bf16.msra.mxu0 0
        %9254 = vmatprep.subr.bf16.mxu0 0
        %9255 = vmatpush1.bf16.msra.mxu0 0
        %9256 = vmatprep.subr.bf16.mxu0 0
        %9257 = vmatpush1.bf16.msra.mxu0 0
        %9258 = vmatprep.subr.bf16.mxu0 0
        %9259 = vmatpush1.bf16.msra.mxu0 0
        %9260 = vmatprep.subr.bf16.mxu0 0
        %9261 = vmatpush1.bf16.msra.mxu0 0
        %9262 = vmatprep.mubr.bf16.mxu0 0
        %9263 = vmatmul.mubr.bf16.gmra.mrb[0].mxu0 %v9228
        %v9264 = vpop.f32.mrb[0].mxu0
        %v9265 = vadd.f32 0.0, %v9264
        %v9266 = vpop.f32.mrb[0].mxu0
        %v9267 = vpop.f32.mrb[0].mxu0
        %v9268 = vadd.f32 0.0, %v9267
        %v9269 = vpop.f32.mrb[0].mxu0
        %9270 = vdwg.mxu0
        %9271 = vrot.lane.b32.xlu0 %v1284, 40
        %v9272 = vpop.permute.xlu0 %9271
        %v9275 = vsel %vm2095, %v8979, 0
        %9277 = vmatprep.subr.bf16.mxu0 0
        %9278 = vmatpush1.bf16.msra.mxu0 %v9272
        %9279 = vmatprep.subr.bf16.mxu0 0
        %9280 = vmatpush1.bf16.msra.mxu0 0
        %9281 = vmatprep.subr.bf16.mxu0 0
        %9282 = vmatpush1.bf16.msra.mxu0 0
        %9283 = vmatprep.subr.bf16.mxu0 0
        %9284 = vmatpush1.bf16.msra.mxu0 0
        %9285 = vmatprep.subr.bf16.mxu0 0
        %9286 = vmatpush1.bf16.msra.mxu0 0
        %9287 = vmatprep.subr.bf16.mxu0 0
        %9288 = vmatpush1.bf16.msra.mxu0 0
        %9289 = vmatprep.subr.bf16.mxu0 0
        %9290 = vmatpush1.bf16.msra.mxu0 0
        %9291 = vmatprep.subr.bf16.mxu0 0
        %9292 = vmatpush1.bf16.msra.mxu0 0
        %9293 = vmatprep.subr.bf16.mxu0 0
        %9294 = vmatpush1.bf16.msra.mxu0 0
        %9295 = vmatprep.subr.bf16.mxu0 0
        %9296 = vmatpush1.bf16.msra.mxu0 0
        %9297 = vmatprep.subr.bf16.mxu0 0
        %9298 = vmatpush1.bf16.msra.mxu0 0
        %9299 = vmatprep.subr.bf16.mxu0 0
        %9300 = vmatpush1.bf16.msra.mxu0 0
        %9301 = vmatprep.subr.bf16.mxu0 0
        %9302 = vmatpush1.bf16.msra.mxu0 0
        %9303 = vmatprep.subr.bf16.mxu0 0
        %9304 = vmatpush1.bf16.msra.mxu0 0
        %9305 = vmatprep.subr.bf16.mxu0 0
        %9306 = vmatpush1.bf16.msra.mxu0 0
        %9307 = vmatprep.subr.bf16.mxu0 0
        %9308 = vmatpush1.bf16.msra.mxu0 0
        %9309 = vmatprep.mubr.bf16.mxu0 0
        %9310 = vmatmul.mubr.bf16.gmra.mrb[0].mxu0 %v9275
        %v9311 = vpop.f32.mrb[0].mxu0
        %v9312 = vadd.f32 0.0, %v9311
        %v9313 = vpop.f32.mrb[0].mxu0
        %v9314 = vpop.f32.mrb[0].mxu0
        %v9315 = vadd.f32 0.0, %v9314
        %v9316 = vpop.f32.mrb[0].mxu0
        %9317 = vdwg.mxu0
        %9318 = vrot.lane.b32.xlu0 %v1285, 40
        %v9319 = vpop.permute.xlu0 %9318
        %v9322 = vsel %vm2095, %v8980, 0
        %9324 = vmatprep.subr.bf16.mxu0 0
        %9325 = vmatpush1.bf16.msra.mxu0 %v9319
        %9326 = vmatprep.subr.bf16.mxu0 0
        %9327 = vmatpush1.bf16.msra.mxu0 0
        %9328 = vmatprep.subr.bf16.mxu0 0
        %9329 = vmatpush1.bf16.msra.mxu0 0
        %9330 = vmatprep.subr.bf16.mxu0 0
        %9331 = vmatpush1.bf16.msra.mxu0 0
        %9332 = vmatprep.subr.bf16.mxu0 0
        %9333 = vmatpush1.bf16.msra.mxu0 0
        %9334 = vmatprep.subr.bf16.mxu0 0
        %9335 = vmatpush1.bf16.msra.mxu0 0
        %9336 = vmatprep.subr.bf16.mxu0 0
        %9337 = vmatpush1.bf16.msra.mxu0 0
        %9338 = vmatprep.subr.bf16.mxu0 0
        %9339 = vmatpush1.bf16.msra.mxu0 0
        %9340 = vmatprep.subr.bf16.mxu0 0
        %9341 = vmatpush1.bf16.msra.mxu0 0
        %9342 = vmatprep.subr.bf16.mxu0 0
        %9343 = vmatpush1.bf16.msra.mxu0 0
        %9344 = vmatprep.subr.bf16.mxu0 0
        %9345 = vmatpush1.bf16.msra.mxu0 0
        %9346 = vmatprep.subr.bf16.mxu0 0
        %9347 = vmatpush1.bf16.msra.mxu0 0
        %9348 = vmatprep.subr.bf16.mxu0 0
        %9349 = vmatpush1.bf16.msra.mxu0 0
        %9350 = vmatprep.subr.bf16.mxu0 0
        %9351 = vmatpush1.bf16.msra.mxu0 0
        %9352 = vmatprep.subr.bf16.mxu0 0
        %9353 = vmatpush1.bf16.msra.mxu0 0
        %9354 = vmatprep.subr.bf16.mxu0 0
        %9355 = vmatpush1.bf16.msra.mxu0 0
        %9356 = vmatprep.mubr.bf16.mxu0 0
        %9357 = vmatmul.mubr.bf16.gmra.mrb[0].mxu0 %v9322
        %v9358 = vpop.f32.mrb[0].mxu0
        %v9359 = vadd.f32 0.0, %v9358
        %v9360 = vpop.f32.mrb[0].mxu0
        %v9361 = vpop.f32.mrb[0].mxu0
        %v9362 = vadd.f32 0.0, %v9361
        %v9363 = vpop.f32.mrb[0].mxu0
        %9364 = vdwg.mxu0
        %9365 = vrot.lane.b32.xlu0 %v1286, 40
        %v9366 = vpop.permute.xlu0 %9365
        %v9369 = vsel %vm2095, %v8981, 0
        %9371 = vmatprep.subr.bf16.mxu0 0
        %9372 = vmatpush1.bf16.msra.mxu0 %v9366
        %9373 = vmatprep.subr.bf16.mxu0 0
        %9374 = vmatpush1.bf16.msra.mxu0 0
        %9375 = vmatprep.subr.bf16.mxu0 0
        %9376 = vmatpush1.bf16.msra.mxu0 0
        %9377 = vmatprep.subr.bf16.mxu0 0
        %9378 = vmatpush1.bf16.msra.mxu0 0
        %9379 = vmatprep.subr.bf16.mxu0 0
        %9380 = vmatpush1.bf16.msra.mxu0 0
        %9381 = vmatprep.subr.bf16.mxu0 0
        %9382 = vmatpush1.bf16.msra.mxu0 0
        %9383 = vmatprep.subr.bf16.mxu0 0
        %9384 = vmatpush1.bf16.msra.mxu0 0
        %9385 = vmatprep.subr.bf16.mxu0 0
        %9386 = vmatpush1.bf16.msra.mxu0 0
        %9387 = vmatprep.subr.bf16.mxu0 0
        %9388 = vmatpush1.bf16.msra.mxu0 0
        %9389 = vmatprep.subr.bf16.mxu0 0
        %9390 = vmatpush1.bf16.msra.mxu0 0
        %9391 = vmatprep.subr.bf16.mxu0 0
        %9392 = vmatpush1.bf16.msra.mxu0 0
        %9393 = vmatprep.subr.bf16.mxu0 0
        %9394 = vmatpush1.bf16.msra.mxu0 0
        %9395 = vmatprep.subr.bf16.mxu0 0
        %9396 = vmatpush1.bf16.msra.mxu0 0
        %9397 = vmatprep.subr.bf16.mxu0 0
        %9398 = vmatpush1.bf16.msra.mxu0 0
        %9399 = vmatprep.subr.bf16.mxu0 0
        %9400 = vmatpush1.bf16.msra.mxu0 0
        %9401 = vmatprep.subr.bf16.mxu0 0
        %9402 = vmatpush1.bf16.msra.mxu0 0
        %9403 = vmatprep.mubr.bf16.mxu0 0
        %9404 = vmatmul.mubr.bf16.gmra.mrb[0].mxu0 %v9369
        %v9405 = vpop.f32.mrb[0].mxu0
        %v9406 = vadd.f32 0.0, %v9405
        %v9407 = vpop.f32.mrb[0].mxu0
        %v9408 = vpop.f32.mrb[0].mxu0
        %v9409 = vadd.f32 0.0, %v9408
        %v9410 = vpop.f32.mrb[0].mxu0
        %9411 = vdwg.mxu0
        %9412 = vrot.lane.b32.xlu0 %v1287, 40
        %v9413 = vpop.permute.xlu0 %9412
        %v9416 = vsel %vm2095, %v8982, 0
        %9418 = vmatprep.subr.bf16.mxu0 0
        %9419 = vmatpush1.bf16.msra.mxu0 %v9413
        %9420 = vmatprep.subr.bf16.mxu0 0
        %9421 = vmatpush1.bf16.msra.mxu0 0
        %9422 = vmatprep.subr.bf16.mxu0 0
        %9423 = vmatpush1.bf16.msra.mxu0 0
        %9424 = vmatprep.subr.bf16.mxu0 0
        %9425 = vmatpush1.bf16.msra.mxu0 0
        %9426 = vmatprep.subr.bf16.mxu0 0
        %9427 = vmatpush1.bf16.msra.mxu0 0
        %9428 = vmatprep.subr.bf16.mxu0 0
        %9429 = vmatpush1.bf16.msra.mxu0 0
        %9430 = vmatprep.subr.bf16.mxu0 0
        %9431 = vmatpush1.bf16.msra.mxu0 0
        %9432 = vmatprep.subr.bf16.mxu0 0
        %9433 = vmatpush1.bf16.msra.mxu0 0
        %9434 = vmatprep.subr.bf16.mxu0 0
        %9435 = vmatpush1.bf16.msra.mxu0 0
        %9436 = vmatprep.subr.bf16.mxu0 0
        %9437 = vmatpush1.bf16.msra.mxu0 0
        %9438 = vmatprep.subr.bf16.mxu0 0
        %9439 = vmatpush1.bf16.msra.mxu0 0
        %9440 = vmatprep.subr.bf16.mxu0 0
        %9441 = vmatpush1.bf16.msra.mxu0 0
        %9442 = vmatprep.subr.bf16.mxu0 0
        %9443 = vmatpush1.bf16.msra.mxu0 0
        %9444 = vmatprep.subr.bf16.mxu0 0
        %9445 = vmatpush1.bf16.msra.mxu0 0
        %9446 = vmatprep.subr.bf16.mxu0 0
        %9447 = vmatpush1.bf16.msra.mxu0 0
        %9448 = vmatprep.subr.bf16.mxu0 0
        %9449 = vmatpush1.bf16.msra.mxu0 0
        %9450 = vmatprep.mubr.bf16.mxu0 0
        %9451 = vmatmul.mubr.bf16.gmra.mrb[0].mxu0 %v9416
        %v9452 = vpop.f32.mrb[0].mxu0
        %v9453 = vadd.f32 0.0, %v9452
        %v9454 = vpop.f32.mrb[0].mxu0
        %v9455 = vpop.f32.mrb[0].mxu0
        %v9456 = vadd.f32 0.0, %v9455
        %v9457 = vpop.f32.mrb[0].mxu0
        %9458 = vdwg.mxu0
        %9459 = vrot.lane.b32.xlu0 %v1288, 40
        %v9460 = vpop.permute.xlu0 %9459
        %v9463 = vsel %vm2095, %v8983, 0
        %9465 = vmatprep.subr.bf16.mxu0 0
        %9466 = vmatpush1.bf16.msra.mxu0 %v9460
        %9467 = vmatprep.subr.bf16.mxu0 0
        %9468 = vmatpush1.bf16.msra.mxu0 0
        %9469 = vmatprep.subr.bf16.mxu0 0
        %9470 = vmatpush1.bf16.msra.mxu0 0
        %9471 = vmatprep.subr.bf16.mxu0 0
        %9472 = vmatpush1.bf16.msra.mxu0 0
        %9473 = vmatprep.subr.bf16.mxu0 0
        %9474 = vmatpush1.bf16.msra.mxu0 0
        %9475 = vmatprep.subr.bf16.mxu0 0
        %9476 = vmatpush1.bf16.msra.mxu0 0
        %9477 = vmatprep.subr.bf16.mxu0 0
        %9478 = vmatpush1.bf16.msra.mxu0 0
        %9479 = vmatprep.subr.bf16.mxu0 0
        %9480 = vmatpush1.bf16.msra.mxu0 0
        %9481 = vmatprep.subr.bf16.mxu0 0
        %9482 = vmatpush1.bf16.msra.mxu0 0
        %9483 = vmatprep.subr.bf16.mxu0 0
        %9484 = vmatpush1.bf16.msra.mxu0 0
        %9485 = vmatprep.subr.bf16.mxu0 0
        %9486 = vmatpush1.bf16.msra.mxu0 0
        %9487 = vmatprep.subr.bf16.mxu0 0
        %9488 = vmatpush1.bf16.msra.mxu0 0
        %9489 = vmatprep.subr.bf16.mxu0 0
        %9490 = vmatpush1.bf16.msra.mxu0 0
        %9491 = vmatprep.subr.bf16.mxu0 0
        %9492 = vmatpush1.bf16.msra.mxu0 0
        %9493 = vmatprep.subr.bf16.mxu0 0
        %9494 = vmatpush1.bf16.msra.mxu0 0
        %9495 = vmatprep.subr.bf16.mxu0 0
        %9496 = vmatpush1.bf16.msra.mxu0 0
        %9497 = vmatprep.mubr.bf16.mxu0 0
        %9498 = vmatmul.mubr.bf16.gmra.mrb[0].mxu0 %v9463
        %v9499 = vpop.f32.mrb[0].mxu0
        %v9500 = vadd.f32 0.0, %v9499
        %v9501 = vpop.f32.mrb[0].mxu0
        %v9502 = vpop.f32.mrb[0].mxu0
        %v9503 = vadd.f32 0.0, %v9502
        %v9504 = vpop.f32.mrb[0].mxu0
        %9505 = vdwg.mxu0
        %9506 = vrot.lane.b32.xlu0 %v1289, 40
        %v9507 = vpop.permute.xlu0 %9506
        %v9510 = vsel %vm2095, %v8984, 0
        %9512 = vmatprep.subr.bf16.mxu0 0
        %9513 = vmatpush1.bf16.msra.mxu0 %v9507
        %9514 = vmatprep.subr.bf16.mxu0 0
        %9515 = vmatpush1.bf16.msra.mxu0 0
        %9516 = vmatprep.subr.bf16.mxu0 0
        %9517 = vmatpush1.bf16.msra.mxu0 0
        %9518 = vmatprep.subr.bf16.mxu0 0
        %9519 = vmatpush1.bf16.msra.mxu0 0
        %9520 = vmatprep.subr.bf16.mxu0 0
        %9521 = vmatpush1.bf16.msra.mxu0 0
        %9522 = vmatprep.subr.bf16.mxu0 0
        %9523 = vmatpush1.bf16.msra.mxu0 0
        %9524 = vmatprep.subr.bf16.mxu0 0
        %9525 = vmatpush1.bf16.msra.mxu0 0
        %9526 = vmatprep.subr.bf16.mxu0 0
        %9527 = vmatpush1.bf16.msra.mxu0 0
        %9528 = vmatprep.subr.bf16.mxu0 0
        %9529 = vmatpush1.bf16.msra.mxu0 0
        %9530 = vmatprep.subr.bf16.mxu0 0
        %9531 = vmatpush1.bf16.msra.mxu0 0
        %9532 = vmatprep.subr.bf16.mxu0 0
        %9533 = vmatpush1.bf16.msra.mxu0 0
        %9534 = vmatprep.subr.bf16.mxu0 0
        %9535 = vmatpush1.bf16.msra.mxu0 0
        %9536 = vmatprep.subr.bf16.mxu0 0
        %9537 = vmatpush1.bf16.msra.mxu0 0
        %9538 = vmatprep.subr.bf16.mxu0 0
        %9539 = vmatpush1.bf16.msra.mxu0 0
        %9540 = vmatprep.subr.bf16.mxu0 0
        %9541 = vmatpush1.bf16.msra.mxu0 0
        %9542 = vmatprep.subr.bf16.mxu0 0
        %9543 = vmatpush1.bf16.msra.mxu0 0
        %9544 = vmatprep.mubr.bf16.mxu0 0
        %9545 = vmatmul.mubr.bf16.gmra.mrb[0].mxu0 %v9510
        %v9546 = vpop.f32.mrb[0].mxu0
        %v9547 = vadd.f32 0.0, %v9546
        %v9548 = vpop.f32.mrb[0].mxu0
        %v9549 = vpop.f32.mrb[0].mxu0
        %v9550 = vadd.f32 0.0, %v9549
        %v9551 = vpop.f32.mrb[0].mxu0
        %9552 = vdwg.mxu0
        %9553 = vrot.lane.b32.xlu0 %v1290, 40
        %v9554 = vpop.permute.xlu0 %9553
        %v9557 = vsel %vm2095, %v8985, 0
        %9559 = vmatprep.subr.bf16.mxu0 0
        %9560 = vmatpush1.bf16.msra.mxu0 %v9554
        %9561 = vmatprep.subr.bf16.mxu0 0
        %9562 = vmatpush1.bf16.msra.mxu0 0
        %9563 = vmatprep.subr.bf16.mxu0 0
        %9564 = vmatpush1.bf16.msra.mxu0 0
        %9565 = vmatprep.subr.bf16.mxu0 0
        %9566 = vmatpush1.bf16.msra.mxu0 0
        %9567 = vmatprep.subr.bf16.mxu0 0
        %9568 = vmatpush1.bf16.msra.mxu0 0
        %9569 = vmatprep.subr.bf16.mxu0 0
        %9570 = vmatpush1.bf16.msra.mxu0 0
        %9571 = vmatprep.subr.bf16.mxu0 0
        %9572 = vmatpush1.bf16.msra.mxu0 0
        %9573 = vmatprep.subr.bf16.mxu0 0
        %9574 = vmatpush1.bf16.msra.mxu0 0
        %9575 = vmatprep.subr.bf16.mxu0 0
        %9576 = vmatpush1.bf16.msra.mxu0 0
        %9577 = vmatprep.subr.bf16.mxu0 0
        %9578 = vmatpush1.bf16.msra.mxu0 0
        %9579 = vmatprep.subr.bf16.mxu0 0
        %9580 = vmatpush1.bf16.msra.mxu0 0
        %9581 = vmatprep.subr.bf16.mxu0 0
        %9582 = vmatpush1.bf16.msra.mxu0 0
        %9583 = vmatprep.subr.bf16.mxu0 0
        %9584 = vmatpush1.bf16.msra.mxu0 0
        %9585 = vmatprep.subr.bf16.mxu0 0
        %9586 = vmatpush1.bf16.msra.mxu0 0
        %9587 = vmatprep.subr.bf16.mxu0 0
        %9588 = vmatpush1.bf16.msra.mxu0 0
        %9589 = vmatprep.subr.bf16.mxu0 0
        %9590 = vmatpush1.bf16.msra.mxu0 0
        %9591 = vmatprep.mubr.bf16.mxu0 0
        %9592 = vmatmul.mubr.bf16.gmra.mrb[0].mxu0 %v9557
        %v9593 = vpop.f32.mrb[0].mxu0
        %v9594 = vadd.f32 0.0, %v9593
        %v9595 = vpop.f32.mrb[0].mxu0
        %v9596 = vpop.f32.mrb[0].mxu0
        %v9597 = vadd.f32 0.0, %v9596
        %v9598 = vpop.f32.mrb[0].mxu0
        %9599 = vdwg.mxu0
        %9600 = vrot.lane.b32.xlu0 %v1291, 40
        %v9601 = vpop.permute.xlu0 %9600
        %v9604 = vsel %vm2095, %v8986, 0
        %9606 = vmatprep.subr.bf16.mxu0 0
        %9607 = vmatpush1.bf16.msra.mxu0 %v9601
        %9608 = vmatprep.subr.bf16.mxu0 0
        %9609 = vmatpush1.bf16.msra.mxu0 0
        %9610 = vmatprep.subr.bf16.mxu0 0
        %9611 = vmatpush1.bf16.msra.mxu0 0
        %9612 = vmatprep.subr.bf16.mxu0 0
        %9613 = vmatpush1.bf16.msra.mxu0 0
        %9614 = vmatprep.subr.bf16.mxu0 0
        %9615 = vmatpush1.bf16.msra.mxu0 0
        %9616 = vmatprep.subr.bf16.mxu0 0
        %9617 = vmatpush1.bf16.msra.mxu0 0
        %9618 = vmatprep.subr.bf16.mxu0 0
        %9619 = vmatpush1.bf16.msra.mxu0 0
        %9620 = vmatprep.subr.bf16.mxu0 0
        %9621 = vmatpush1.bf16.msra.mxu0 0
        %9622 = vmatprep.subr.bf16.mxu0 0
        %9623 = vmatpush1.bf16.msra.mxu0 0
        %9624 = vmatprep.subr.bf16.mxu0 0
        %9625 = vmatpush1.bf16.msra.mxu0 0
        %9626 = vmatprep.subr.bf16.mxu0 0
        %9627 = vmatpush1.bf16.msra.mxu0 0
        %9628 = vmatprep.subr.bf16.mxu0 0
        %9629 = vmatpush1.bf16.msra.mxu0 0
        %9630 = vmatprep.subr.bf16.mxu0 0
        %9631 = vmatpush1.bf16.msra.mxu0 0
        %9632 = vmatprep.subr.bf16.mxu0 0
        %9633 = vmatpush1.bf16.msra.mxu0 0
        %9634 = vmatprep.subr.bf16.mxu0 0
        %9635 = vmatpush1.bf16.msra.mxu0 0
        %9636 = vmatprep.subr.bf16.mxu0 0
        %9637 = vmatpush1.bf16.msra.mxu0 0
        %9638 = vmatprep.mubr.bf16.mxu0 0
        %9639 = vmatmul.mubr.bf16.gmra.mrb[0].mxu0 %v9604
        %v9640 = vpop.f32.mrb[0].mxu0
        %v9641 = vadd.f32 0.0, %v9640
        %v9642 = vpop.f32.mrb[0].mxu0
        %v9643 = vpop.f32.mrb[0].mxu0
        %v9644 = vadd.f32 0.0, %v9643
        %v9645 = vpop.f32.mrb[0].mxu0
        %9646 = vdwg.mxu0
        %9647 = vrot.lane.b32.xlu0 %v1292, 40
        %v9648 = vpop.permute.xlu0 %9647
        %v9651 = vsel %vm2095, %v8987, 0
        %9653 = vmatprep.subr.bf16.mxu0 0
        %9654 = vmatpush1.bf16.msra.mxu0 %v9648
        %9655 = vmatprep.subr.bf16.mxu0 0
        %9656 = vmatpush1.bf16.msra.mxu0 0
        %9657 = vmatprep.subr.bf16.mxu0 0
        %9658 = vmatpush1.bf16.msra.mxu0 0
        %9659 = vmatprep.subr.bf16.mxu0 0
        %9660 = vmatpush1.bf16.msra.mxu0 0
        %9661 = vmatprep.subr.bf16.mxu0 0
        %9662 = vmatpush1.bf16.msra.mxu0 0
        %9663 = vmatprep.subr.bf16.mxu0 0
        %9664 = vmatpush1.bf16.msra.mxu0 0
        %9665 = vmatprep.subr.bf16.mxu0 0
        %9666 = vmatpush1.bf16.msra.mxu0 0
        %9667 = vmatprep.subr.bf16.mxu0 0
        %9668 = vmatpush1.bf16.msra.mxu0 0
        %9669 = vmatprep.subr.bf16.mxu0 0
        %9670 = vmatpush1.bf16.msra.mxu0 0
        %9671 = vmatprep.subr.bf16.mxu0 0
        %9672 = vmatpush1.bf16.msra.mxu0 0
        %9673 = vmatprep.subr.bf16.mxu0 0
        %9674 = vmatpush1.bf16.msra.mxu0 0
        %9675 = vmatprep.subr.bf16.mxu0 0
        %9676 = vmatpush1.bf16.msra.mxu0 0
        %9677 = vmatprep.subr.bf16.mxu0 0
        %9678 = vmatpush1.bf16.msra.mxu0 0
        %9679 = vmatprep.subr.bf16.mxu0 0
        %9680 = vmatpush1.bf16.msra.mxu0 0
        %9681 = vmatprep.subr.bf16.mxu0 0
        %9682 = vmatpush1.bf16.msra.mxu0 0
        %9683 = vmatprep.subr.bf16.mxu0 0
        %9684 = vmatpush1.bf16.msra.mxu0 0
        %9685 = vmatprep.mubr.bf16.mxu0 0
        %9686 = vmatmul.mubr.bf16.gmra.mrb[0].mxu0 %v9651
        %v9687 = vpop.f32.mrb[0].mxu0
        %v9688 = vadd.f32 0.0, %v9687
        %v9689 = vpop.f32.mrb[0].mxu0
        %v9690 = vpop.f32.mrb[0].mxu0
        %v9691 = vadd.f32 0.0, %v9690
        %v9692 = vpop.f32.mrb[0].mxu0
        %9693 = vdwg.mxu0
        %9694 = vrot.lane.b32.xlu0 %v1293, 40
        %v9695 = vpop.permute.xlu0 %9694
        %v9698 = vsel %vm2095, %v8988, 0
        %9700 = vmatprep.subr.bf16.mxu0 0
        %9701 = vmatpush1.bf16.msra.mxu0 %v9695
        %9702 = vmatprep.subr.bf16.mxu0 0
        %9703 = vmatpush1.bf16.msra.mxu0 0
        %9704 = vmatprep.subr.bf16.mxu0 0
        %9705 = vmatpush1.bf16.msra.mxu0 0
        %9706 = vmatprep.subr.bf16.mxu0 0
        %9707 = vmatpush1.bf16.msra.mxu0 0
        %9708 = vmatprep.subr.bf16.mxu0 0
        %9709 = vmatpush1.bf16.msra.mxu0 0
        %9710 = vmatprep.subr.bf16.mxu0 0
        %9711 = vmatpush1.bf16.msra.mxu0 0
        %9712 = vmatprep.subr.bf16.mxu0 0
        %9713 = vmatpush1.bf16.msra.mxu0 0
        %9714 = vmatprep.subr.bf16.mxu0 0
        %9715 = vmatpush1.bf16.msra.mxu0 0
        %9716 = vmatprep.subr.bf16.mxu0 0
        %9717 = vmatpush1.bf16.msra.mxu0 0
        %9718 = vmatprep.subr.bf16.mxu0 0
        %9719 = vmatpush1.bf16.msra.mxu0 0
        %9720 = vmatprep.subr.bf16.mxu0 0
        %9721 = vmatpush1.bf16.msra.mxu0 0
        %9722 = vmatprep.subr.bf16.mxu0 0
        %9723 = vmatpush1.bf16.msra.mxu0 0
        %9724 = vmatprep.subr.bf16.mxu0 0
        %9725 = vmatpush1.bf16.msra.mxu0 0
        %9726 = vmatprep.subr.bf16.mxu0 0
        %9727 = vmatpush1.bf16.msra.mxu0 0
        %9728 = vmatprep.subr.bf16.mxu0 0
        %9729 = vmatpush1.bf16.msra.mxu0 0
        %9730 = vmatprep.subr.bf16.mxu0 0
        %9731 = vmatpush1.bf16.msra.mxu0 0
        %9732 = vmatprep.mubr.bf16.mxu0 0
        %9733 = vmatmul.mubr.bf16.gmra.mrb[0].mxu0 %v9698
        %v9734 = vpop.f32.mrb[0].mxu0
        %v9735 = vadd.f32 0.0, %v9734
        %v9736 = vpop.f32.mrb[0].mxu0
        %v9737 = vpop.f32.mrb[0].mxu0
        %v9738 = vadd.f32 0.0, %v9737
        %v9739 = vpop.f32.mrb[0].mxu0
        %9740 = vdwg.mxu0
        %v9741 = vpack.c.bf16 %v9033, %v9030
        %v9742 = vpack.c.bf16 %v9080, %v9077
        %v9743 = vpack.c.bf16 %v9127, %v9124
        %v9744 = vpack.c.bf16 %v9174, %v9171
        %v9745 = vpack.c.bf16 %v9221, %v9218
        %v9746 = vpack.c.bf16 %v9268, %v9265
        %v9747 = vpack.c.bf16 %v9315, %v9312
        %v9748 = vpack.c.bf16 %v9362, %v9359
        %v9749 = vpack.c.bf16 %v9409, %v9406
        %v9750 = vpack.c.bf16 %v9456, %v9453
        %v9751 = vpack.c.bf16 %v9503, %v9500
        %v9752 = vpack.c.bf16 %v9550, %v9547
        %v9753 = vpack.c.bf16 %v9597, %v9594
        %v9754 = vpack.c.bf16 %v9644, %v9641
        %v9755 = vpack.c.bf16 %v9691, %v9688
        %v9756 = vpack.c.bf16 %v9738, %v9735
        %v9758 = vsel %vm1297, %v9741, 0
        %v9761 = vsel %vm1297, %v9742, 0
        %v9764 = vsel %vm1297, %v9743, 0
        %v9767 = vsel %vm1297, %v9744, 0
        %v9770 = vsel %vm1297, %v9745, 0
        %v9773 = vsel %vm1297, %v9746, 0
        %v9776 = vsel %vm1297, %v9747, 0
        %v9779 = vsel %vm1297, %v9748, 0
        %v9782 = vsel %vm1297, %v9749, 0
        %v9785 = vsel %vm1297, %v9750, 0
        %v9788 = vsel %vm1297, %v9751, 0
        %v9791 = vsel %vm1297, %v9752, 0
        %v9794 = vsel %vm1297, %v9753, 0
        %v9797 = vsel %vm1297, %v9754, 0
        %v9800 = vsel %vm1297, %v9755, 0
        %v9803 = vsel %vm1297, %v9756, 0
        %v9806 = vsel %vm5232, %v1149, 0
        %9808 = vmatprep.subr.bf16.mxu0 0
        %9809 = vmatpush1.bf16.msra.mxu0 %v9806
        %9810 = vmatprep.subr.bf16.mxu0 0
        %9811 = vmatpush1.bf16.msra.mxu0 0
        %9812 = vmatprep.subr.bf16.mxu0 0
        %9813 = vmatpush1.bf16.msra.mxu0 0
        %9814 = vmatprep.subr.bf16.mxu0 0
        %9815 = vmatpush1.bf16.msra.mxu0 0
        %9816 = vmatprep.subr.bf16.mxu0 0
        %9817 = vmatpush1.bf16.msra.mxu0 0
        %9818 = vmatprep.subr.bf16.mxu0 0
        %9819 = vmatpush1.bf16.msra.mxu0 0
        %9820 = vmatprep.subr.bf16.mxu0 0
        %9821 = vmatpush1.bf16.msra.mxu0 0
        %9822 = vmatprep.subr.bf16.mxu0 0
        %9823 = vmatpush1.bf16.msra.mxu0 0
        %9824 = vmatprep.subr.bf16.mxu0 0
        %9825 = vmatpush1.bf16.msra.mxu0 0
        %9826 = vmatprep.subr.bf16.mxu0 0
        %9827 = vmatpush1.bf16.msra.mxu0 0
        %9828 = vmatprep.subr.bf16.mxu0 0
        %9829 = vmatpush1.bf16.msra.mxu0 0
        %9830 = vmatprep.subr.bf16.mxu0 0
        %9831 = vmatpush1.bf16.msra.mxu0 0
        %9832 = vmatprep.subr.bf16.mxu0 0
        %9833 = vmatpush1.bf16.msra.mxu0 0
        %9834 = vmatprep.subr.bf16.mxu0 0
        %9835 = vmatpush1.bf16.msra.mxu0 0
        %9836 = vmatprep.subr.bf16.mxu0 0
        %9837 = vmatpush1.bf16.msra.mxu0 0
        %9838 = vmatprep.subr.bf16.mxu0 0
        %9839 = vmatpush1.bf16.msra.mxu0 0
        %9840 = vmatprep.mubr.bf16.mxu0 0
        %9841 = vmatmul.mubr.bf16.gmra.mrb[0].mxu0 %v9758
        %v9842 = vpop.f32.mrb[0].mxu0
        %v9843 = vadd.f32 0.0, %v9842
        %v9844 = vpop.f32.mrb[0].mxu0
        %v9845 = vpop.f32.mrb[0].mxu0
        %v9846 = vadd.f32 0.0, %v9845
        %v9847 = vpop.f32.mrb[0].mxu0
        %9848 = vmatprep.mubr.bf16.mxu0 0
        %9849 = vmatmul.mubr.bf16.gmra.mrb[0].mxu0 %v9761
        %v9850 = vpop.f32.mrb[0].mxu0
        %v9851 = vadd.f32 0.0, %v9850
        %v9852 = vpop.f32.mrb[0].mxu0
        %v9853 = vpop.f32.mrb[0].mxu0
        %v9854 = vadd.f32 0.0, %v9853
        %v9855 = vpop.f32.mrb[0].mxu0
        %9856 = vmatprep.mubr.bf16.mxu0 0
        %9857 = vmatmul.mubr.bf16.gmra.mrb[0].mxu0 %v9764
        %v9858 = vpop.f32.mrb[0].mxu0
        %v9859 = vadd.f32 0.0, %v9858
        %v9860 = vpop.f32.mrb[0].mxu0
        %v9861 = vpop.f32.mrb[0].mxu0
        %v9862 = vadd.f32 0.0, %v9861
        %v9863 = vpop.f32.mrb[0].mxu0
        %9864 = vmatprep.mubr.bf16.mxu0 0
        %9865 = vmatmul.mubr.bf16.gmra.mrb[0].mxu0 %v9767
        %v9866 = vpop.f32.mrb[0].mxu0
        %v9867 = vadd.f32 0.0, %v9866
        %v9868 = vpop.f32.mrb[0].mxu0
        %v9869 = vpop.f32.mrb[0].mxu0
        %v9870 = vadd.f32 0.0, %v9869
        %v9871 = vpop.f32.mrb[0].mxu0
        %9872 = vmatprep.mubr.bf16.mxu0 0
        %9873 = vmatmul.mubr.bf16.gmra.mrb[0].mxu0 %v9770
        %v9874 = vpop.f32.mrb[0].mxu0
        %v9875 = vadd.f32 0.0, %v9874
        %v9876 = vpop.f32.mrb[0].mxu0
        %v9877 = vpop.f32.mrb[0].mxu0
        %v9878 = vadd.f32 0.0, %v9877
        %v9879 = vpop.f32.mrb[0].mxu0
        %9880 = vmatprep.mubr.bf16.mxu0 0
        %9881 = vmatmul.mubr.bf16.gmra.mrb[0].mxu0 %v9773
        %v9882 = vpop.f32.mrb[0].mxu0
        %v9883 = vadd.f32 0.0, %v9882
        %v9884 = vpop.f32.mrb[0].mxu0
        %v9885 = vpop.f32.mrb[0].mxu0
        %v9886 = vadd.f32 0.0, %v9885
        %v9887 = vpop.f32.mrb[0].mxu0
        %9888 = vmatprep.mubr.bf16.mxu0 0
        %9889 = vmatmul.mubr.bf16.gmra.mrb[0].mxu0 %v9776
        %v9890 = vpop.f32.mrb[0].mxu0
        %v9891 = vadd.f32 0.0, %v9890
        %v9892 = vpop.f32.mrb[0].mxu0
        %v9893 = vpop.f32.mrb[0].mxu0
        %v9894 = vadd.f32 0.0, %v9893
        %v9895 = vpop.f32.mrb[0].mxu0
        %9896 = vmatprep.mubr.bf16.mxu0 0
        %9897 = vmatmul.mubr.bf16.gmra.mrb[0].mxu0 %v9779
        %v9898 = vpop.f32.mrb[0].mxu0
        %v9899 = vadd.f32 0.0, %v9898
        %v9900 = vpop.f32.mrb[0].mxu0
        %v9901 = vpop.f32.mrb[0].mxu0
        %v9902 = vadd.f32 0.0, %v9901
        %v9903 = vpop.f32.mrb[0].mxu0
        %9904 = vmatprep.mubr.bf16.mxu0 0
        %9905 = vmatmul.mubr.bf16.gmra.mrb[0].mxu0 %v9782
        %v9906 = vpop.f32.mrb[0].mxu0
        %v9907 = vadd.f32 0.0, %v9906
        %v9908 = vpop.f32.mrb[0].mxu0
        %v9909 = vpop.f32.mrb[0].mxu0
        %v9910 = vadd.f32 0.0, %v9909
        %v9911 = vpop.f32.mrb[0].mxu0
        %9912 = vmatprep.mubr.bf16.mxu0 0
        %9913 = vmatmul.mubr.bf16.gmra.mrb[0].mxu0 %v9785
        %v9914 = vpop.f32.mrb[0].mxu0
        %v9915 = vadd.f32 0.0, %v9914
        %v9916 = vpop.f32.mrb[0].mxu0
        %v9917 = vpop.f32.mrb[0].mxu0
        %v9918 = vadd.f32 0.0, %v9917
        %v9919 = vpop.f32.mrb[0].mxu0
        %9920 = vmatprep.mubr.bf16.mxu0 0
        %9921 = vmatmul.mubr.bf16.gmra.mrb[0].mxu0 %v9788
        %v9922 = vpop.f32.mrb[0].mxu0
        %v9923 = vadd.f32 0.0, %v9922
        %v9924 = vpop.f32.mrb[0].mxu0
        %v9925 = vpop.f32.mrb[0].mxu0
        %v9926 = vadd.f32 0.0, %v9925
        %v9927 = vpop.f32.mrb[0].mxu0
        %9928 = vmatprep.mubr.bf16.mxu0 0
        %9929 = vmatmul.mubr.bf16.gmra.mrb[0].mxu0 %v9791
        %v9930 = vpop.f32.mrb[0].mxu0
        %v9931 = vadd.f32 0.0, %v9930
        %v9932 = vpop.f32.mrb[0].mxu0
        %v9933 = vpop.f32.mrb[0].mxu0
        %v9934 = vadd.f32 0.0, %v9933
        %v9935 = vpop.f32.mrb[0].mxu0
        %9936 = vmatprep.mubr.bf16.mxu0 0
        %9937 = vmatmul.mubr.bf16.gmra.mrb[0].mxu0 %v9794
        %v9938 = vpop.f32.mrb[0].mxu0
        %v9939 = vadd.f32 0.0, %v9938
        %v9940 = vpop.f32.mrb[0].mxu0
        %v9941 = vpop.f32.mrb[0].mxu0
        %v9942 = vadd.f32 0.0, %v9941
        %v9943 = vpop.f32.mrb[0].mxu0
        %9944 = vmatprep.mubr.bf16.mxu0 0
        %9945 = vmatmul.mubr.bf16.gmra.mrb[0].mxu0 %v9797
        %v9946 = vpop.f32.mrb[0].mxu0
        %v9947 = vadd.f32 0.0, %v9946
        %v9948 = vpop.f32.mrb[0].mxu0
        %v9949 = vpop.f32.mrb[0].mxu0
        %v9950 = vadd.f32 0.0, %v9949
        %v9951 = vpop.f32.mrb[0].mxu0
        %9952 = vmatprep.mubr.bf16.mxu0 0
        %9953 = vmatmul.mubr.bf16.gmra.mrb[0].mxu0 %v9800
        %v9954 = vpop.f32.mrb[0].mxu0
        %v9955 = vadd.f32 0.0, %v9954
        %v9956 = vpop.f32.mrb[0].mxu0
        %v9957 = vpop.f32.mrb[0].mxu0
        %v9958 = vadd.f32 0.0, %v9957
        %v9959 = vpop.f32.mrb[0].mxu0
        %9960 = vmatprep.mubr.bf16.mxu0 0
        %9961 = vmatmul.mubr.bf16.gmra.mrb[0].mxu0 %v9803
        %v9962 = vpop.f32.mrb[0].mxu0
        %v9963 = vadd.f32 0.0, %v9962
        %v9964 = vpop.f32.mrb[0].mxu0
        %v9965 = vpop.f32.mrb[0].mxu0
        %v9966 = vadd.f32 0.0, %v9965
        %v9967 = vpop.f32.mrb[0].mxu0
        %9968 = vdwg.mxu0
        %v9969 = vadd.f32 %v7773, %v9843
        %v9970 = vadd.f32 %v7774, %v9846
        %v9971 = vadd.f32 %v7775, %v9851
        %v9972 = vadd.f32 %v7776, %v9854
        %v9973 = vadd.f32 %v7777, %v9859
        %v9974 = vadd.f32 %v7778, %v9862
        %v9975 = vadd.f32 %v7779, %v9867
        %v9976 = vadd.f32 %v7780, %v9870
        %v9977 = vadd.f32 %v7781, %v9875
        %v9978 = vadd.f32 %v7782, %v9878
        %v9979 = vadd.f32 %v7783, %v9883
        %v9980 = vadd.f32 %v7784, %v9886
        %v9981 = vadd.f32 %v7785, %v9891
        %v9982 = vadd.f32 %v7786, %v9894
        %v9983 = vadd.f32 %v7787, %v9899
        %v9984 = vadd.f32 %v7788, %v9902
        %v9985 = vadd.f32 %v7789, %v9907
        %v9986 = vadd.f32 %v7790, %v9910
        %v9987 = vadd.f32 %v7791, %v9915
        %v9988 = vadd.f32 %v7792, %v9918
        %v9989 = vadd.f32 %v7793, %v9923
        %v9990 = vadd.f32 %v7794, %v9926
        %v9991 = vadd.f32 %v7795, %v9931
        %v9992 = vadd.f32 %v7796, %v9934
        %v9993 = vadd.f32 %v7797, %v9939
        %v9994 = vadd.f32 %v7798, %v9942
        %v9995 = vadd.f32 %v7799, %v9947
        %v9996 = vadd.f32 %v7800, %v9950
        %v9997 = vadd.f32 %v7801, %v9955
        %v9998 = vadd.f32 %v7802, %v9958
        %v9999 = vadd.f32 %v7803, %v9963
        %v10000 = vadd.f32 %v7804, %v9966
        %v10001 = vld [vmem:[%s6] sm:$0x1]
        %v10003 = vlaneseq
        %v10004 = vshrl.u32 %v10003, 7
        %v10005 = vsub.s32 0, %v10004
        %v10006 = vrot.slane %v10001, %v10005
        %v10008 = vadd.f32 %v9969, %v10006
        %v10009 = vadd.f32 %v9970, %v10006
        %v10010 = vadd.f32 %v9971, %v10006
        %v10011 = vadd.f32 %v9972, %v10006
        %v10012 = vadd.f32 %v9973, %v10006
        %v10013 = vadd.f32 %v9974, %v10006
        %v10014 = vadd.f32 %v9975, %v10006
        %v10015 = vadd.f32 %v9976, %v10006
        %v10016 = vadd.f32 %v9977, %v10006
        %v10017 = vadd.f32 %v9978, %v10006
        %v10018 = vadd.f32 %v9979, %v10006
        %v10019 = vadd.f32 %v9980, %v10006
        %v10020 = vadd.f32 %v9981, %v10006
        %v10021 = vadd.f32 %v9982, %v10006
        %v10022 = vadd.f32 %v9983, %v10006
        %v10023 = vadd.f32 %v9984, %v10006
        %v10024 = vadd.f32 %v9985, %v10006
        %v10025 = vadd.f32 %v9986, %v10006
        %v10026 = vadd.f32 %v9987, %v10006
        %v10027 = vadd.f32 %v9988, %v10006
        %v10028 = vadd.f32 %v9989, %v10006
        %v10029 = vadd.f32 %v9990, %v10006
        %v10030 = vadd.f32 %v9991, %v10006
        %v10031 = vadd.f32 %v9992, %v10006
        %v10032 = vadd.f32 %v9993, %v10006
        %v10033 = vadd.f32 %v9994, %v10006
        %v10034 = vadd.f32 %v9995, %v10006
        %v10035 = vadd.f32 %v9996, %v10006
        %v10036 = vadd.f32 %v9997, %v10006
        %v10037 = vadd.f32 %v9998, %v10006
        %v10038 = vadd.f32 %v9999, %v10006
        %v10039 = vadd.f32 %v10000, %v10006
        %10040 = vst.msk [vmem:[%s366] sm:$0xff] %vm404, %v10008
        %10041 = vst.msk [vmem:[%s366 + $0x8] sm:$0xff] %vm404, %v10009
        %10042 = vst.msk [vmem:[%s366 + $0x10] sm:$0xff] %vm404, %v10010
        %10043 = vst.msk [vmem:[%s366 + $0x18] sm:$0xff] %vm404, %v10011
        %10044 = vst.msk [vmem:[%s366 + $0x20] sm:$0xff] %vm404, %v10012
        %10045 = vst.msk [vmem:[%s366 + $0x28] sm:$0xff] %vm404, %v10013
        %10046 = vst.msk [vmem:[%s366 + $0x30] sm:$0xff] %vm404, %v10014
        %10047 = vst.msk [vmem:[%s366 + $0x38] sm:$0xff] %vm404, %v10015
        %10048 = vst.msk [vmem:[%s366 + $0x40] sm:$0xff] %vm404, %v10016
        %10049 = vst.msk [vmem:[%s366 + $0x48] sm:$0xff] %vm404, %v10017
        %10050 = vst.msk [vmem:[%s366 + $0x50] sm:$0xff] %vm404, %v10018
        %10051 = vst.msk [vmem:[%s366 + $0x58] sm:$0xff] %vm404, %v10019
        %10052 = vst.msk [vmem:[%s366 + $0x60] sm:$0xff] %vm404, %v10020
        %10053 = vst.msk [vmem:[%s366 + $0x68] sm:$0xff] %vm404, %v10021
        %10054 = vst.msk [vmem:[%s366 + $0x70] sm:$0xff] %vm404, %v10022
        %10055 = vst.msk [vmem:[%s366 + $0x78] sm:$0xff] %vm404, %v10023
        %10056 = vst.msk [vmem:[%s366 + $0x80] sm:$0xff] %vm404, %v10024
        %10057 = vst.msk [vmem:[%s366 + $0x88] sm:$0xff] %vm404, %v10025
        %10058 = vst.msk [vmem:[%s366 + $0x90] sm:$0xff] %vm404, %v10026
        %10059 = vst.msk [vmem:[%s366 + $0x98] sm:$0xff] %vm404, %v10027
        %10060 = vst.msk [vmem:[%s366 + $0xa0] sm:$0xff] %vm404, %v10028
        %10061 = vst.msk [vmem:[%s366 + $0xa8] sm:$0xff] %vm404, %v10029
        %10062 = vst.msk [vmem:[%s366 + $0xb0] sm:$0xff] %vm404, %v10030
        %10063 = vst.msk [vmem:[%s366 + $0xb8] sm:$0xff] %vm404, %v10031
        %10064 = vst.msk [vmem:[%s366 + $0xc0] sm:$0xff] %vm404, %v10032
        %10065 = vst.msk [vmem:[%s366 + $0xc8] sm:$0xff] %vm404, %v10033
        %10066 = vst.msk [vmem:[%s366 + $0xd0] sm:$0xff] %vm404, %v10034
        %10067 = vst.msk [vmem:[%s366 + $0xd8] sm:$0xff] %vm404, %v10035
        %10068 = vst.msk [vmem:[%s366 + $0xe0] sm:$0xff] %vm404, %v10036
        %10069 = vst.msk [vmem:[%s366 + $0xe8] sm:$0xff] %vm404, %v10037
        %10070 = vst.msk [vmem:[%s366 + $0xf0] sm:$0xff] %vm404, %v10038
        %10071 = vst.msk [vmem:[%s366 + $0xf8] sm:$0xff] %vm404, %v10039
        %s10072 = sand.u32 %s208, 1
        %s10073 = scalar_lea.sflag [#allocation4], %s10072
        %s10074 = sand.u32 %s208, 1
        %s10075 = smul.addr %s10074, 256
        %s10076 = scalar_lea.vmem [#allocation10], %s10075
        // Predicated region
        $region69: #{tpu_custom_call.1} parent=51 // pred_check
          %p10077 = pneg %p218
        $region70: #{tpu_custom_call.1} parent=51 // pred_check_branch
          %10079 = sbr.rel (%p10077) target = $region72
        $region71: #{tpu_custom_call.1} parent=51 // pred_region
          %s10080 = smul.u32 16, %s27
          %s10082 = ssub.s32 4096, 4096
          %10083 = vsyncadd %s10073, %s10082
          %s10084 = smul.addr %s10080, 2
          %s10085 = smul.addr %s10084, 128
          %s10086 = scalar_lea.hbm %s8, %s10085
          %s10087 = sshll.u32 %s10076, 4
          %s10088 = int_to_ptr.vmem [resolvable:$true] %s10087
          %10093 = dma.vmem_to_hbm [thread:$0]  %s10088, 4096, %s10086, %s10073, 128, 128, 8
        $region72: #{tpu_custom_call.1} parent=51 // pred_fallthru
          _
      $region52: #{tpu_custom_call.1} parent=5 // pred_fallthru
        _
      %p10094 = scmp.le.s32.totalorder 2, %s22
      // Predicated region
      $region73: #{tpu_custom_call.1} parent=5 // pred_check
        %p10095 = pneg %p10094
      $region74: #{tpu_custom_call.1} parent=5 // pred_check_branch
        %10097 = sbr.rel (%p10095) target = $region76
      $region75: #{tpu_custom_call.1} parent=5 // pred_region
        %s10098 = ssub.s32 %s22, 2
        // Predicated region
        $region77: #{tpu_custom_call.1} parent=75 // pred_check
          %p10099 = pneg %p224
        $region78: #{tpu_custom_call.1} parent=75 // pred_check_branch
          %10101 = sbr.rel (%p10099) target = $region80
        $region79: #{tpu_custom_call.1} parent=75 // pred_region
          %s10102 = sand.u32 %s209, 1
          %s10103 = scalar_lea.sflag [#allocation4], %s10102
          %s10104 = sand.u32 %s209, 1
          %s10105 = smul.addr %s10104, 256
          %s10106 = scalar_lea.vmem [#allocation10], %s10105
          %10107 = dma.done %s10103, 4096
        $region80: #{tpu_custom_call.1} parent=75 // pred_fallthru
          _
      $region76: #{tpu_custom_call.1} parent=5 // pred_fallthru
        _
    $region6: #{tpu_custom_call.1} parent=1 // loop_footer
      %s26 = sadd.s32 1, %s22
    $region7: #{tpu_custom_call.1} parent=1 // loop_footer_branch
      %21 = sbr.rel target = $region3
    $region8: #{tpu_custom_call.1} parent=1 // loop_exit
      _
    %10108 = vsyncpa [#allocation3], 1
    %s10109 = scalar_lea.sflag [#allocation3], 1
    %10110 = vsyncpa %s10109, 1
    %10111 = vsyncpa [#allocation6], 1
    %10112 = vsyncpa [#allocation9], 1
    %10113 = vsyncpa [#allocation4], 1
    %s10114 = scalar_lea.sflag [#allocation4], 1
    %10115 = vsyncpa %s10114, 1

</llo_original>
